<compile_context>
chip_gen: v7x
topology: tpu7x:2x2x1
jax: 0.10.0
libtpu: 0.0.40
codegen_flags: <defaults>
</compile_context>

<pallas_src>
import functools

import jax
import jax.numpy as jnp
from jax.experimental import pallas as pl
from jax.experimental.pallas import tpu as pltpu

ARC = (64, 128, 128)
LATENT = 10
H_FLAT = 128          # flat_dim = (128, 1, 1) for a 1x28x28 input
BN_EPS = 1e-5

MAX_TM = 512          # max rows per matmul M-block (A tile <= ~1.6 MiB bf16)
MIN_SPLIT = 256       # split M into >=2 "parallel" blocks when M >= 2*MIN_SPLIT


def _round_up(x, m):
    return (x + m - 1) // m * m


def _choose_tiling(M):
    """Pick (num_blocks, tm): tm % 16 == 0 (bf16 sublane pack), prefer zero row
    padding, and >=2 parallel blocks when there is enough work (v7x 2 TCs)."""
    nb_min = max(1, -(-M // MAX_TM))
    if M >= 2 * MIN_SPLIT:
        nb_min = max(nb_min, 2)
    best = None
    for nb in range(nb_min, nb_min + 8):
        tm = _round_up(-(-M // nb), 16)
        pad = nb * tm - M
        if pad == 0:
            return nb, tm
        if best is None or pad < best[2]:
            best = (nb, tm, pad)
    return best[0], best[1]


# ----------------------------- Pallas kernels --------------------------------

def _matmul_stats_kernel(a_ref, b_ref, o_ref, stat_ref):
    """bf16 matmul (f32 acc) + fused per-M-block BN [sum; sumsq] epilogue.
    Zero-padded A rows contribute zero output rows -> do not perturb stats."""
    acc = jnp.dot(a_ref[...], b_ref[...], preferred_element_type=jnp.float32)
    o_ref[...] = acc.astype(o_ref.dtype)
    s = jnp.sum(acc, axis=0, keepdims=True)          # (1, Np)
    ss = jnp.sum(acc * acc, axis=0, keepdims=True)   # (1, Np)
    stat_ref[...] = jnp.concatenate([s, ss], axis=0)[None]   # (1, 2, Np)


def _matmul_bias_kernel(a_ref, b_ref, bias_ref, o_ref, *, n_out):
    acc = jnp.dot(a_ref[...], b_ref[...], preferred_element_type=jnp.float32)
    acc = acc + bias_ref[...]
    o_ref[...] = acc[:, :n_out]                      # write only real columns


def _bn_relu_kernel(x_ref, stat_ref, gamma_ref, beta_ref, o_ref, *,
                    inv_count, eps, c_out, relu):
    """Training-mode BN (+ReLU): fold stats->scale/shift in-kernel, f32 math,
    bf16 store sliced to the real channel count."""
    mean = stat_ref[0:1, :] * inv_count
    var = stat_ref[1:2, :] * inv_count - mean * mean   # biased variance
    scale = gamma_ref[...] * jax.lax.rsqrt(var + eps)  # rsqrt -> EUP slot
    shift = beta_ref[...] - mean * scale
    y = x_ref[...].astype(jnp.float32) * scale + shift
    if relu:
        y = jnp.maximum(y, 0.0)
    o_ref[...] = y[:, :c_out].astype(o_ref.dtype)


# ----------------------------- Pallas wrappers -------------------------------

def _pad_rows_cols(a, mp, kp):
    m, k = a.shape
    if mp != m or kp != k:
        a = jnp.pad(a, ((0, mp - m), (0, kp - k)))
    return a


def matmul_stats(a, b_p):
    """a: (M, K); b_p: (Kp, Np) bf16 weight (pre-padded, pre-transposed).
    Returns (y bf16 (Mp, Np), stats f32 (2, Np), (M, Mp, tm))."""
    M, K = a.shape
    Kp, Np = b_p.shape
    nb, tm = _choose_tiling(M)
    Mp = nb * tm
    a = _pad_rows_cols(a.astype(jnp.bfloat16), Mp, Kp)

    cost = pl.CostEstimate(
        flops=2 * Mp * Kp * Np + 3 * Mp * Np, transcendentals=0,
        bytes_accessed=Mp * Kp * 2 + Kp * Np * 2 + Mp * Np * 2 + nb * 2 * Np * 4)

    y, stats = pl.pallas_call(
        _matmul_stats_kernel,
        out_shape=(jax.ShapeDtypeStruct((Mp, Np), jnp.bfloat16),
                   jax.ShapeDtypeStruct((nb, 2, Np), jnp.float32)),
        grid_spec=pltpu.PrefetchScalarGridSpec(
            num_scalar_prefetch=0,
            grid=(nb,),
            in_specs=[pl.BlockSpec((tm, Kp), lambda i: (i, 0)),
                      pl.BlockSpec((Kp, Np), lambda i: (0, 0))],
            out_specs=(pl.BlockSpec((tm, Np), lambda i: (i, 0)),
                       pl.BlockSpec((1, 2, Np), lambda i: (i, 0, 0))),
        ),
        compiler_params=pltpu.CompilerParams(
            dimension_semantics=("parallel",)),
        cost_estimate=cost,
    )(a, b_p)
    return y, jnp.sum(stats, axis=0), (M, Mp, tm)


def matmul_bias(a, b_p, bias_p, n_out):
    """Matmul + bias, f32 output sliced in-kernel to n_out columns."""
    M, K = a.shape
    Kp, Np = b_p.shape
    nb, tm = _choose_tiling(M)
    Mp = nb * tm
    a = _pad_rows_cols(a.astype(jnp.bfloat16), Mp, Kp)

    cost = pl.CostEstimate(
        flops=2 * Mp * Kp * Np, transcendentals=0,
        bytes_accessed=Mp * Kp * 2 + Kp * Np * 2 + Mp * n_out * 4)

    out = pl.pallas_call(
        functools.partial(_matmul_bias_kernel, n_out=n_out),
        out_shape=jax.ShapeDtypeStruct((Mp, n_out), jnp.float32),
        grid_spec=pltpu.PrefetchScalarGridSpec(
            num_scalar_prefetch=0,
            grid=(nb,),
            in_specs=[pl.BlockSpec((tm, Kp), lambda i: (i, 0)),
                      pl.BlockSpec((Kp, Np), lambda i: (0, 0)),
                      pl.BlockSpec((1, Np), lambda i: (0, 0))],
            out_specs=pl.BlockSpec((tm, n_out), lambda i: (i, 0)),
        ),
        compiler_params=pltpu.CompilerParams(
            dimension_semantics=("parallel",)),
        cost_estimate=cost,
    )(a, b_p, bias_p)
    return out[:M] if Mp != M else out


def bn_relu_apply(y, stats, gamma_p, beta_p, c_out, count, tm,
                  relu=True, eps=BN_EPS):
    """y: (Mp, Np) bf16 pre-BN activation (extra padded rows are sliced by the
    caller); stats: (2, Np) f32 [sum; sumsq] over `count` real rows."""
    Mp, Np = y.shape
    nb = Mp // tm
    kern = functools.partial(_bn_relu_kernel, inv_count=1.0 / count,
                             eps=eps, c_out=c_out, relu=relu)
    cost = pl.CostEstimate(
        flops=4 * Mp * Np, transcendentals=Np,
        bytes_accessed=Mp * Np * 2 + Mp * c_out * 2 + 4 * Np * 4)

    return pl.pallas_call(
        kern,
        out_shape=jax.ShapeDtypeStruct((Mp, c_out), jnp.bfloat16),
        grid_spec=pltpu.PrefetchScalarGridSpec(
            num_scalar_prefetch=0,
            grid=(nb,),
            in_specs=[pl.BlockSpec((tm, Np), lambda i: (i, 0)),
                      pl.BlockSpec((2, Np), lambda i: (0, 0)),
                      pl.BlockSpec((1, Np), lambda i: (0, 0)),
                      pl.BlockSpec((1, Np), lambda i: (0, 0))],
            out_specs=pl.BlockSpec((tm, c_out), lambda i: (i, 0)),
        ),
        compiler_params=pltpu.CompilerParams(
            dimension_semantics=("parallel",)),
        cost_estimate=cost,
    )(y, stats, gamma_p, beta_p)


# ------------------------ conv / pool glue (JAX) -----------------------------

def im2col(x_nhwc, kh, kw):
    # TODO(synk): implicit-GEMM (fold kh*kw into the matmul grid) to avoid the
    # 9x-25x blown-up patch matrix materialized in HBM.
    N, H, W, C = x_nhwc.shape
    Ho, Wo = H - kh + 1, W - kw + 1
    pats = [x_nhwc[:, i:i + Ho, j:j + Wo, :]
            for i in range(kh) for j in range(kw)]
    p = jnp.stack(pats, axis=3)                      # (N,Ho,Wo,kh*kw,C)
    return p.reshape(N * Ho * Wo, kh * kw * C), (N, Ho, Wo)


def conv_bn_relu(x_nhwc, w_mat, kh, kw, cout, gamma_p, beta_p):
    """Valid conv (stride 1, bias folded into BN) + training BN + ReLU."""
    pat, (N, Ho, Wo) = im2col(x_nhwc.astype(jnp.bfloat16), kh, kw)
    y, stats, (M, Mp, tm) = matmul_stats(pat, w_mat)
    h = bn_relu_apply(y, stats, gamma_p, beta_p, cout, M, tm)
    if Mp != M:
        h = h[:M]
    return h.reshape(N, Ho, Wo, cout)


def deconv_bn_relu(x_nhwc, w_mat, kh, kw, cout, gamma_p, beta_p):
    """ConvTranspose2d(stride=1, pad=0) == full-pad conv with flipped kernel
    (flip/transpose already baked into w_mat), then BN + ReLU."""
    xpad = jnp.pad(x_nhwc, ((0, 0), (kh - 1, kh - 1), (kw - 1, kw - 1), (0, 0)))
    return conv_bn_relu(xpad, w_mat, kh, kw, cout, gamma_p, beta_p)


def conv_transpose_bias(x_nhwc, w_mat, kh, kw, cout, bias_p):
    """Final ConvTranspose2d with bias, f32 output (no BN)."""
    xpad = jnp.pad(x_nhwc, ((0, 0), (kh - 1, kh - 1), (kw - 1, kw - 1), (0, 0)))
    pat, (N, Ho, Wo) = im2col(xpad.astype(jnp.bfloat16), kh, kw)
    y = matmul_bias(pat, w_mat, bias_p, cout)
    return y.reshape(N, Ho, Wo, cout)


def fc_bn_relu(x, w_mat, gamma_p, beta_p, c_out):
    y, stats, (M, Mp, tm) = matmul_stats(x, w_mat)
    h = bn_relu_apply(y, stats, gamma_p, beta_p, c_out, M, tm)
    return h[:M] if Mp != M else h


def maxpool2x2(x_nhwc):
    """MaxPool2d(2) with argmax tracking (window-local indices, used only to
    drive the matching unpool).
    TODO(synk): fuse into _bn_relu_kernel (W-pair compare via pltpu.roll)."""
    N, H, W, C = x_nhwc.shape
    Ho, Wo = H // 2, W // 2
    xc = x_nhwc[:, :Ho * 2, :Wo * 2, :].reshape(N, Ho, 2, Wo, 2, C)
    cand = jnp.transpose(xc, (0, 1, 3, 2, 4, 5)).reshape(N, Ho, Wo, 4, C)
    idx = jnp.argmax(cand, axis=3)
    pooled = jnp.max(cand, axis=3)
    return pooled, idx


def maxunpool2x2(pooled, idx, out_h, out_w):
    """MaxUnpool2d(2): scatter values back to argmax positions, zero-pad.
    TODO(synk): fold into the padded-input assembly of the following deconv."""
    N, Ho, Wo, C = pooled.shape
    onehot = (jnp.arange(4).reshape(1, 1, 1, 4, 1) == idx[:, :, :, None, :])
    scat = jnp.where(onehot, pooled[:, :, :, None, :], 0.0)
    scat = scat.reshape(N, Ho, Wo, 2, 2, C)
    scat = jnp.transpose(scat, (0, 1, 3, 2, 4, 5)).reshape(N, Ho * 2, Wo * 2, C)
    return jnp.pad(scat,
                   ((0, 0), (0, out_h - Ho * 2), (0, out_w - Wo * 2), (0, 0)))


# ------------------------------ parameters -----------------------------------

def init_params(key):
    """PyTorch-layout parameters (same set as the torch module)."""
    ks = jax.random.split(key, 8)
    s = 0.05
    p = {}
    p['conv1_w'] = s * jax.random.normal(ks[0], (ARC[0], 1, 5, 5), jnp.float32)
    p['conv1_b'] = jnp.zeros((ARC[0],), jnp.float32)
    p['conv2_w'] = s * jax.random.normal(ks[1], (ARC[1], ARC[0], 3, 3), jnp.float32)
    p['conv2_b'] = jnp.zeros((ARC[1],), jnp.float32)
    p['conv3_w'] = s * jax.random.normal(ks[2], (ARC[2], ARC[1], 3, 3), jnp.float32)
    p['conv3_b'] = jnp.zeros((ARC[2],), jnp.float32)
    p['fc1_w'] = s * jax.random.normal(ks[3], (2 * LATENT, H_FLAT), jnp.float32)
    p['fc1_b'] = jnp.zeros((2 * LATENT,), jnp.float32)
    p['fc2_w'] = s * jax.random.normal(ks[4], (H_FLAT, LATENT), jnp.float32)
    p['fc2_b'] = jnp.zeros((H_FLAT,), jnp.float32)
    p['dconv1_w'] = s * jax.random.normal(ks[5], (ARC[2], ARC[1], 3, 3), jnp.float32)
    p['dconv1_b'] = jnp.zeros((ARC[1],), jnp.float32)
    p['dconv2_w'] = s * jax.random.normal(ks[6], (ARC[1], ARC[0], 3, 3), jnp.float32)
    p['dconv2_b'] = jnp.zeros((ARC[0],), jnp.float32)
    p['dconv3_w'] = s * jax.random.normal(ks[7], (ARC[0], 1, 5, 5), jnp.float32)
    p['dconv3_b'] = jnp.zeros((1,), jnp.float32)
    for name, c in [('bnf1', ARC[0]), ('bnf2', ARC[1]), ('bnf3', ARC[2]),
                    ('bnb1', ARC[2]), ('bnb2', ARC[1]), ('bnb3', ARC[0])]:
        p[name + '_g'] = jnp.ones((c,), jnp.float32)   # BN default gamma=1
        p[name + '_b'] = jnp.zeros((c,), jnp.float32)  # BN default beta=0
    return p


def _pad_weight(wmat):
    K, N = wmat.shape
    Kp, Np = _round_up(K, 8), _round_up(N, 128)
    return jnp.pad(wmat, ((0, Kp - K), (0, Np - N))).astype(jnp.bfloat16)


def _prep_conv(w_oihw):
    cout, cin, kh, kw = w_oihw.shape
    wmat = jnp.transpose(w_oihw, (2, 3, 1, 0)).reshape(kh * kw * cin, cout)
    return _pad_weight(wmat)


def _prep_deconv(w_iohw):
    # ConvTranspose2d(stride=1, pad=0) == valid conv with flipped kernel.
    w_eq = jnp.transpose(jnp.flip(w_iohw, axis=(2, 3)), (1, 0, 2, 3))
    return _prep_conv(w_eq)


def _prep_bias(b):
    Np = _round_up(b.shape[0], 128)
    return jnp.pad(b.astype(jnp.float32), (0, Np - b.shape[0])).reshape(1, Np)


def _prep_bn(gamma, beta):
    c = gamma.shape[0]
    Np = _round_up(c, 128)
    g = jnp.pad(gamma.astype(jnp.float32), (0, Np - c),
                constant_values=1.0).reshape(1, Np)
    b = jnp.pad(beta.astype(jnp.float32), (0, Np - c)).reshape(1, Np)
    return g, b


def prepare_params(p):
    """One-time conversion of PyTorch-layout params into kernel-ready operands
    (weights transposed, K padded to 8, N padded to 128, bf16; BN params padded
    to 128 lanes). Conv1/2/3, dconv1/2 and fc2 biases are dropped: they feed
    training-mode BatchNorm, whose batch-mean subtraction cancels a per-channel
    constant exactly (only valid while BN uses batch statistics)."""
    w = {
        'conv1': _prep_conv(p['conv1_w']),
        'conv2': _prep_conv(p['conv2_w']),
        'conv3': _prep_conv(p['conv3_w']),
        'dconv1': _prep_deconv(p['dconv1_w']),
        'dconv2': _prep_deconv(p['dconv2_w']),
        'dconv3': _prep_deconv(p['dconv3_w']),
        'dconv3_b': _prep_bias(p['dconv3_b']),
        'fc1': _pad_weight(p['fc1_w'].T),     # torch Linear: y = x @ W.T + b
        'fc1_b': _prep_bias(p['fc1_b']),
        'fc2': _pad_weight(p['fc2_w'].T),
    }
    for name in ('bnf1', 'bnf2', 'bnf3', 'bnb1', 'bnb2', 'bnb3'):
        g, b = _prep_bn(p[name + '_g'], p[name + '_b'])
        w[name + '_g'] = g
        w[name + '_b'] = b
    return w


# ------------------------------- forward -------------------------------------

def cvae2_pool_forward(w, x_nchw, eps):
    # ---- encode ----
    x = jnp.transpose(x_nchw, (0, 2, 3, 1))                        # NCHW->NHWC
    h = conv_bn_relu(x, w['conv1'], 5, 5, ARC[0],
                     w['bnf1_g'], w['bnf1_b'])                     # (N,24,24,64)
    h, id1 = maxpool2x2(h)                                         # (N,12,12,64)
    h = conv_bn_relu(h, w['conv2'], 3, 3, ARC[1],
                     w['bnf2_g'], w['bnf2_b'])                     # (N,10,10,128)
    h, id2 = maxpool2x2(h)                                         # (N,5,5,128)
    h = conv_bn_relu(h, w['conv3'], 3, 3, ARC[2],
                     w['bnf3_g'], w['bnf3_b'])                     # (N,3,3,128)
    h, id3 = maxpool2x2(h)                                         # (N,1,1,128)

    N = x.shape[0]
    flat = h.reshape(N, H_FLAT)     # 1x1 spatial -> same order as NCHW flatten
    z2 = matmul_bias(flat, w['fc1'], w['fc1_b'], 2 * LATENT)       # (N, 20) f32
    mu = z2[:, :LATENT]
    log_sig = z2[:, LATENT:]

    # ---- reparameterize ----
    z = mu + jnp.exp(log_sig * 0.5) * eps

    # ---- decode ----
    d = fc_bn_relu(z, w['fc2'], w['bnb1_g'], w['bnb1_b'], H_FLAT)  # (N, 128)
    d = d.reshape(N, 1, 1, H_FLAT)
    d = maxunpool2x2(d, id3, 3, 3)                                 # (N,3,3,128)
    d = deconv_bn_relu(d, w['dconv1'], 3, 3, ARC[1],
                       w['bnb2_g'], w['bnb2_b'])                   # (N,5,5,128)
    d = maxunpool2x2(d, id2, 10, 10)                               # (N,10,10,128)
    d = deconv_bn_relu(d, w['dconv2'], 3, 3, ARC[0],
                       w['bnb3_g'], w['bnb3_b'])                   # (N,12,12,64)
    d = maxunpool2x2(d, id1, 24, 24)                               # (N,24,24,64)
    x_hat = conv_transpose_bias(d, w['dconv3'], 5, 5, 1,
                                w['dconv3_b'])                     # (N,28,28,1)
    x_hat = jnp.transpose(x_hat, (0, 3, 1, 2))                     # NHWC->NCHW
    return x_hat, mu, log_sig


if __name__ == "__main__":
    key = jax.random.PRNGKey(0)
    kp, kx, ke = jax.random.split(key, 3)
    params = init_params(kp)
    mm_params = prepare_params(params)   # one-time weight prep (outside jit)

    batch = 2
    x = jax.random.normal(kx, (batch, 1, 28, 28), jnp.float32)
    eps = jax.random.normal(ke, (batch, LATENT), jnp.float32)

    fwd = jax.jit(cvae2_pool_forward)
    x_hat, mu, log_sig = fwd(mm_params, x, eps)
    jax.block_until_ready((x_hat, mu, log_sig))

    assert x_hat.shape == (batch, 1, 28, 28)
    assert mu.shape == (batch, LATENT)
    assert log_sig.shape == (batch, LATENT)
    assert jnp.all(jnp.isfinite(x_hat))
    print("KERNEL_OK")
</pallas_src>

<mosaic_0001>
module attributes {stable_mosaic.version = 11 : i64} {
  func.func @_matmul_stats_kernel(%arg0: i32, %arg1: memref<384x32xbf16, #tpu.memory_space<vmem>>, %arg2: memref<32x128xbf16, #tpu.memory_space<vmem>>, %arg3: memref<384x128xbf16, #tpu.memory_space<vmem>>, %arg4: memref<1x2x128xf32, #tpu.memory_space<vmem>>) attributes {dimension_semantics = [#tpu.dimension_semantics<parallel>], iteration_bounds = array<i64: 3>, scalar_prefetch = 0 : i64, scratch_operands = 0 : i64, tpu.core_type = #tpu.core_type<tc>, window_params = [{transform_indices = @transform_0, window_bounds = array<i64: 384, 32>}, {pipeline_mode = #tpu.pipeline_mode<synchronous>, transform_indices = @transform_1, window_bounds = array<i64: 32, 128>}, {transform_indices = @transform_2, window_bounds = array<i64: 384, 128>}, {transform_indices = @transform_3, window_bounds = array<i64: 1, 2, 128>}]} {
    %c0 = arith.constant 0 : index
    %c0_0 = arith.constant 0 : index
    %0 = vector.load %arg1[%c0, %c0_0] : memref<384x32xbf16, #tpu.memory_space<vmem>>, vector<384x32xbf16>
    %c0_1 = arith.constant 0 : index
    %c0_2 = arith.constant 0 : index
    %1 = vector.load %arg2[%c0_1, %c0_2] : memref<32x128xbf16, #tpu.memory_space<vmem>>, vector<32x128xbf16>
    %cst = arith.constant dense<0.000000e+00> : vector<384x128xf32>
    %2 = tpu.matmul %0, %1, %cst {dimension_numbers = #tpu.dot_dimension_numbers<[1], [0], [0], [1], [0, 0, 1, 1], [], []>} : vector<384x32xbf16>, vector<32x128xbf16>, vector<384x128xf32> -> vector<384x128xf32>
    %3 = arith.truncf %2 : vector<384x128xf32> to vector<384x128xbf16>
    %c0_3 = arith.constant 0 : index
    %c0_4 = arith.constant 0 : index
    %4 = vector.load %arg3[%c0_3, %c0_4] : memref<384x128xbf16, #tpu.memory_space<vmem>>, vector<384x128xbf16>
    tpu.vector_store %arg3[%c0_3, %c0_4], %3 {strides = array<i32>} : memref<384x128xbf16, #tpu.memory_space<vmem>>, vector<384x128xbf16>,
    %cst_5 = arith.constant dense<0.000000e+00> : vector<128xf32>
    %5 = vector.multi_reduction <add>, %2, %cst_5 [0] : vector<384x128xf32> to vector<128xf32>
    %6 = vector.shape_cast %5 : vector<128xf32> to vector<1x128xf32>
    %7 = arith.mulf %2, %2 : vector<384x128xf32>
    %cst_6 = arith.constant dense<0.000000e+00> : vector<128xf32>
    %8 = vector.multi_reduction <add>, %7, %cst_6 [0] : vector<384x128xf32> to vector<128xf32>
    %9 = vector.shape_cast %8 : vector<128xf32> to vector<1x128xf32>
    %10 = tpu.concatenate %6, %9 in 0 : vector<1x128xf32>, vector<1x128xf32> -> vector<2x128xf32>
    %11 = vector.shape_cast %10 : vector<2x128xf32> to vector<1x2x128xf32>
    %c0_7 = arith.constant 0 : index
    %c0_8 = arith.constant 0 : index
    %c0_9 = arith.constant 0 : index
    %12 = vector.load %arg4[%c0_7, %c0_8, %c0_9] : memref<1x2x128xf32, #tpu.memory_space<vmem>>, vector<1x2x128xf32>
    tpu.vector_store %arg4[%c0_7, %c0_8, %c0_9], %11 {strides = array<i32>} : memref<1x2x128xf32, #tpu.memory_space<vmem>>, vector<1x2x128xf32>,
    return
  }
  func.func @transform_0(%arg0: i32) -> (i32, i32) {
    %c0_i32 = arith.constant 0 : i32
    %c0_i32_0 = arith.constant 0 : i32
    return %arg0, %c0_i32 : i32, i32
  }
  func.func @transform_1(%arg0: i32) -> (i32, i32) {
    %c0_i32 = arith.constant 0 : i32
    %c0_i32_0 = arith.constant 0 : i32
    %c0_i32_1 = arith.constant 0 : i32
    return %c0_i32, %c0_i32_0 : i32, i32
  }
  func.func @transform_2(%arg0: i32) -> (i32, i32) {
    %c0_i32 = arith.constant 0 : i32
    %c0_i32_0 = arith.constant 0 : i32
    return %arg0, %c0_i32 : i32, i32
  }
  func.func @transform_3(%arg0: i32) -> (i32, i32, i32) {
    %c0_i32 = arith.constant 0 : i32
    %c0_i32_0 = arith.constant 0 : i32
    %c0_i32_1 = arith.constant 0 : i32
    return %arg0, %c0_i32, %c0_i32_0 : i32, i32, i32
  }
}

module attributes {stable_mosaic.version = 11 : i64} {
  func.func @_bn_relu_kernel(%arg0: i32, %arg1: memref<384x128xbf16, #tpu.memory_space<vmem>>, %arg2: memref<2x128xf32, #tpu.memory_space<vmem>>, %arg3: memref<1x128xf32, #tpu.memory_space<vmem>>, %arg4: memref<1x128xf32, #tpu.memory_space<vmem>>, %arg5: memref<384x64xbf16, #tpu.memory_space<vmem>>) attributes {dimension_semantics = [#tpu.dimension_semantics<parallel>], iteration_bounds = array<i64: 3>, scalar_prefetch = 0 : i64, scratch_operands = 0 : i64, tpu.core_type = #tpu.core_type<tc>, window_params = [{transform_indices = @transform_0, window_bounds = array<i64: 384, 128>}, {pipeline_mode = #tpu.pipeline_mode<synchronous>, transform_indices = @transform_1, window_bounds = array<i64: 2, 128>}, {pipeline_mode = #tpu.pipeline_mode<synchronous>, transform_indices = @transform_2, window_bounds = array<i64: 1, 128>}, {pipeline_mode = #tpu.pipeline_mode<synchronous>, transform_indices = @transform_3, window_bounds = array<i64: 1, 128>}, {transform_indices = @transform_4, window_bounds = array<i64: 384, 64>}]} {
    %c0 = arith.constant 0 : index
    %c0_0 = arith.constant 0 : index
    %0 = vector.load %arg2[%c0, %c0_0] : memref<2x128xf32, #tpu.memory_space<vmem>>, vector<1x128xf32>
    %cst = arith.constant 8.68055562E-4 : f32
    %1 = vector.broadcast %cst : f32 to vector<1x128xf32>
    %2 = arith.mulf %0, %1 : vector<1x128xf32>
    %c1 = arith.constant 1 : index
    %c0_1 = arith.constant 0 : index
    %3 = vector.load %arg2[%c1, %c0_1] : memref<2x128xf32, #tpu.memory_space<vmem>>, vector<1x128xf32>
    %cst_2 = arith.constant 8.68055562E-4 : f32
    %4 = vector.broadcast %cst_2 : f32 to vector<1x128xf32>
    %5 = arith.mulf %3, %4 : vector<1x128xf32>
    %6 = arith.mulf %2, %2 : vector<1x128xf32>
    %7 = arith.subf %5, %6 : vector<1x128xf32>
    %c0_3 = arith.constant 0 : index
    %c0_4 = arith.constant 0 : index
    %8 = vector.load %arg3[%c0_3, %c0_4] : memref<1x128xf32, #tpu.memory_space<vmem>>, vector<1x128xf32>
    %cst_5 = arith.constant 9.99999974E-6 : f32
    %9 = vector.broadcast %cst_5 : f32 to vector<1x128xf32>
    %10 = arith.addf %7, %9 : vector<1x128xf32>
    %11 = math.rsqrt %10 : vector<1x128xf32>
    %12 = arith.mulf %8, %11 : vector<1x128xf32>
    %c0_6 = arith.constant 0 : index
    %c0_7 = arith.constant 0 : index
    %13 = vector.load %arg4[%c0_6, %c0_7] : memref<1x128xf32, #tpu.memory_space<vmem>>, vector<1x128xf32>
    %14 = arith.mulf %2, %12 : vector<1x128xf32>
    %15 = arith.subf %13, %14 : vector<1x128xf32>
    %c0_8 = arith.constant 0 : index
    %c0_9 = arith.constant 0 : index
    %16 = vector.load %arg1[%c0_8, %c0_9] : memref<384x128xbf16, #tpu.memory_space<vmem>>, vector<384x128xbf16>
    %17 = arith.extf %16 : vector<384x128xbf16> to vector<384x128xf32>
    %18 = vector.broadcast %12 : vector<1x128xf32> to vector<384x128xf32>
    %19 = arith.mulf %17, %18 : vector<384x128xf32>
    %20 = vector.broadcast %15 : vector<1x128xf32> to vector<384x128xf32>
    %21 = arith.addf %19, %20 : vector<384x128xf32>
    %cst_10 = arith.constant 0.000000e+00 : f32
    %22 = vector.broadcast %cst_10 : f32 to vector<384x128xf32>
    %23 = arith.maximumf %21, %22 : vector<384x128xf32>
    %24 = vector.extract_strided_slice %23 {offsets = [0, 0], sizes = [384, 64], strides = [1, 1]} : vector<384x128xf32> to vector<384x64xf32>
    %25 = arith.truncf %24 : vector<384x64xf32> to vector<384x64xbf16>
    %c0_11 = arith.constant 0 : index
    %c0_12 = arith.constant 0 : index
    %26 = vector.load %arg5[%c0_11, %c0_12] : memref<384x64xbf16, #tpu.memory_space<vmem>>, vector<384x64xbf16>
    tpu.vector_store %arg5[%c0_11, %c0_12], %25 {strides = array<i32>} : memref<384x64xbf16, #tpu.memory_space<vmem>>, vector<384x64xbf16>,
    return
  }
  func.func @transform_0(%arg0: i32) -> (i32, i32) {
    %c0_i32 = arith.constant 0 : i32
    %c0_i32_0 = arith.constant 0 : i32
    return %arg0, %c0_i32 : i32, i32
  }
  func.func @transform_1(%arg0: i32) -> (i32, i32) {
    %c0_i32 = arith.constant 0 : i32
    %c0_i32_0 = arith.constant 0 : i32
    %c0_i32_1 = arith.constant 0 : i32
    return %c0_i32, %c0_i32_0 : i32, i32
  }
  func.func @transform_2(%arg0: i32) -> (i32, i32) {
    %c0_i32 = arith.constant 0 : i32
    %c0_i32_0 = arith.constant 0 : i32
    %c0_i32_1 = arith.constant 0 : i32
    return %c0_i32, %c0_i32_0 : i32, i32
  }
  func.func @transform_3(%arg0: i32) -> (i32, i32) {
    %c0_i32 = arith.constant 0 : i32
    %c0_i32_0 = arith.constant 0 : i32
    %c0_i32_1 = arith.constant 0 : i32
    return %c0_i32, %c0_i32_0 : i32, i32
  }
  func.func @transform_4(%arg0: i32) -> (i32, i32) {
    %c0_i32 = arith.constant 0 : i32
    %c0_i32_0 = arith.constant 0 : i32
    return %arg0, %c0_i32 : i32, i32
  }
}

module attributes {stable_mosaic.version = 11 : i64} {
  func.func @_matmul_stats_kernel(%arg0: i32, %arg1: memref<208x576xbf16, #tpu.memory_space<vmem>>, %arg2: memref<576x128xbf16, #tpu.memory_space<vmem>>, %arg3: memref<208x128xbf16, #tpu.memory_space<vmem>>, %arg4: memref<1x2x128xf32, #tpu.memory_space<vmem>>) attributes {dimension_semantics = [#tpu.dimension_semantics<parallel>], iteration_bounds = array<i64: 1>, scalar_prefetch = 0 : i64, scratch_operands = 0 : i64, tpu.core_type = #tpu.core_type<tc>, window_params = [{transform_indices = @transform_0, window_bounds = array<i64: 208, 576>}, {pipeline_mode = #tpu.pipeline_mode<synchronous>, transform_indices = @transform_1, window_bounds = array<i64: 576, 128>}, {transform_indices = @transform_2, window_bounds = array<i64: 208, 128>}, {transform_indices = @transform_3, window_bounds = array<i64: 1, 2, 128>}]} {
    %c0 = arith.constant 0 : index
    %c0_0 = arith.constant 0 : index
    %0 = vector.load %arg1[%c0, %c0_0] : memref<208x576xbf16, #tpu.memory_space<vmem>>, vector<208x576xbf16>
    %c0_1 = arith.constant 0 : index
    %c0_2 = arith.constant 0 : index
    %1 = vector.load %arg2[%c0_1, %c0_2] : memref<576x128xbf16, #tpu.memory_space<vmem>>, vector<576x128xbf16>
    %cst = arith.constant dense<0.000000e+00> : vector<208x128xf32>
    %2 = tpu.matmul %0, %1, %cst {dimension_numbers = #tpu.dot_dimension_numbers<[1], [0], [0], [1], [0, 0, 1, 1], [], []>} : vector<208x576xbf16>, vector<576x128xbf16>, vector<208x128xf32> -> vector<208x128xf32>
    %3 = arith.truncf %2 : vector<208x128xf32> to vector<208x128xbf16>
    %c0_3 = arith.constant 0 : index
    %c0_4 = arith.constant 0 : index
    %4 = vector.load %arg3[%c0_3, %c0_4] : memref<208x128xbf16, #tpu.memory_space<vmem>>, vector<208x128xbf16>
    tpu.vector_store %arg3[%c0_3, %c0_4], %3 {strides = array<i32>} : memref<208x128xbf16, #tpu.memory_space<vmem>>, vector<208x128xbf16>,
    %cst_5 = arith.constant dense<0.000000e+00> : vector<128xf32>
    %5 = vector.multi_reduction <add>, %2, %cst_5 [0] : vector<208x128xf32> to vector<128xf32>
    %6 = vector.shape_cast %5 : vector<128xf32> to vector<1x128xf32>
    %7 = arith.mulf %2, %2 : vector<208x128xf32>
    %cst_6 = arith.constant dense<0.000000e+00> : vector<128xf32>
    %8 = vector.multi_reduction <add>, %7, %cst_6 [0] : vector<208x128xf32> to vector<128xf32>
    %9 = vector.shape_cast %8 : vector<128xf32> to vector<1x128xf32>
    %10 = tpu.concatenate %6, %9 in 0 : vector<1x128xf32>, vector<1x128xf32> -> vector<2x128xf32>
    %11 = vector.shape_cast %10 : vector<2x128xf32> to vector<1x2x128xf32>
    %c0_7 = arith.constant 0 : index
    %c0_8 = arith.constant 0 : index
    %c0_9 = arith.constant 0 : index
    %12 = vector.load %arg4[%c0_7, %c0_8, %c0_9] : memref<1x2x128xf32, #tpu.memory_space<vmem>>, vector<1x2x128xf32>
    tpu.vector_store %arg4[%c0_7, %c0_8, %c0_9], %11 {strides = array<i32>} : memref<1x2x128xf32, #tpu.memory_space<vmem>>, vector<1x2x128xf32>,
    return
  }
  func.func @transform_0(%arg0: i32) -> (i32, i32) {
    %c0_i32 = arith.constant 0 : i32
    %c0_i32_0 = arith.constant 0 : i32
    return %arg0, %c0_i32 : i32, i32
  }
  func.func @transform_1(%arg0: i32) -> (i32, i32) {
    %c0_i32 = arith.constant 0 : i32
    %c0_i32_0 = arith.constant 0 : i32
    %c0_i32_1 = arith.constant 0 : i32
    return %c0_i32, %c0_i32_0 : i32, i32
  }
  func.func @transform_2(%arg0: i32) -> (i32, i32) {
    %c0_i32 = arith.constant 0 : i32
    %c0_i32_0 = arith.constant 0 : i32
    return %arg0, %c0_i32 : i32, i32
  }
  func.func @transform_3(%arg0: i32) -> (i32, i32, i32) {
    %c0_i32 = arith.constant 0 : i32
    %c0_i32_0 = arith.constant 0 : i32
    %c0_i32_1 = arith.constant 0 : i32
    return %arg0, %c0_i32, %c0_i32_0 : i32, i32, i32
  }
}

module attributes {stable_mosaic.version = 11 : i64} {
  func.func @_bn_relu_kernel(%arg0: i32, %arg1: memref<208x128xbf16, #tpu.memory_space<vmem>>, %arg2: memref<2x128xf32, #tpu.memory_space<vmem>>, %arg3: memref<1x128xf32, #tpu.memory_space<vmem>>, %arg4: memref<1x128xf32, #tpu.memory_space<vmem>>, %arg5: memref<208x128xbf16, #tpu.memory_space<vmem>>) attributes {dimension_semantics = [#tpu.dimension_semantics<parallel>], iteration_bounds = array<i64: 1>, scalar_prefetch = 0 : i64, scratch_operands = 0 : i64, tpu.core_type = #tpu.core_type<tc>, window_params = [{transform_indices = @transform_0, window_bounds = array<i64: 208, 128>}, {pipeline_mode = #tpu.pipeline_mode<synchronous>, transform_indices = @transform_1, window_bounds = array<i64: 2, 128>}, {pipeline_mode = #tpu.pipeline_mode<synchronous>, transform_indices = @transform_2, window_bounds = array<i64: 1, 128>}, {pipeline_mode = #tpu.pipeline_mode<synchronous>, transform_indices = @transform_3, window_bounds = array<i64: 1, 128>}, {transform_indices = @transform_4, window_bounds = array<i64: 208, 128>}]} {
    %c0 = arith.constant 0 : index
    %c0_0 = arith.constant 0 : index
    %0 = vector.load %arg2[%c0, %c0_0] : memref<2x128xf32, #tpu.memory_space<vmem>>, vector<1x128xf32>
    %cst = arith.constant 5.000000e-03 : f32
    %1 = vector.broadcast %cst : f32 to vector<1x128xf32>
    %2 = arith.mulf %0, %1 : vector<1x128xf32>
    %c1 = arith.constant 1 : index
    %c0_1 = arith.constant 0 : index
    %3 = vector.load %arg2[%c1, %c0_1] : memref<2x128xf32, #tpu.memory_space<vmem>>, vector<1x128xf32>
    %cst_2 = arith.constant 5.000000e-03 : f32
    %4 = vector.broadcast %cst_2 : f32 to vector<1x128xf32>
    %5 = arith.mulf %3, %4 : vector<1x128xf32>
    %6 = arith.mulf %2, %2 : vector<1x128xf32>
    %7 = arith.subf %5, %6 : vector<1x128xf32>
    %c0_3 = arith.constant 0 : index
    %c0_4 = arith.constant 0 : index
    %8 = vector.load %arg3[%c0_3, %c0_4] : memref<1x128xf32, #tpu.memory_space<vmem>>, vector<1x128xf32>
    %cst_5 = arith.constant 9.99999974E-6 : f32
    %9 = vector.broadcast %cst_5 : f32 to vector<1x128xf32>
    %10 = arith.addf %7, %9 : vector<1x128xf32>
    %11 = math.rsqrt %10 : vector<1x128xf32>
    %12 = arith.mulf %8, %11 : vector<1x128xf32>
    %c0_6 = arith.constant 0 : index
    %c0_7 = arith.constant 0 : index
    %13 = vector.load %arg4[%c0_6, %c0_7] : memref<1x128xf32, #tpu.memory_space<vmem>>, vector<1x128xf32>
    %14 = arith.mulf %2, %12 : vector<1x128xf32>
    %15 = arith.subf %13, %14 : vector<1x128xf32>
    %c0_8 = arith.constant 0 : index
    %c0_9 = arith.constant 0 : index
    %16 = vector.load %arg1[%c0_8, %c0_9] : memref<208x128xbf16, #tpu.memory_space<vmem>>, vector<208x128xbf16>
    %17 = arith.extf %16 : vector<208x128xbf16> to vector<208x128xf32>
    %18 = vector.broadcast %12 : vector<1x128xf32> to vector<208x128xf32>
    %19 = arith.mulf %17, %18 : vector<208x128xf32>
    %20 = vector.broadcast %15 : vector<1x128xf32> to vector<208x128xf32>
    %21 = arith.addf %19, %20 : vector<208x128xf32>
    %cst_10 = arith.constant 0.000000e+00 : f32
    %22 = vector.broadcast %cst_10 : f32 to vector<208x128xf32>
    %23 = arith.maximumf %21, %22 : vector<208x128xf32>
    %24 = arith.truncf %23 : vector<208x128xf32> to vector<208x128xbf16>
    %c0_11 = arith.constant 0 : index
    %c0_12 = arith.constant 0 : index
    %25 = vector.load %arg5[%c0_11, %c0_12] : memref<208x128xbf16, #tpu.memory_space<vmem>>, vector<208x128xbf16>
    tpu.vector_store %arg5[%c0_11, %c0_12], %24 {strides = array<i32>} : memref<208x128xbf16, #tpu.memory_space<vmem>>, vector<208x128xbf16>,
    return
  }
  func.func @transform_0(%arg0: i32) -> (i32, i32) {
    %c0_i32 = arith.constant 0 : i32
    %c0_i32_0 = arith.constant 0 : i32
    return %arg0, %c0_i32 : i32, i32
  }
  func.func @transform_1(%arg0: i32) -> (i32, i32) {
    %c0_i32 = arith.constant 0 : i32
    %c0_i32_0 = arith.constant 0 : i32
    %c0_i32_1 = arith.constant 0 : i32
    return %c0_i32, %c0_i32_0 : i32, i32
  }
  func.func @transform_2(%arg0: i32) -> (i32, i32) {
    %c0_i32 = arith.constant 0 : i32
    %c0_i32_0 = arith.constant 0 : i32
    %c0_i32_1 = arith.constant 0 : i32
    return %c0_i32, %c0_i32_0 : i32, i32
  }
  func.func @transform_3(%arg0: i32) -> (i32, i32) {
    %c0_i32 = arith.constant 0 : i32
    %c0_i32_0 = arith.constant 0 : i32
    %c0_i32_1 = arith.constant 0 : i32
    return %c0_i32, %c0_i32_0 : i32, i32
  }
  func.func @transform_4(%arg0: i32) -> (i32, i32) {
    %c0_i32 = arith.constant 0 : i32
    %c0_i32_0 = arith.constant 0 : i32
    return %arg0, %c0_i32 : i32, i32
  }
}

module attributes {stable_mosaic.version = 11 : i64} {
  func.func @_matmul_stats_kernel(%arg0: i32, %arg1: memref<32x1152xbf16, #tpu.memory_space<vmem>>, %arg2: memref<1152x128xbf16, #tpu.memory_space<vmem>>, %arg3: memref<32x128xbf16, #tpu.memory_space<vmem>>, %arg4: memref<1x2x128xf32, #tpu.memory_space<vmem>>) attributes {dimension_semantics = [#tpu.dimension_semantics<parallel>], iteration_bounds = array<i64: 1>, scalar_prefetch = 0 : i64, scratch_operands = 0 : i64, tpu.core_type = #tpu.core_type<tc>, window_params = [{transform_indices = @transform_0, window_bounds = array<i64: 32, 1152>}, {pipeline_mode = #tpu.pipeline_mode<synchronous>, transform_indices = @transform_1, window_bounds = array<i64: 1152, 128>}, {transform_indices = @transform_2, window_bounds = array<i64: 32, 128>}, {transform_indices = @transform_3, window_bounds = array<i64: 1, 2, 128>}]} {
    %c0 = arith.constant 0 : index
    %c0_0 = arith.constant 0 : index
    %0 = vector.load %arg1[%c0, %c0_0] : memref<32x1152xbf16, #tpu.memory_space<vmem>>, vector<32x1152xbf16>
    %c0_1 = arith.constant 0 : index
    %c0_2 = arith.constant 0 : index
    %1 = vector.load %arg2[%c0_1, %c0_2] : memref<1152x128xbf16, #tpu.memory_space<vmem>>, vector<1152x128xbf16>
    %cst = arith.constant dense<0.000000e+00> : vector<32x128xf32>
    %2 = tpu.matmul %0, %1, %cst {dimension_numbers = #tpu.dot_dimension_numbers<[1], [0], [0], [1], [0, 0, 1, 1], [], []>} : vector<32x1152xbf16>, vector<1152x128xbf16>, vector<32x128xf32> -> vector<32x128xf32>
    %3 = arith.truncf %2 : vector<32x128xf32> to vector<32x128xbf16>
    %c0_3 = arith.constant 0 : index
    %c0_4 = arith.constant 0 : index
    %4 = vector.load %arg3[%c0_3, %c0_4] : memref<32x128xbf16, #tpu.memory_space<vmem>>, vector<32x128xbf16>
    tpu.vector_store %arg3[%c0_3, %c0_4], %3 {strides = array<i32>} : memref<32x128xbf16, #tpu.memory_space<vmem>>, vector<32x128xbf16>,
    %cst_5 = arith.constant dense<0.000000e+00> : vector<128xf32>
    %5 = vector.multi_reduction <add>, %2, %cst_5 [0] : vector<32x128xf32> to vector<128xf32>
    %6 = vector.shape_cast %5 : vector<128xf32> to vector<1x128xf32>
    %7 = arith.mulf %2, %2 : vector<32x128xf32>
    %cst_6 = arith.constant dense<0.000000e+00> : vector<128xf32>
    %8 = vector.multi_reduction <add>, %7, %cst_6 [0] : vector<32x128xf32> to vector<128xf32>
    %9 = vector.shape_cast %8 : vector<128xf32> to vector<1x128xf32>
    %10 = tpu.concatenate %6, %9 in 0 : vector<1x128xf32>, vector<1x128xf32> -> vector<2x128xf32>
    %11 = vector.shape_cast %10 : vector<2x128xf32> to vector<1x2x128xf32>
    %c0_7 = arith.constant 0 : index
    %c0_8 = arith.constant 0 : index
    %c0_9 = arith.constant 0 : index
    %12 = vector.load %arg4[%c0_7, %c0_8, %c0_9] : memref<1x2x128xf32, #tpu.memory_space<vmem>>, vector<1x2x128xf32>
    tpu.vector_store %arg4[%c0_7, %c0_8, %c0_9], %11 {strides = array<i32>} : memref<1x2x128xf32, #tpu.memory_space<vmem>>, vector<1x2x128xf32>,
    return
  }
  func.func @transform_0(%arg0: i32) -> (i32, i32) {
    %c0_i32 = arith.constant 0 : i32
    %c0_i32_0 = arith.constant 0 : i32
    return %arg0, %c0_i32 : i32, i32
  }
  func.func @transform_1(%arg0: i32) -> (i32, i32) {
    %c0_i32 = arith.constant 0 : i32
    %c0_i32_0 = arith.constant 0 : i32
    %c0_i32_1 = arith.constant 0 : i32
    return %c0_i32, %c0_i32_0 : i32, i32
  }
  func.func @transform_2(%arg0: i32) -> (i32, i32) {
    %c0_i32 = arith.constant 0 : i32
    %c0_i32_0 = arith.constant 0 : i32
    return %arg0, %c0_i32 : i32, i32
  }
  func.func @transform_3(%arg0: i32) -> (i32, i32, i32) {
    %c0_i32 = arith.constant 0 : i32
    %c0_i32_0 = arith.constant 0 : i32
    %c0_i32_1 = arith.constant 0 : i32
    return %arg0, %c0_i32, %c0_i32_0 : i32, i32, i32
  }
}

module attributes {stable_mosaic.version = 11 : i64} {
  func.func @_bn_relu_kernel(%arg0: i32, %arg1: memref<32x128xbf16, #tpu.memory_space<vmem>>, %arg2: memref<2x128xf32, #tpu.memory_space<vmem>>, %arg3: memref<1x128xf32, #tpu.memory_space<vmem>>, %arg4: memref<1x128xf32, #tpu.memory_space<vmem>>, %arg5: memref<32x128xbf16, #tpu.memory_space<vmem>>) attributes {dimension_semantics = [#tpu.dimension_semantics<parallel>], iteration_bounds = array<i64: 1>, scalar_prefetch = 0 : i64, scratch_operands = 0 : i64, tpu.core_type = #tpu.core_type<tc>, window_params = [{transform_indices = @transform_0, window_bounds = array<i64: 32, 128>}, {pipeline_mode = #tpu.pipeline_mode<synchronous>, transform_indices = @transform_1, window_bounds = array<i64: 2, 128>}, {pipeline_mode = #tpu.pipeline_mode<synchronous>, transform_indices = @transform_2, window_bounds = array<i64: 1, 128>}, {pipeline_mode = #tpu.pipeline_mode<synchronous>, transform_indices = @transform_3, window_bounds = array<i64: 1, 128>}, {transform_indices = @transform_4, window_bounds = array<i64: 32, 128>}]} {
    %c0 = arith.constant 0 : index
    %c0_0 = arith.constant 0 : index
    %0 = vector.load %arg2[%c0, %c0_0] : memref<2x128xf32, #tpu.memory_space<vmem>>, vector<1x128xf32>
    %cst = arith.constant 0.055555556 : f32
    %1 = vector.broadcast %cst : f32 to vector<1x128xf32>
    %2 = arith.mulf %0, %1 : vector<1x128xf32>
    %c1 = arith.constant 1 : index
    %c0_1 = arith.constant 0 : index
    %3 = vector.load %arg2[%c1, %c0_1] : memref<2x128xf32, #tpu.memory_space<vmem>>, vector<1x128xf32>
    %cst_2 = arith.constant 0.055555556 : f32
    %4 = vector.broadcast %cst_2 : f32 to vector<1x128xf32>
    %5 = arith.mulf %3, %4 : vector<1x128xf32>
    %6 = arith.mulf %2, %2 : vector<1x128xf32>
    %7 = arith.subf %5, %6 : vector<1x128xf32>
    %c0_3 = arith.constant 0 : index
    %c0_4 = arith.constant 0 : index
    %8 = vector.load %arg3[%c0_3, %c0_4] : memref<1x128xf32, #tpu.memory_space<vmem>>, vector<1x128xf32>
    %cst_5 = arith.constant 9.99999974E-6 : f32
    %9 = vector.broadcast %cst_5 : f32 to vector<1x128xf32>
    %10 = arith.addf %7, %9 : vector<1x128xf32>
    %11 = math.rsqrt %10 : vector<1x128xf32>
    %12 = arith.mulf %8, %11 : vector<1x128xf32>
    %c0_6 = arith.constant 0 : index
    %c0_7 = arith.constant 0 : index
    %13 = vector.load %arg4[%c0_6, %c0_7] : memref<1x128xf32, #tpu.memory_space<vmem>>, vector<1x128xf32>
    %14 = arith.mulf %2, %12 : vector<1x128xf32>
    %15 = arith.subf %13, %14 : vector<1x128xf32>
    %c0_8 = arith.constant 0 : index
    %c0_9 = arith.constant 0 : index
    %16 = vector.load %arg1[%c0_8, %c0_9] : memref<32x128xbf16, #tpu.memory_space<vmem>>, vector<32x128xbf16>
    %17 = arith.extf %16 : vector<32x128xbf16> to vector<32x128xf32>
    %18 = vector.broadcast %12 : vector<1x128xf32> to vector<32x128xf32>
    %19 = arith.mulf %17, %18 : vector<32x128xf32>
    %20 = vector.broadcast %15 : vector<1x128xf32> to vector<32x128xf32>
    %21 = arith.addf %19, %20 : vector<32x128xf32>
    %cst_10 = arith.constant 0.000000e+00 : f32
    %22 = vector.broadcast %cst_10 : f32 to vector<32x128xf32>
    %23 = arith.maximumf %21, %22 : vector<32x128xf32>
    %24 = arith.truncf %23 : vector<32x128xf32> to vector<32x128xbf16>
    %c0_11 = arith.constant 0 : index
    %c0_12 = arith.constant 0 : index
    %25 = vector.load %arg5[%c0_11, %c0_12] : memref<32x128xbf16, #tpu.memory_space<vmem>>, vector<32x128xbf16>
    tpu.vector_store %arg5[%c0_11, %c0_12], %24 {strides = array<i32>} : memref<32x128xbf16, #tpu.memory_space<vmem>>, vector<32x128xbf16>,
    return
  }
  func.func @transform_0(%arg0: i32) -> (i32, i32) {
    %c0_i32 = arith.constant 0 : i32
    %c0_i32_0 = arith.constant 0 : i32
    return %arg0, %c0_i32 : i32, i32
  }
  func.func @transform_1(%arg0: i32) -> (i32, i32) {
    %c0_i32 = arith.constant 0 : i32
    %c0_i32_0 = arith.constant 0 : i32
    %c0_i32_1 = arith.constant 0 : i32
    return %c0_i32, %c0_i32_0 : i32, i32
  }
  func.func @transform_2(%arg0: i32) -> (i32, i32) {
    %c0_i32 = arith.constant 0 : i32
    %c0_i32_0 = arith.constant 0 : i32
    %c0_i32_1 = arith.constant 0 : i32
    return %c0_i32, %c0_i32_0 : i32, i32
  }
  func.func @transform_3(%arg0: i32) -> (i32, i32) {
    %c0_i32 = arith.constant 0 : i32
    %c0_i32_0 = arith.constant 0 : i32
    %c0_i32_1 = arith.constant 0 : i32
    return %c0_i32, %c0_i32_0 : i32, i32
  }
  func.func @transform_4(%arg0: i32) -> (i32, i32) {
    %c0_i32 = arith.constant 0 : i32
    %c0_i32_0 = arith.constant 0 : i32
    return %arg0, %c0_i32 : i32, i32
  }
}

module attributes {stable_mosaic.version = 11 : i64} {
  func.func @_matmul_bias_kernel(%arg0: i32, %arg1: memref<16x128xbf16, #tpu.memory_space<vmem>>, %arg2: memref<128x128xbf16, #tpu.memory_space<vmem>>, %arg3: memref<1x128xf32, #tpu.memory_space<vmem>>, %arg4: memref<16x20xf32, #tpu.memory_space<vmem>>) attributes {dimension_semantics = [#tpu.dimension_semantics<parallel>], iteration_bounds = array<i64: 1>, scalar_prefetch = 0 : i64, scratch_operands = 0 : i64, tpu.core_type = #tpu.core_type<tc>, window_params = [{transform_indices = @transform_0, window_bounds = array<i64: 16, 128>}, {pipeline_mode = #tpu.pipeline_mode<synchronous>, transform_indices = @transform_1, window_bounds = array<i64: 128, 128>}, {pipeline_mode = #tpu.pipeline_mode<synchronous>, transform_indices = @transform_2, window_bounds = array<i64: 1, 128>}, {transform_indices = @transform_3, window_bounds = array<i64: 16, 20>}]} {
    %c0 = arith.constant 0 : index
    %c0_0 = arith.constant 0 : index
    %0 = vector.load %arg1[%c0, %c0_0] : memref<16x128xbf16, #tpu.memory_space<vmem>>, vector<16x128xbf16>
    %c0_1 = arith.constant 0 : index
    %c0_2 = arith.constant 0 : index
    %1 = vector.load %arg2[%c0_1, %c0_2] : memref<128x128xbf16, #tpu.memory_space<vmem>>, vector<128x128xbf16>
    %cst = arith.constant dense<0.000000e+00> : vector<16x128xf32>
    %2 = tpu.matmul %0, %1, %cst {dimension_numbers = #tpu.dot_dimension_numbers<[1], [0], [0], [1], [0, 0, 1, 1], [], []>} : vector<16x128xbf16>, vector<128x128xbf16>, vector<16x128xf32> -> vector<16x128xf32>
    %c0_3 = arith.constant 0 : index
    %c0_4 = arith.constant 0 : index
    %3 = vector.load %arg3[%c0_3, %c0_4] : memref<1x128xf32, #tpu.memory_space<vmem>>, vector<1x128xf32>
    %4 = vector.broadcast %3 : vector<1x128xf32> to vector<16x128xf32>
    %5 = arith.addf %2, %4 : vector<16x128xf32>
    %6 = vector.extract_strided_slice %5 {offsets = [0, 0], sizes = [16, 20], strides = [1, 1]} : vector<16x128xf32> to vector<16x20xf32>
    %c0_5 = arith.constant 0 : index
    %c0_6 = arith.constant 0 : index
    %7 = vector.load %arg4[%c0_5, %c0_6] : memref<16x20xf32, #tpu.memory_space<vmem>>, vector<16x20xf32>
    tpu.vector_store %arg4[%c0_5, %c0_6], %6 {strides = array<i32>} : memref<16x20xf32, #tpu.memory_space<vmem>>, vector<16x20xf32>,
    return
  }
  func.func @transform_0(%arg0: i32) -> (i32, i32) {
    %c0_i32 = arith.constant 0 : i32
    %c0_i32_0 = arith.constant 0 : i32
    return %arg0, %c0_i32 : i32, i32
  }
  func.func @transform_1(%arg0: i32) -> (i32, i32) {
    %c0_i32 = arith.constant 0 : i32
    %c0_i32_0 = arith.constant 0 : i32
    %c0_i32_1 = arith.constant 0 : i32
    return %c0_i32, %c0_i32_0 : i32, i32
  }
  func.func @transform_2(%arg0: i32) -> (i32, i32) {
    %c0_i32 = arith.constant 0 : i32
    %c0_i32_0 = arith.constant 0 : i32
    %c0_i32_1 = arith.constant 0 : i32
    return %c0_i32, %c0_i32_0 : i32, i32
  }
  func.func @transform_3(%arg0: i32) -> (i32, i32) {
    %c0_i32 = arith.constant 0 : i32
    %c0_i32_0 = arith.constant 0 : i32
    return %arg0, %c0_i32 : i32, i32
  }
}

module attributes {stable_mosaic.version = 11 : i64} {
  func.func @_bn_relu_kernel(%arg0: i32, %arg1: memref<16x128xbf16, #tpu.memory_space<vmem>>, %arg2: memref<2x128xf32, #tpu.memory_space<vmem>>, %arg3: memref<1x128xf32, #tpu.memory_space<vmem>>, %arg4: memref<1x128xf32, #tpu.memory_space<vmem>>, %arg5: memref<16x128xbf16, #tpu.memory_space<vmem>>) attributes {dimension_semantics = [#tpu.dimension_semantics<parallel>], iteration_bounds = array<i64: 1>, scalar_prefetch = 0 : i64, scratch_operands = 0 : i64, tpu.core_type = #tpu.core_type<tc>, window_params = [{transform_indices = @transform_0, window_bounds = array<i64: 16, 128>}, {pipeline_mode = #tpu.pipeline_mode<synchronous>, transform_indices = @transform_1, window_bounds = array<i64: 2, 128>}, {pipeline_mode = #tpu.pipeline_mode<synchronous>, transform_indices = @transform_2, window_bounds = array<i64: 1, 128>}, {pipeline_mode = #tpu.pipeline_mode<synchronous>, transform_indices = @transform_3, window_bounds = array<i64: 1, 128>}, {transform_indices = @transform_4, window_bounds = array<i64: 16, 128>}]} {
    %c0 = arith.constant 0 : index
    %c0_0 = arith.constant 0 : index
    %0 = vector.load %arg2[%c0, %c0_0] : memref<2x128xf32, #tpu.memory_space<vmem>>, vector<1x128xf32>
    %cst = arith.constant 5.000000e-01 : f32
    %1 = vector.broadcast %cst : f32 to vector<1x128xf32>
    %2 = arith.mulf %0, %1 : vector<1x128xf32>
    %c1 = arith.constant 1 : index
    %c0_1 = arith.constant 0 : index
    %3 = vector.load %arg2[%c1, %c0_1] : memref<2x128xf32, #tpu.memory_space<vmem>>, vector<1x128xf32>
    %cst_2 = arith.constant 5.000000e-01 : f32
    %4 = vector.broadcast %cst_2 : f32 to vector<1x128xf32>
    %5 = arith.mulf %3, %4 : vector<1x128xf32>
    %6 = arith.mulf %2, %2 : vector<1x128xf32>
    %7 = arith.subf %5, %6 : vector<1x128xf32>
    %c0_3 = arith.constant 0 : index
    %c0_4 = arith.constant 0 : index
    %8 = vector.load %arg3[%c0_3, %c0_4] : memref<1x128xf32, #tpu.memory_space<vmem>>, vector<1x128xf32>
    %cst_5 = arith.constant 9.99999974E-6 : f32
    %9 = vector.broadcast %cst_5 : f32 to vector<1x128xf32>
    %10 = arith.addf %7, %9 : vector<1x128xf32>
    %11 = math.rsqrt %10 : vector<1x128xf32>
    %12 = arith.mulf %8, %11 : vector<1x128xf32>
    %c0_6 = arith.constant 0 : index
    %c0_7 = arith.constant 0 : index
    %13 = vector.load %arg4[%c0_6, %c0_7] : memref<1x128xf32, #tpu.memory_space<vmem>>, vector<1x128xf32>
    %14 = arith.mulf %2, %12 : vector<1x128xf32>
    %15 = arith.subf %13, %14 : vector<1x128xf32>
    %c0_8 = arith.constant 0 : index
    %c0_9 = arith.constant 0 : index
    %16 = vector.load %arg1[%c0_8, %c0_9] : memref<16x128xbf16, #tpu.memory_space<vmem>>, vector<16x128xbf16>
    %17 = arith.extf %16 : vector<16x128xbf16> to vector<16x128xf32>
    %18 = vector.broadcast %12 : vector<1x128xf32> to vector<16x128xf32>
    %19 = arith.mulf %17, %18 : vector<16x128xf32>
    %20 = vector.broadcast %15 : vector<1x128xf32> to vector<16x128xf32>
    %21 = arith.addf %19, %20 : vector<16x128xf32>
    %cst_10 = arith.constant 0.000000e+00 : f32
    %22 = vector.broadcast %cst_10 : f32 to vector<16x128xf32>
    %23 = arith.maximumf %21, %22 : vector<16x128xf32>
    %24 = arith.truncf %23 : vector<16x128xf32> to vector<16x128xbf16>
    %c0_11 = arith.constant 0 : index
    %c0_12 = arith.constant 0 : index
    %25 = vector.load %arg5[%c0_11, %c0_12] : memref<16x128xbf16, #tpu.memory_space<vmem>>, vector<16x128xbf16>
    tpu.vector_store %arg5[%c0_11, %c0_12], %24 {strides = array<i32>} : memref<16x128xbf16, #tpu.memory_space<vmem>>, vector<16x128xbf16>,
    return
  }
  func.func @transform_0(%arg0: i32) -> (i32, i32) {
    %c0_i32 = arith.constant 0 : i32
    %c0_i32_0 = arith.constant 0 : i32
    return %arg0, %c0_i32 : i32, i32
  }
  func.func @transform_1(%arg0: i32) -> (i32, i32) {
    %c0_i32 = arith.constant 0 : i32
    %c0_i32_0 = arith.constant 0 : i32
    %c0_i32_1 = arith.constant 0 : i32
    return %c0_i32, %c0_i32_0 : i32, i32
  }
  func.func @transform_2(%arg0: i32) -> (i32, i32) {
    %c0_i32 = arith.constant 0 : i32
    %c0_i32_0 = arith.constant 0 : i32
    %c0_i32_1 = arith.constant 0 : i32
    return %c0_i32, %c0_i32_0 : i32, i32
  }
  func.func @transform_3(%arg0: i32) -> (i32, i32) {
    %c0_i32 = arith.constant 0 : i32
    %c0_i32_0 = arith.constant 0 : i32
    %c0_i32_1 = arith.constant 0 : i32
    return %c0_i32, %c0_i32_0 : i32, i32
  }
  func.func @transform_4(%arg0: i32) -> (i32, i32) {
    %c0_i32 = arith.constant 0 : i32
    %c0_i32_0 = arith.constant 0 : i32
    return %arg0, %c0_i32 : i32, i32
  }
}

module attributes {stable_mosaic.version = 11 : i64} {
  func.func @_matmul_stats_kernel(%arg0: i32, %arg1: memref<16x16xbf16, #tpu.memory_space<vmem>>, %arg2: memref<16x128xbf16, #tpu.memory_space<vmem>>, %arg3: memref<16x128xbf16, #tpu.memory_space<vmem>>, %arg4: memref<1x2x128xf32, #tpu.memory_space<vmem>>) attributes {dimension_semantics = [#tpu.dimension_semantics<parallel>], iteration_bounds = array<i64: 1>, scalar_prefetch = 0 : i64, scratch_operands = 0 : i64, tpu.core_type = #tpu.core_type<tc>, window_params = [{transform_indices = @transform_0, window_bounds = array<i64: 16, 16>}, {pipeline_mode = #tpu.pipeline_mode<synchronous>, transform_indices = @transform_1, window_bounds = array<i64: 16, 128>}, {transform_indices = @transform_2, window_bounds = array<i64: 16, 128>}, {transform_indices = @transform_3, window_bounds = array<i64: 1, 2, 128>}]} {
    %c0 = arith.constant 0 : index
    %c0_0 = arith.constant 0 : index
    %0 = vector.load %arg1[%c0, %c0_0] : memref<16x16xbf16, #tpu.memory_space<vmem>>, vector<16x16xbf16>
    %c0_1 = arith.constant 0 : index
    %c0_2 = arith.constant 0 : index
    %1 = vector.load %arg2[%c0_1, %c0_2] : memref<16x128xbf16, #tpu.memory_space<vmem>>, vector<16x128xbf16>
    %cst = arith.constant dense<0.000000e+00> : vector<16x128xf32>
    %2 = tpu.matmul %0, %1, %cst {dimension_numbers = #tpu.dot_dimension_numbers<[1], [0], [0], [1], [0, 0, 1, 1], [], []>} : vector<16x16xbf16>, vector<16x128xbf16>, vector<16x128xf32> -> vector<16x128xf32>
    %3 = arith.truncf %2 : vector<16x128xf32> to vector<16x128xbf16>
    %c0_3 = arith.constant 0 : index
    %c0_4 = arith.constant 0 : index
    %4 = vector.load %arg3[%c0_3, %c0_4] : memref<16x128xbf16, #tpu.memory_space<vmem>>, vector<16x128xbf16>
    tpu.vector_store %arg3[%c0_3, %c0_4], %3 {strides = array<i32>} : memref<16x128xbf16, #tpu.memory_space<vmem>>, vector<16x128xbf16>,
    %cst_5 = arith.constant dense<0.000000e+00> : vector<128xf32>
    %5 = vector.multi_reduction <add>, %2, %cst_5 [0] : vector<16x128xf32> to vector<128xf32>
    %6 = vector.shape_cast %5 : vector<128xf32> to vector<1x128xf32>
    %7 = arith.mulf %2, %2 : vector<16x128xf32>
    %cst_6 = arith.constant dense<0.000000e+00> : vector<128xf32>
    %8 = vector.multi_reduction <add>, %7, %cst_6 [0] : vector<16x128xf32> to vector<128xf32>
    %9 = vector.shape_cast %8 : vector<128xf32> to vector<1x128xf32>
    %10 = tpu.concatenate %6, %9 in 0 : vector<1x128xf32>, vector<1x128xf32> -> vector<2x128xf32>
    %11 = vector.shape_cast %10 : vector<2x128xf32> to vector<1x2x128xf32>
    %c0_7 = arith.constant 0 : index
    %c0_8 = arith.constant 0 : index
    %c0_9 = arith.constant 0 : index
    %12 = vector.load %arg4[%c0_7, %c0_8, %c0_9] : memref<1x2x128xf32, #tpu.memory_space<vmem>>, vector<1x2x128xf32>
    tpu.vector_store %arg4[%c0_7, %c0_8, %c0_9], %11 {strides = array<i32>} : memref<1x2x128xf32, #tpu.memory_space<vmem>>, vector<1x2x128xf32>,
    return
  }
  func.func @transform_0(%arg0: i32) -> (i32, i32) {
    %c0_i32 = arith.constant 0 : i32
    %c0_i32_0 = arith.constant 0 : i32
    return %arg0, %c0_i32 : i32, i32
  }
  func.func @transform_1(%arg0: i32) -> (i32, i32) {
    %c0_i32 = arith.constant 0 : i32
    %c0_i32_0 = arith.constant 0 : i32
    %c0_i32_1 = arith.constant 0 : i32
    return %c0_i32, %c0_i32_0 : i32, i32
  }
  func.func @transform_2(%arg0: i32) -> (i32, i32) {
    %c0_i32 = arith.constant 0 : i32
    %c0_i32_0 = arith.constant 0 : i32
    return %arg0, %c0_i32 : i32, i32
  }
  func.func @transform_3(%arg0: i32) -> (i32, i32, i32) {
    %c0_i32 = arith.constant 0 : i32
    %c0_i32_0 = arith.constant 0 : i32
    %c0_i32_1 = arith.constant 0 : i32
    return %arg0, %c0_i32, %c0_i32_0 : i32, i32, i32
  }
}

module attributes {stable_mosaic.version = 11 : i64} {
  func.func @_bn_relu_kernel(%arg0: i32, %arg1: memref<64x128xbf16, #tpu.memory_space<vmem>>, %arg2: memref<2x128xf32, #tpu.memory_space<vmem>>, %arg3: memref<1x128xf32, #tpu.memory_space<vmem>>, %arg4: memref<1x128xf32, #tpu.memory_space<vmem>>, %arg5: memref<64x128xbf16, #tpu.memory_space<vmem>>) attributes {dimension_semantics = [#tpu.dimension_semantics<parallel>], iteration_bounds = array<i64: 1>, scalar_prefetch = 0 : i64, scratch_operands = 0 : i64, tpu.core_type = #tpu.core_type<tc>, window_params = [{transform_indices = @transform_0, window_bounds = array<i64: 64, 128>}, {pipeline_mode = #tpu.pipeline_mode<synchronous>, transform_indices = @transform_1, window_bounds = array<i64: 2, 128>}, {pipeline_mode = #tpu.pipeline_mode<synchronous>, transform_indices = @transform_2, window_bounds = array<i64: 1, 128>}, {pipeline_mode = #tpu.pipeline_mode<synchronous>, transform_indices = @transform_3, window_bounds = array<i64: 1, 128>}, {transform_indices = @transform_4, window_bounds = array<i64: 64, 128>}]} {
    %c0 = arith.constant 0 : index
    %c0_0 = arith.constant 0 : index
    %0 = vector.load %arg2[%c0, %c0_0] : memref<2x128xf32, #tpu.memory_space<vmem>>, vector<1x128xf32>
    %cst = arith.constant 2.000000e-02 : f32
    %1 = vector.broadcast %cst : f32 to vector<1x128xf32>
    %2 = arith.mulf %0, %1 : vector<1x128xf32>
    %c1 = arith.constant 1 : index
    %c0_1 = arith.constant 0 : index
    %3 = vector.load %arg2[%c1, %c0_1] : memref<2x128xf32, #tpu.memory_space<vmem>>, vector<1x128xf32>
    %cst_2 = arith.constant 2.000000e-02 : f32
    %4 = vector.broadcast %cst_2 : f32 to vector<1x128xf32>
    %5 = arith.mulf %3, %4 : vector<1x128xf32>
    %6 = arith.mulf %2, %2 : vector<1x128xf32>
    %7 = arith.subf %5, %6 : vector<1x128xf32>
    %c0_3 = arith.constant 0 : index
    %c0_4 = arith.constant 0 : index
    %8 = vector.load %arg3[%c0_3, %c0_4] : memref<1x128xf32, #tpu.memory_space<vmem>>, vector<1x128xf32>
    %cst_5 = arith.constant 9.99999974E-6 : f32
    %9 = vector.broadcast %cst_5 : f32 to vector<1x128xf32>
    %10 = arith.addf %7, %9 : vector<1x128xf32>
    %11 = math.rsqrt %10 : vector<1x128xf32>
    %12 = arith.mulf %8, %11 : vector<1x128xf32>
    %c0_6 = arith.constant 0 : index
    %c0_7 = arith.constant 0 : index
    %13 = vector.load %arg4[%c0_6, %c0_7] : memref<1x128xf32, #tpu.memory_space<vmem>>, vector<1x128xf32>
    %14 = arith.mulf %2, %12 : vector<1x128xf32>
    %15 = arith.subf %13, %14 : vector<1x128xf32>
    %c0_8 = arith.constant 0 : index
    %c0_9 = arith.constant 0 : index
    %16 = vector.load %arg1[%c0_8, %c0_9] : memref<64x128xbf16, #tpu.memory_space<vmem>>, vector<64x128xbf16>
    %17 = arith.extf %16 : vector<64x128xbf16> to vector<64x128xf32>
    %18 = vector.broadcast %12 : vector<1x128xf32> to vector<64x128xf32>
    %19 = arith.mulf %17, %18 : vector<64x128xf32>
    %20 = vector.broadcast %15 : vector<1x128xf32> to vector<64x128xf32>
    %21 = arith.addf %19, %20 : vector<64x128xf32>
    %cst_10 = arith.constant 0.000000e+00 : f32
    %22 = vector.broadcast %cst_10 : f32 to vector<64x128xf32>
    %23 = arith.maximumf %21, %22 : vector<64x128xf32>
    %24 = arith.truncf %23 : vector<64x128xf32> to vector<64x128xbf16>
    %c0_11 = arith.constant 0 : index
    %c0_12 = arith.constant 0 : index
    %25 = vector.load %arg5[%c0_11, %c0_12] : memref<64x128xbf16, #tpu.memory_space<vmem>>, vector<64x128xbf16>
    tpu.vector_store %arg5[%c0_11, %c0_12], %24 {strides = array<i32>} : memref<64x128xbf16, #tpu.memory_space<vmem>>, vector<64x128xbf16>,
    return
  }
  func.func @transform_0(%arg0: i32) -> (i32, i32) {
    %c0_i32 = arith.constant 0 : i32
    %c0_i32_0 = arith.constant 0 : i32
    return %arg0, %c0_i32 : i32, i32
  }
  func.func @transform_1(%arg0: i32) -> (i32, i32) {
    %c0_i32 = arith.constant 0 : i32
    %c0_i32_0 = arith.constant 0 : i32
    %c0_i32_1 = arith.constant 0 : i32
    return %c0_i32, %c0_i32_0 : i32, i32
  }
  func.func @transform_2(%arg0: i32) -> (i32, i32) {
    %c0_i32 = arith.constant 0 : i32
    %c0_i32_0 = arith.constant 0 : i32
    %c0_i32_1 = arith.constant 0 : i32
    return %c0_i32, %c0_i32_0 : i32, i32
  }
  func.func @transform_3(%arg0: i32) -> (i32, i32) {
    %c0_i32 = arith.constant 0 : i32
    %c0_i32_0 = arith.constant 0 : i32
    %c0_i32_1 = arith.constant 0 : i32
    return %c0_i32, %c0_i32_0 : i32, i32
  }
  func.func @transform_4(%arg0: i32) -> (i32, i32) {
    %c0_i32 = arith.constant 0 : i32
    %c0_i32_0 = arith.constant 0 : i32
    return %arg0, %c0_i32 : i32, i32
  }
}

module attributes {stable_mosaic.version = 11 : i64} {
  func.func @_matmul_stats_kernel(%arg0: i32, %arg1: memref<64x1152xbf16, #tpu.memory_space<vmem>>, %arg2: memref<1152x128xbf16, #tpu.memory_space<vmem>>, %arg3: memref<64x128xbf16, #tpu.memory_space<vmem>>, %arg4: memref<1x2x128xf32, #tpu.memory_space<vmem>>) attributes {dimension_semantics = [#tpu.dimension_semantics<parallel>], iteration_bounds = array<i64: 1>, scalar_prefetch = 0 : i64, scratch_operands = 0 : i64, tpu.core_type = #tpu.core_type<tc>, window_params = [{transform_indices = @transform_0, window_bounds = array<i64: 64, 1152>}, {pipeline_mode = #tpu.pipeline_mode<synchronous>, transform_indices = @transform_1, window_bounds = array<i64: 1152, 128>}, {transform_indices = @transform_2, window_bounds = array<i64: 64, 128>}, {transform_indices = @transform_3, window_bounds = array<i64: 1, 2, 128>}]} {
    %c0 = arith.constant 0 : index
    %c0_0 = arith.constant 0 : index
    %0 = vector.load %arg1[%c0, %c0_0] : memref<64x1152xbf16, #tpu.memory_space<vmem>>, vector<64x1152xbf16>
    %c0_1 = arith.constant 0 : index
    %c0_2 = arith.constant 0 : index
    %1 = vector.load %arg2[%c0_1, %c0_2] : memref<1152x128xbf16, #tpu.memory_space<vmem>>, vector<1152x128xbf16>
    %cst = arith.constant dense<0.000000e+00> : vector<64x128xf32>
    %2 = tpu.matmul %0, %1, %cst {dimension_numbers = #tpu.dot_dimension_numbers<[1], [0], [0], [1], [0, 0, 1, 1], [], []>} : vector<64x1152xbf16>, vector<1152x128xbf16>, vector<64x128xf32> -> vector<64x128xf32>
    %3 = arith.truncf %2 : vector<64x128xf32> to vector<64x128xbf16>
    %c0_3 = arith.constant 0 : index
    %c0_4 = arith.constant 0 : index
    %4 = vector.load %arg3[%c0_3, %c0_4] : memref<64x128xbf16, #tpu.memory_space<vmem>>, vector<64x128xbf16>
    tpu.vector_store %arg3[%c0_3, %c0_4], %3 {strides = array<i32>} : memref<64x128xbf16, #tpu.memory_space<vmem>>, vector<64x128xbf16>,
    %cst_5 = arith.constant dense<0.000000e+00> : vector<128xf32>
    %5 = vector.multi_reduction <add>, %2, %cst_5 [0] : vector<64x128xf32> to vector<128xf32>
    %6 = vector.shape_cast %5 : vector<128xf32> to vector<1x128xf32>
    %7 = arith.mulf %2, %2 : vector<64x128xf32>
    %cst_6 = arith.constant dense<0.000000e+00> : vector<128xf32>
    %8 = vector.multi_reduction <add>, %7, %cst_6 [0] : vector<64x128xf32> to vector<128xf32>
    %9 = vector.shape_cast %8 : vector<128xf32> to vector<1x128xf32>
    %10 = tpu.concatenate %6, %9 in 0 : vector<1x128xf32>, vector<1x128xf32> -> vector<2x128xf32>
    %11 = vector.shape_cast %10 : vector<2x128xf32> to vector<1x2x128xf32>
    %c0_7 = arith.constant 0 : index
    %c0_8 = arith.constant 0 : index
    %c0_9 = arith.constant 0 : index
    %12 = vector.load %arg4[%c0_7, %c0_8, %c0_9] : memref<1x2x128xf32, #tpu.memory_space<vmem>>, vector<1x2x128xf32>
    tpu.vector_store %arg4[%c0_7, %c0_8, %c0_9], %11 {strides = array<i32>} : memref<1x2x128xf32, #tpu.memory_space<vmem>>, vector<1x2x128xf32>,
    return
  }
  func.func @transform_0(%arg0: i32) -> (i32, i32) {
    %c0_i32 = arith.constant 0 : i32
    %c0_i32_0 = arith.constant 0 : i32
    return %arg0, %c0_i32 : i32, i32
  }
  func.func @transform_1(%arg0: i32) -> (i32, i32) {
    %c0_i32 = arith.constant 0 : i32
    %c0_i32_0 = arith.constant 0 : i32
    %c0_i32_1 = arith.constant 0 : i32
    return %c0_i32, %c0_i32_0 : i32, i32
  }
  func.func @transform_2(%arg0: i32) -> (i32, i32) {
    %c0_i32 = arith.constant 0 : i32
    %c0_i32_0 = arith.constant 0 : i32
    return %arg0, %c0_i32 : i32, i32
  }
  func.func @transform_3(%arg0: i32) -> (i32, i32, i32) {
    %c0_i32 = arith.constant 0 : i32
    %c0_i32_0 = arith.constant 0 : i32
    %c0_i32_1 = arith.constant 0 : i32
    return %arg0, %c0_i32, %c0_i32_0 : i32, i32, i32
  }
}

module attributes {stable_mosaic.version = 11 : i64} {
  func.func @_bn_relu_kernel(%arg0: i32, %arg1: memref<288x128xbf16, #tpu.memory_space<vmem>>, %arg2: memref<2x128xf32, #tpu.memory_space<vmem>>, %arg3: memref<1x128xf32, #tpu.memory_space<vmem>>, %arg4: memref<1x128xf32, #tpu.memory_space<vmem>>, %arg5: memref<288x64xbf16, #tpu.memory_space<vmem>>) attributes {dimension_semantics = [#tpu.dimension_semantics<parallel>], iteration_bounds = array<i64: 1>, scalar_prefetch = 0 : i64, scratch_operands = 0 : i64, tpu.core_type = #tpu.core_type<tc>, window_params = [{transform_indices = @transform_0, window_bounds = array<i64: 288, 128>}, {pipeline_mode = #tpu.pipeline_mode<synchronous>, transform_indices = @transform_1, window_bounds = array<i64: 2, 128>}, {pipeline_mode = #tpu.pipeline_mode<synchronous>, transform_indices = @transform_2, window_bounds = array<i64: 1, 128>}, {pipeline_mode = #tpu.pipeline_mode<synchronous>, transform_indices = @transform_3, window_bounds = array<i64: 1, 128>}, {transform_indices = @transform_4, window_bounds = array<i64: 288, 64>}]} {
    %c0 = arith.constant 0 : index
    %c0_0 = arith.constant 0 : index
    %0 = vector.load %arg2[%c0, %c0_0] : memref<2x128xf32, #tpu.memory_space<vmem>>, vector<1x128xf32>
    %cst = arith.constant 0.00347222225 : f32
    %1 = vector.broadcast %cst : f32 to vector<1x128xf32>
    %2 = arith.mulf %0, %1 : vector<1x128xf32>
    %c1 = arith.constant 1 : index
    %c0_1 = arith.constant 0 : index
    %3 = vector.load %arg2[%c1, %c0_1] : memref<2x128xf32, #tpu.memory_space<vmem>>, vector<1x128xf32>
    %cst_2 = arith.constant 0.00347222225 : f32
    %4 = vector.broadcast %cst_2 : f32 to vector<1x128xf32>
    %5 = arith.mulf %3, %4 : vector<1x128xf32>
    %6 = arith.mulf %2, %2 : vector<1x128xf32>
    %7 = arith.subf %5, %6 : vector<1x128xf32>
    %c0_3 = arith.constant 0 : index
    %c0_4 = arith.constant 0 : index
    %8 = vector.load %arg3[%c0_3, %c0_4] : memref<1x128xf32, #tpu.memory_space<vmem>>, vector<1x128xf32>
    %cst_5 = arith.constant 9.99999974E-6 : f32
    %9 = vector.broadcast %cst_5 : f32 to vector<1x128xf32>
    %10 = arith.addf %7, %9 : vector<1x128xf32>
    %11 = math.rsqrt %10 : vector<1x128xf32>
    %12 = arith.mulf %8, %11 : vector<1x128xf32>
    %c0_6 = arith.constant 0 : index
    %c0_7 = arith.constant 0 : index
    %13 = vector.load %arg4[%c0_6, %c0_7] : memref<1x128xf32, #tpu.memory_space<vmem>>, vector<1x128xf32>
    %14 = arith.mulf %2, %12 : vector<1x128xf32>
    %15 = arith.subf %13, %14 : vector<1x128xf32>
    %c0_8 = arith.constant 0 : index
    %c0_9 = arith.constant 0 : index
    %16 = vector.load %arg1[%c0_8, %c0_9] : memref<288x128xbf16, #tpu.memory_space<vmem>>, vector<288x128xbf16>
    %17 = arith.extf %16 : vector<288x128xbf16> to vector<288x128xf32>
    %18 = vector.broadcast %12 : vector<1x128xf32> to vector<288x128xf32>
    %19 = arith.mulf %17, %18 : vector<288x128xf32>
    %20 = vector.broadcast %15 : vector<1x128xf32> to vector<288x128xf32>
    %21 = arith.addf %19, %20 : vector<288x128xf32>
    %cst_10 = arith.constant 0.000000e+00 : f32
    %22 = vector.broadcast %cst_10 : f32 to vector<288x128xf32>
    %23 = arith.maximumf %21, %22 : vector<288x128xf32>
    %24 = vector.extract_strided_slice %23 {offsets = [0, 0], sizes = [288, 64], strides = [1, 1]} : vector<288x128xf32> to vector<288x64xf32>
    %25 = arith.truncf %24 : vector<288x64xf32> to vector<288x64xbf16>
    %c0_11 = arith.constant 0 : index
    %c0_12 = arith.constant 0 : index
    %26 = vector.load %arg5[%c0_11, %c0_12] : memref<288x64xbf16, #tpu.memory_space<vmem>>, vector<288x64xbf16>
    tpu.vector_store %arg5[%c0_11, %c0_12], %25 {strides = array<i32>} : memref<288x64xbf16, #tpu.memory_space<vmem>>, vector<288x64xbf16>,
    return
  }
  func.func @transform_0(%arg0: i32) -> (i32, i32) {
    %c0_i32 = arith.constant 0 : i32
    %c0_i32_0 = arith.constant 0 : i32
    return %arg0, %c0_i32 : i32, i32
  }
  func.func @transform_1(%arg0: i32) -> (i32, i32) {
    %c0_i32 = arith.constant 0 : i32
    %c0_i32_0 = arith.constant 0 : i32
    %c0_i32_1 = arith.constant 0 : i32
    return %c0_i32, %c0_i32_0 : i32, i32
  }
  func.func @transform_2(%arg0: i32) -> (i32, i32) {
    %c0_i32 = arith.constant 0 : i32
    %c0_i32_0 = arith.constant 0 : i32
    %c0_i32_1 = arith.constant 0 : i32
    return %c0_i32, %c0_i32_0 : i32, i32
  }
  func.func @transform_3(%arg0: i32) -> (i32, i32) {
    %c0_i32 = arith.constant 0 : i32
    %c0_i32_0 = arith.constant 0 : i32
    %c0_i32_1 = arith.constant 0 : i32
    return %c0_i32, %c0_i32_0 : i32, i32
  }
  func.func @transform_4(%arg0: i32) -> (i32, i32) {
    %c0_i32 = arith.constant 0 : i32
    %c0_i32_0 = arith.constant 0 : i32
    return %arg0, %c0_i32 : i32, i32
  }
}

module attributes {stable_mosaic.version = 11 : i64} {
  func.func @_matmul_stats_kernel(%arg0: i32, %arg1: memref<288x1152xbf16, #tpu.memory_space<vmem>>, %arg2: memref<1152x128xbf16, #tpu.memory_space<vmem>>, %arg3: memref<288x128xbf16, #tpu.memory_space<vmem>>, %arg4: memref<1x2x128xf32, #tpu.memory_space<vmem>>) attributes {dimension_semantics = [#tpu.dimension_semantics<parallel>], iteration_bounds = array<i64: 1>, scalar_prefetch = 0 : i64, scratch_operands = 0 : i64, tpu.core_type = #tpu.core_type<tc>, window_params = [{transform_indices = @transform_0, window_bounds = array<i64: 288, 1152>}, {pipeline_mode = #tpu.pipeline_mode<synchronous>, transform_indices = @transform_1, window_bounds = array<i64: 1152, 128>}, {transform_indices = @transform_2, window_bounds = array<i64: 288, 128>}, {transform_indices = @transform_3, window_bounds = array<i64: 1, 2, 128>}]} {
    %c0 = arith.constant 0 : index
    %c0_0 = arith.constant 0 : index
    %0 = vector.load %arg1[%c0, %c0_0] : memref<288x1152xbf16, #tpu.memory_space<vmem>>, vector<288x1152xbf16>
    %c0_1 = arith.constant 0 : index
    %c0_2 = arith.constant 0 : index
    %1 = vector.load %arg2[%c0_1, %c0_2] : memref<1152x128xbf16, #tpu.memory_space<vmem>>, vector<1152x128xbf16>
    %cst = arith.constant dense<0.000000e+00> : vector<288x128xf32>
    %2 = tpu.matmul %0, %1, %cst {dimension_numbers = #tpu.dot_dimension_numbers<[1], [0], [0], [1], [0, 0, 1, 1], [], []>} : vector<288x1152xbf16>, vector<1152x128xbf16>, vector<288x128xf32> -> vector<288x128xf32>
    %3 = arith.truncf %2 : vector<288x128xf32> to vector<288x128xbf16>
    %c0_3 = arith.constant 0 : index
    %c0_4 = arith.constant 0 : index
    %4 = vector.load %arg3[%c0_3, %c0_4] : memref<288x128xbf16, #tpu.memory_space<vmem>>, vector<288x128xbf16>
    tpu.vector_store %arg3[%c0_3, %c0_4], %3 {strides = array<i32>} : memref<288x128xbf16, #tpu.memory_space<vmem>>, vector<288x128xbf16>,
    %cst_5 = arith.constant dense<0.000000e+00> : vector<128xf32>
    %5 = vector.multi_reduction <add>, %2, %cst_5 [0] : vector<288x128xf32> to vector<128xf32>
    %6 = vector.shape_cast %5 : vector<128xf32> to vector<1x128xf32>
    %7 = arith.mulf %2, %2 : vector<288x128xf32>
    %cst_6 = arith.constant dense<0.000000e+00> : vector<128xf32>
    %8 = vector.multi_reduction <add>, %7, %cst_6 [0] : vector<288x128xf32> to vector<128xf32>
    %9 = vector.shape_cast %8 : vector<128xf32> to vector<1x128xf32>
    %10 = tpu.concatenate %6, %9 in 0 : vector<1x128xf32>, vector<1x128xf32> -> vector<2x128xf32>
    %11 = vector.shape_cast %10 : vector<2x128xf32> to vector<1x2x128xf32>
    %c0_7 = arith.constant 0 : index
    %c0_8 = arith.constant 0 : index
    %c0_9 = arith.constant 0 : index
    %12 = vector.load %arg4[%c0_7, %c0_8, %c0_9] : memref<1x2x128xf32, #tpu.memory_space<vmem>>, vector<1x2x128xf32>
    tpu.vector_store %arg4[%c0_7, %c0_8, %c0_9], %11 {strides = array<i32>} : memref<1x2x128xf32, #tpu.memory_space<vmem>>, vector<1x2x128xf32>,
    return
  }
  func.func @transform_0(%arg0: i32) -> (i32, i32) {
    %c0_i32 = arith.constant 0 : i32
    %c0_i32_0 = arith.constant 0 : i32
    return %arg0, %c0_i32 : i32, i32
  }
  func.func @transform_1(%arg0: i32) -> (i32, i32) {
    %c0_i32 = arith.constant 0 : i32
    %c0_i32_0 = arith.constant 0 : i32
    %c0_i32_1 = arith.constant 0 : i32
    return %c0_i32, %c0_i32_0 : i32, i32
  }
  func.func @transform_2(%arg0: i32) -> (i32, i32) {
    %c0_i32 = arith.constant 0 : i32
    %c0_i32_0 = arith.constant 0 : i32
    return %arg0, %c0_i32 : i32, i32
  }
  func.func @transform_3(%arg0: i32) -> (i32, i32, i32) {
    %c0_i32 = arith.constant 0 : i32
    %c0_i32_0 = arith.constant 0 : i32
    %c0_i32_1 = arith.constant 0 : i32
    return %arg0, %c0_i32, %c0_i32_0 : i32, i32, i32
  }
}

module attributes {stable_mosaic.version = 11 : i64} {
  func.func @_matmul_bias_kernel(%arg0: i32, %arg1: memref<224x1600xbf16, #tpu.memory_space<vmem>>, %arg2: memref<1600x128xbf16, #tpu.memory_space<vmem>>, %arg3: memref<1x128xf32, #tpu.memory_space<vmem>>, %arg4: memref<224x1xf32, #tpu.memory_space<vmem>>) attributes {dimension_semantics = [#tpu.dimension_semantics<parallel>], iteration_bounds = array<i64: 7>, scalar_prefetch = 0 : i64, scratch_operands = 0 : i64, tpu.core_type = #tpu.core_type<tc>, window_params = [{transform_indices = @transform_0, window_bounds = array<i64: 224, 1600>}, {pipeline_mode = #tpu.pipeline_mode<synchronous>, transform_indices = @transform_1, window_bounds = array<i64: 1600, 128>}, {pipeline_mode = #tpu.pipeline_mode<synchronous>, transform_indices = @transform_2, window_bounds = array<i64: 1, 128>}, {transform_indices = @transform_3, window_bounds = array<i64: 224, 1>}]} {
    %c0 = arith.constant 0 : index
    %c0_0 = arith.constant 0 : index
    %0 = vector.load %arg1[%c0, %c0_0] : memref<224x1600xbf16, #tpu.memory_space<vmem>>, vector<224x1600xbf16>
    %c0_1 = arith.constant 0 : index
    %c0_2 = arith.constant 0 : index
    %1 = vector.load %arg2[%c0_1, %c0_2] : memref<1600x128xbf16, #tpu.memory_space<vmem>>, vector<1600x128xbf16>
    %cst = arith.constant dense<0.000000e+00> : vector<224x128xf32>
    %2 = tpu.matmul %0, %1, %cst {dimension_numbers = #tpu.dot_dimension_numbers<[1], [0], [0], [1], [0, 0, 1, 1], [], []>} : vector<224x1600xbf16>, vector<1600x128xbf16>, vector<224x128xf32> -> vector<224x128xf32>
    %c0_3 = arith.constant 0 : index
    %c0_4 = arith.constant 0 : index
    %3 = vector.load %arg3[%c0_3, %c0_4] : memref<1x128xf32, #tpu.memory_space<vmem>>, vector<1x128xf32>
    %4 = vector.broadcast %3 : vector<1x128xf32> to vector<224x128xf32>
    %5 = arith.addf %2, %4 : vector<224x128xf32>
    %6 = vector.extract_strided_slice %5 {offsets = [0, 0], sizes = [224, 1], strides = [1, 1]} : vector<224x128xf32> to vector<224x1xf32>
    %c0_5 = arith.constant 0 : index
    %c0_6 = arith.constant 0 : index
    %7 = vector.load %arg4[%c0_5, %c0_6] : memref<224x1xf32, #tpu.memory_space<vmem>>, vector<224x1xf32>
    tpu.vector_store %arg4[%c0_5, %c0_6], %6 {strides = array<i32>} : memref<224x1xf32, #tpu.memory_space<vmem>>, vector<224x1xf32>,
    return
  }
  func.func @transform_0(%arg0: i32) -> (i32, i32) {
    %c0_i32 = arith.constant 0 : i32
    %c0_i32_0 = arith.constant 0 : i32
    return %arg0, %c0_i32 : i32, i32
  }
  func.func @transform_1(%arg0: i32) -> (i32, i32) {
    %c0_i32 = arith.constant 0 : i32
    %c0_i32_0 = arith.constant 0 : i32
    %c0_i32_1 = arith.constant 0 : i32
    return %c0_i32, %c0_i32_0 : i32, i32
  }
  func.func @transform_2(%arg0: i32) -> (i32, i32) {
    %c0_i32 = arith.constant 0 : i32
    %c0_i32_0 = arith.constant 0 : i32
    %c0_i32_1 = arith.constant 0 : i32
    return %c0_i32, %c0_i32_0 : i32, i32
  }
  func.func @transform_3(%arg0: i32) -> (i32, i32) {
    %c0_i32 = arith.constant 0 : i32
    %c0_i32_0 = arith.constant 0 : i32
    return %arg0, %c0_i32 : i32, i32
  }
}

</mosaic_0001>

<llo_original>
// kernel: cvae2_pool_forward.15
$region0: #{cvae2_pool_forward.15}
  #allocation0 [shape = 'u32[]', space=smem, size = 0x4, offset = 0x4, fixed_abs, tag = 'smem constant byte address 0x4 - core index']
  #allocation1 [shape = 'u32[144,128]{1,0:T(1,128)}', space=vmem, size = 0x12000, scoped, tag = 'internal scratch']
  %s0 = inlined_call_operand.vmem [shape: bf16[1152,128], index: 0, kind: input, shape index: {}]
  %s1 = inlined_call_operand.vmem [shape: f32[2,128], index: 1, kind: input, shape index: {}]
  %s2 = inlined_call_operand.hbm [shape: f32[1,128], index: 2, kind: input, shape index: {}]
  %s3 = inlined_call_operand.hbm [shape: f32[1,128], index: 3, kind: input, shape index: {}]
  %s4 = inlined_call_operand.vmem [shape: bf16[1152,64], index: 4, kind: output, shape index: {}]
  %s5 = sld [smem:[#allocation0]]
  $region57: #{cvae2_pool_forward.15} parent=0
    _
  %s7 = ssub.s32 1, %s5
  %s8 = scalar_select 0, %s7, %s5
  $region1: #{cvae2_pool_forward.15} parent=0
    #allocation2 [shape = 'u8[512]{0}', space=vmem, size = 0x400, scoped, tag = 'input window, operand 2, single buffered']
    #allocation3 [shape = 's32[2]{0}', space=sflag, size = 0x8, scoped, tag = 'scoped memory for cvae2_pool_forward.15']
    #allocation4 [shape = 'u8[512]{0}', space=vmem, size = 0x400, scoped, tag = 'input window, operand 3, single buffered']
    #allocation5 [shape = 's32[1]{0}', space=sflag, size = 0x4, scoped, tag = 'scoped memory for cvae2_pool_forward.15']
    %9 = vsyncpa [#allocation3], 0
    %10 = vsyncpa [#allocation5], 0
    loop: start=0, step=1, limit=5
    $region2: #{cvae2_pool_forward.15} parent=1 // loop_pre_header
      _
    $region3: #{cvae2_pool_forward.15} parent=1 // loop_header
      %s12 = sphi 0, %s16
      %p13 = scmp.ge.s32.totalorder %s12, 5
      %s22 = sphi 0, %s24
      %s25 = sphi 0, %s22
      %s26 = sphi 0, %s25
      %s42 = sphi 0, %s26
      %s46 = sphi 0, %s46
      %s48 = sphi 0, %s46
      %s49 = sphi 0, %s48
      %s63 = sphi 0, %s49
      %s67 = sphi 0, %s67
      %s69 = sphi 0, %s67
      %s70 = sphi 0, %s69
      %s84 = sphi 0, %s70
      %s88 = sphi 0, %s88
      %s90 = sphi 0, %s88
      %s91 = sphi 0, %s90
      %s105 = sphi 0, %s91
      %s111 = sphi 0, %s113
      %s114 = sphi 0, %s111
      %s115 = sphi 0, %s114
      %s131 = sphi 0, %s115
    $region4: #{cvae2_pool_forward.15} parent=1 // loop_header_branch
      %15 = sbr.rel (%p13) target = $region8
    $region5: #{cvae2_pool_forward.15} parent=1 // loop_body
      %s17 = ssub.s32 %s12, 1
      %s18 = ssub.s32 %s12, 2
      %s19 = sadd.s32 %s12, 1
      %s20 = ssub.s32 %s12, %s19
      %p21 = scmp.eq.s32.totalorder %s20, 0
      %s23 = sadd.s32 %s22, 1
      %s24 = scalar_select %p21, %s22, %s23
      %p27 = pneg %p21
      %p28 = scmp.eq.s32.totalorder %s12, 2
      %p29 = por %p27, %p28
      %p30 = scmp.ne.s32.totalorder %s22, %s25
      %p31 = scmp.eq.s32.totalorder %s12, 0
      %p32 = por %p30, %p31
      %p33 = scmp.ne.s32.totalorder %s22, %s25
      %p34 = scmp.eq.s32.totalorder %s17, 2
      %p35 = por %p33, %p34
      %p36 = scmp.ne.s32.totalorder %s25, %s26
      %p37 = scmp.eq.s32.totalorder %s17, 0
      %p38 = por %p36, %p37
      %p39 = scmp.ne.s32.totalorder %s25, %s26
      %p40 = scmp.eq.s32.totalorder %s18, 2
      %p41 = por %p39, %p40
      %p43 = scmp.ne.s32.totalorder %s26, %s42
      %p44 = scmp.eq.s32.totalorder %s18, 0
      %p45 = por %p43, %p44
      %s47 = sadd.s32 %s46, 1
      %p50 = scmp.eq.s32.totalorder %s12, 2
      %p51 = scmp.ne.s32.totalorder %s46, %s48
      %p52 = scmp.eq.s32.totalorder %s12, 0
      %p53 = por %p51, %p52
      %p54 = scmp.ne.s32.totalorder %s46, %s48
      %p55 = scmp.eq.s32.totalorder %s17, 2
      %p56 = por %p54, %p55
      %p57 = scmp.ne.s32.totalorder %s48, %s49
      %p58 = scmp.eq.s32.totalorder %s17, 0
      %p59 = por %p57, %p58
      %p60 = scmp.ne.s32.totalorder %s48, %s49
      %p61 = scmp.eq.s32.totalorder %s18, 2
      %p62 = por %p60, %p61
      %p64 = scmp.ne.s32.totalorder %s49, %s63
      %p65 = scmp.eq.s32.totalorder %s18, 0
      %p66 = por %p64, %p65
      %s68 = sadd.s32 %s67, 1
      %p71 = scmp.eq.s32.totalorder %s12, 2
      %p72 = scmp.ne.s32.totalorder %s67, %s69
      %p73 = scmp.eq.s32.totalorder %s12, 0
      %p74 = por %p72, %p73
      %p75 = scmp.ne.s32.totalorder %s67, %s69
      %p76 = scmp.eq.s32.totalorder %s17, 2
      %p77 = por %p75, %p76
      %p78 = scmp.ne.s32.totalorder %s69, %s70
      %p79 = scmp.eq.s32.totalorder %s17, 0
      %p80 = por %p78, %p79
      %p81 = scmp.ne.s32.totalorder %s69, %s70
      %p82 = scmp.eq.s32.totalorder %s18, 2
      %p83 = por %p81, %p82
      %p85 = scmp.ne.s32.totalorder %s70, %s84
      %p86 = scmp.eq.s32.totalorder %s18, 0
      %p87 = por %p85, %p86
      %s89 = sadd.s32 %s88, 1
      %p92 = scmp.eq.s32.totalorder %s12, 2
      %p93 = scmp.ne.s32.totalorder %s88, %s90
      %p94 = scmp.eq.s32.totalorder %s12, 0
      %p95 = por %p93, %p94
      %p96 = scmp.ne.s32.totalorder %s88, %s90
      %p97 = scmp.eq.s32.totalorder %s17, 2
      %p98 = por %p96, %p97
      %p99 = scmp.ne.s32.totalorder %s90, %s91
      %p100 = scmp.eq.s32.totalorder %s17, 0
      %p101 = por %p99, %p100
      %p102 = scmp.ne.s32.totalorder %s90, %s91
      %p103 = scmp.eq.s32.totalorder %s18, 2
      %p104 = por %p102, %p103
      %p106 = scmp.ne.s32.totalorder %s91, %s105
      %p107 = scmp.eq.s32.totalorder %s18, 0
      %p108 = por %p106, %p107
      %s109 = ssub.s32 %s12, %s19
      %p110 = scmp.eq.s32.totalorder %s109, 0
      %s112 = sadd.s32 %s111, 1
      %s113 = scalar_select %p110, %s111, %s112
      %p116 = pneg %p110
      %p117 = scmp.eq.s32.totalorder %s12, 2
      %p118 = por %p116, %p117
      %p119 = scmp.ne.s32.totalorder %s111, %s114
      %p120 = scmp.eq.s32.totalorder %s12, 0
      %p121 = por %p119, %p120
      %p122 = scmp.ne.s32.totalorder %s111, %s114
      %p123 = scmp.eq.s32.totalorder %s17, 2
      %p124 = por %p122, %p123
      %p125 = scmp.ne.s32.totalorder %s114, %s115
      %p126 = scmp.eq.s32.totalorder %s17, 0
      %p127 = por %p125, %p126
      %p128 = scmp.ne.s32.totalorder %s114, %s115
      %p129 = scmp.eq.s32.totalorder %s18, 2
      %p130 = por %p128, %p129
      %p132 = scmp.ne.s32.totalorder %s115, %s131
      %p133 = scmp.eq.s32.totalorder %s18, 0
      %p134 = por %p132, %p133
      %p135 = scmp.le.s32.totalorder 1, %s12
      %p136 = scmp.lt.s32.totalorder %s12, 4
      %p137 = pnand %p135, %p136
      %p138 = pneg %p137
      // Predicated region
      $region9: #{cvae2_pool_forward.15} parent=5 // pred_check
        _
      $region10: #{cvae2_pool_forward.15} parent=5 // pred_check_branch
        %140 = sbr.rel (%p137) target = $region12
      $region11: #{cvae2_pool_forward.15} parent=5 // pred_region
        %s141 = ssub.s32 %s12, 1
        // Predicated region
        $region13: #{cvae2_pool_forward.15} parent=11 // pred_check
          %p142 = pneg %p59
        $region14: #{cvae2_pool_forward.15} parent=11 // pred_check_branch
          %144 = sbr.rel (%p142) target = $region16
        $region15: #{cvae2_pool_forward.15} parent=11 // pred_region
          _
        $region16: #{cvae2_pool_forward.15} parent=11 // pred_fallthru
          _
        // Predicated region
        $region17: #{cvae2_pool_forward.15} parent=11 // pred_check
          %p145 = pneg %p80
        $region18: #{cvae2_pool_forward.15} parent=11 // pred_check_branch
          %147 = sbr.rel (%p145) target = $region20
        $region19: #{cvae2_pool_forward.15} parent=11 // pred_region
          %s149 = ssub.s32 16, 16
          %150 = vsyncadd [#allocation3], %s149
          %s152 = sshll.u32 [#allocation2], 4
          %s153 = int_to_ptr.vmem [resolvable:$true] %s152
          %155 = dma.hbm_to_vmem [thread:$0]  %s2, 16, %s153, [#allocation3]
        $region20: #{cvae2_pool_forward.15} parent=11 // pred_fallthru
          _
        // Predicated region
        $region21: #{cvae2_pool_forward.15} parent=11 // pred_check
          %p156 = pneg %p101
        $region22: #{cvae2_pool_forward.15} parent=11 // pred_check_branch
          %158 = sbr.rel (%p156) target = $region24
        $region23: #{cvae2_pool_forward.15} parent=11 // pred_region
          %s160 = ssub.s32 16, 16
          %161 = vsyncadd [#allocation5], %s160
          %s163 = sshll.u32 [#allocation4], 4
          %s164 = int_to_ptr.vmem [resolvable:$true] %s163
          %166 = dma.hbm_to_vmem [thread:$0]  %s3, 16, %s164, [#allocation5]
        $region24: #{cvae2_pool_forward.15} parent=11 // pred_fallthru
          _
      $region12: #{cvae2_pool_forward.15} parent=5 // pred_fallthru
        _
      %p167 = scmp.lt.s32.totalorder %s12, 3
      // Predicated region
      $region25: #{cvae2_pool_forward.15} parent=5 // pred_check
        %p168 = pneg %p167
      $region26: #{cvae2_pool_forward.15} parent=5 // pred_check_branch
        %170 = sbr.rel (%p168) target = $region28
      $region27: #{cvae2_pool_forward.15} parent=5 // pred_region
        // Predicated region
        $region29: #{cvae2_pool_forward.15} parent=27 // pred_check
          %p171 = pneg %p32
        $region30: #{cvae2_pool_forward.15} parent=27 // pred_check_branch
          %173 = sbr.rel (%p171) target = $region32
        $region31: #{cvae2_pool_forward.15} parent=27 // pred_region
          %s174 = smul.u32 48, %s12
          %p175 = scmp.lt.s32.totalorder %s174, 143
          %s176 = scalar_select %p175, %s174, 143
          %s177 = smul.addr %s176, 4
          %s178 = scalar_lea.vmem %s0, %s177
          %s179 = smul.u32 48, %s12
        $region32: #{cvae2_pool_forward.15} parent=27 // pred_fallthru
          _
      $region28: #{cvae2_pool_forward.15} parent=5 // pred_fallthru
        _
      %p180 = scmp.le.s32.totalorder 1, %s12
      %p181 = scmp.lt.s32.totalorder %s12, 4
      %p182 = pnand %p180, %p181
      %p183 = pneg %p182
      // Predicated region
      $region33: #{cvae2_pool_forward.15} parent=5 // pred_check
        _
      $region34: #{cvae2_pool_forward.15} parent=5 // pred_check_branch
        %185 = sbr.rel (%p182) target = $region36
      $region35: #{cvae2_pool_forward.15} parent=5 // pred_region
        %s186 = ssub.s32 %s12, 1
        // Predicated region
        $region37: #{cvae2_pool_forward.15} parent=35 // pred_check
          %p187 = pneg %p80
        $region38: #{cvae2_pool_forward.15} parent=35 // pred_check_branch
          %189 = sbr.rel (%p187) target = $region40
        $region39: #{cvae2_pool_forward.15} parent=35 // pred_region
          %190 = dma.done [#allocation3], 16
        $region40: #{cvae2_pool_forward.15} parent=35 // pred_fallthru
          _
        // Predicated region
        $region41: #{cvae2_pool_forward.15} parent=35 // pred_check
          %p191 = pneg %p101
        $region42: #{cvae2_pool_forward.15} parent=35 // pred_check_branch
          %193 = sbr.rel (%p191) target = $region44
        $region43: #{cvae2_pool_forward.15} parent=35 // pred_region
          %194 = dma.done [#allocation5], 16
        $region44: #{cvae2_pool_forward.15} parent=35 // pred_fallthru
          _
        %s195 = smul.u32 48, %s17
        %p196 = scmp.lt.s32.totalorder %s195, 143
        %s197 = scalar_select %p196, %s195, 143
        %s198 = smul.addr %s197, 4
        %s199 = scalar_lea.vmem %s0, %s198
        %p200 = pneg %p38
        %p201 = pneg %p35
        %p202 = pneg %p59
        %p203 = pneg %p56
        %p204 = pneg %p80
        %p205 = pneg %p77
        %p206 = pneg %p101
        %p207 = pneg %p98
        %p208 = pneg %p127
        %p209 = pneg %p124
        %s210 = smul.u32 48, %s17
        %p211 = scmp.lt.s32.totalorder %s210, 143
        %s212 = scalar_select %p211, %s210, 143
        %s213 = smul.addr %s212, 4
        %s214 = scalar_lea.vmem %s4, %s213
        %s215 = smul.u32 48, %s17
        %p216 = scmp.lt.s32.totalorder %s215, 143
        %s217 = scalar_select %p216, %s215, 143
        %s218 = smul.addr %s217, 4
        %s219 = scalar_lea.vmem %s0, %s218
        %s220 = smul.u32 48, %s17
        %s221 = smul.u32 48, %s17
        %p222 = scmp.lt.s32.totalorder %s221, 143
        %s223 = scalar_select %p222, %s221, 143
        %s224 = smul.addr %s223, 4
        %s225 = scalar_lea.vmem %s4, %s224
        %s226 = smul.u32 48, %s17
        %v227 = vld [vmem:[%s1] sm:$0x1]
        %v228 = vmul.f32 %v227, 0.00086805556
        %v229 = vld [vmem:[%s1 + $0x1] sm:$0x1]
        %v230 = vmul.f32 %v229, 0.00086805556
        %v231 = vmul.f32 %v228, %v228
        %v232 = vsub.f32 %v230, %v231
        %v233 = vld [vmem:[#allocation2] sm:$0x1]
        %v234 = vadd.f32 %v232, 1e-05
        %v235 = vrsqrt.pop %v234
        %v236 = vmul.f32 %v233, %v235
        %v237 = vld [vmem:[#allocation4] sm:$0x1]
        %v238 = vmul.f32 %v228, %v236
        %v239 = vsub.f32 %v237, %v238
        %v240 = vld [vmem:[%s219] sm:$0xf]
        %v241 = vld [vmem:[%s219 + $0x4] sm:$0xf]
        %v242 = vld [vmem:[%s219 + $0x8] sm:$0xf]
        %v243 = vld [vmem:[%s219 + $0xc] sm:$0xf]
        %v244 = vld [vmem:[%s219 + $0x10] sm:$0xf]
        %v245 = vld [vmem:[%s219 + $0x14] sm:$0xf]
        %v246 = vld [vmem:[%s219 + $0x18] sm:$0xf]
        %v247 = vld [vmem:[%s219 + $0x1c] sm:$0xf]
        %v248 = vld [vmem:[%s219 + $0x20] sm:$0xf]
        %v249 = vld [vmem:[%s219 + $0x24] sm:$0xf]
        %v250 = vld [vmem:[%s219 + $0x28] sm:$0xf]
        %v251 = vld [vmem:[%s219 + $0x2c] sm:$0xf]
        %v252 = vld [vmem:[%s219 + $0x30] sm:$0xf]
        %v253 = vld [vmem:[%s219 + $0x34] sm:$0xf]
        %v254 = vld [vmem:[%s219 + $0x38] sm:$0xf]
        %v255 = vld [vmem:[%s219 + $0x3c] sm:$0xf]
        %v256 = vld [vmem:[%s219 + $0x40] sm:$0xf]
        %v257 = vld [vmem:[%s219 + $0x44] sm:$0xf]
        %v258 = vld [vmem:[%s219 + $0x48] sm:$0xf]
        %v259 = vld [vmem:[%s219 + $0x4c] sm:$0xf]
        %v260 = vld [vmem:[%s219 + $0x50] sm:$0xf]
        %v261 = vld [vmem:[%s219 + $0x54] sm:$0xf]
        %v262 = vld [vmem:[%s219 + $0x58] sm:$0xf]
        %v263 = vld [vmem:[%s219 + $0x5c] sm:$0xf]
        %v264 = vld [vmem:[%s219 + $0x60] sm:$0xf]
        %v265 = vld [vmem:[%s219 + $0x64] sm:$0xf]
        %v266 = vld [vmem:[%s219 + $0x68] sm:$0xf]
        %v267 = vld [vmem:[%s219 + $0x6c] sm:$0xf]
        %v268 = vld [vmem:[%s219 + $0x70] sm:$0xf]
        %v269 = vld [vmem:[%s219 + $0x74] sm:$0xf]
        %v270 = vld [vmem:[%s219 + $0x78] sm:$0xf]
        %v271 = vld [vmem:[%s219 + $0x7c] sm:$0xf]
        %v272 = vld [vmem:[%s219 + $0x80] sm:$0xf]
        %v273 = vld [vmem:[%s219 + $0x84] sm:$0xf]
        %v274 = vld [vmem:[%s219 + $0x88] sm:$0xf]
        %v275 = vld [vmem:[%s219 + $0x8c] sm:$0xf]
        %v276 = vld [vmem:[%s219 + $0x90] sm:$0xf]
        %v277 = vld [vmem:[%s219 + $0x94] sm:$0xf]
        %v278 = vld [vmem:[%s219 + $0x98] sm:$0xf]
        %v279 = vld [vmem:[%s219 + $0x9c] sm:$0xf]
        %v280 = vld [vmem:[%s219 + $0xa0] sm:$0xf]
        %v281 = vld [vmem:[%s219 + $0xa4] sm:$0xf]
        %v282 = vld [vmem:[%s219 + $0xa8] sm:$0xf]
        %v283 = vld [vmem:[%s219 + $0xac] sm:$0xf]
        %v284 = vld [vmem:[%s219 + $0xb0] sm:$0xf]
        %v285 = vld [vmem:[%s219 + $0xb4] sm:$0xf]
        %v286 = vld [vmem:[%s219 + $0xb8] sm:$0xf]
        %v287 = vld [vmem:[%s219 + $0xbc] sm:$0xf]
        %v288 = vunpack.c.l.bf16 %v240
        %v289 = vunpack.c.l.bf16 %v241
        %v290 = vunpack.c.l.bf16 %v242
        %v291 = vunpack.c.l.bf16 %v243
        %v292 = vunpack.c.l.bf16 %v244
        %v293 = vunpack.c.l.bf16 %v245
        %v294 = vunpack.c.l.bf16 %v246
        %v295 = vunpack.c.l.bf16 %v247
        %v296 = vunpack.c.l.bf16 %v248
        %v297 = vunpack.c.l.bf16 %v249
        %v298 = vunpack.c.l.bf16 %v250
        %v299 = vunpack.c.l.bf16 %v251
        %v300 = vunpack.c.l.bf16 %v252
        %v301 = vunpack.c.l.bf16 %v253
        %v302 = vunpack.c.l.bf16 %v254
        %v303 = vunpack.c.l.bf16 %v255
        %v304 = vunpack.c.l.bf16 %v256
        %v305 = vunpack.c.l.bf16 %v257
        %v306 = vunpack.c.l.bf16 %v258
        %v307 = vunpack.c.l.bf16 %v259
        %v308 = vunpack.c.l.bf16 %v260
        %v309 = vunpack.c.l.bf16 %v261
        %v310 = vunpack.c.l.bf16 %v262
        %v311 = vunpack.c.l.bf16 %v263
        %v312 = vunpack.c.l.bf16 %v264
        %v313 = vunpack.c.l.bf16 %v265
        %v314 = vunpack.c.l.bf16 %v266
        %v315 = vunpack.c.l.bf16 %v267
        %v316 = vunpack.c.l.bf16 %v268
        %v317 = vunpack.c.l.bf16 %v269
        %v318 = vunpack.c.l.bf16 %v270
        %v319 = vunpack.c.l.bf16 %v271
        %v320 = vunpack.c.l.bf16 %v272
        %v321 = vunpack.c.l.bf16 %v273
        %v322 = vunpack.c.l.bf16 %v274
        %v323 = vunpack.c.l.bf16 %v275
        %v324 = vunpack.c.l.bf16 %v276
        %v325 = vunpack.c.l.bf16 %v277
        %v326 = vunpack.c.l.bf16 %v278
        %v327 = vunpack.c.l.bf16 %v279
        %v328 = vunpack.c.l.bf16 %v280
        %v329 = vunpack.c.l.bf16 %v281
        %v330 = vunpack.c.l.bf16 %v282
        %v331 = vunpack.c.l.bf16 %v283
        %v332 = vunpack.c.l.bf16 %v284
        %v333 = vunpack.c.l.bf16 %v285
        %v334 = vunpack.c.l.bf16 %v286
        %v335 = vunpack.c.l.bf16 %v287
        %v337 = vlaneseq
        %v338 = vshrl.u32 %v337, 7
        %v339 = vsub.s32 0, %v338
        %v340 = vrot.slane %v236, %v339
        %v342 = vmul.f32 %v288, %v340
        %v343 = vmul.f32 %v289, %v340
        %v344 = vmul.f32 %v290, %v340
        %v345 = vmul.f32 %v291, %v340
        %v346 = vmul.f32 %v292, %v340
        %v347 = vmul.f32 %v293, %v340
        %v348 = vmul.f32 %v294, %v340
        %v349 = vmul.f32 %v295, %v340
        %v350 = vmul.f32 %v296, %v340
        %v351 = vmul.f32 %v297, %v340
        %v352 = vmul.f32 %v298, %v340
        %v353 = vmul.f32 %v299, %v340
        %v354 = vmul.f32 %v300, %v340
        %v355 = vmul.f32 %v301, %v340
        %v356 = vmul.f32 %v302, %v340
        %v357 = vmul.f32 %v303, %v340
        %v358 = vmul.f32 %v304, %v340
        %v359 = vmul.f32 %v305, %v340
        %v360 = vmul.f32 %v306, %v340
        %v361 = vmul.f32 %v307, %v340
        %v362 = vmul.f32 %v308, %v340
        %v363 = vmul.f32 %v309, %v340
        %v364 = vmul.f32 %v310, %v340
        %v365 = vmul.f32 %v311, %v340
        %v366 = vmul.f32 %v312, %v340
        %v367 = vmul.f32 %v313, %v340
        %v368 = vmul.f32 %v314, %v340
        %v369 = vmul.f32 %v315, %v340
        %v370 = vmul.f32 %v316, %v340
        %v371 = vmul.f32 %v317, %v340
        %v372 = vmul.f32 %v318, %v340
        %v373 = vmul.f32 %v319, %v340
        %v374 = vmul.f32 %v320, %v340
        %v375 = vmul.f32 %v321, %v340
        %v376 = vmul.f32 %v322, %v340
        %v377 = vmul.f32 %v323, %v340
        %v378 = vmul.f32 %v324, %v340
        %v379 = vmul.f32 %v325, %v340
        %v380 = vmul.f32 %v326, %v340
        %v381 = vmul.f32 %v327, %v340
        %v382 = vmul.f32 %v328, %v340
        %v383 = vmul.f32 %v329, %v340
        %v384 = vmul.f32 %v330, %v340
        %v385 = vmul.f32 %v331, %v340
        %v386 = vmul.f32 %v332, %v340
        %v387 = vmul.f32 %v333, %v340
        %v388 = vmul.f32 %v334, %v340
        %v389 = vmul.f32 %v335, %v340
        %v391 = vlaneseq
        %v392 = vshrl.u32 %v391, 7
        %v393 = vsub.s32 0, %v392
        %v394 = vrot.slane %v239, %v393
        %v396 = vadd.f32 %v342, %v394
        %v397 = vadd.f32 %v343, %v394
        %v398 = vadd.f32 %v344, %v394
        %v399 = vadd.f32 %v345, %v394
        %v400 = vadd.f32 %v346, %v394
        %v401 = vadd.f32 %v347, %v394
        %v402 = vadd.f32 %v348, %v394
        %v403 = vadd.f32 %v349, %v394
        %v404 = vadd.f32 %v350, %v394
        %v405 = vadd.f32 %v351, %v394
        %v406 = vadd.f32 %v352, %v394
        %v407 = vadd.f32 %v353, %v394
        %v408 = vadd.f32 %v354, %v394
        %v409 = vadd.f32 %v355, %v394
        %v410 = vadd.f32 %v356, %v394
        %v411 = vadd.f32 %v357, %v394
        %v412 = vadd.f32 %v358, %v394
        %v413 = vadd.f32 %v359, %v394
        %v414 = vadd.f32 %v360, %v394
        %v415 = vadd.f32 %v361, %v394
        %v416 = vadd.f32 %v362, %v394
        %v417 = vadd.f32 %v363, %v394
        %v418 = vadd.f32 %v364, %v394
        %v419 = vadd.f32 %v365, %v394
        %v420 = vadd.f32 %v366, %v394
        %v421 = vadd.f32 %v367, %v394
        %v422 = vadd.f32 %v368, %v394
        %v423 = vadd.f32 %v369, %v394
        %v424 = vadd.f32 %v370, %v394
        %v425 = vadd.f32 %v371, %v394
        %v426 = vadd.f32 %v372, %v394
        %v427 = vadd.f32 %v373, %v394
        %v428 = vadd.f32 %v374, %v394
        %v429 = vadd.f32 %v375, %v394
        %v430 = vadd.f32 %v376, %v394
        %v431 = vadd.f32 %v377, %v394
        %v432 = vadd.f32 %v378, %v394
        %v433 = vadd.f32 %v379, %v394
        %v434 = vadd.f32 %v380, %v394
        %v435 = vadd.f32 %v381, %v394
        %v436 = vadd.f32 %v382, %v394
        %v437 = vadd.f32 %v383, %v394
        %v438 = vadd.f32 %v384, %v394
        %v439 = vadd.f32 %v385, %v394
        %v440 = vadd.f32 %v386, %v394
        %v441 = vadd.f32 %v387, %v394
        %v442 = vadd.f32 %v388, %v394
        %v443 = vadd.f32 %v389, %v394
        %v444 = vmax.f32 %v396, 0.0
        %v445 = vmax.f32 %v397, 0.0
        %v446 = vmax.f32 %v398, 0.0
        %v447 = vmax.f32 %v399, 0.0
        %v448 = vmax.f32 %v400, 0.0
        %v449 = vmax.f32 %v401, 0.0
        %v450 = vmax.f32 %v402, 0.0
        %v451 = vmax.f32 %v403, 0.0
        %v452 = vmax.f32 %v404, 0.0
        %v453 = vmax.f32 %v405, 0.0
        %v454 = vmax.f32 %v406, 0.0
        %v455 = vmax.f32 %v407, 0.0
        %v456 = vmax.f32 %v408, 0.0
        %v457 = vmax.f32 %v409, 0.0
        %v458 = vmax.f32 %v410, 0.0
        %v459 = vmax.f32 %v411, 0.0
        %v460 = vmax.f32 %v412, 0.0
        %v461 = vmax.f32 %v413, 0.0
        %v462 = vmax.f32 %v414, 0.0
        %v463 = vmax.f32 %v415, 0.0
        %v464 = vmax.f32 %v416, 0.0
        %v465 = vmax.f32 %v417, 0.0
        %v466 = vmax.f32 %v418, 0.0
        %v467 = vmax.f32 %v419, 0.0
        %v468 = vmax.f32 %v420, 0.0
        %v469 = vmax.f32 %v421, 0.0
        %v470 = vmax.f32 %v422, 0.0
        %v471 = vmax.f32 %v423, 0.0
        %v472 = vmax.f32 %v424, 0.0
        %v473 = vmax.f32 %v425, 0.0
        %v474 = vmax.f32 %v426, 0.0
        %v475 = vmax.f32 %v427, 0.0
        %v476 = vmax.f32 %v428, 0.0
        %v477 = vmax.f32 %v429, 0.0
        %v478 = vmax.f32 %v430, 0.0
        %v479 = vmax.f32 %v431, 0.0
        %v480 = vmax.f32 %v432, 0.0
        %v481 = vmax.f32 %v433, 0.0
        %v482 = vmax.f32 %v434, 0.0
        %v483 = vmax.f32 %v435, 0.0
        %v484 = vmax.f32 %v436, 0.0
        %v485 = vmax.f32 %v437, 0.0
        %v486 = vmax.f32 %v438, 0.0
        %v487 = vmax.f32 %v439, 0.0
        %v488 = vmax.f32 %v440, 0.0
        %v489 = vmax.f32 %v441, 0.0
        %v490 = vmax.f32 %v442, 0.0
        %v491 = vmax.f32 %v443, 0.0
        %v492 = vpack.c.bf16 %v445, %v444
        %v493 = vpack.c.bf16 %v447, %v446
        %v494 = vpack.c.bf16 %v449, %v448
        %v495 = vpack.c.bf16 %v451, %v450
        %v496 = vpack.c.bf16 %v453, %v452
        %v497 = vpack.c.bf16 %v455, %v454
        %v498 = vpack.c.bf16 %v457, %v456
        %v499 = vpack.c.bf16 %v459, %v458
        %v500 = vpack.c.bf16 %v461, %v460
        %v501 = vpack.c.bf16 %v463, %v462
        %v502 = vpack.c.bf16 %v465, %v464
        %v503 = vpack.c.bf16 %v467, %v466
        %v504 = vpack.c.bf16 %v469, %v468
        %v505 = vpack.c.bf16 %v471, %v470
        %v506 = vpack.c.bf16 %v473, %v472
        %v507 = vpack.c.bf16 %v475, %v474
        %v508 = vpack.c.bf16 %v477, %v476
        %v509 = vpack.c.bf16 %v479, %v478
        %v510 = vpack.c.bf16 %v481, %v480
        %v511 = vpack.c.bf16 %v483, %v482
        %v512 = vpack.c.bf16 %v485, %v484
        %v513 = vpack.c.bf16 %v487, %v486
        %v514 = vpack.c.bf16 %v489, %v488
        %v515 = vpack.c.bf16 %v491, %v490
        %v540 = vunpack.c.l.b16 %v492
        %v541 = vunpack.c.h.b16 %v492
        %v542 = vunpack.c.l.b16 %v493
        %v543 = vunpack.c.h.b16 %v493
        %v544 = vunpack.c.l.b16 %v494
        %v545 = vunpack.c.h.b16 %v494
        %v546 = vunpack.c.l.b16 %v495
        %v547 = vunpack.c.h.b16 %v495
        %v548 = vunpack.c.l.b16 %v496
        %v549 = vunpack.c.h.b16 %v496
        %v550 = vunpack.c.l.b16 %v497
        %v551 = vunpack.c.h.b16 %v497
        %v552 = vunpack.c.l.b16 %v498
        %v553 = vunpack.c.h.b16 %v498
        %v554 = vunpack.c.l.b16 %v499
        %v555 = vunpack.c.h.b16 %v499
        %v556 = vunpack.c.l.b16 %v500
        %v557 = vunpack.c.h.b16 %v500
        %v558 = vunpack.c.l.b16 %v501
        %v559 = vunpack.c.h.b16 %v501
        %v560 = vunpack.c.l.b16 %v502
        %v561 = vunpack.c.h.b16 %v502
        %v562 = vunpack.c.l.b16 %v503
        %v563 = vunpack.c.h.b16 %v503
        %v564 = vunpack.c.l.b16 %v504
        %v565 = vunpack.c.h.b16 %v504
        %v566 = vunpack.c.l.b16 %v505
        %v567 = vunpack.c.h.b16 %v505
        %v568 = vunpack.c.l.b16 %v506
        %v569 = vunpack.c.h.b16 %v506
        %v570 = vunpack.c.l.b16 %v507
        %v571 = vunpack.c.h.b16 %v507
        %v572 = vunpack.c.l.b16 %v508
        %v573 = vunpack.c.h.b16 %v508
        %v574 = vunpack.c.l.b16 %v509
        %v575 = vunpack.c.h.b16 %v509
        %v576 = vunpack.c.l.b16 %v510
        %v577 = vunpack.c.h.b16 %v510
        %v578 = vunpack.c.l.b16 %v511
        %v579 = vunpack.c.h.b16 %v511
        %v580 = vunpack.c.l.b16 %v512
        %v581 = vunpack.c.h.b16 %v512
        %v582 = vunpack.c.l.b16 %v513
        %v583 = vunpack.c.h.b16 %v513
        %v584 = vunpack.c.l.b16 %v514
        %v585 = vunpack.c.h.b16 %v514
        %v586 = vunpack.c.l.b16 %v515
        %v587 = vunpack.c.h.b16 %v515
        %v588 = vpack.c.b16 %v540, %v540
        %v589 = vpack.c.b16 %v541, %v541
        %v590 = vpack.c.b16 %v542, %v542
        %v591 = vpack.c.b16 %v543, %v543
        %v592 = vpack.c.b16 %v544, %v544
        %v593 = vpack.c.b16 %v545, %v545
        %v594 = vpack.c.b16 %v546, %v546
        %v595 = vpack.c.b16 %v547, %v547
        %v596 = vpack.c.b16 %v548, %v548
        %v597 = vpack.c.b16 %v549, %v549
        %v598 = vpack.c.b16 %v550, %v550
        %v599 = vpack.c.b16 %v551, %v551
        %v600 = vpack.c.b16 %v552, %v552
        %v601 = vpack.c.b16 %v553, %v553
        %v602 = vpack.c.b16 %v554, %v554
        %v603 = vpack.c.b16 %v555, %v555
        %v604 = vpack.c.b16 %v556, %v556
        %v605 = vpack.c.b16 %v557, %v557
        %v606 = vpack.c.b16 %v558, %v558
        %v607 = vpack.c.b16 %v559, %v559
        %v608 = vpack.c.b16 %v560, %v560
        %v609 = vpack.c.b16 %v561, %v561
        %v610 = vpack.c.b16 %v562, %v562
        %v611 = vpack.c.b16 %v563, %v563
        %v612 = vpack.c.b16 %v564, %v564
        %v613 = vpack.c.b16 %v565, %v565
        %v614 = vpack.c.b16 %v566, %v566
        %v615 = vpack.c.b16 %v567, %v567
        %v616 = vpack.c.b16 %v568, %v568
        %v617 = vpack.c.b16 %v569, %v569
        %v618 = vpack.c.b16 %v570, %v570
        %v619 = vpack.c.b16 %v571, %v571
        %v620 = vpack.c.b16 %v572, %v572
        %v621 = vpack.c.b16 %v573, %v573
        %v622 = vpack.c.b16 %v574, %v574
        %v623 = vpack.c.b16 %v575, %v575
        %v624 = vpack.c.b16 %v576, %v576
        %v625 = vpack.c.b16 %v577, %v577
        %v626 = vpack.c.b16 %v578, %v578
        %v627 = vpack.c.b16 %v579, %v579
        %v628 = vpack.c.b16 %v580, %v580
        %v629 = vpack.c.b16 %v581, %v581
        %v630 = vpack.c.b16 %v582, %v582
        %v631 = vpack.c.b16 %v583, %v583
        %v632 = vpack.c.b16 %v584, %v584
        %v633 = vpack.c.b16 %v585, %v585
        %v634 = vpack.c.b16 %v586, %v586
        %v635 = vpack.c.b16 %v587, %v587
        %vm684 = vcmask 519168
        %685 = vst.msk [vmem:[%s225] sm:$0xf] %vm684, %v588
        %686 = vst.msk [vmem:[%s225 + $0x4] sm:$0xf] %vm684, %v589
        %687 = vst.msk [vmem:[%s225 + $0x8] sm:$0xf] %vm684, %v590
        %688 = vst.msk [vmem:[%s225 + $0xc] sm:$0xf] %vm684, %v591
        %689 = vst.msk [vmem:[%s225 + $0x10] sm:$0xf] %vm684, %v592
        %690 = vst.msk [vmem:[%s225 + $0x14] sm:$0xf] %vm684, %v593
        %691 = vst.msk [vmem:[%s225 + $0x18] sm:$0xf] %vm684, %v594
        %692 = vst.msk [vmem:[%s225 + $0x1c] sm:$0xf] %vm684, %v595
        %693 = vst.msk [vmem:[%s225 + $0x20] sm:$0xf] %vm684, %v596
        %694 = vst.msk [vmem:[%s225 + $0x24] sm:$0xf] %vm684, %v597
        %695 = vst.msk [vmem:[%s225 + $0x28] sm:$0xf] %vm684, %v598
        %696 = vst.msk [vmem:[%s225 + $0x2c] sm:$0xf] %vm684, %v599
        %697 = vst.msk [vmem:[%s225 + $0x30] sm:$0xf] %vm684, %v600
        %698 = vst.msk [vmem:[%s225 + $0x34] sm:$0xf] %vm684, %v601
        %699 = vst.msk [vmem:[%s225 + $0x38] sm:$0xf] %vm684, %v602
        %700 = vst.msk [vmem:[%s225 + $0x3c] sm:$0xf] %vm684, %v603
        %701 = vst.msk [vmem:[%s225 + $0x40] sm:$0xf] %vm684, %v604
        %702 = vst.msk [vmem:[%s225 + $0x44] sm:$0xf] %vm684, %v605
        %703 = vst.msk [vmem:[%s225 + $0x48] sm:$0xf] %vm684, %v606
        %704 = vst.msk [vmem:[%s225 + $0x4c] sm:$0xf] %vm684, %v607
        %705 = vst.msk [vmem:[%s225 + $0x50] sm:$0xf] %vm684, %v608
        %706 = vst.msk [vmem:[%s225 + $0x54] sm:$0xf] %vm684, %v609
        %707 = vst.msk [vmem:[%s225 + $0x58] sm:$0xf] %vm684, %v610
        %708 = vst.msk [vmem:[%s225 + $0x5c] sm:$0xf] %vm684, %v611
        %709 = vst.msk [vmem:[%s225 + $0x60] sm:$0xf] %vm684, %v612
        %710 = vst.msk [vmem:[%s225 + $0x64] sm:$0xf] %vm684, %v613
        %711 = vst.msk [vmem:[%s225 + $0x68] sm:$0xf] %vm684, %v614
        %712 = vst.msk [vmem:[%s225 + $0x6c] sm:$0xf] %vm684, %v615
        %713 = vst.msk [vmem:[%s225 + $0x70] sm:$0xf] %vm684, %v616
        %714 = vst.msk [vmem:[%s225 + $0x74] sm:$0xf] %vm684, %v617
        %715 = vst.msk [vmem:[%s225 + $0x78] sm:$0xf] %vm684, %v618
        %716 = vst.msk [vmem:[%s225 + $0x7c] sm:$0xf] %vm684, %v619
        %717 = vst.msk [vmem:[%s225 + $0x80] sm:$0xf] %vm684, %v620
        %718 = vst.msk [vmem:[%s225 + $0x84] sm:$0xf] %vm684, %v621
        %719 = vst.msk [vmem:[%s225 + $0x88] sm:$0xf] %vm684, %v622
        %720 = vst.msk [vmem:[%s225 + $0x8c] sm:$0xf] %vm684, %v623
        %721 = vst.msk [vmem:[%s225 + $0x90] sm:$0xf] %vm684, %v624
        %722 = vst.msk [vmem:[%s225 + $0x94] sm:$0xf] %vm684, %v625
        %723 = vst.msk [vmem:[%s225 + $0x98] sm:$0xf] %vm684, %v626
        %724 = vst.msk [vmem:[%s225 + $0x9c] sm:$0xf] %vm684, %v627
        %725 = vst.msk [vmem:[%s225 + $0xa0] sm:$0xf] %vm684, %v628
        %726 = vst.msk [vmem:[%s225 + $0xa4] sm:$0xf] %vm684, %v629
        %727 = vst.msk [vmem:[%s225 + $0xa8] sm:$0xf] %vm684, %v630
        %728 = vst.msk [vmem:[%s225 + $0xac] sm:$0xf] %vm684, %v631
        %729 = vst.msk [vmem:[%s225 + $0xb0] sm:$0xf] %vm684, %v632
        %730 = vst.msk [vmem:[%s225 + $0xb4] sm:$0xf] %vm684, %v633
        %731 = vst.msk [vmem:[%s225 + $0xb8] sm:$0xf] %vm684, %v634
        %732 = vst.msk [vmem:[%s225 + $0xbc] sm:$0xf] %vm684, %v635
        %s733 = smul.u32 48, %s17
        %p734 = scmp.lt.s32.totalorder %s733, 143
        %s735 = scalar_select %p734, %s733, 143
        %s736 = smul.addr %s735, 4
        %s737 = scalar_lea.vmem %s4, %s736
        // Predicated region
        $region45: #{cvae2_pool_forward.15} parent=35 // pred_check
          %p738 = pneg %p124
        $region46: #{cvae2_pool_forward.15} parent=35 // pred_check_branch
          %740 = sbr.rel (%p738) target = $region48
        $region47: #{cvae2_pool_forward.15} parent=35 // pred_region
          %s741 = smul.u32 48, %s17
        $region48: #{cvae2_pool_forward.15} parent=35 // pred_fallthru
          _
      $region36: #{cvae2_pool_forward.15} parent=5 // pred_fallthru
        _
      %p742 = scmp.le.s32.totalorder 2, %s12
      // Predicated region
      $region49: #{cvae2_pool_forward.15} parent=5 // pred_check
        %p743 = pneg %p742
      $region50: #{cvae2_pool_forward.15} parent=5 // pred_check_branch
        %745 = sbr.rel (%p743) target = $region52
      $region51: #{cvae2_pool_forward.15} parent=5 // pred_region
        %s746 = ssub.s32 %s12, 2
        // Predicated region
        $region53: #{cvae2_pool_forward.15} parent=51 // pred_check
          %p747 = pneg %p130
        $region54: #{cvae2_pool_forward.15} parent=51 // pred_check_branch
          %749 = sbr.rel (%p747) target = $region56
        $region55: #{cvae2_pool_forward.15} parent=51 // pred_region
          %s750 = smul.u32 48, %s18
          %p751 = scmp.lt.s32.totalorder %s750, 143
          %s752 = scalar_select %p751, %s750, 143
          %s753 = smul.addr %s752, 4
          %s754 = scalar_lea.vmem %s4, %s753
        $region56: #{cvae2_pool_forward.15} parent=51 // pred_fallthru
          _
      $region52: #{cvae2_pool_forward.15} parent=5 // pred_fallthru
        _
    $region6: #{cvae2_pool_forward.15} parent=1 // loop_footer
      %s16 = sadd.s32 1, %s12
    $region7: #{cvae2_pool_forward.15} parent=1 // loop_footer_branch
      %11 = sbr.rel target = $region3
    $region8: #{cvae2_pool_forward.15} parent=1 // loop_exit
      _
    %755 = vsyncpa [#allocation3], 1
    %s756 = scalar_lea.sflag [#allocation3], 1
    %757 = vsyncpa %s756, 1
    %758 = vsyncpa [#allocation5], 1

// kernel: cvae2_pool_forward.14
$region0: #{cvae2_pool_forward.14}
  #allocation0 [shape = 'u32[]', space=smem, size = 0x4, offset = 0x4, fixed_abs, tag = 'smem constant byte address 0x4 - core index']
  #allocation1 [shape = 'u32[144,128]{1,0:T(1,128)}', space=vmem, size = 0x12000, scoped, tag = 'internal scratch']
  %s0 = inlined_call_operand.vmem [shape: bf16[1152,32], index: 0, kind: input, shape index: {}]
  %s1 = inlined_call_operand.hbm [shape: bf16[32,128], index: 1, kind: input, shape index: {}]
  %s2 = inlined_call_operand.vmem [shape: bf16[1152,128], index: 2, kind: output, shape index: {0}]
  %s3 = inlined_call_operand.vmem [shape: f32[3,2,128], index: 3, kind: output, shape index: {1}]
  %4 = xla_tuple %s2, %s3
  %s5 = sld [smem:[#allocation0]]
  $region53: #{cvae2_pool_forward.14} parent=0
    _
  %s7 = ssub.s32 1, %s5
  %s8 = scalar_select 0, %s7, %s5
  $region1: #{cvae2_pool_forward.14} parent=0
    #allocation2 [shape = 'u8[8192]{0}', space=vmem, size = 0x2000, scoped, tag = 'input window, operand 1, single buffered']
    #allocation3 [shape = 's32[2]{0}', space=sflag, size = 0x8, scoped, tag = 'scoped memory for cvae2_pool_forward.14']
    %9 = vsyncpa [#allocation3], 0
    loop: start=0, step=1, limit=5
    $region2: #{cvae2_pool_forward.14} parent=1 // loop_pre_header
      _
    $region3: #{cvae2_pool_forward.14} parent=1 // loop_header
      %s11 = sphi 0, %s15
      %p12 = scmp.ge.s32.totalorder %s11, 5
      %s21 = sphi 0, %s23
      %s24 = sphi 0, %s21
      %s25 = sphi 0, %s24
      %s41 = sphi 0, %s25
      %s45 = sphi 0, %s45
      %s47 = sphi 0, %s45
      %s48 = sphi 0, %s47
      %s62 = sphi 0, %s48
      %s68 = sphi 0, %s70
      %s71 = sphi 0, %s68
      %s72 = sphi 0, %s71
      %s88 = sphi 0, %s72
      %s94 = sphi 0, %s96
      %s97 = sphi 0, %s94
      %s98 = sphi 0, %s97
      %s114 = sphi 0, %s98
    $region4: #{cvae2_pool_forward.14} parent=1 // loop_header_branch
      %14 = sbr.rel (%p12) target = $region8
    $region5: #{cvae2_pool_forward.14} parent=1 // loop_body
      %s16 = ssub.s32 %s11, 1
      %s17 = ssub.s32 %s11, 2
      %s18 = sadd.s32 %s11, 1
      %s19 = ssub.s32 %s11, %s18
      %p20 = scmp.eq.s32.totalorder %s19, 0
      %s22 = sadd.s32 %s21, 1
      %s23 = scalar_select %p20, %s21, %s22
      %p26 = pneg %p20
      %p27 = scmp.eq.s32.totalorder %s11, 2
      %p28 = por %p26, %p27
      %p29 = scmp.ne.s32.totalorder %s21, %s24
      %p30 = scmp.eq.s32.totalorder %s11, 0
      %p31 = por %p29, %p30
      %p32 = scmp.ne.s32.totalorder %s21, %s24
      %p33 = scmp.eq.s32.totalorder %s16, 2
      %p34 = por %p32, %p33
      %p35 = scmp.ne.s32.totalorder %s24, %s25
      %p36 = scmp.eq.s32.totalorder %s16, 0
      %p37 = por %p35, %p36
      %p38 = scmp.ne.s32.totalorder %s24, %s25
      %p39 = scmp.eq.s32.totalorder %s17, 2
      %p40 = por %p38, %p39
      %p42 = scmp.ne.s32.totalorder %s25, %s41
      %p43 = scmp.eq.s32.totalorder %s17, 0
      %p44 = por %p42, %p43
      %s46 = sadd.s32 %s45, 1
      %p49 = scmp.eq.s32.totalorder %s11, 2
      %p50 = scmp.ne.s32.totalorder %s45, %s47
      %p51 = scmp.eq.s32.totalorder %s11, 0
      %p52 = por %p50, %p51
      %p53 = scmp.ne.s32.totalorder %s45, %s47
      %p54 = scmp.eq.s32.totalorder %s16, 2
      %p55 = por %p53, %p54
      %p56 = scmp.ne.s32.totalorder %s47, %s48
      %p57 = scmp.eq.s32.totalorder %s16, 0
      %p58 = por %p56, %p57
      %p59 = scmp.ne.s32.totalorder %s47, %s48
      %p60 = scmp.eq.s32.totalorder %s17, 2
      %p61 = por %p59, %p60
      %p63 = scmp.ne.s32.totalorder %s48, %s62
      %p64 = scmp.eq.s32.totalorder %s17, 0
      %p65 = por %p63, %p64
      %s66 = ssub.s32 %s11, %s18
      %p67 = scmp.eq.s32.totalorder %s66, 0
      %s69 = sadd.s32 %s68, 1
      %s70 = scalar_select %p67, %s68, %s69
      %p73 = pneg %p67
      %p74 = scmp.eq.s32.totalorder %s11, 2
      %p75 = por %p73, %p74
      %p76 = scmp.ne.s32.totalorder %s68, %s71
      %p77 = scmp.eq.s32.totalorder %s11, 0
      %p78 = por %p76, %p77
      %p79 = scmp.ne.s32.totalorder %s68, %s71
      %p80 = scmp.eq.s32.totalorder %s16, 2
      %p81 = por %p79, %p80
      %p82 = scmp.ne.s32.totalorder %s71, %s72
      %p83 = scmp.eq.s32.totalorder %s16, 0
      %p84 = por %p82, %p83
      %p85 = scmp.ne.s32.totalorder %s71, %s72
      %p86 = scmp.eq.s32.totalorder %s17, 2
      %p87 = por %p85, %p86
      %p89 = scmp.ne.s32.totalorder %s72, %s88
      %p90 = scmp.eq.s32.totalorder %s17, 0
      %p91 = por %p89, %p90
      %s92 = ssub.s32 %s11, %s18
      %p93 = scmp.eq.s32.totalorder %s92, 0
      %s95 = sadd.s32 %s94, 1
      %s96 = scalar_select %p93, %s94, %s95
      %p99 = pneg %p93
      %p100 = scmp.eq.s32.totalorder %s11, 2
      %p101 = por %p99, %p100
      %p102 = scmp.ne.s32.totalorder %s94, %s97
      %p103 = scmp.eq.s32.totalorder %s11, 0
      %p104 = por %p102, %p103
      %p105 = scmp.ne.s32.totalorder %s94, %s97
      %p106 = scmp.eq.s32.totalorder %s16, 2
      %p107 = por %p105, %p106
      %p108 = scmp.ne.s32.totalorder %s97, %s98
      %p109 = scmp.eq.s32.totalorder %s16, 0
      %p110 = por %p108, %p109
      %p111 = scmp.ne.s32.totalorder %s97, %s98
      %p112 = scmp.eq.s32.totalorder %s17, 2
      %p113 = por %p111, %p112
      %p115 = scmp.ne.s32.totalorder %s98, %s114
      %p116 = scmp.eq.s32.totalorder %s17, 0
      %p117 = por %p115, %p116
      %p118 = scmp.le.s32.totalorder 1, %s11
      %p119 = scmp.lt.s32.totalorder %s11, 4
      %p120 = pnand %p118, %p119
      %p121 = pneg %p120
      // Predicated region
      $region9: #{cvae2_pool_forward.14} parent=5 // pred_check
        _
      $region10: #{cvae2_pool_forward.14} parent=5 // pred_check_branch
        %123 = sbr.rel (%p120) target = $region12
      $region11: #{cvae2_pool_forward.14} parent=5 // pred_region
        %s124 = ssub.s32 %s11, 1
        // Predicated region
        $region13: #{cvae2_pool_forward.14} parent=11 // pred_check
          %p125 = pneg %p58
        $region14: #{cvae2_pool_forward.14} parent=11 // pred_check_branch
          %127 = sbr.rel (%p125) target = $region16
        $region15: #{cvae2_pool_forward.14} parent=11 // pred_region
          %s129 = ssub.s32 256, 256
          %130 = vsyncadd [#allocation3], %s129
          %s131 = sshll.u32 [#allocation2], 4
          %s132 = int_to_ptr.vmem [resolvable:$true] %s131
          %137 = dma.hbm_to_vmem [thread:$0]  %s1, 256, %s132, [#allocation3], 64, 64, 4
        $region16: #{cvae2_pool_forward.14} parent=11 // pred_fallthru
          _
      $region12: #{cvae2_pool_forward.14} parent=5 // pred_fallthru
        _
      %p138 = scmp.lt.s32.totalorder %s11, 3
      // Predicated region
      $region17: #{cvae2_pool_forward.14} parent=5 // pred_check
        %p139 = pneg %p138
      $region18: #{cvae2_pool_forward.14} parent=5 // pred_check_branch
        %141 = sbr.rel (%p139) target = $region20
      $region19: #{cvae2_pool_forward.14} parent=5 // pred_region
        // Predicated region
        $region21: #{cvae2_pool_forward.14} parent=19 // pred_check
          %p142 = pneg %p31
        $region22: #{cvae2_pool_forward.14} parent=19 // pred_check_branch
          %144 = sbr.rel (%p142) target = $region24
        $region23: #{cvae2_pool_forward.14} parent=19 // pred_region
          %s145 = smul.u32 48, %s11
          %p146 = scmp.lt.s32.totalorder %s145, 143
          %s147 = scalar_select %p146, %s145, 143
          %s148 = smul.addr %s147, 4
          %s149 = scalar_lea.vmem %s0, %s148
          %s150 = smul.u32 48, %s11
        $region24: #{cvae2_pool_forward.14} parent=19 // pred_fallthru
          _
      $region20: #{cvae2_pool_forward.14} parent=5 // pred_fallthru
        _
      %p151 = scmp.le.s32.totalorder 1, %s11
      %p152 = scmp.lt.s32.totalorder %s11, 4
      %p153 = pnand %p151, %p152
      %p154 = pneg %p153
      // Predicated region
      $region25: #{cvae2_pool_forward.14} parent=5 // pred_check
        _
      $region26: #{cvae2_pool_forward.14} parent=5 // pred_check_branch
        %156 = sbr.rel (%p153) target = $region28
      $region27: #{cvae2_pool_forward.14} parent=5 // pred_region
        %s157 = ssub.s32 %s11, 1
        // Predicated region
        $region29: #{cvae2_pool_forward.14} parent=27 // pred_check
          %p158 = pneg %p58
        $region30: #{cvae2_pool_forward.14} parent=27 // pred_check_branch
          %160 = sbr.rel (%p158) target = $region32
        $region31: #{cvae2_pool_forward.14} parent=27 // pred_region
          %161 = dma.done [#allocation3], 256
        $region32: #{cvae2_pool_forward.14} parent=27 // pred_fallthru
          _
        %s162 = smul.u32 48, %s16
        %p163 = scmp.lt.s32.totalorder %s162, 143
        %s164 = scalar_select %p163, %s162, 143
        %s165 = smul.addr %s164, 4
        %s166 = scalar_lea.vmem %s0, %s165
        %p167 = pneg %p37
        %p168 = pneg %p34
        %p169 = pneg %p58
        %p170 = pneg %p55
        %p171 = pneg %p84
        %p172 = pneg %p81
        %s173 = smul.u32 48, %s16
        %p174 = scmp.lt.s32.totalorder %s173, 143
        %s175 = scalar_select %p174, %s173, 143
        %s176 = smul.addr %s175, 4
        %s177 = scalar_lea.vmem %s2, %s176
        %p178 = pneg %p110
        %p179 = pneg %p107
        %p180 = scmp.lt.s32.totalorder %s16, 2
        %s181 = scalar_select %p180, %s16, 2
        %s182 = smul.addr %s181, 2
        %s183 = scalar_lea.vmem %s3, %s182
        %s184 = smul.u32 48, %s16
        %p185 = scmp.lt.s32.totalorder %s184, 143
        %s186 = scalar_select %p185, %s184, 143
        %s187 = smul.addr %s186, 4
        %s188 = scalar_lea.vmem %s0, %s187
        %s189 = smul.u32 48, %s16
        %s190 = smul.u32 48, %s16
        %p191 = scmp.lt.s32.totalorder %s190, 143
        %s192 = scalar_select %p191, %s190, 143
        %s193 = smul.addr %s192, 4
        %s194 = scalar_lea.vmem %s2, %s193
        %s195 = smul.u32 48, %s16
        %p196 = scmp.lt.s32.totalorder %s16, 2
        %s197 = scalar_select %p196, %s16, 2
        %s198 = smul.addr %s197, 2
        %s199 = scalar_lea.vmem %s3, %s198
        %v201 = vld [vmem:[%s188] sm:$0xf]
        %v202 = vld [vmem:[%s188 + $0x4] sm:$0xf]
        %v203 = vld [vmem:[%s188 + $0x8] sm:$0xf]
        %v204 = vld [vmem:[%s188 + $0xc] sm:$0xf]
        %v205 = vld [vmem:[%s188 + $0x10] sm:$0xf]
        %v206 = vld [vmem:[%s188 + $0x14] sm:$0xf]
        %v207 = vld [vmem:[%s188 + $0x18] sm:$0xf]
        %v208 = vld [vmem:[%s188 + $0x1c] sm:$0xf]
        %v209 = vld [vmem:[%s188 + $0x20] sm:$0xf]
        %v210 = vld [vmem:[%s188 + $0x24] sm:$0xf]
        %v211 = vld [vmem:[%s188 + $0x28] sm:$0xf]
        %v212 = vld [vmem:[%s188 + $0x2c] sm:$0xf]
        %v213 = vld [vmem:[%s188 + $0x30] sm:$0xf]
        %v214 = vld [vmem:[%s188 + $0x34] sm:$0xf]
        %v215 = vld [vmem:[%s188 + $0x38] sm:$0xf]
        %v216 = vld [vmem:[%s188 + $0x3c] sm:$0xf]
        %v217 = vld [vmem:[%s188 + $0x40] sm:$0xf]
        %v218 = vld [vmem:[%s188 + $0x44] sm:$0xf]
        %v219 = vld [vmem:[%s188 + $0x48] sm:$0xf]
        %v220 = vld [vmem:[%s188 + $0x4c] sm:$0xf]
        %v221 = vld [vmem:[%s188 + $0x50] sm:$0xf]
        %v222 = vld [vmem:[%s188 + $0x54] sm:$0xf]
        %v223 = vld [vmem:[%s188 + $0x58] sm:$0xf]
        %v224 = vld [vmem:[%s188 + $0x5c] sm:$0xf]
        %v225 = vld [vmem:[%s188 + $0x60] sm:$0xf]
        %v226 = vld [vmem:[%s188 + $0x64] sm:$0xf]
        %v227 = vld [vmem:[%s188 + $0x68] sm:$0xf]
        %v228 = vld [vmem:[%s188 + $0x6c] sm:$0xf]
        %v229 = vld [vmem:[%s188 + $0x70] sm:$0xf]
        %v230 = vld [vmem:[%s188 + $0x74] sm:$0xf]
        %v231 = vld [vmem:[%s188 + $0x78] sm:$0xf]
        %v232 = vld [vmem:[%s188 + $0x7c] sm:$0xf]
        %v233 = vld [vmem:[%s188 + $0x80] sm:$0xf]
        %v234 = vld [vmem:[%s188 + $0x84] sm:$0xf]
        %v235 = vld [vmem:[%s188 + $0x88] sm:$0xf]
        %v236 = vld [vmem:[%s188 + $0x8c] sm:$0xf]
        %v237 = vld [vmem:[%s188 + $0x90] sm:$0xf]
        %v238 = vld [vmem:[%s188 + $0x94] sm:$0xf]
        %v239 = vld [vmem:[%s188 + $0x98] sm:$0xf]
        %v240 = vld [vmem:[%s188 + $0x9c] sm:$0xf]
        %v241 = vld [vmem:[%s188 + $0xa0] sm:$0xf]
        %v242 = vld [vmem:[%s188 + $0xa4] sm:$0xf]
        %v243 = vld [vmem:[%s188 + $0xa8] sm:$0xf]
        %v244 = vld [vmem:[%s188 + $0xac] sm:$0xf]
        %v245 = vld [vmem:[%s188 + $0xb0] sm:$0xf]
        %v246 = vld [vmem:[%s188 + $0xb4] sm:$0xf]
        %v247 = vld [vmem:[%s188 + $0xb8] sm:$0xf]
        %v248 = vld [vmem:[%s188 + $0xbc] sm:$0xf]
        %v249 = vld [vmem:[#allocation2] sm:$0xf]
        %v250 = vld [vmem:[#allocation2 + $0x4] sm:$0xf]
        %v251 = vld [vmem:[#allocation2 + $0x8] sm:$0xf]
        %v252 = vld [vmem:[#allocation2 + $0xc] sm:$0xf]
        %v301 = vunpack.c.l.b16 %v201
        %v302 = vunpack.c.l.b16 %v202
        %v303 = vunpack.c.l.b16 %v203
        %v304 = vunpack.c.l.b16 %v204
        %v305 = vunpack.c.l.b16 %v205
        %v306 = vunpack.c.l.b16 %v206
        %v307 = vunpack.c.l.b16 %v207
        %v308 = vunpack.c.l.b16 %v208
        %v309 = vunpack.c.l.b16 %v209
        %v310 = vunpack.c.l.b16 %v210
        %v311 = vunpack.c.l.b16 %v211
        %v312 = vunpack.c.l.b16 %v212
        %v313 = vunpack.c.l.b16 %v213
        %v314 = vunpack.c.l.b16 %v214
        %v315 = vunpack.c.l.b16 %v215
        %v316 = vunpack.c.l.b16 %v216
        %v317 = vunpack.c.l.b16 %v217
        %v318 = vunpack.c.l.b16 %v218
        %v319 = vunpack.c.l.b16 %v219
        %v320 = vunpack.c.l.b16 %v220
        %v321 = vunpack.c.l.b16 %v221
        %v322 = vunpack.c.l.b16 %v222
        %v323 = vunpack.c.l.b16 %v223
        %v324 = vunpack.c.l.b16 %v224
        %v325 = vunpack.c.l.b16 %v225
        %v326 = vunpack.c.l.b16 %v226
        %v327 = vunpack.c.l.b16 %v227
        %v328 = vunpack.c.l.b16 %v228
        %v329 = vunpack.c.l.b16 %v229
        %v330 = vunpack.c.l.b16 %v230
        %v331 = vunpack.c.l.b16 %v231
        %v332 = vunpack.c.l.b16 %v232
        %v333 = vunpack.c.l.b16 %v233
        %v334 = vunpack.c.l.b16 %v234
        %v335 = vunpack.c.l.b16 %v235
        %v336 = vunpack.c.l.b16 %v236
        %v337 = vunpack.c.l.b16 %v237
        %v338 = vunpack.c.l.b16 %v238
        %v339 = vunpack.c.l.b16 %v239
        %v340 = vunpack.c.l.b16 %v240
        %v341 = vunpack.c.l.b16 %v241
        %v342 = vunpack.c.l.b16 %v242
        %v343 = vunpack.c.l.b16 %v243
        %v344 = vunpack.c.l.b16 %v244
        %v345 = vunpack.c.l.b16 %v245
        %v346 = vunpack.c.l.b16 %v246
        %v347 = vunpack.c.l.b16 %v247
        %v348 = vunpack.c.l.b16 %v248
        %v349 = vpack.c.b16 %v302, %v301
        %v350 = vpack.c.b16 %v304, %v303
        %v351 = vpack.c.b16 %v306, %v305
        %v352 = vpack.c.b16 %v308, %v307
        %v353 = vpack.c.b16 %v310, %v309
        %v354 = vpack.c.b16 %v312, %v311
        %v355 = vpack.c.b16 %v314, %v313
        %v356 = vpack.c.b16 %v316, %v315
        %v357 = vpack.c.b16 %v318, %v317
        %v358 = vpack.c.b16 %v320, %v319
        %v359 = vpack.c.b16 %v322, %v321
        %v360 = vpack.c.b16 %v324, %v323
        %v361 = vpack.c.b16 %v326, %v325
        %v362 = vpack.c.b16 %v328, %v327
        %v363 = vpack.c.b16 %v330, %v329
        %v364 = vpack.c.b16 %v332, %v331
        %v365 = vpack.c.b16 %v334, %v333
        %v366 = vpack.c.b16 %v336, %v335
        %v367 = vpack.c.b16 %v338, %v337
        %v368 = vpack.c.b16 %v340, %v339
        %v369 = vpack.c.b16 %v342, %v341
        %v370 = vpack.c.b16 %v344, %v343
        %v371 = vpack.c.b16 %v346, %v345
        %v372 = vpack.c.b16 %v348, %v347
        %v377 = vunpack.c.l.b16 %v249
        %v378 = vunpack.c.l.b16 %v250
        %v379 = vunpack.c.l.b16 %v251
        %v380 = vunpack.c.l.b16 %v252
        %v381 = vpack.c.b16 %v378, %v377
        %v382 = vpack.c.b16 %v380, %v379
        %vm385 = vcmask 261120
        %v387 = vsel %vm385, %v349, 0
        %v390 = vsel %vm385, %v350, 0
        %v393 = vsel %vm385, %v351, 0
        %v396 = vsel %vm385, %v352, 0
        %v399 = vsel %vm385, %v353, 0
        %v402 = vsel %vm385, %v354, 0
        %v405 = vsel %vm385, %v355, 0
        %v408 = vsel %vm385, %v356, 0
        %v411 = vsel %vm385, %v357, 0
        %v414 = vsel %vm385, %v358, 0
        %v417 = vsel %vm385, %v359, 0
        %v420 = vsel %vm385, %v360, 0
        %v423 = vsel %vm385, %v361, 0
        %v426 = vsel %vm385, %v362, 0
        %v429 = vsel %vm385, %v363, 0
        %v432 = vsel %vm385, %v364, 0
        %v435 = vsel %vm385, %v365, 0
        %v438 = vsel %vm385, %v366, 0
        %v441 = vsel %vm385, %v367, 0
        %v444 = vsel %vm385, %v368, 0
        %v447 = vsel %vm385, %v369, 0
        %v450 = vsel %vm385, %v370, 0
        %v453 = vsel %vm385, %v371, 0
        %v456 = vsel %vm385, %v372, 0
        %458 = vmatprep.subr.bf16.mxu0 0
        %459 = vmatpush1.bf16.msra.mxu0 %v381
        %460 = vmatprep.subr.bf16.mxu0 0
        %461 = vmatpush1.bf16.msra.mxu0 %v382
        %462 = vmatprep.subr.bf16.mxu0 0
        %463 = vmatpush1.bf16.msra.mxu0 0
        %464 = vmatprep.subr.bf16.mxu0 0
        %465 = vmatpush1.bf16.msra.mxu0 0
        %466 = vmatprep.subr.bf16.mxu0 0
        %467 = vmatpush1.bf16.msra.mxu0 0
        %468 = vmatprep.subr.bf16.mxu0 0
        %469 = vmatpush1.bf16.msra.mxu0 0
        %470 = vmatprep.subr.bf16.mxu0 0
        %471 = vmatpush1.bf16.msra.mxu0 0
        %472 = vmatprep.subr.bf16.mxu0 0
        %473 = vmatpush1.bf16.msra.mxu0 0
        %474 = vmatprep.subr.bf16.mxu0 0
        %475 = vmatpush1.bf16.msra.mxu0 0
        %476 = vmatprep.subr.bf16.mxu0 0
        %477 = vmatpush1.bf16.msra.mxu0 0
        %478 = vmatprep.subr.bf16.mxu0 0
        %479 = vmatpush1.bf16.msra.mxu0 0
        %480 = vmatprep.subr.bf16.mxu0 0
        %481 = vmatpush1.bf16.msra.mxu0 0
        %482 = vmatprep.subr.bf16.mxu0 0
        %483 = vmatpush1.bf16.msra.mxu0 0
        %484 = vmatprep.subr.bf16.mxu0 0
        %485 = vmatpush1.bf16.msra.mxu0 0
        %486 = vmatprep.subr.bf16.mxu0 0
        %487 = vmatpush1.bf16.msra.mxu0 0
        %488 = vmatprep.subr.bf16.mxu0 0
        %489 = vmatpush1.bf16.msra.mxu0 0
        %490 = vmatprep.mubr.bf16.mxu0 0
        %491 = vmatmul.mubr.bf16.gmra.mrb[0].mxu0 %v387
        %v492 = vpop.f32.mrb[0].mxu0
        %v493 = vadd.f32 0.0, %v492
        %v494 = vpop.f32.mrb[0].mxu0
        %v495 = vpop.f32.mrb[0].mxu0
        %v496 = vadd.f32 0.0, %v495
        %v497 = vpop.f32.mrb[0].mxu0
        %498 = vmatprep.mubr.bf16.mxu0 0
        %499 = vmatmul.mubr.bf16.gmra.mrb[0].mxu0 %v390
        %v500 = vpop.f32.mrb[0].mxu0
        %v501 = vadd.f32 0.0, %v500
        %v502 = vpop.f32.mrb[0].mxu0
        %v503 = vpop.f32.mrb[0].mxu0
        %v504 = vadd.f32 0.0, %v503
        %v505 = vpop.f32.mrb[0].mxu0
        %506 = vmatprep.mubr.bf16.mxu0 0
        %507 = vmatmul.mubr.bf16.gmra.mrb[0].mxu0 %v393
        %v508 = vpop.f32.mrb[0].mxu0
        %v509 = vadd.f32 0.0, %v508
        %v510 = vpop.f32.mrb[0].mxu0
        %v511 = vpop.f32.mrb[0].mxu0
        %v512 = vadd.f32 0.0, %v511
        %v513 = vpop.f32.mrb[0].mxu0
        %514 = vmatprep.mubr.bf16.mxu0 0
        %515 = vmatmul.mubr.bf16.gmra.mrb[0].mxu0 %v396
        %v516 = vpop.f32.mrb[0].mxu0
        %v517 = vadd.f32 0.0, %v516
        %v518 = vpop.f32.mrb[0].mxu0
        %v519 = vpop.f32.mrb[0].mxu0
        %v520 = vadd.f32 0.0, %v519
        %v521 = vpop.f32.mrb[0].mxu0
        %522 = vmatprep.mubr.bf16.mxu0 0
        %523 = vmatmul.mubr.bf16.gmra.mrb[0].mxu0 %v399
        %v524 = vpop.f32.mrb[0].mxu0
        %v525 = vadd.f32 0.0, %v524
        %v526 = vpop.f32.mrb[0].mxu0
        %v527 = vpop.f32.mrb[0].mxu0
        %v528 = vadd.f32 0.0, %v527
        %v529 = vpop.f32.mrb[0].mxu0
        %530 = vmatprep.mubr.bf16.mxu0 0
        %531 = vmatmul.mubr.bf16.gmra.mrb[0].mxu0 %v402
        %v532 = vpop.f32.mrb[0].mxu0
        %v533 = vadd.f32 0.0, %v532
        %v534 = vpop.f32.mrb[0].mxu0
        %v535 = vpop.f32.mrb[0].mxu0
        %v536 = vadd.f32 0.0, %v535
        %v537 = vpop.f32.mrb[0].mxu0
        %538 = vmatprep.mubr.bf16.mxu0 0
        %539 = vmatmul.mubr.bf16.gmra.mrb[0].mxu0 %v405
        %v540 = vpop.f32.mrb[0].mxu0
        %v541 = vadd.f32 0.0, %v540
        %v542 = vpop.f32.mrb[0].mxu0
        %v543 = vpop.f32.mrb[0].mxu0
        %v544 = vadd.f32 0.0, %v543
        %v545 = vpop.f32.mrb[0].mxu0
        %546 = vmatprep.mubr.bf16.mxu0 0
        %547 = vmatmul.mubr.bf16.gmra.mrb[0].mxu0 %v408
        %v548 = vpop.f32.mrb[0].mxu0
        %v549 = vadd.f32 0.0, %v548
        %v550 = vpop.f32.mrb[0].mxu0
        %v551 = vpop.f32.mrb[0].mxu0
        %v552 = vadd.f32 0.0, %v551
        %v553 = vpop.f32.mrb[0].mxu0
        %554 = vmatprep.mubr.bf16.mxu0 0
        %555 = vmatmul.mubr.bf16.gmra.mrb[0].mxu0 %v411
        %v556 = vpop.f32.mrb[0].mxu0
        %v557 = vadd.f32 0.0, %v556
        %v558 = vpop.f32.mrb[0].mxu0
        %v559 = vpop.f32.mrb[0].mxu0
        %v560 = vadd.f32 0.0, %v559
        %v561 = vpop.f32.mrb[0].mxu0
        %562 = vmatprep.mubr.bf16.mxu0 0
        %563 = vmatmul.mubr.bf16.gmra.mrb[0].mxu0 %v414
        %v564 = vpop.f32.mrb[0].mxu0
        %v565 = vadd.f32 0.0, %v564
        %v566 = vpop.f32.mrb[0].mxu0
        %v567 = vpop.f32.mrb[0].mxu0
        %v568 = vadd.f32 0.0, %v567
        %v569 = vpop.f32.mrb[0].mxu0
        %570 = vmatprep.mubr.bf16.mxu0 0
        %571 = vmatmul.mubr.bf16.gmra.mrb[0].mxu0 %v417
        %v572 = vpop.f32.mrb[0].mxu0
        %v573 = vadd.f32 0.0, %v572
        %v574 = vpop.f32.mrb[0].mxu0
        %v575 = vpop.f32.mrb[0].mxu0
        %v576 = vadd.f32 0.0, %v575
        %v577 = vpop.f32.mrb[0].mxu0
        %578 = vmatprep.mubr.bf16.mxu0 0
        %579 = vmatmul.mubr.bf16.gmra.mrb[0].mxu0 %v420
        %v580 = vpop.f32.mrb[0].mxu0
        %v581 = vadd.f32 0.0, %v580
        %v582 = vpop.f32.mrb[0].mxu0
        %v583 = vpop.f32.mrb[0].mxu0
        %v584 = vadd.f32 0.0, %v583
        %v585 = vpop.f32.mrb[0].mxu0
        %586 = vmatprep.mubr.bf16.mxu0 0
        %587 = vmatmul.mubr.bf16.gmra.mrb[0].mxu0 %v423
        %v588 = vpop.f32.mrb[0].mxu0
        %v589 = vadd.f32 0.0, %v588
        %v590 = vpop.f32.mrb[0].mxu0
        %v591 = vpop.f32.mrb[0].mxu0
        %v592 = vadd.f32 0.0, %v591
        %v593 = vpop.f32.mrb[0].mxu0
        %594 = vmatprep.mubr.bf16.mxu0 0
        %595 = vmatmul.mubr.bf16.gmra.mrb[0].mxu0 %v426
        %v596 = vpop.f32.mrb[0].mxu0
        %v597 = vadd.f32 0.0, %v596
        %v598 = vpop.f32.mrb[0].mxu0
        %v599 = vpop.f32.mrb[0].mxu0
        %v600 = vadd.f32 0.0, %v599
        %v601 = vpop.f32.mrb[0].mxu0
        %602 = vmatprep.mubr.bf16.mxu0 0
        %603 = vmatmul.mubr.bf16.gmra.mrb[0].mxu0 %v429
        %v604 = vpop.f32.mrb[0].mxu0
        %v605 = vadd.f32 0.0, %v604
        %v606 = vpop.f32.mrb[0].mxu0
        %v607 = vpop.f32.mrb[0].mxu0
        %v608 = vadd.f32 0.0, %v607
        %v609 = vpop.f32.mrb[0].mxu0
        %610 = vmatprep.mubr.bf16.mxu0 0
        %611 = vmatmul.mubr.bf16.gmra.mrb[0].mxu0 %v432
        %v612 = vpop.f32.mrb[0].mxu0
        %v613 = vadd.f32 0.0, %v612
        %v614 = vpop.f32.mrb[0].mxu0
        %v615 = vpop.f32.mrb[0].mxu0
        %v616 = vadd.f32 0.0, %v615
        %v617 = vpop.f32.mrb[0].mxu0
        %618 = vmatprep.mubr.bf16.mxu0 0
        %619 = vmatmul.mubr.bf16.gmra.mrb[0].mxu0 %v435
        %v620 = vpop.f32.mrb[0].mxu0
        %v621 = vadd.f32 0.0, %v620
        %v622 = vpop.f32.mrb[0].mxu0
        %v623 = vpop.f32.mrb[0].mxu0
        %v624 = vadd.f32 0.0, %v623
        %v625 = vpop.f32.mrb[0].mxu0
        %626 = vmatprep.mubr.bf16.mxu0 0
        %627 = vmatmul.mubr.bf16.gmra.mrb[0].mxu0 %v438
        %v628 = vpop.f32.mrb[0].mxu0
        %v629 = vadd.f32 0.0, %v628
        %v630 = vpop.f32.mrb[0].mxu0
        %v631 = vpop.f32.mrb[0].mxu0
        %v632 = vadd.f32 0.0, %v631
        %v633 = vpop.f32.mrb[0].mxu0
        %634 = vmatprep.mubr.bf16.mxu0 0
        %635 = vmatmul.mubr.bf16.gmra.mrb[0].mxu0 %v441
        %v636 = vpop.f32.mrb[0].mxu0
        %v637 = vadd.f32 0.0, %v636
        %v638 = vpop.f32.mrb[0].mxu0
        %v639 = vpop.f32.mrb[0].mxu0
        %v640 = vadd.f32 0.0, %v639
        %v641 = vpop.f32.mrb[0].mxu0
        %642 = vmatprep.mubr.bf16.mxu0 0
        %643 = vmatmul.mubr.bf16.gmra.mrb[0].mxu0 %v444
        %v644 = vpop.f32.mrb[0].mxu0
        %v645 = vadd.f32 0.0, %v644
        %v646 = vpop.f32.mrb[0].mxu0
        %v647 = vpop.f32.mrb[0].mxu0
        %v648 = vadd.f32 0.0, %v647
        %v649 = vpop.f32.mrb[0].mxu0
        %650 = vmatprep.mubr.bf16.mxu0 0
        %651 = vmatmul.mubr.bf16.gmra.mrb[0].mxu0 %v447
        %v652 = vpop.f32.mrb[0].mxu0
        %v653 = vadd.f32 0.0, %v652
        %v654 = vpop.f32.mrb[0].mxu0
        %v655 = vpop.f32.mrb[0].mxu0
        %v656 = vadd.f32 0.0, %v655
        %v657 = vpop.f32.mrb[0].mxu0
        %658 = vmatprep.mubr.bf16.mxu0 0
        %659 = vmatmul.mubr.bf16.gmra.mrb[0].mxu0 %v450
        %v660 = vpop.f32.mrb[0].mxu0
        %v661 = vadd.f32 0.0, %v660
        %v662 = vpop.f32.mrb[0].mxu0
        %v663 = vpop.f32.mrb[0].mxu0
        %v664 = vadd.f32 0.0, %v663
        %v665 = vpop.f32.mrb[0].mxu0
        %666 = vmatprep.mubr.bf16.mxu0 0
        %667 = vmatmul.mubr.bf16.gmra.mrb[0].mxu0 %v453
        %v668 = vpop.f32.mrb[0].mxu0
        %v669 = vadd.f32 0.0, %v668
        %v670 = vpop.f32.mrb[0].mxu0
        %v671 = vpop.f32.mrb[0].mxu0
        %v672 = vadd.f32 0.0, %v671
        %v673 = vpop.f32.mrb[0].mxu0
        %674 = vmatprep.mubr.bf16.mxu0 0
        %675 = vmatmul.mubr.bf16.gmra.mrb[0].mxu0 %v456
        %v676 = vpop.f32.mrb[0].mxu0
        %v677 = vadd.f32 0.0, %v676
        %v678 = vpop.f32.mrb[0].mxu0
        %v679 = vpop.f32.mrb[0].mxu0
        %v680 = vadd.f32 0.0, %v679
        %v681 = vpop.f32.mrb[0].mxu0
        %682 = vdwg.mxu0
        %v683 = vpack.c.bf16 %v496, %v493
        %v684 = vpack.c.bf16 %v504, %v501
        %v685 = vpack.c.bf16 %v512, %v509
        %v686 = vpack.c.bf16 %v520, %v517
        %v687 = vpack.c.bf16 %v528, %v525
        %v688 = vpack.c.bf16 %v536, %v533
        %v689 = vpack.c.bf16 %v544, %v541
        %v690 = vpack.c.bf16 %v552, %v549
        %v691 = vpack.c.bf16 %v560, %v557
        %v692 = vpack.c.bf16 %v568, %v565
        %v693 = vpack.c.bf16 %v576, %v573
        %v694 = vpack.c.bf16 %v584, %v581
        %v695 = vpack.c.bf16 %v592, %v589
        %v696 = vpack.c.bf16 %v600, %v597
        %v697 = vpack.c.bf16 %v608, %v605
        %v698 = vpack.c.bf16 %v616, %v613
        %v699 = vpack.c.bf16 %v624, %v621
        %v700 = vpack.c.bf16 %v632, %v629
        %v701 = vpack.c.bf16 %v640, %v637
        %v702 = vpack.c.bf16 %v648, %v645
        %v703 = vpack.c.bf16 %v656, %v653
        %v704 = vpack.c.bf16 %v664, %v661
        %v705 = vpack.c.bf16 %v672, %v669
        %v706 = vpack.c.bf16 %v680, %v677
        %v731 = vunpack.c.l.b16 %v683
        %v732 = vunpack.c.h.b16 %v683
        %v733 = vunpack.c.l.b16 %v684
        %v734 = vunpack.c.h.b16 %v684
        %v735 = vunpack.c.l.b16 %v685
        %v736 = vunpack.c.h.b16 %v685
        %v737 = vunpack.c.l.b16 %v686
        %v738 = vunpack.c.h.b16 %v686
        %v739 = vunpack.c.l.b16 %v687
        %v740 = vunpack.c.h.b16 %v687
        %v741 = vunpack.c.l.b16 %v688
        %v742 = vunpack.c.h.b16 %v688
        %v743 = vunpack.c.l.b16 %v689
        %v744 = vunpack.c.h.b16 %v689
        %v745 = vunpack.c.l.b16 %v690
        %v746 = vunpack.c.h.b16 %v690
        %v747 = vunpack.c.l.b16 %v691
        %v748 = vunpack.c.h.b16 %v691
        %v749 = vunpack.c.l.b16 %v692
        %v750 = vunpack.c.h.b16 %v692
        %v751 = vunpack.c.l.b16 %v693
        %v752 = vunpack.c.h.b16 %v693
        %v753 = vunpack.c.l.b16 %v694
        %v754 = vunpack.c.h.b16 %v694
        %v755 = vunpack.c.l.b16 %v695
        %v756 = vunpack.c.h.b16 %v695
        %v757 = vunpack.c.l.b16 %v696
        %v758 = vunpack.c.h.b16 %v696
        %v759 = vunpack.c.l.b16 %v697
        %v760 = vunpack.c.h.b16 %v697
        %v761 = vunpack.c.l.b16 %v698
        %v762 = vunpack.c.h.b16 %v698
        %v763 = vunpack.c.l.b16 %v699
        %v764 = vunpack.c.h.b16 %v699
        %v765 = vunpack.c.l.b16 %v700
        %v766 = vunpack.c.h.b16 %v700
        %v767 = vunpack.c.l.b16 %v701
        %v768 = vunpack.c.h.b16 %v701
        %v769 = vunpack.c.l.b16 %v702
        %v770 = vunpack.c.h.b16 %v702
        %v771 = vunpack.c.l.b16 %v703
        %v772 = vunpack.c.h.b16 %v703
        %v773 = vunpack.c.l.b16 %v704
        %v774 = vunpack.c.h.b16 %v704
        %v775 = vunpack.c.l.b16 %v705
        %v776 = vunpack.c.h.b16 %v705
        %v777 = vunpack.c.l.b16 %v706
        %v778 = vunpack.c.h.b16 %v706
        %v779 = vpack.c.b16 %v731, %v731
        %v780 = vpack.c.b16 %v732, %v732
        %v781 = vpack.c.b16 %v733, %v733
        %v782 = vpack.c.b16 %v734, %v734
        %v783 = vpack.c.b16 %v735, %v735
        %v784 = vpack.c.b16 %v736, %v736
        %v785 = vpack.c.b16 %v737, %v737
        %v786 = vpack.c.b16 %v738, %v738
        %v787 = vpack.c.b16 %v739, %v739
        %v788 = vpack.c.b16 %v740, %v740
        %v789 = vpack.c.b16 %v741, %v741
        %v790 = vpack.c.b16 %v742, %v742
        %v791 = vpack.c.b16 %v743, %v743
        %v792 = vpack.c.b16 %v744, %v744
        %v793 = vpack.c.b16 %v745, %v745
        %v794 = vpack.c.b16 %v746, %v746
        %v795 = vpack.c.b16 %v747, %v747
        %v796 = vpack.c.b16 %v748, %v748
        %v797 = vpack.c.b16 %v749, %v749
        %v798 = vpack.c.b16 %v750, %v750
        %v799 = vpack.c.b16 %v751, %v751
        %v800 = vpack.c.b16 %v752, %v752
        %v801 = vpack.c.b16 %v753, %v753
        %v802 = vpack.c.b16 %v754, %v754
        %v803 = vpack.c.b16 %v755, %v755
        %v804 = vpack.c.b16 %v756, %v756
        %v805 = vpack.c.b16 %v757, %v757
        %v806 = vpack.c.b16 %v758, %v758
        %v807 = vpack.c.b16 %v759, %v759
        %v808 = vpack.c.b16 %v760, %v760
        %v809 = vpack.c.b16 %v761, %v761
        %v810 = vpack.c.b16 %v762, %v762
        %v811 = vpack.c.b16 %v763, %v763
        %v812 = vpack.c.b16 %v764, %v764
        %v813 = vpack.c.b16 %v765, %v765
        %v814 = vpack.c.b16 %v766, %v766
        %v815 = vpack.c.b16 %v767, %v767
        %v816 = vpack.c.b16 %v768, %v768
        %v817 = vpack.c.b16 %v769, %v769
        %v818 = vpack.c.b16 %v770, %v770
        %v819 = vpack.c.b16 %v771, %v771
        %v820 = vpack.c.b16 %v772, %v772
        %v821 = vpack.c.b16 %v773, %v773
        %v822 = vpack.c.b16 %v774, %v774
        %v823 = vpack.c.b16 %v775, %v775
        %v824 = vpack.c.b16 %v776, %v776
        %v825 = vpack.c.b16 %v777, %v777
        %v826 = vpack.c.b16 %v778, %v778
        %875 = vst [vmem:[%s194] sm:$0xf] %v779
        %876 = vst [vmem:[%s194 + $0x4] sm:$0xf] %v780
        %877 = vst [vmem:[%s194 + $0x8] sm:$0xf] %v781
        %878 = vst [vmem:[%s194 + $0xc] sm:$0xf] %v782
        %879 = vst [vmem:[%s194 + $0x10] sm:$0xf] %v783
        %880 = vst [vmem:[%s194 + $0x14] sm:$0xf] %v784
        %881 = vst [vmem:[%s194 + $0x18] sm:$0xf] %v785
        %882 = vst [vmem:[%s194 + $0x1c] sm:$0xf] %v786
        %883 = vst [vmem:[%s194 + $0x20] sm:$0xf] %v787
        %884 = vst [vmem:[%s194 + $0x24] sm:$0xf] %v788
        %885 = vst [vmem:[%s194 + $0x28] sm:$0xf] %v789
        %886 = vst [vmem:[%s194 + $0x2c] sm:$0xf] %v790
        %887 = vst [vmem:[%s194 + $0x30] sm:$0xf] %v791
        %888 = vst [vmem:[%s194 + $0x34] sm:$0xf] %v792
        %889 = vst [vmem:[%s194 + $0x38] sm:$0xf] %v793
        %890 = vst [vmem:[%s194 + $0x3c] sm:$0xf] %v794
        %891 = vst [vmem:[%s194 + $0x40] sm:$0xf] %v795
        %892 = vst [vmem:[%s194 + $0x44] sm:$0xf] %v796
        %893 = vst [vmem:[%s194 + $0x48] sm:$0xf] %v797
        %894 = vst [vmem:[%s194 + $0x4c] sm:$0xf] %v798
        %895 = vst [vmem:[%s194 + $0x50] sm:$0xf] %v799
        %896 = vst [vmem:[%s194 + $0x54] sm:$0xf] %v800
        %897 = vst [vmem:[%s194 + $0x58] sm:$0xf] %v801
        %898 = vst [vmem:[%s194 + $0x5c] sm:$0xf] %v802
        %899 = vst [vmem:[%s194 + $0x60] sm:$0xf] %v803
        %900 = vst [vmem:[%s194 + $0x64] sm:$0xf] %v804
        %901 = vst [vmem:[%s194 + $0x68] sm:$0xf] %v805
        %902 = vst [vmem:[%s194 + $0x6c] sm:$0xf] %v806
        %903 = vst [vmem:[%s194 + $0x70] sm:$0xf] %v807
        %904 = vst [vmem:[%s194 + $0x74] sm:$0xf] %v808
        %905 = vst [vmem:[%s194 + $0x78] sm:$0xf] %v809
        %906 = vst [vmem:[%s194 + $0x7c] sm:$0xf] %v810
        %907 = vst [vmem:[%s194 + $0x80] sm:$0xf] %v811
        %908 = vst [vmem:[%s194 + $0x84] sm:$0xf] %v812
        %909 = vst [vmem:[%s194 + $0x88] sm:$0xf] %v813
        %910 = vst [vmem:[%s194 + $0x8c] sm:$0xf] %v814
        %911 = vst [vmem:[%s194 + $0x90] sm:$0xf] %v815
        %912 = vst [vmem:[%s194 + $0x94] sm:$0xf] %v816
        %913 = vst [vmem:[%s194 + $0x98] sm:$0xf] %v817
        %914 = vst [vmem:[%s194 + $0x9c] sm:$0xf] %v818
        %915 = vst [vmem:[%s194 + $0xa0] sm:$0xf] %v819
        %916 = vst [vmem:[%s194 + $0xa4] sm:$0xf] %v820
        %917 = vst [vmem:[%s194 + $0xa8] sm:$0xf] %v821
        %918 = vst [vmem:[%s194 + $0xac] sm:$0xf] %v822
        %919 = vst [vmem:[%s194 + $0xb0] sm:$0xf] %v823
        %920 = vst [vmem:[%s194 + $0xb4] sm:$0xf] %v824
        %921 = vst [vmem:[%s194 + $0xb8] sm:$0xf] %v825
        %922 = vst [vmem:[%s194 + $0xbc] sm:$0xf] %v826
        %v923 = vadd.f32 %v493, %v496
        %v924 = vadd.f32 %v923, %v501
        %v925 = vadd.f32 %v924, %v504
        %v926 = vadd.f32 %v925, %v509
        %v927 = vadd.f32 %v926, %v512
        %v928 = vadd.f32 %v927, %v517
        %v929 = vadd.f32 %v928, %v520
        %v930 = vadd.f32 %v929, %v525
        %v931 = vadd.f32 %v930, %v528
        %v932 = vadd.f32 %v931, %v533
        %v933 = vadd.f32 %v932, %v536
        %v934 = vadd.f32 %v933, %v541
        %v935 = vadd.f32 %v934, %v544
        %v936 = vadd.f32 %v935, %v549
        %v937 = vadd.f32 %v936, %v552
        %v938 = vadd.f32 %v937, %v557
        %v939 = vadd.f32 %v938, %v560
        %v940 = vadd.f32 %v939, %v565
        %v941 = vadd.f32 %v940, %v568
        %v942 = vadd.f32 %v941, %v573
        %v943 = vadd.f32 %v942, %v576
        %v944 = vadd.f32 %v943, %v581
        %v945 = vadd.f32 %v944, %v584
        %v946 = vadd.f32 %v945, %v589
        %v947 = vadd.f32 %v946, %v592
        %v948 = vadd.f32 %v947, %v597
        %v949 = vadd.f32 %v948, %v600
        %v950 = vadd.f32 %v949, %v605
        %v951 = vadd.f32 %v950, %v608
        %v952 = vadd.f32 %v951, %v613
        %v953 = vadd.f32 %v952, %v616
        %v954 = vadd.f32 %v953, %v621
        %v955 = vadd.f32 %v954, %v624
        %v956 = vadd.f32 %v955, %v629
        %v957 = vadd.f32 %v956, %v632
        %v958 = vadd.f32 %v957, %v637
        %v959 = vadd.f32 %v958, %v640
        %v960 = vadd.f32 %v959, %v645
        %v961 = vadd.f32 %v960, %v648
        %v962 = vadd.f32 %v961, %v653
        %v963 = vadd.f32 %v962, %v656
        %v964 = vadd.f32 %v963, %v661
        %v965 = vadd.f32 %v964, %v664
        %v966 = vadd.f32 %v965, %v669
        %v967 = vadd.f32 %v966, %v672
        %v968 = vadd.f32 %v967, %v677
        %v969 = vadd.f32 %v968, %v680
        %v970 = vrot.slane %v969, 4
        %v971 = vadd.f32 %v969, %v970
        %v972 = vrot.slane %v971, 2
        %v973 = vadd.f32 %v971, %v972
        %v974 = vrot.slane %v973, 1
        %v975 = vadd.f32 %v973, %v974
        %v976 = vmul.f32 %v493, %v493
        %v977 = vmul.f32 %v496, %v496
        %v978 = vmul.f32 %v501, %v501
        %v979 = vmul.f32 %v504, %v504
        %v980 = vmul.f32 %v509, %v509
        %v981 = vmul.f32 %v512, %v512
        %v982 = vmul.f32 %v517, %v517
        %v983 = vmul.f32 %v520, %v520
        %v984 = vmul.f32 %v525, %v525
        %v985 = vmul.f32 %v528, %v528
        %v986 = vmul.f32 %v533, %v533
        %v987 = vmul.f32 %v536, %v536
        %v988 = vmul.f32 %v541, %v541
        %v989 = vmul.f32 %v544, %v544
        %v990 = vmul.f32 %v549, %v549
        %v991 = vmul.f32 %v552, %v552
        %v992 = vmul.f32 %v557, %v557
        %v993 = vmul.f32 %v560, %v560
        %v994 = vmul.f32 %v565, %v565
        %v995 = vmul.f32 %v568, %v568
        %v996 = vmul.f32 %v573, %v573
        %v997 = vmul.f32 %v576, %v576
        %v998 = vmul.f32 %v581, %v581
        %v999 = vmul.f32 %v584, %v584
        %v1000 = vmul.f32 %v589, %v589
        %v1001 = vmul.f32 %v592, %v592
        %v1002 = vmul.f32 %v597, %v597
        %v1003 = vmul.f32 %v600, %v600
        %v1004 = vmul.f32 %v605, %v605
        %v1005 = vmul.f32 %v608, %v608
        %v1006 = vmul.f32 %v613, %v613
        %v1007 = vmul.f32 %v616, %v616
        %v1008 = vmul.f32 %v621, %v621
        %v1009 = vmul.f32 %v624, %v624
        %v1010 = vmul.f32 %v629, %v629
        %v1011 = vmul.f32 %v632, %v632
        %v1012 = vmul.f32 %v637, %v637
        %v1013 = vmul.f32 %v640, %v640
        %v1014 = vmul.f32 %v645, %v645
        %v1015 = vmul.f32 %v648, %v648
        %v1016 = vmul.f32 %v653, %v653
        %v1017 = vmul.f32 %v656, %v656
        %v1018 = vmul.f32 %v661, %v661
        %v1019 = vmul.f32 %v664, %v664
        %v1020 = vmul.f32 %v669, %v669
        %v1021 = vmul.f32 %v672, %v672
        %v1022 = vmul.f32 %v677, %v677
        %v1023 = vmul.f32 %v680, %v680
        %v1024 = vadd.f32 %v976, %v977
        %v1025 = vadd.f32 %v1024, %v978
        %v1026 = vadd.f32 %v1025, %v979
        %v1027 = vadd.f32 %v1026, %v980
        %v1028 = vadd.f32 %v1027, %v981
        %v1029 = vadd.f32 %v1028, %v982
        %v1030 = vadd.f32 %v1029, %v983
        %v1031 = vadd.f32 %v1030, %v984
        %v1032 = vadd.f32 %v1031, %v985
        %v1033 = vadd.f32 %v1032, %v986
        %v1034 = vadd.f32 %v1033, %v987
        %v1035 = vadd.f32 %v1034, %v988
        %v1036 = vadd.f32 %v1035, %v989
        %v1037 = vadd.f32 %v1036, %v990
        %v1038 = vadd.f32 %v1037, %v991
        %v1039 = vadd.f32 %v1038, %v992
        %v1040 = vadd.f32 %v1039, %v993
        %v1041 = vadd.f32 %v1040, %v994
        %v1042 = vadd.f32 %v1041, %v995
        %v1043 = vadd.f32 %v1042, %v996
        %v1044 = vadd.f32 %v1043, %v997
        %v1045 = vadd.f32 %v1044, %v998
        %v1046 = vadd.f32 %v1045, %v999
        %v1047 = vadd.f32 %v1046, %v1000
        %v1048 = vadd.f32 %v1047, %v1001
        %v1049 = vadd.f32 %v1048, %v1002
        %v1050 = vadd.f32 %v1049, %v1003
        %v1051 = vadd.f32 %v1050, %v1004
        %v1052 = vadd.f32 %v1051, %v1005
        %v1053 = vadd.f32 %v1052, %v1006
        %v1054 = vadd.f32 %v1053, %v1007
        %v1055 = vadd.f32 %v1054, %v1008
        %v1056 = vadd.f32 %v1055, %v1009
        %v1057 = vadd.f32 %v1056, %v1010
        %v1058 = vadd.f32 %v1057, %v1011
        %v1059 = vadd.f32 %v1058, %v1012
        %v1060 = vadd.f32 %v1059, %v1013
        %v1061 = vadd.f32 %v1060, %v1014
        %v1062 = vadd.f32 %v1061, %v1015
        %v1063 = vadd.f32 %v1062, %v1016
        %v1064 = vadd.f32 %v1063, %v1017
        %v1065 = vadd.f32 %v1064, %v1018
        %v1066 = vadd.f32 %v1065, %v1019
        %v1067 = vadd.f32 %v1066, %v1020
        %v1068 = vadd.f32 %v1067, %v1021
        %v1069 = vadd.f32 %v1068, %v1022
        %v1070 = vadd.f32 %v1069, %v1023
        %v1071 = vrot.slane %v1070, 4
        %v1072 = vadd.f32 %v1070, %v1071
        %v1073 = vrot.slane %v1072, 2
        %v1074 = vadd.f32 %v1072, %v1073
        %v1075 = vrot.slane %v1074, 1
        %v1076 = vadd.f32 %v1074, %v1075
        %vm1077 = vcmask 1040384
        %v1078 = vsel %vm1077, %v975, %v1076
        %1079 = vst [vmem:[%s199] sm:$0x3] %v1078
        %s1080 = smul.u32 48, %s16
        %p1081 = scmp.lt.s32.totalorder %s1080, 143
        %s1082 = scalar_select %p1081, %s1080, 143
        %s1083 = smul.addr %s1082, 4
        %s1084 = scalar_lea.vmem %s2, %s1083
        %p1085 = scmp.lt.s32.totalorder %s16, 2
        %s1086 = scalar_select %p1085, %s16, 2
        %s1087 = smul.addr %s1086, 2
        %s1088 = scalar_lea.vmem %s3, %s1087
        // Predicated region
        $region33: #{cvae2_pool_forward.14} parent=27 // pred_check
          %p1089 = pneg %p81
        $region34: #{cvae2_pool_forward.14} parent=27 // pred_check_branch
          %1091 = sbr.rel (%p1089) target = $region36
        $region35: #{cvae2_pool_forward.14} parent=27 // pred_region
          %s1092 = smul.u32 48, %s16
        $region36: #{cvae2_pool_forward.14} parent=27 // pred_fallthru
          _
        // Predicated region
        $region37: #{cvae2_pool_forward.14} parent=27 // pred_check
          %p1093 = pneg %p107
        $region38: #{cvae2_pool_forward.14} parent=27 // pred_check_branch
          %1095 = sbr.rel (%p1093) target = $region40
        $region39: #{cvae2_pool_forward.14} parent=27 // pred_region
          _
        $region40: #{cvae2_pool_forward.14} parent=27 // pred_fallthru
          _
      $region28: #{cvae2_pool_forward.14} parent=5 // pred_fallthru
        _
      %p1096 = scmp.le.s32.totalorder 2, %s11
      // Predicated region
      $region41: #{cvae2_pool_forward.14} parent=5 // pred_check
        %p1097 = pneg %p1096
      $region42: #{cvae2_pool_forward.14} parent=5 // pred_check_branch
        %1099 = sbr.rel (%p1097) target = $region44
      $region43: #{cvae2_pool_forward.14} parent=5 // pred_region
        %s1100 = ssub.s32 %s11, 2
        // Predicated region
        $region45: #{cvae2_pool_forward.14} parent=43 // pred_check
          %p1101 = pneg %p87
        $region46: #{cvae2_pool_forward.14} parent=43 // pred_check_branch
          %1103 = sbr.rel (%p1101) target = $region48
        $region47: #{cvae2_pool_forward.14} parent=43 // pred_region
          %s1104 = smul.u32 48, %s17
          %p1105 = scmp.lt.s32.totalorder %s1104, 143
          %s1106 = scalar_select %p1105, %s1104, 143
          %s1107 = smul.addr %s1106, 4
          %s1108 = scalar_lea.vmem %s2, %s1107
        $region48: #{cvae2_pool_forward.14} parent=43 // pred_fallthru
          _
        // Predicated region
        $region49: #{cvae2_pool_forward.14} parent=43 // pred_check
          %p1109 = pneg %p113
        $region50: #{cvae2_pool_forward.14} parent=43 // pred_check_branch
          %1111 = sbr.rel (%p1109) target = $region52
        $region51: #{cvae2_pool_forward.14} parent=43 // pred_region
          %p1112 = scmp.lt.s32.totalorder %s17, 2
          %s1113 = scalar_select %p1112, %s17, 2
          %s1114 = smul.addr %s1113, 2
          %s1115 = scalar_lea.vmem %s3, %s1114
        $region52: #{cvae2_pool_forward.14} parent=43 // pred_fallthru
          _
      $region44: #{cvae2_pool_forward.14} parent=5 // pred_fallthru
        _
    $region6: #{cvae2_pool_forward.14} parent=1 // loop_footer
      %s15 = sadd.s32 1, %s11
    $region7: #{cvae2_pool_forward.14} parent=1 // loop_footer_branch
      %10 = sbr.rel target = $region3
    $region8: #{cvae2_pool_forward.14} parent=1 // loop_exit
      _
    %1116 = vsyncpa [#allocation3], 1
    %s1117 = scalar_lea.sflag [#allocation3], 1
    %1118 = vsyncpa %s1117, 1

// kernel: cvae2_pool_forward.17
$region0: #{cvae2_pool_forward.17}
  #allocation0 [shape = 'u32[]', space=smem, size = 0x4, offset = 0x4, fixed_abs, tag = 'smem constant byte address 0x4 - core index']
  #allocation1 [shape = 'u32[144,128]{1,0:T(1,128)}', space=vmem, size = 0x12000, scoped, tag = 'internal scratch']
  %s0 = inlined_call_operand.vmem [shape: bf16[208,128], index: 0, kind: input, shape index: {}]
  %s1 = inlined_call_operand.vmem [shape: f32[2,128], index: 1, kind: input, shape index: {}]
  %s2 = inlined_call_operand.vmem [shape: f32[1,128], index: 2, kind: input, shape index: {}]
  %s3 = inlined_call_operand.vmem [shape: f32[1,128], index: 3, kind: input, shape index: {}]
  %s4 = inlined_call_operand.vmem [shape: bf16[208,128], index: 4, kind: output, shape index: {}]
  %s5 = sld [smem:[#allocation0]]
  $region26: #{cvae2_pool_forward.17} parent=0
    _
  %s7 = ssub.s32 1, %s5
  %s8 = scalar_select 0, %s7, %s5
  // Predicated region
  $region2: #{cvae2_pool_forward.17} parent=0 // pred_check
    _
  $region3: #{cvae2_pool_forward.17} parent=0 // pred_check_branch
    %10 = sbr.rel (0) target = $region5
  $region4: #{cvae2_pool_forward.17} parent=0 // pred_region
    _
  $region5: #{cvae2_pool_forward.17} parent=0 // pred_fallthru
    _
  // Predicated region
  $region6: #{cvae2_pool_forward.17} parent=0 // pred_check
    _
  $region7: #{cvae2_pool_forward.17} parent=0 // pred_check_branch
    %12 = sbr.rel (0) target = $region9
  $region8: #{cvae2_pool_forward.17} parent=0 // pred_region
    _
  $region9: #{cvae2_pool_forward.17} parent=0 // pred_fallthru
    _
  // Predicated region
  $region10: #{cvae2_pool_forward.17} parent=0 // pred_check
    _
  $region11: #{cvae2_pool_forward.17} parent=0 // pred_check_branch
    %14 = sbr.rel (0) target = $region13
  $region12: #{cvae2_pool_forward.17} parent=0 // pred_region
    _
  $region13: #{cvae2_pool_forward.17} parent=0 // pred_fallthru
    _
  // Predicated region
  $region14: #{cvae2_pool_forward.17} parent=0 // pred_check
    _
  $region15: #{cvae2_pool_forward.17} parent=0 // pred_check_branch
    %16 = sbr.rel (0) target = $region17
  $region16: #{cvae2_pool_forward.17} parent=0 // pred_region
    _
  $region17: #{cvae2_pool_forward.17} parent=0 // pred_fallthru
    _
  %v17 = vld [vmem:[%s1] sm:$0x1]
  %v18 = vmul.f32 %v17, 0.005
  %v19 = vld [vmem:[%s1 + $0x1] sm:$0x1]
  %v20 = vmul.f32 %v19, 0.005
  %v21 = vmul.f32 %v18, %v18
  %v22 = vsub.f32 %v20, %v21
  %v23 = vld [vmem:[%s2] sm:$0x1]
  %v24 = vadd.f32 %v22, 1e-05
  %v25 = vrsqrt.pop %v24
  %v26 = vmul.f32 %v23, %v25
  %v27 = vld [vmem:[%s3] sm:$0x1]
  %v28 = vmul.f32 %v18, %v26
  %v29 = vsub.f32 %v27, %v28
  %v30 = vld [vmem:[%s0] sm:$0xf]
  %v31 = vld [vmem:[%s0 + $0x4] sm:$0xf]
  %v32 = vld [vmem:[%s0 + $0x8] sm:$0xf]
  %v33 = vld [vmem:[%s0 + $0xc] sm:$0xf]
  %v34 = vld [vmem:[%s0 + $0x10] sm:$0xf]
  %v35 = vld [vmem:[%s0 + $0x14] sm:$0xf]
  %v36 = vld [vmem:[%s0 + $0x18] sm:$0xf]
  %v37 = vld [vmem:[%s0 + $0x1c] sm:$0xf]
  %v38 = vld [vmem:[%s0 + $0x20] sm:$0xf]
  %v39 = vld [vmem:[%s0 + $0x24] sm:$0xf]
  %v40 = vld [vmem:[%s0 + $0x28] sm:$0xf]
  %v41 = vld [vmem:[%s0 + $0x2c] sm:$0xf]
  %v42 = vld [vmem:[%s0 + $0x30] sm:$0xf]
  %v43 = vld [vmem:[%s0 + $0x34] sm:$0xf]
  %v44 = vld [vmem:[%s0 + $0x38] sm:$0xf]
  %v45 = vld [vmem:[%s0 + $0x3c] sm:$0xf]
  %v46 = vld [vmem:[%s0 + $0x40] sm:$0xf]
  %v47 = vld [vmem:[%s0 + $0x44] sm:$0xf]
  %v48 = vld [vmem:[%s0 + $0x48] sm:$0xf]
  %v49 = vld [vmem:[%s0 + $0x4c] sm:$0xf]
  %v50 = vld [vmem:[%s0 + $0x50] sm:$0xf]
  %v51 = vld [vmem:[%s0 + $0x54] sm:$0xf]
  %v52 = vld [vmem:[%s0 + $0x58] sm:$0xf]
  %v53 = vld [vmem:[%s0 + $0x5c] sm:$0xf]
  %v54 = vld [vmem:[%s0 + $0x60] sm:$0xf]
  %v55 = vld [vmem:[%s0 + $0x64] sm:$0xf]
  %v56 = vunpack.c.l.bf16 %v30
  %v57 = vunpack.c.l.bf16 %v31
  %v58 = vunpack.c.l.bf16 %v32
  %v59 = vunpack.c.l.bf16 %v33
  %v60 = vunpack.c.l.bf16 %v34
  %v61 = vunpack.c.l.bf16 %v35
  %v62 = vunpack.c.l.bf16 %v36
  %v63 = vunpack.c.l.bf16 %v37
  %v64 = vunpack.c.l.bf16 %v38
  %v65 = vunpack.c.l.bf16 %v39
  %v66 = vunpack.c.l.bf16 %v40
  %v67 = vunpack.c.l.bf16 %v41
  %v68 = vunpack.c.l.bf16 %v42
  %v69 = vunpack.c.l.bf16 %v43
  %v70 = vunpack.c.l.bf16 %v44
  %v71 = vunpack.c.l.bf16 %v45
  %v72 = vunpack.c.l.bf16 %v46
  %v73 = vunpack.c.l.bf16 %v47
  %v74 = vunpack.c.l.bf16 %v48
  %v75 = vunpack.c.l.bf16 %v49
  %v76 = vunpack.c.l.bf16 %v50
  %v77 = vunpack.c.l.bf16 %v51
  %v78 = vunpack.c.l.bf16 %v52
  %v79 = vunpack.c.l.bf16 %v53
  %v80 = vunpack.c.l.bf16 %v54
  %v81 = vunpack.c.l.bf16 %v55
  %v83 = vlaneseq
  %v84 = vshrl.u32 %v83, 7
  %v85 = vsub.s32 0, %v84
  %v86 = vrot.slane %v26, %v85
  %v88 = vmul.f32 %v56, %v86
  %v89 = vmul.f32 %v57, %v86
  %v90 = vmul.f32 %v58, %v86
  %v91 = vmul.f32 %v59, %v86
  %v92 = vmul.f32 %v60, %v86
  %v93 = vmul.f32 %v61, %v86
  %v94 = vmul.f32 %v62, %v86
  %v95 = vmul.f32 %v63, %v86
  %v96 = vmul.f32 %v64, %v86
  %v97 = vmul.f32 %v65, %v86
  %v98 = vmul.f32 %v66, %v86
  %v99 = vmul.f32 %v67, %v86
  %v100 = vmul.f32 %v68, %v86
  %v101 = vmul.f32 %v69, %v86
  %v102 = vmul.f32 %v70, %v86
  %v103 = vmul.f32 %v71, %v86
  %v104 = vmul.f32 %v72, %v86
  %v105 = vmul.f32 %v73, %v86
  %v106 = vmul.f32 %v74, %v86
  %v107 = vmul.f32 %v75, %v86
  %v108 = vmul.f32 %v76, %v86
  %v109 = vmul.f32 %v77, %v86
  %v110 = vmul.f32 %v78, %v86
  %v111 = vmul.f32 %v79, %v86
  %v112 = vmul.f32 %v80, %v86
  %v113 = vmul.f32 %v81, %v86
  %v115 = vlaneseq
  %v116 = vshrl.u32 %v115, 7
  %v117 = vsub.s32 0, %v116
  %v118 = vrot.slane %v29, %v117
  %v120 = vadd.f32 %v88, %v118
  %v121 = vadd.f32 %v89, %v118
  %v122 = vadd.f32 %v90, %v118
  %v123 = vadd.f32 %v91, %v118
  %v124 = vadd.f32 %v92, %v118
  %v125 = vadd.f32 %v93, %v118
  %v126 = vadd.f32 %v94, %v118
  %v127 = vadd.f32 %v95, %v118
  %v128 = vadd.f32 %v96, %v118
  %v129 = vadd.f32 %v97, %v118
  %v130 = vadd.f32 %v98, %v118
  %v131 = vadd.f32 %v99, %v118
  %v132 = vadd.f32 %v100, %v118
  %v133 = vadd.f32 %v101, %v118
  %v134 = vadd.f32 %v102, %v118
  %v135 = vadd.f32 %v103, %v118
  %v136 = vadd.f32 %v104, %v118
  %v137 = vadd.f32 %v105, %v118
  %v138 = vadd.f32 %v106, %v118
  %v139 = vadd.f32 %v107, %v118
  %v140 = vadd.f32 %v108, %v118
  %v141 = vadd.f32 %v109, %v118
  %v142 = vadd.f32 %v110, %v118
  %v143 = vadd.f32 %v111, %v118
  %v144 = vadd.f32 %v112, %v118
  %v145 = vadd.f32 %v113, %v118
  %v146 = vmax.f32 %v120, 0.0
  %v147 = vmax.f32 %v121, 0.0
  %v148 = vmax.f32 %v122, 0.0
  %v149 = vmax.f32 %v123, 0.0
  %v150 = vmax.f32 %v124, 0.0
  %v151 = vmax.f32 %v125, 0.0
  %v152 = vmax.f32 %v126, 0.0
  %v153 = vmax.f32 %v127, 0.0
  %v154 = vmax.f32 %v128, 0.0
  %v155 = vmax.f32 %v129, 0.0
  %v156 = vmax.f32 %v130, 0.0
  %v157 = vmax.f32 %v131, 0.0
  %v158 = vmax.f32 %v132, 0.0
  %v159 = vmax.f32 %v133, 0.0
  %v160 = vmax.f32 %v134, 0.0
  %v161 = vmax.f32 %v135, 0.0
  %v162 = vmax.f32 %v136, 0.0
  %v163 = vmax.f32 %v137, 0.0
  %v164 = vmax.f32 %v138, 0.0
  %v165 = vmax.f32 %v139, 0.0
  %v166 = vmax.f32 %v140, 0.0
  %v167 = vmax.f32 %v141, 0.0
  %v168 = vmax.f32 %v142, 0.0
  %v169 = vmax.f32 %v143, 0.0
  %v170 = vmax.f32 %v144, 0.0
  %v171 = vmax.f32 %v145, 0.0
  %v172 = vpack.c.bf16 %v147, %v146
  %v173 = vpack.c.bf16 %v149, %v148
  %v174 = vpack.c.bf16 %v151, %v150
  %v175 = vpack.c.bf16 %v153, %v152
  %v176 = vpack.c.bf16 %v155, %v154
  %v177 = vpack.c.bf16 %v157, %v156
  %v178 = vpack.c.bf16 %v159, %v158
  %v179 = vpack.c.bf16 %v161, %v160
  %v180 = vpack.c.bf16 %v163, %v162
  %v181 = vpack.c.bf16 %v165, %v164
  %v182 = vpack.c.bf16 %v167, %v166
  %v183 = vpack.c.bf16 %v169, %v168
  %v184 = vpack.c.bf16 %v171, %v170
  %v198 = vunpack.c.l.b16 %v172
  %v199 = vunpack.c.h.b16 %v172
  %v200 = vunpack.c.l.b16 %v173
  %v201 = vunpack.c.h.b16 %v173
  %v202 = vunpack.c.l.b16 %v174
  %v203 = vunpack.c.h.b16 %v174
  %v204 = vunpack.c.l.b16 %v175
  %v205 = vunpack.c.h.b16 %v175
  %v206 = vunpack.c.l.b16 %v176
  %v207 = vunpack.c.h.b16 %v176
  %v208 = vunpack.c.l.b16 %v177
  %v209 = vunpack.c.h.b16 %v177
  %v210 = vunpack.c.l.b16 %v178
  %v211 = vunpack.c.h.b16 %v178
  %v212 = vunpack.c.l.b16 %v179
  %v213 = vunpack.c.h.b16 %v179
  %v214 = vunpack.c.l.b16 %v180
  %v215 = vunpack.c.h.b16 %v180
  %v216 = vunpack.c.l.b16 %v181
  %v217 = vunpack.c.h.b16 %v181
  %v218 = vunpack.c.l.b16 %v182
  %v219 = vunpack.c.h.b16 %v182
  %v220 = vunpack.c.l.b16 %v183
  %v221 = vunpack.c.h.b16 %v183
  %v222 = vunpack.c.l.b16 %v184
  %v223 = vunpack.c.h.b16 %v184
  %v224 = vpack.c.b16 %v198, %v198
  %v225 = vpack.c.b16 %v199, %v199
  %v226 = vpack.c.b16 %v200, %v200
  %v227 = vpack.c.b16 %v201, %v201
  %v228 = vpack.c.b16 %v202, %v202
  %v229 = vpack.c.b16 %v203, %v203
  %v230 = vpack.c.b16 %v204, %v204
  %v231 = vpack.c.b16 %v205, %v205
  %v232 = vpack.c.b16 %v206, %v206
  %v233 = vpack.c.b16 %v207, %v207
  %v234 = vpack.c.b16 %v208, %v208
  %v235 = vpack.c.b16 %v209, %v209
  %v236 = vpack.c.b16 %v210, %v210
  %v237 = vpack.c.b16 %v211, %v211
  %v238 = vpack.c.b16 %v212, %v212
  %v239 = vpack.c.b16 %v213, %v213
  %v240 = vpack.c.b16 %v214, %v214
  %v241 = vpack.c.b16 %v215, %v215
  %v242 = vpack.c.b16 %v216, %v216
  %v243 = vpack.c.b16 %v217, %v217
  %v244 = vpack.c.b16 %v218, %v218
  %v245 = vpack.c.b16 %v219, %v219
  %v246 = vpack.c.b16 %v220, %v220
  %v247 = vpack.c.b16 %v221, %v221
  %v248 = vpack.c.b16 %v222, %v222
  %v249 = vpack.c.b16 %v223, %v223
  %276 = vst [vmem:[%s4] sm:$0xf] %v224
  %277 = vst [vmem:[%s4 + $0x4] sm:$0xf] %v225
  %278 = vst [vmem:[%s4 + $0x8] sm:$0xf] %v226
  %279 = vst [vmem:[%s4 + $0xc] sm:$0xf] %v227
  %280 = vst [vmem:[%s4 + $0x10] sm:$0xf] %v228
  %281 = vst [vmem:[%s4 + $0x14] sm:$0xf] %v229
  %282 = vst [vmem:[%s4 + $0x18] sm:$0xf] %v230
  %283 = vst [vmem:[%s4 + $0x1c] sm:$0xf] %v231
  %284 = vst [vmem:[%s4 + $0x20] sm:$0xf] %v232
  %285 = vst [vmem:[%s4 + $0x24] sm:$0xf] %v233
  %286 = vst [vmem:[%s4 + $0x28] sm:$0xf] %v234
  %287 = vst [vmem:[%s4 + $0x2c] sm:$0xf] %v235
  %288 = vst [vmem:[%s4 + $0x30] sm:$0xf] %v236
  %289 = vst [vmem:[%s4 + $0x34] sm:$0xf] %v237
  %290 = vst [vmem:[%s4 + $0x38] sm:$0xf] %v238
  %291 = vst [vmem:[%s4 + $0x3c] sm:$0xf] %v239
  %292 = vst [vmem:[%s4 + $0x40] sm:$0xf] %v240
  %293 = vst [vmem:[%s4 + $0x44] sm:$0xf] %v241
  %294 = vst [vmem:[%s4 + $0x48] sm:$0xf] %v242
  %295 = vst [vmem:[%s4 + $0x4c] sm:$0xf] %v243
  %296 = vst [vmem:[%s4 + $0x50] sm:$0xf] %v244
  %297 = vst [vmem:[%s4 + $0x54] sm:$0xf] %v245
  %298 = vst [vmem:[%s4 + $0x58] sm:$0xf] %v246
  %299 = vst [vmem:[%s4 + $0x5c] sm:$0xf] %v247
  %300 = vst [vmem:[%s4 + $0x60] sm:$0xf] %v248
  %301 = vst [vmem:[%s4 + $0x64] sm:$0xf] %v249
  // Predicated region
  $region18: #{cvae2_pool_forward.17} parent=0 // pred_check
    _
  $region19: #{cvae2_pool_forward.17} parent=0 // pred_check_branch
    %303 = sbr.rel (0) target = $region21
  $region20: #{cvae2_pool_forward.17} parent=0 // pred_region
    _
  $region21: #{cvae2_pool_forward.17} parent=0 // pred_fallthru
    _
  // Predicated region
  $region22: #{cvae2_pool_forward.17} parent=0 // pred_check
    _
  $region23: #{cvae2_pool_forward.17} parent=0 // pred_check_branch
    %305 = sbr.rel (0) target = $region25
  $region24: #{cvae2_pool_forward.17} parent=0 // pred_region
    _
  $region25: #{cvae2_pool_forward.17} parent=0 // pred_fallthru
    _

// kernel: cvae2_pool_forward.16
$region0: #{cvae2_pool_forward.16}
  #allocation0 [shape = 'u32[]', space=smem, size = 0x4, offset = 0x4, fixed_abs, tag = 'smem constant byte address 0x4 - core index']
  #allocation1 [shape = 'u32[144,128]{1,0:T(1,128)}', space=vmem, size = 0x12000, scoped, tag = 'internal scratch']
  %s0 = inlined_call_operand.vmem [shape: bf16[208,576], index: 0, kind: input, shape index: {}]
  %s1 = inlined_call_operand.vmem [shape: bf16[576,128], index: 1, kind: input, shape index: {}]
  %s2 = inlined_call_operand.vmem [shape: bf16[208,128], index: 2, kind: output, shape index: {0}]
  %s3 = inlined_call_operand.vmem [shape: f32[1,2,128], index: 3, kind: output, shape index: {1}]
  %4 = xla_tuple %s2, %s3
  %s5 = sld [smem:[#allocation0]]
  $region26: #{cvae2_pool_forward.16} parent=0
    _
  %s7 = ssub.s32 1, %s5
  %s8 = scalar_select 0, %s7, %s5
  // Predicated region
  $region2: #{cvae2_pool_forward.16} parent=0 // pred_check
    _
  $region3: #{cvae2_pool_forward.16} parent=0 // pred_check_branch
    %10 = sbr.rel (0) target = $region5
  $region4: #{cvae2_pool_forward.16} parent=0 // pred_region
    _
  $region5: #{cvae2_pool_forward.16} parent=0 // pred_fallthru
    _
  // Predicated region
  $region6: #{cvae2_pool_forward.16} parent=0 // pred_check
    _
  $region7: #{cvae2_pool_forward.16} parent=0 // pred_check_branch
    %12 = sbr.rel (0) target = $region9
  $region8: #{cvae2_pool_forward.16} parent=0 // pred_region
    _
  $region9: #{cvae2_pool_forward.16} parent=0 // pred_fallthru
    _
  %v14 = vld [vmem:[%s0] sm:$0xff]
  %v15 = vld [vmem:[%s0 + $0x8] sm:$0xff]
  %v16 = vld [vmem:[%s0 + $0x10] sm:$0xf]
  %v17 = vld [vmem:[%s0 + $0x14] sm:$0xff]
  %v18 = vld [vmem:[%s0 + $0x1c] sm:$0xff]
  %v19 = vld [vmem:[%s0 + $0x24] sm:$0xf]
  %v20 = vld [vmem:[%s0 + $0x28] sm:$0xff]
  %v21 = vld [vmem:[%s0 + $0x30] sm:$0xff]
  %v22 = vld [vmem:[%s0 + $0x38] sm:$0xf]
  %v23 = vld [vmem:[%s0 + $0x3c] sm:$0xff]
  %v24 = vld [vmem:[%s0 + $0x44] sm:$0xff]
  %v25 = vld [vmem:[%s0 + $0x4c] sm:$0xf]
  %v26 = vld [vmem:[%s0 + $0x50] sm:$0xff]
  %v27 = vld [vmem:[%s0 + $0x58] sm:$0xff]
  %v28 = vld [vmem:[%s0 + $0x60] sm:$0xf]
  %v29 = vld [vmem:[%s0 + $0x64] sm:$0xff]
  %v30 = vld [vmem:[%s0 + $0x6c] sm:$0xff]
  %v31 = vld [vmem:[%s0 + $0x74] sm:$0xf]
  %v32 = vld [vmem:[%s0 + $0x78] sm:$0xff]
  %v33 = vld [vmem:[%s0 + $0x80] sm:$0xff]
  %v34 = vld [vmem:[%s0 + $0x88] sm:$0xf]
  %v35 = vld [vmem:[%s0 + $0x8c] sm:$0xff]
  %v36 = vld [vmem:[%s0 + $0x94] sm:$0xff]
  %v37 = vld [vmem:[%s0 + $0x9c] sm:$0xf]
  %v38 = vld [vmem:[%s0 + $0xa0] sm:$0xff]
  %v39 = vld [vmem:[%s0 + $0xa8] sm:$0xff]
  %v40 = vld [vmem:[%s0 + $0xb0] sm:$0xf]
  %v41 = vld [vmem:[%s0 + $0xb4] sm:$0xff]
  %v42 = vld [vmem:[%s0 + $0xbc] sm:$0xff]
  %v43 = vld [vmem:[%s0 + $0xc4] sm:$0xf]
  %v44 = vld [vmem:[%s0 + $0xc8] sm:$0xff]
  %v45 = vld [vmem:[%s0 + $0xd0] sm:$0xff]
  %v46 = vld [vmem:[%s0 + $0xd8] sm:$0xf]
  %v47 = vld [vmem:[%s0 + $0xdc] sm:$0xff]
  %v48 = vld [vmem:[%s0 + $0xe4] sm:$0xff]
  %v49 = vld [vmem:[%s0 + $0xec] sm:$0xf]
  %v50 = vld [vmem:[%s0 + $0xf0] sm:$0xff]
  %v51 = vld [vmem:[%s0 + $0xf8] sm:$0xff]
  %v52 = vld [vmem:[%s0 + $0x100] sm:$0xf]
  %v53 = vld [vmem:[%s0 + $0x104] sm:$0xff]
  %v54 = vld [vmem:[%s0 + $0x10c] sm:$0xff]
  %v55 = vld [vmem:[%s0 + $0x114] sm:$0xf]
  %v56 = vld [vmem:[%s0 + $0x118] sm:$0xff]
  %v57 = vld [vmem:[%s0 + $0x120] sm:$0xff]
  %v58 = vld [vmem:[%s0 + $0x128] sm:$0xf]
  %v59 = vld [vmem:[%s0 + $0x12c] sm:$0xff]
  %v60 = vld [vmem:[%s0 + $0x134] sm:$0xff]
  %v61 = vld [vmem:[%s0 + $0x13c] sm:$0xf]
  %v62 = vld [vmem:[%s0 + $0x140] sm:$0xff]
  %v63 = vld [vmem:[%s0 + $0x148] sm:$0xff]
  %v64 = vld [vmem:[%s0 + $0x150] sm:$0xf]
  %v65 = vld [vmem:[%s0 + $0x154] sm:$0xff]
  %v66 = vld [vmem:[%s0 + $0x15c] sm:$0xff]
  %v67 = vld [vmem:[%s0 + $0x164] sm:$0xf]
  %v68 = vld [vmem:[%s0 + $0x168] sm:$0xff]
  %v69 = vld [vmem:[%s0 + $0x170] sm:$0xff]
  %v70 = vld [vmem:[%s0 + $0x178] sm:$0xf]
  %v71 = vld [vmem:[%s0 + $0x17c] sm:$0xff]
  %v72 = vld [vmem:[%s0 + $0x184] sm:$0xff]
  %v73 = vld [vmem:[%s0 + $0x18c] sm:$0xf]
  %v74 = vld [vmem:[%s0 + $0x190] sm:$0xff]
  %v75 = vld [vmem:[%s0 + $0x198] sm:$0xff]
  %v76 = vld [vmem:[%s0 + $0x1a0] sm:$0xf]
  %v77 = vld [vmem:[%s0 + $0x1a4] sm:$0xff]
  %v78 = vld [vmem:[%s0 + $0x1ac] sm:$0xff]
  %v79 = vld [vmem:[%s0 + $0x1b4] sm:$0xf]
  %v80 = vld [vmem:[%s0 + $0x1b8] sm:$0xff]
  %v81 = vld [vmem:[%s0 + $0x1c0] sm:$0xff]
  %v82 = vld [vmem:[%s0 + $0x1c8] sm:$0xf]
  %v83 = vld [vmem:[%s0 + $0x1cc] sm:$0xff]
  %v84 = vld [vmem:[%s0 + $0x1d4] sm:$0xff]
  %v85 = vld [vmem:[%s0 + $0x1dc] sm:$0xf]
  %v86 = vld [vmem:[%s0 + $0x1e0] sm:$0xff]
  %v87 = vld [vmem:[%s0 + $0x1e8] sm:$0xff]
  %v88 = vld [vmem:[%s0 + $0x1f0] sm:$0xf]
  %v89 = vld [vmem:[%s0 + $0x1f4] sm:$0xff]
  %v90 = vld [vmem:[%s0 + $0x1fc] sm:$0xff]
  %v91 = vld [vmem:[%s0 + $0x204] sm:$0xf]
  %v92 = vld [vmem:[%s1] sm:$0xf]
  %v93 = vld [vmem:[%s1 + $0x4] sm:$0xf]
  %v94 = vld [vmem:[%s1 + $0x8] sm:$0xf]
  %v95 = vld [vmem:[%s1 + $0xc] sm:$0xf]
  %v96 = vld [vmem:[%s1 + $0x10] sm:$0xf]
  %v97 = vld [vmem:[%s1 + $0x14] sm:$0xf]
  %v98 = vld [vmem:[%s1 + $0x18] sm:$0xf]
  %v99 = vld [vmem:[%s1 + $0x1c] sm:$0xf]
  %v100 = vld [vmem:[%s1 + $0x20] sm:$0xf]
  %v101 = vld [vmem:[%s1 + $0x24] sm:$0xf]
  %v102 = vld [vmem:[%s1 + $0x28] sm:$0xf]
  %v103 = vld [vmem:[%s1 + $0x2c] sm:$0xf]
  %v104 = vld [vmem:[%s1 + $0x30] sm:$0xf]
  %v105 = vld [vmem:[%s1 + $0x34] sm:$0xf]
  %v106 = vld [vmem:[%s1 + $0x38] sm:$0xf]
  %v107 = vld [vmem:[%s1 + $0x3c] sm:$0xf]
  %v108 = vld [vmem:[%s1 + $0x40] sm:$0xf]
  %v109 = vld [vmem:[%s1 + $0x44] sm:$0xf]
  %v110 = vld [vmem:[%s1 + $0x48] sm:$0xf]
  %v111 = vld [vmem:[%s1 + $0x4c] sm:$0xf]
  %v112 = vld [vmem:[%s1 + $0x50] sm:$0xf]
  %v113 = vld [vmem:[%s1 + $0x54] sm:$0xf]
  %v114 = vld [vmem:[%s1 + $0x58] sm:$0xf]
  %v115 = vld [vmem:[%s1 + $0x5c] sm:$0xf]
  %v116 = vld [vmem:[%s1 + $0x60] sm:$0xf]
  %v117 = vld [vmem:[%s1 + $0x64] sm:$0xf]
  %v118 = vld [vmem:[%s1 + $0x68] sm:$0xf]
  %v119 = vld [vmem:[%s1 + $0x6c] sm:$0xf]
  %v120 = vld [vmem:[%s1 + $0x70] sm:$0xf]
  %v121 = vld [vmem:[%s1 + $0x74] sm:$0xf]
  %v122 = vld [vmem:[%s1 + $0x78] sm:$0xf]
  %v123 = vld [vmem:[%s1 + $0x7c] sm:$0xf]
  %v124 = vld [vmem:[%s1 + $0x80] sm:$0xf]
  %v125 = vld [vmem:[%s1 + $0x84] sm:$0xf]
  %v126 = vld [vmem:[%s1 + $0x88] sm:$0xf]
  %v127 = vld [vmem:[%s1 + $0x8c] sm:$0xf]
  %v128 = vld [vmem:[%s1 + $0x90] sm:$0xf]
  %v129 = vld [vmem:[%s1 + $0x94] sm:$0xf]
  %v130 = vld [vmem:[%s1 + $0x98] sm:$0xf]
  %v131 = vld [vmem:[%s1 + $0x9c] sm:$0xf]
  %v132 = vld [vmem:[%s1 + $0xa0] sm:$0xf]
  %v133 = vld [vmem:[%s1 + $0xa4] sm:$0xf]
  %v134 = vld [vmem:[%s1 + $0xa8] sm:$0xf]
  %v135 = vld [vmem:[%s1 + $0xac] sm:$0xf]
  %v136 = vld [vmem:[%s1 + $0xb0] sm:$0xf]
  %v137 = vld [vmem:[%s1 + $0xb4] sm:$0xf]
  %v138 = vld [vmem:[%s1 + $0xb8] sm:$0xf]
  %v139 = vld [vmem:[%s1 + $0xbc] sm:$0xf]
  %v140 = vld [vmem:[%s1 + $0xc0] sm:$0xf]
  %v141 = vld [vmem:[%s1 + $0xc4] sm:$0xf]
  %v142 = vld [vmem:[%s1 + $0xc8] sm:$0xf]
  %v143 = vld [vmem:[%s1 + $0xcc] sm:$0xf]
  %v144 = vld [vmem:[%s1 + $0xd0] sm:$0xf]
  %v145 = vld [vmem:[%s1 + $0xd4] sm:$0xf]
  %v146 = vld [vmem:[%s1 + $0xd8] sm:$0xf]
  %v147 = vld [vmem:[%s1 + $0xdc] sm:$0xf]
  %v148 = vld [vmem:[%s1 + $0xe0] sm:$0xf]
  %v149 = vld [vmem:[%s1 + $0xe4] sm:$0xf]
  %v150 = vld [vmem:[%s1 + $0xe8] sm:$0xf]
  %v151 = vld [vmem:[%s1 + $0xec] sm:$0xf]
  %v152 = vld [vmem:[%s1 + $0xf0] sm:$0xf]
  %v153 = vld [vmem:[%s1 + $0xf4] sm:$0xf]
  %v154 = vld [vmem:[%s1 + $0xf8] sm:$0xf]
  %v155 = vld [vmem:[%s1 + $0xfc] sm:$0xf]
  %v156 = vld [vmem:[%s1 + $0x100] sm:$0xf]
  %v157 = vld [vmem:[%s1 + $0x104] sm:$0xf]
  %v158 = vld [vmem:[%s1 + $0x108] sm:$0xf]
  %v159 = vld [vmem:[%s1 + $0x10c] sm:$0xf]
  %v160 = vld [vmem:[%s1 + $0x110] sm:$0xf]
  %v161 = vld [vmem:[%s1 + $0x114] sm:$0xf]
  %v162 = vld [vmem:[%s1 + $0x118] sm:$0xf]
  %v163 = vld [vmem:[%s1 + $0x11c] sm:$0xf]
  %v242 = vunpack.c.l.b16 %v14
  %v243 = vunpack.c.h.b16 %v14
  %v244 = vunpack.c.l.b16 %v15
  %v245 = vunpack.c.h.b16 %v15
  %v246 = vunpack.c.l.b16 %v16
  %v247 = vunpack.c.l.b16 %v17
  %v248 = vunpack.c.h.b16 %v17
  %v249 = vunpack.c.l.b16 %v18
  %v250 = vunpack.c.h.b16 %v18
  %v251 = vunpack.c.l.b16 %v19
  %v252 = vunpack.c.l.b16 %v20
  %v253 = vunpack.c.h.b16 %v20
  %v254 = vunpack.c.l.b16 %v21
  %v255 = vunpack.c.h.b16 %v21
  %v256 = vunpack.c.l.b16 %v22
  %v257 = vunpack.c.l.b16 %v23
  %v258 = vunpack.c.h.b16 %v23
  %v259 = vunpack.c.l.b16 %v24
  %v260 = vunpack.c.h.b16 %v24
  %v261 = vunpack.c.l.b16 %v25
  %v262 = vunpack.c.l.b16 %v26
  %v263 = vunpack.c.h.b16 %v26
  %v264 = vunpack.c.l.b16 %v27
  %v265 = vunpack.c.h.b16 %v27
  %v266 = vunpack.c.l.b16 %v28
  %v267 = vunpack.c.l.b16 %v29
  %v268 = vunpack.c.h.b16 %v29
  %v269 = vunpack.c.l.b16 %v30
  %v270 = vunpack.c.h.b16 %v30
  %v271 = vunpack.c.l.b16 %v31
  %v272 = vunpack.c.l.b16 %v32
  %v273 = vunpack.c.h.b16 %v32
  %v274 = vunpack.c.l.b16 %v33
  %v275 = vunpack.c.h.b16 %v33
  %v276 = vunpack.c.l.b16 %v34
  %v277 = vunpack.c.l.b16 %v35
  %v278 = vunpack.c.h.b16 %v35
  %v279 = vunpack.c.l.b16 %v36
  %v280 = vunpack.c.h.b16 %v36
  %v281 = vunpack.c.l.b16 %v37
  %v282 = vunpack.c.l.b16 %v38
  %v283 = vunpack.c.h.b16 %v38
  %v284 = vunpack.c.l.b16 %v39
  %v285 = vunpack.c.h.b16 %v39
  %v286 = vunpack.c.l.b16 %v40
  %v287 = vunpack.c.l.b16 %v41
  %v288 = vunpack.c.h.b16 %v41
  %v289 = vunpack.c.l.b16 %v42
  %v290 = vunpack.c.h.b16 %v42
  %v291 = vunpack.c.l.b16 %v43
  %v292 = vunpack.c.l.b16 %v44
  %v293 = vunpack.c.h.b16 %v44
  %v294 = vunpack.c.l.b16 %v45
  %v295 = vunpack.c.h.b16 %v45
  %v296 = vunpack.c.l.b16 %v46
  %v297 = vunpack.c.l.b16 %v47
  %v298 = vunpack.c.h.b16 %v47
  %v299 = vunpack.c.l.b16 %v48
  %v300 = vunpack.c.h.b16 %v48
  %v301 = vunpack.c.l.b16 %v49
  %v302 = vunpack.c.l.b16 %v50
  %v303 = vunpack.c.h.b16 %v50
  %v304 = vunpack.c.l.b16 %v51
  %v305 = vunpack.c.h.b16 %v51
  %v306 = vunpack.c.l.b16 %v52
  %v307 = vunpack.c.l.b16 %v53
  %v308 = vunpack.c.h.b16 %v53
  %v309 = vunpack.c.l.b16 %v54
  %v310 = vunpack.c.h.b16 %v54
  %v311 = vunpack.c.l.b16 %v55
  %v312 = vunpack.c.l.b16 %v56
  %v313 = vunpack.c.h.b16 %v56
  %v314 = vunpack.c.l.b16 %v57
  %v315 = vunpack.c.h.b16 %v57
  %v316 = vunpack.c.l.b16 %v58
  %v317 = vunpack.c.l.b16 %v59
  %v318 = vunpack.c.h.b16 %v59
  %v319 = vunpack.c.l.b16 %v60
  %v320 = vunpack.c.h.b16 %v60
  %v321 = vunpack.c.l.b16 %v61
  %v322 = vunpack.c.l.b16 %v62
  %v323 = vunpack.c.h.b16 %v62
  %v324 = vunpack.c.l.b16 %v63
  %v325 = vunpack.c.h.b16 %v63
  %v326 = vunpack.c.l.b16 %v64
  %v327 = vunpack.c.l.b16 %v65
  %v328 = vunpack.c.h.b16 %v65
  %v329 = vunpack.c.l.b16 %v66
  %v330 = vunpack.c.h.b16 %v66
  %v331 = vunpack.c.l.b16 %v67
  %v332 = vunpack.c.l.b16 %v68
  %v333 = vunpack.c.h.b16 %v68
  %v334 = vunpack.c.l.b16 %v69
  %v335 = vunpack.c.h.b16 %v69
  %v336 = vunpack.c.l.b16 %v70
  %v337 = vunpack.c.l.b16 %v71
  %v338 = vunpack.c.h.b16 %v71
  %v339 = vunpack.c.l.b16 %v72
  %v340 = vunpack.c.h.b16 %v72
  %v341 = vunpack.c.l.b16 %v73
  %v342 = vunpack.c.l.b16 %v74
  %v343 = vunpack.c.h.b16 %v74
  %v344 = vunpack.c.l.b16 %v75
  %v345 = vunpack.c.h.b16 %v75
  %v346 = vunpack.c.l.b16 %v76
  %v347 = vunpack.c.l.b16 %v77
  %v348 = vunpack.c.h.b16 %v77
  %v349 = vunpack.c.l.b16 %v78
  %v350 = vunpack.c.h.b16 %v78
  %v351 = vunpack.c.l.b16 %v79
  %v352 = vunpack.c.l.b16 %v80
  %v353 = vunpack.c.h.b16 %v80
  %v354 = vunpack.c.l.b16 %v81
  %v355 = vunpack.c.h.b16 %v81
  %v356 = vunpack.c.l.b16 %v82
  %v357 = vunpack.c.l.b16 %v83
  %v358 = vunpack.c.h.b16 %v83
  %v359 = vunpack.c.l.b16 %v84
  %v360 = vunpack.c.h.b16 %v84
  %v361 = vunpack.c.l.b16 %v85
  %v362 = vunpack.c.l.b16 %v86
  %v363 = vunpack.c.h.b16 %v86
  %v364 = vunpack.c.l.b16 %v87
  %v365 = vunpack.c.h.b16 %v87
  %v366 = vunpack.c.l.b16 %v88
  %v367 = vunpack.c.l.b16 %v89
  %v368 = vunpack.c.h.b16 %v89
  %v369 = vunpack.c.l.b16 %v90
  %v370 = vunpack.c.h.b16 %v90
  %v371 = vunpack.c.l.b16 %v91
  %v372 = vpack.c.b16 %v247, %v242
  %v373 = vpack.c.b16 %v248, %v243
  %v374 = vpack.c.b16 %v249, %v244
  %v375 = vpack.c.b16 %v250, %v245
  %v376 = vpack.c.b16 %v251, %v246
  %v377 = vpack.c.b16 %v257, %v252
  %v378 = vpack.c.b16 %v258, %v253
  %v379 = vpack.c.b16 %v259, %v254
  %v380 = vpack.c.b16 %v260, %v255
  %v381 = vpack.c.b16 %v261, %v256
  %v382 = vpack.c.b16 %v267, %v262
  %v383 = vpack.c.b16 %v268, %v263
  %v384 = vpack.c.b16 %v269, %v264
  %v385 = vpack.c.b16 %v270, %v265
  %v386 = vpack.c.b16 %v271, %v266
  %v387 = vpack.c.b16 %v277, %v272
  %v388 = vpack.c.b16 %v278, %v273
  %v389 = vpack.c.b16 %v279, %v274
  %v390 = vpack.c.b16 %v280, %v275
  %v391 = vpack.c.b16 %v281, %v276
  %v392 = vpack.c.b16 %v287, %v282
  %v393 = vpack.c.b16 %v288, %v283
  %v394 = vpack.c.b16 %v289, %v284
  %v395 = vpack.c.b16 %v290, %v285
  %v396 = vpack.c.b16 %v291, %v286
  %v397 = vpack.c.b16 %v297, %v292
  %v398 = vpack.c.b16 %v298, %v293
  %v399 = vpack.c.b16 %v299, %v294
  %v400 = vpack.c.b16 %v300, %v295
  %v401 = vpack.c.b16 %v301, %v296
  %v402 = vpack.c.b16 %v307, %v302
  %v403 = vpack.c.b16 %v308, %v303
  %v404 = vpack.c.b16 %v309, %v304
  %v405 = vpack.c.b16 %v310, %v305
  %v406 = vpack.c.b16 %v311, %v306
  %v407 = vpack.c.b16 %v317, %v312
  %v408 = vpack.c.b16 %v318, %v313
  %v409 = vpack.c.b16 %v319, %v314
  %v410 = vpack.c.b16 %v320, %v315
  %v411 = vpack.c.b16 %v321, %v316
  %v412 = vpack.c.b16 %v327, %v322
  %v413 = vpack.c.b16 %v328, %v323
  %v414 = vpack.c.b16 %v329, %v324
  %v415 = vpack.c.b16 %v330, %v325
  %v416 = vpack.c.b16 %v331, %v326
  %v417 = vpack.c.b16 %v337, %v332
  %v418 = vpack.c.b16 %v338, %v333
  %v419 = vpack.c.b16 %v339, %v334
  %v420 = vpack.c.b16 %v340, %v335
  %v421 = vpack.c.b16 %v341, %v336
  %v422 = vpack.c.b16 %v347, %v342
  %v423 = vpack.c.b16 %v348, %v343
  %v424 = vpack.c.b16 %v349, %v344
  %v425 = vpack.c.b16 %v350, %v345
  %v426 = vpack.c.b16 %v351, %v346
  %v427 = vpack.c.b16 %v357, %v352
  %v428 = vpack.c.b16 %v358, %v353
  %v429 = vpack.c.b16 %v359, %v354
  %v430 = vpack.c.b16 %v360, %v355
  %v431 = vpack.c.b16 %v361, %v356
  %v432 = vpack.c.b16 %v367, %v362
  %v433 = vpack.c.b16 %v368, %v363
  %v434 = vpack.c.b16 %v369, %v364
  %v435 = vpack.c.b16 %v370, %v365
  %v436 = vpack.c.b16 %v371, %v366
  %v561 = vunpack.c.l.b16 %v92
  %v562 = vunpack.c.l.b16 %v93
  %v563 = vunpack.c.l.b16 %v94
  %v564 = vunpack.c.l.b16 %v95
  %v565 = vunpack.c.l.b16 %v96
  %v566 = vunpack.c.l.b16 %v97
  %v567 = vunpack.c.l.b16 %v98
  %v568 = vunpack.c.l.b16 %v99
  %v569 = vunpack.c.l.b16 %v100
  %v570 = vunpack.c.l.b16 %v101
  %v571 = vunpack.c.l.b16 %v102
  %v572 = vunpack.c.l.b16 %v103
  %v573 = vunpack.c.l.b16 %v104
  %v574 = vunpack.c.l.b16 %v105
  %v575 = vunpack.c.l.b16 %v106
  %v576 = vunpack.c.l.b16 %v107
  %v577 = vunpack.c.l.b16 %v108
  %v578 = vunpack.c.l.b16 %v109
  %v579 = vunpack.c.l.b16 %v110
  %v580 = vunpack.c.l.b16 %v111
  %v581 = vunpack.c.l.b16 %v112
  %v582 = vunpack.c.l.b16 %v113
  %v583 = vunpack.c.l.b16 %v114
  %v584 = vunpack.c.l.b16 %v115
  %v585 = vunpack.c.l.b16 %v116
  %v586 = vunpack.c.l.b16 %v117
  %v587 = vunpack.c.l.b16 %v118
  %v588 = vunpack.c.l.b16 %v119
  %v589 = vunpack.c.l.b16 %v120
  %v590 = vunpack.c.l.b16 %v121
  %v591 = vunpack.c.l.b16 %v122
  %v592 = vunpack.c.l.b16 %v123
  %v593 = vunpack.c.l.b16 %v124
  %v594 = vunpack.c.l.b16 %v125
  %v595 = vunpack.c.l.b16 %v126
  %v596 = vunpack.c.l.b16 %v127
  %v597 = vunpack.c.l.b16 %v128
  %v598 = vunpack.c.l.b16 %v129
  %v599 = vunpack.c.l.b16 %v130
  %v600 = vunpack.c.l.b16 %v131
  %v601 = vunpack.c.l.b16 %v132
  %v602 = vunpack.c.l.b16 %v133
  %v603 = vunpack.c.l.b16 %v134
  %v604 = vunpack.c.l.b16 %v135
  %v605 = vunpack.c.l.b16 %v136
  %v606 = vunpack.c.l.b16 %v137
  %v607 = vunpack.c.l.b16 %v138
  %v608 = vunpack.c.l.b16 %v139
  %v609 = vunpack.c.l.b16 %v140
  %v610 = vunpack.c.l.b16 %v141
  %v611 = vunpack.c.l.b16 %v142
  %v612 = vunpack.c.l.b16 %v143
  %v613 = vunpack.c.l.b16 %v144
  %v614 = vunpack.c.l.b16 %v145
  %v615 = vunpack.c.l.b16 %v146
  %v616 = vunpack.c.l.b16 %v147
  %v617 = vunpack.c.l.b16 %v148
  %v618 = vunpack.c.l.b16 %v149
  %v619 = vunpack.c.l.b16 %v150
  %v620 = vunpack.c.l.b16 %v151
  %v621 = vunpack.c.l.b16 %v152
  %v622 = vunpack.c.l.b16 %v153
  %v623 = vunpack.c.l.b16 %v154
  %v624 = vunpack.c.l.b16 %v155
  %v625 = vunpack.c.l.b16 %v156
  %v626 = vunpack.c.l.b16 %v157
  %v627 = vunpack.c.l.b16 %v158
  %v628 = vunpack.c.l.b16 %v159
  %v629 = vunpack.c.l.b16 %v160
  %v630 = vunpack.c.l.b16 %v161
  %v631 = vunpack.c.l.b16 %v162
  %v632 = vunpack.c.l.b16 %v163
  %v633 = vpack.c.b16 %v562, %v561
  %v634 = vpack.c.b16 %v564, %v563
  %v635 = vpack.c.b16 %v566, %v565
  %v636 = vpack.c.b16 %v568, %v567
  %v637 = vpack.c.b16 %v570, %v569
  %v638 = vpack.c.b16 %v572, %v571
  %v639 = vpack.c.b16 %v574, %v573
  %v640 = vpack.c.b16 %v576, %v575
  %v641 = vpack.c.b16 %v578, %v577
  %v642 = vpack.c.b16 %v580, %v579
  %v643 = vpack.c.b16 %v582, %v581
  %v644 = vpack.c.b16 %v584, %v583
  %v645 = vpack.c.b16 %v586, %v585
  %v646 = vpack.c.b16 %v588, %v587
  %v647 = vpack.c.b16 %v590, %v589
  %v648 = vpack.c.b16 %v592, %v591
  %v649 = vpack.c.b16 %v594, %v593
  %v650 = vpack.c.b16 %v596, %v595
  %v651 = vpack.c.b16 %v598, %v597
  %v652 = vpack.c.b16 %v600, %v599
  %v653 = vpack.c.b16 %v602, %v601
  %v654 = vpack.c.b16 %v604, %v603
  %v655 = vpack.c.b16 %v606, %v605
  %v656 = vpack.c.b16 %v608, %v607
  %v657 = vpack.c.b16 %v610, %v609
  %v658 = vpack.c.b16 %v612, %v611
  %v659 = vpack.c.b16 %v614, %v613
  %v660 = vpack.c.b16 %v616, %v615
  %v661 = vpack.c.b16 %v618, %v617
  %v662 = vpack.c.b16 %v620, %v619
  %v663 = vpack.c.b16 %v622, %v621
  %v664 = vpack.c.b16 %v624, %v623
  %v665 = vpack.c.b16 %v626, %v625
  %v666 = vpack.c.b16 %v628, %v627
  %v667 = vpack.c.b16 %v630, %v629
  %v668 = vpack.c.b16 %v632, %v631
  %vm705 = vcmask 523264
  %v707 = vsel %vm705, %v376, 0
  %v710 = vsel %vm705, %v381, 0
  %v713 = vsel %vm705, %v386, 0
  %v716 = vsel %vm705, %v391, 0
  %v719 = vsel %vm705, %v396, 0
  %v722 = vsel %vm705, %v401, 0
  %v725 = vsel %vm705, %v406, 0
  %v728 = vsel %vm705, %v411, 0
  %v731 = vsel %vm705, %v416, 0
  %v734 = vsel %vm705, %v421, 0
  %v737 = vsel %vm705, %v426, 0
  %v740 = vsel %vm705, %v431, 0
  %v743 = vsel %vm705, %v436, 0
  %745 = vmatprep.subr.bf16.mxu0 0
  %746 = vmatpush1.bf16.msra.mxu0 %v633
  %747 = vmatprep.subr.bf16.mxu0 0
  %748 = vmatpush1.bf16.msra.mxu0 %v634
  %749 = vmatprep.subr.bf16.mxu0 0
  %750 = vmatpush1.bf16.msra.mxu0 %v635
  %751 = vmatprep.subr.bf16.mxu0 0
  %752 = vmatpush1.bf16.msra.mxu0 %v636
  %753 = vmatprep.subr.bf16.mxu0 0
  %754 = vmatpush1.bf16.msra.mxu0 %v637
  %755 = vmatprep.subr.bf16.mxu0 0
  %756 = vmatpush1.bf16.msra.mxu0 %v638
  %757 = vmatprep.subr.bf16.mxu0 0
  %758 = vmatpush1.bf16.msra.mxu0 %v639
  %759 = vmatprep.subr.bf16.mxu0 0
  %760 = vmatpush1.bf16.msra.mxu0 %v640
  %761 = vmatprep.subr.bf16.mxu0 0
  %762 = vmatpush1.bf16.msra.mxu0 %v641
  %763 = vmatprep.subr.bf16.mxu0 0
  %764 = vmatpush1.bf16.msra.mxu0 %v642
  %765 = vmatprep.subr.bf16.mxu0 0
  %766 = vmatpush1.bf16.msra.mxu0 %v643
  %767 = vmatprep.subr.bf16.mxu0 0
  %768 = vmatpush1.bf16.msra.mxu0 %v644
  %769 = vmatprep.subr.bf16.mxu0 0
  %770 = vmatpush1.bf16.msra.mxu0 %v645
  %771 = vmatprep.subr.bf16.mxu0 0
  %772 = vmatpush1.bf16.msra.mxu0 %v646
  %773 = vmatprep.subr.bf16.mxu0 0
  %774 = vmatpush1.bf16.msra.mxu0 %v647
  %775 = vmatprep.subr.bf16.mxu0 0
  %776 = vmatpush1.bf16.msra.mxu0 %v648
  %777 = vmatprep.mubr.bf16.mxu0 %v373
  %778 = vmatmul.mubr.bf16.gmra.mrb[0].mxu0 %v372
  %v779 = vpop.f32.mrb[0].mxu0
  %v780 = vadd.f32 0.0, %v779
  %v781 = vpop.f32.mrb[0].mxu0
  %v782 = vpop.f32.mrb[0].mxu0
  %v783 = vadd.f32 0.0, %v782
  %v784 = vpop.f32.mrb[0].mxu0
  %785 = vmatprep.mubr.bf16.mxu0 %v378
  %786 = vmatmul.mubr.bf16.gmra.mrb[0].mxu0 %v377
  %v787 = vpop.f32.mrb[0].mxu0
  %v788 = vadd.f32 0.0, %v787
  %v789 = vpop.f32.mrb[0].mxu0
  %v790 = vpop.f32.mrb[0].mxu0
  %v791 = vadd.f32 0.0, %v790
  %v792 = vpop.f32.mrb[0].mxu0
  %793 = vmatprep.mubr.bf16.mxu0 %v383
  %794 = vmatmul.mubr.bf16.gmra.mrb[0].mxu0 %v382
  %v795 = vpop.f32.mrb[0].mxu0
  %v796 = vadd.f32 0.0, %v795
  %v797 = vpop.f32.mrb[0].mxu0
  %v798 = vpop.f32.mrb[0].mxu0
  %v799 = vadd.f32 0.0, %v798
  %v800 = vpop.f32.mrb[0].mxu0
  %801 = vmatprep.mubr.bf16.mxu0 %v388
  %802 = vmatmul.mubr.bf16.gmra.mrb[0].mxu0 %v387
  %v803 = vpop.f32.mrb[0].mxu0
  %v804 = vadd.f32 0.0, %v803
  %v805 = vpop.f32.mrb[0].mxu0
  %v806 = vpop.f32.mrb[0].mxu0
  %v807 = vadd.f32 0.0, %v806
  %v808 = vpop.f32.mrb[0].mxu0
  %809 = vmatprep.mubr.bf16.mxu0 %v393
  %810 = vmatmul.mubr.bf16.gmra.mrb[0].mxu0 %v392
  %v811 = vpop.f32.mrb[0].mxu0
  %v812 = vadd.f32 0.0, %v811
  %v813 = vpop.f32.mrb[0].mxu0
  %v814 = vpop.f32.mrb[0].mxu0
  %v815 = vadd.f32 0.0, %v814
  %v816 = vpop.f32.mrb[0].mxu0
  %817 = vmatprep.mubr.bf16.mxu0 %v398
  %818 = vmatmul.mubr.bf16.gmra.mrb[0].mxu0 %v397
  %v819 = vpop.f32.mrb[0].mxu0
  %v820 = vadd.f32 0.0, %v819
  %v821 = vpop.f32.mrb[0].mxu0
  %v822 = vpop.f32.mrb[0].mxu0
  %v823 = vadd.f32 0.0, %v822
  %v824 = vpop.f32.mrb[0].mxu0
  %825 = vmatprep.mubr.bf16.mxu0 %v403
  %826 = vmatmul.mubr.bf16.gmra.mrb[0].mxu0 %v402
  %v827 = vpop.f32.mrb[0].mxu0
  %v828 = vadd.f32 0.0, %v827
  %v829 = vpop.f32.mrb[0].mxu0
  %v830 = vpop.f32.mrb[0].mxu0
  %v831 = vadd.f32 0.0, %v830
  %v832 = vpop.f32.mrb[0].mxu0
  %833 = vmatprep.mubr.bf16.mxu0 %v408
  %834 = vmatmul.mubr.bf16.gmra.mrb[0].mxu0 %v407
  %v835 = vpop.f32.mrb[0].mxu0
  %v836 = vadd.f32 0.0, %v835
  %v837 = vpop.f32.mrb[0].mxu0
  %v838 = vpop.f32.mrb[0].mxu0
  %v839 = vadd.f32 0.0, %v838
  %v840 = vpop.f32.mrb[0].mxu0
  %841 = vmatprep.mubr.bf16.mxu0 %v413
  %842 = vmatmul.mubr.bf16.gmra.mrb[0].mxu0 %v412
  %v843 = vpop.f32.mrb[0].mxu0
  %v844 = vadd.f32 0.0, %v843
  %v845 = vpop.f32.mrb[0].mxu0
  %v846 = vpop.f32.mrb[0].mxu0
  %v847 = vadd.f32 0.0, %v846
  %v848 = vpop.f32.mrb[0].mxu0
  %849 = vmatprep.mubr.bf16.mxu0 %v418
  %850 = vmatmul.mubr.bf16.gmra.mrb[0].mxu0 %v417
  %v851 = vpop.f32.mrb[0].mxu0
  %v852 = vadd.f32 0.0, %v851
  %v853 = vpop.f32.mrb[0].mxu0
  %v854 = vpop.f32.mrb[0].mxu0
  %v855 = vadd.f32 0.0, %v854
  %v856 = vpop.f32.mrb[0].mxu0
  %857 = vmatprep.mubr.bf16.mxu0 %v423
  %858 = vmatmul.mubr.bf16.gmra.mrb[0].mxu0 %v422
  %v859 = vpop.f32.mrb[0].mxu0
  %v860 = vadd.f32 0.0, %v859
  %v861 = vpop.f32.mrb[0].mxu0
  %v862 = vpop.f32.mrb[0].mxu0
  %v863 = vadd.f32 0.0, %v862
  %v864 = vpop.f32.mrb[0].mxu0
  %865 = vmatprep.mubr.bf16.mxu0 %v428
  %866 = vmatmul.mubr.bf16.gmra.mrb[0].mxu0 %v427
  %v867 = vpop.f32.mrb[0].mxu0
  %v868 = vadd.f32 0.0, %v867
  %v869 = vpop.f32.mrb[0].mxu0
  %v870 = vpop.f32.mrb[0].mxu0
  %v871 = vadd.f32 0.0, %v870
  %v872 = vpop.f32.mrb[0].mxu0
  %873 = vmatprep.mubr.bf16.mxu0 %v433
  %874 = vmatmul.mubr.bf16.gmra.mrb[0].mxu0 %v432
  %v875 = vpop.f32.mrb[0].mxu0
  %v876 = vadd.f32 0.0, %v875
  %v877 = vpop.f32.mrb[0].mxu0
  %v878 = vpop.f32.mrb[0].mxu0
  %v879 = vadd.f32 0.0, %v878
  %v880 = vpop.f32.mrb[0].mxu0
  %881 = vdwg.mxu0
  %882 = vmatprep.subr.bf16.mxu0 0
  %883 = vmatpush1.bf16.msra.mxu0 %v649
  %884 = vmatprep.subr.bf16.mxu0 0
  %885 = vmatpush1.bf16.msra.mxu0 %v650
  %886 = vmatprep.subr.bf16.mxu0 0
  %887 = vmatpush1.bf16.msra.mxu0 %v651
  %888 = vmatprep.subr.bf16.mxu0 0
  %889 = vmatpush1.bf16.msra.mxu0 %v652
  %890 = vmatprep.subr.bf16.mxu0 0
  %891 = vmatpush1.bf16.msra.mxu0 %v653
  %892 = vmatprep.subr.bf16.mxu0 0
  %893 = vmatpush1.bf16.msra.mxu0 %v654
  %894 = vmatprep.subr.bf16.mxu0 0
  %895 = vmatpush1.bf16.msra.mxu0 %v655
  %896 = vmatprep.subr.bf16.mxu0 0
  %897 = vmatpush1.bf16.msra.mxu0 %v656
  %898 = vmatprep.subr.bf16.mxu0 0
  %899 = vmatpush1.bf16.msra.mxu0 %v657
  %900 = vmatprep.subr.bf16.mxu0 0
  %901 = vmatpush1.bf16.msra.mxu0 %v658
  %902 = vmatprep.subr.bf16.mxu0 0
  %903 = vmatpush1.bf16.msra.mxu0 %v659
  %904 = vmatprep.subr.bf16.mxu0 0
  %905 = vmatpush1.bf16.msra.mxu0 %v660
  %906 = vmatprep.subr.bf16.mxu0 0
  %907 = vmatpush1.bf16.msra.mxu0 %v661
  %908 = vmatprep.subr.bf16.mxu0 0
  %909 = vmatpush1.bf16.msra.mxu0 %v662
  %910 = vmatprep.subr.bf16.mxu0 0
  %911 = vmatpush1.bf16.msra.mxu0 %v663
  %912 = vmatprep.subr.bf16.mxu0 0
  %913 = vmatpush1.bf16.msra.mxu0 %v664
  %914 = vmatprep.mubr.bf16.mxu0 %v375
  %915 = vmatmul.mubr.bf16.gmra.mrb[0].mxu0 %v374
  %v916 = vpop.f32.mrb[0].mxu0
  %v917 = vadd.f32 %v780, %v916
  %v918 = vpop.f32.mrb[0].mxu0
  %v919 = vpop.f32.mrb[0].mxu0
  %v920 = vadd.f32 %v783, %v919
  %v921 = vpop.f32.mrb[0].mxu0
  %922 = vmatprep.mubr.bf16.mxu0 %v380
  %923 = vmatmul.mubr.bf16.gmra.mrb[0].mxu0 %v379
  %v924 = vpop.f32.mrb[0].mxu0
  %v925 = vadd.f32 %v788, %v924
  %v926 = vpop.f32.mrb[0].mxu0
  %v927 = vpop.f32.mrb[0].mxu0
  %v928 = vadd.f32 %v791, %v927
  %v929 = vpop.f32.mrb[0].mxu0
  %930 = vmatprep.mubr.bf16.mxu0 %v385
  %931 = vmatmul.mubr.bf16.gmra.mrb[0].mxu0 %v384
  %v932 = vpop.f32.mrb[0].mxu0
  %v933 = vadd.f32 %v796, %v932
  %v934 = vpop.f32.mrb[0].mxu0
  %v935 = vpop.f32.mrb[0].mxu0
  %v936 = vadd.f32 %v799, %v935
  %v937 = vpop.f32.mrb[0].mxu0
  %938 = vmatprep.mubr.bf16.mxu0 %v390
  %939 = vmatmul.mubr.bf16.gmra.mrb[0].mxu0 %v389
  %v940 = vpop.f32.mrb[0].mxu0
  %v941 = vadd.f32 %v804, %v940
  %v942 = vpop.f32.mrb[0].mxu0
  %v943 = vpop.f32.mrb[0].mxu0
  %v944 = vadd.f32 %v807, %v943
  %v945 = vpop.f32.mrb[0].mxu0
  %946 = vmatprep.mubr.bf16.mxu0 %v395
  %947 = vmatmul.mubr.bf16.gmra.mrb[0].mxu0 %v394
  %v948 = vpop.f32.mrb[0].mxu0
  %v949 = vadd.f32 %v812, %v948
  %v950 = vpop.f32.mrb[0].mxu0
  %v951 = vpop.f32.mrb[0].mxu0
  %v952 = vadd.f32 %v815, %v951
  %v953 = vpop.f32.mrb[0].mxu0
  %954 = vmatprep.mubr.bf16.mxu0 %v400
  %955 = vmatmul.mubr.bf16.gmra.mrb[0].mxu0 %v399
  %v956 = vpop.f32.mrb[0].mxu0
  %v957 = vadd.f32 %v820, %v956
  %v958 = vpop.f32.mrb[0].mxu0
  %v959 = vpop.f32.mrb[0].mxu0
  %v960 = vadd.f32 %v823, %v959
  %v961 = vpop.f32.mrb[0].mxu0
  %962 = vmatprep.mubr.bf16.mxu0 %v405
  %963 = vmatmul.mubr.bf16.gmra.mrb[0].mxu0 %v404
  %v964 = vpop.f32.mrb[0].mxu0
  %v965 = vadd.f32 %v828, %v964
  %v966 = vpop.f32.mrb[0].mxu0
  %v967 = vpop.f32.mrb[0].mxu0
  %v968 = vadd.f32 %v831, %v967
  %v969 = vpop.f32.mrb[0].mxu0
  %970 = vmatprep.mubr.bf16.mxu0 %v410
  %971 = vmatmul.mubr.bf16.gmra.mrb[0].mxu0 %v409
  %v972 = vpop.f32.mrb[0].mxu0
  %v973 = vadd.f32 %v836, %v972
  %v974 = vpop.f32.mrb[0].mxu0
  %v975 = vpop.f32.mrb[0].mxu0
  %v976 = vadd.f32 %v839, %v975
  %v977 = vpop.f32.mrb[0].mxu0
  %978 = vmatprep.mubr.bf16.mxu0 %v415
  %979 = vmatmul.mubr.bf16.gmra.mrb[0].mxu0 %v414
  %v980 = vpop.f32.mrb[0].mxu0
  %v981 = vadd.f32 %v844, %v980
  %v982 = vpop.f32.mrb[0].mxu0
  %v983 = vpop.f32.mrb[0].mxu0
  %v984 = vadd.f32 %v847, %v983
  %v985 = vpop.f32.mrb[0].mxu0
  %986 = vmatprep.mubr.bf16.mxu0 %v420
  %987 = vmatmul.mubr.bf16.gmra.mrb[0].mxu0 %v419
  %v988 = vpop.f32.mrb[0].mxu0
  %v989 = vadd.f32 %v852, %v988
  %v990 = vpop.f32.mrb[0].mxu0
  %v991 = vpop.f32.mrb[0].mxu0
  %v992 = vadd.f32 %v855, %v991
  %v993 = vpop.f32.mrb[0].mxu0
  %994 = vmatprep.mubr.bf16.mxu0 %v425
  %995 = vmatmul.mubr.bf16.gmra.mrb[0].mxu0 %v424
  %v996 = vpop.f32.mrb[0].mxu0
  %v997 = vadd.f32 %v860, %v996
  %v998 = vpop.f32.mrb[0].mxu0
  %v999 = vpop.f32.mrb[0].mxu0
  %v1000 = vadd.f32 %v863, %v999
  %v1001 = vpop.f32.mrb[0].mxu0
  %1002 = vmatprep.mubr.bf16.mxu0 %v430
  %1003 = vmatmul.mubr.bf16.gmra.mrb[0].mxu0 %v429
  %v1004 = vpop.f32.mrb[0].mxu0
  %v1005 = vadd.f32 %v868, %v1004
  %v1006 = vpop.f32.mrb[0].mxu0
  %v1007 = vpop.f32.mrb[0].mxu0
  %v1008 = vadd.f32 %v871, %v1007
  %v1009 = vpop.f32.mrb[0].mxu0
  %1010 = vmatprep.mubr.bf16.mxu0 %v435
  %1011 = vmatmul.mubr.bf16.gmra.mrb[0].mxu0 %v434
  %v1012 = vpop.f32.mrb[0].mxu0
  %v1013 = vadd.f32 %v876, %v1012
  %v1014 = vpop.f32.mrb[0].mxu0
  %v1015 = vpop.f32.mrb[0].mxu0
  %v1016 = vadd.f32 %v879, %v1015
  %v1017 = vpop.f32.mrb[0].mxu0
  %1018 = vdwg.mxu0
  %1019 = vmatprep.subr.bf16.mxu0 0
  %1020 = vmatpush1.bf16.msra.mxu0 %v665
  %1021 = vmatprep.subr.bf16.mxu0 0
  %1022 = vmatpush1.bf16.msra.mxu0 %v666
  %1023 = vmatprep.subr.bf16.mxu0 0
  %1024 = vmatpush1.bf16.msra.mxu0 %v667
  %1025 = vmatprep.subr.bf16.mxu0 0
  %1026 = vmatpush1.bf16.msra.mxu0 %v668
  %1027 = vmatprep.subr.bf16.mxu0 0
  %1028 = vmatpush1.bf16.msra.mxu0 0
  %1029 = vmatprep.subr.bf16.mxu0 0
  %1030 = vmatpush1.bf16.msra.mxu0 0
  %1031 = vmatprep.subr.bf16.mxu0 0
  %1032 = vmatpush1.bf16.msra.mxu0 0
  %1033 = vmatprep.subr.bf16.mxu0 0
  %1034 = vmatpush1.bf16.msra.mxu0 0
  %1035 = vmatprep.subr.bf16.mxu0 0
  %1036 = vmatpush1.bf16.msra.mxu0 0
  %1037 = vmatprep.subr.bf16.mxu0 0
  %1038 = vmatpush1.bf16.msra.mxu0 0
  %1039 = vmatprep.subr.bf16.mxu0 0
  %1040 = vmatpush1.bf16.msra.mxu0 0
  %1041 = vmatprep.subr.bf16.mxu0 0
  %1042 = vmatpush1.bf16.msra.mxu0 0
  %1043 = vmatprep.subr.bf16.mxu0 0
  %1044 = vmatpush1.bf16.msra.mxu0 0
  %1045 = vmatprep.subr.bf16.mxu0 0
  %1046 = vmatpush1.bf16.msra.mxu0 0
  %1047 = vmatprep.subr.bf16.mxu0 0
  %1048 = vmatpush1.bf16.msra.mxu0 0
  %1049 = vmatprep.subr.bf16.mxu0 0
  %1050 = vmatpush1.bf16.msra.mxu0 0
  %1051 = vmatprep.mubr.bf16.mxu0 0
  %1052 = vmatmul.mubr.bf16.gmra.mrb[0].mxu0 %v707
  %v1053 = vpop.f32.mrb[0].mxu0
  %v1054 = vadd.f32 %v917, %v1053
  %v1055 = vpop.f32.mrb[0].mxu0
  %v1056 = vpop.f32.mrb[0].mxu0
  %v1057 = vadd.f32 %v920, %v1056
  %v1058 = vpop.f32.mrb[0].mxu0
  %1059 = vmatprep.mubr.bf16.mxu0 0
  %1060 = vmatmul.mubr.bf16.gmra.mrb[0].mxu0 %v710
  %v1061 = vpop.f32.mrb[0].mxu0
  %v1062 = vadd.f32 %v925, %v1061
  %v1063 = vpop.f32.mrb[0].mxu0
  %v1064 = vpop.f32.mrb[0].mxu0
  %v1065 = vadd.f32 %v928, %v1064
  %v1066 = vpop.f32.mrb[0].mxu0
  %1067 = vmatprep.mubr.bf16.mxu0 0
  %1068 = vmatmul.mubr.bf16.gmra.mrb[0].mxu0 %v713
  %v1069 = vpop.f32.mrb[0].mxu0
  %v1070 = vadd.f32 %v933, %v1069
  %v1071 = vpop.f32.mrb[0].mxu0
  %v1072 = vpop.f32.mrb[0].mxu0
  %v1073 = vadd.f32 %v936, %v1072
  %v1074 = vpop.f32.mrb[0].mxu0
  %1075 = vmatprep.mubr.bf16.mxu0 0
  %1076 = vmatmul.mubr.bf16.gmra.mrb[0].mxu0 %v716
  %v1077 = vpop.f32.mrb[0].mxu0
  %v1078 = vadd.f32 %v941, %v1077
  %v1079 = vpop.f32.mrb[0].mxu0
  %v1080 = vpop.f32.mrb[0].mxu0
  %v1081 = vadd.f32 %v944, %v1080
  %v1082 = vpop.f32.mrb[0].mxu0
  %1083 = vmatprep.mubr.bf16.mxu0 0
  %1084 = vmatmul.mubr.bf16.gmra.mrb[0].mxu0 %v719
  %v1085 = vpop.f32.mrb[0].mxu0
  %v1086 = vadd.f32 %v949, %v1085
  %v1087 = vpop.f32.mrb[0].mxu0
  %v1088 = vpop.f32.mrb[0].mxu0
  %v1089 = vadd.f32 %v952, %v1088
  %v1090 = vpop.f32.mrb[0].mxu0
  %1091 = vmatprep.mubr.bf16.mxu0 0
  %1092 = vmatmul.mubr.bf16.gmra.mrb[0].mxu0 %v722
  %v1093 = vpop.f32.mrb[0].mxu0
  %v1094 = vadd.f32 %v957, %v1093
  %v1095 = vpop.f32.mrb[0].mxu0
  %v1096 = vpop.f32.mrb[0].mxu0
  %v1097 = vadd.f32 %v960, %v1096
  %v1098 = vpop.f32.mrb[0].mxu0
  %1099 = vmatprep.mubr.bf16.mxu0 0
  %1100 = vmatmul.mubr.bf16.gmra.mrb[0].mxu0 %v725
  %v1101 = vpop.f32.mrb[0].mxu0
  %v1102 = vadd.f32 %v965, %v1101
  %v1103 = vpop.f32.mrb[0].mxu0
  %v1104 = vpop.f32.mrb[0].mxu0
  %v1105 = vadd.f32 %v968, %v1104
  %v1106 = vpop.f32.mrb[0].mxu0
  %1107 = vmatprep.mubr.bf16.mxu0 0
  %1108 = vmatmul.mubr.bf16.gmra.mrb[0].mxu0 %v728
  %v1109 = vpop.f32.mrb[0].mxu0
  %v1110 = vadd.f32 %v973, %v1109
  %v1111 = vpop.f32.mrb[0].mxu0
  %v1112 = vpop.f32.mrb[0].mxu0
  %v1113 = vadd.f32 %v976, %v1112
  %v1114 = vpop.f32.mrb[0].mxu0
  %1115 = vmatprep.mubr.bf16.mxu0 0
  %1116 = vmatmul.mubr.bf16.gmra.mrb[0].mxu0 %v731
  %v1117 = vpop.f32.mrb[0].mxu0
  %v1118 = vadd.f32 %v981, %v1117
  %v1119 = vpop.f32.mrb[0].mxu0
  %v1120 = vpop.f32.mrb[0].mxu0
  %v1121 = vadd.f32 %v984, %v1120
  %v1122 = vpop.f32.mrb[0].mxu0
  %1123 = vmatprep.mubr.bf16.mxu0 0
  %1124 = vmatmul.mubr.bf16.gmra.mrb[0].mxu0 %v734
  %v1125 = vpop.f32.mrb[0].mxu0
  %v1126 = vadd.f32 %v989, %v1125
  %v1127 = vpop.f32.mrb[0].mxu0
  %v1128 = vpop.f32.mrb[0].mxu0
  %v1129 = vadd.f32 %v992, %v1128
  %v1130 = vpop.f32.mrb[0].mxu0
  %1131 = vmatprep.mubr.bf16.mxu0 0
  %1132 = vmatmul.mubr.bf16.gmra.mrb[0].mxu0 %v737
  %v1133 = vpop.f32.mrb[0].mxu0
  %v1134 = vadd.f32 %v997, %v1133
  %v1135 = vpop.f32.mrb[0].mxu0
  %v1136 = vpop.f32.mrb[0].mxu0
  %v1137 = vadd.f32 %v1000, %v1136
  %v1138 = vpop.f32.mrb[0].mxu0
  %1139 = vmatprep.mubr.bf16.mxu0 0
  %1140 = vmatmul.mubr.bf16.gmra.mrb[0].mxu0 %v740
  %v1141 = vpop.f32.mrb[0].mxu0
  %v1142 = vadd.f32 %v1005, %v1141
  %v1143 = vpop.f32.mrb[0].mxu0
  %v1144 = vpop.f32.mrb[0].mxu0
  %v1145 = vadd.f32 %v1008, %v1144
  %v1146 = vpop.f32.mrb[0].mxu0
  %1147 = vmatprep.mubr.bf16.mxu0 0
  %1148 = vmatmul.mubr.bf16.gmra.mrb[0].mxu0 %v743
  %v1149 = vpop.f32.mrb[0].mxu0
  %v1150 = vadd.f32 %v1013, %v1149
  %v1151 = vpop.f32.mrb[0].mxu0
  %v1152 = vpop.f32.mrb[0].mxu0
  %v1153 = vadd.f32 %v1016, %v1152
  %v1154 = vpop.f32.mrb[0].mxu0
  %1155 = vdwg.mxu0
  %v1156 = vpack.c.bf16 %v1057, %v1054
  %v1157 = vpack.c.bf16 %v1065, %v1062
  %v1158 = vpack.c.bf16 %v1073, %v1070
  %v1159 = vpack.c.bf16 %v1081, %v1078
  %v1160 = vpack.c.bf16 %v1089, %v1086
  %v1161 = vpack.c.bf16 %v1097, %v1094
  %v1162 = vpack.c.bf16 %v1105, %v1102
  %v1163 = vpack.c.bf16 %v1113, %v1110
  %v1164 = vpack.c.bf16 %v1121, %v1118
  %v1165 = vpack.c.bf16 %v1129, %v1126
  %v1166 = vpack.c.bf16 %v1137, %v1134
  %v1167 = vpack.c.bf16 %v1145, %v1142
  %v1168 = vpack.c.bf16 %v1153, %v1150
  %v1182 = vunpack.c.l.b16 %v1156
  %v1183 = vunpack.c.h.b16 %v1156
  %v1184 = vunpack.c.l.b16 %v1157
  %v1185 = vunpack.c.h.b16 %v1157
  %v1186 = vunpack.c.l.b16 %v1158
  %v1187 = vunpack.c.h.b16 %v1158
  %v1188 = vunpack.c.l.b16 %v1159
  %v1189 = vunpack.c.h.b16 %v1159
  %v1190 = vunpack.c.l.b16 %v1160
  %v1191 = vunpack.c.h.b16 %v1160
  %v1192 = vunpack.c.l.b16 %v1161
  %v1193 = vunpack.c.h.b16 %v1161
  %v1194 = vunpack.c.l.b16 %v1162
  %v1195 = vunpack.c.h.b16 %v1162
  %v1196 = vunpack.c.l.b16 %v1163
  %v1197 = vunpack.c.h.b16 %v1163
  %v1198 = vunpack.c.l.b16 %v1164
  %v1199 = vunpack.c.h.b16 %v1164
  %v1200 = vunpack.c.l.b16 %v1165
  %v1201 = vunpack.c.h.b16 %v1165
  %v1202 = vunpack.c.l.b16 %v1166
  %v1203 = vunpack.c.h.b16 %v1166
  %v1204 = vunpack.c.l.b16 %v1167
  %v1205 = vunpack.c.h.b16 %v1167
  %v1206 = vunpack.c.l.b16 %v1168
  %v1207 = vunpack.c.h.b16 %v1168
  %v1208 = vpack.c.b16 %v1182, %v1182
  %v1209 = vpack.c.b16 %v1183, %v1183
  %v1210 = vpack.c.b16 %v1184, %v1184
  %v1211 = vpack.c.b16 %v1185, %v1185
  %v1212 = vpack.c.b16 %v1186, %v1186
  %v1213 = vpack.c.b16 %v1187, %v1187
  %v1214 = vpack.c.b16 %v1188, %v1188
  %v1215 = vpack.c.b16 %v1189, %v1189
  %v1216 = vpack.c.b16 %v1190, %v1190
  %v1217 = vpack.c.b16 %v1191, %v1191
  %v1218 = vpack.c.b16 %v1192, %v1192
  %v1219 = vpack.c.b16 %v1193, %v1193
  %v1220 = vpack.c.b16 %v1194, %v1194
  %v1221 = vpack.c.b16 %v1195, %v1195
  %v1222 = vpack.c.b16 %v1196, %v1196
  %v1223 = vpack.c.b16 %v1197, %v1197
  %v1224 = vpack.c.b16 %v1198, %v1198
  %v1225 = vpack.c.b16 %v1199, %v1199
  %v1226 = vpack.c.b16 %v1200, %v1200
  %v1227 = vpack.c.b16 %v1201, %v1201
  %v1228 = vpack.c.b16 %v1202, %v1202
  %v1229 = vpack.c.b16 %v1203, %v1203
  %v1230 = vpack.c.b16 %v1204, %v1204
  %v1231 = vpack.c.b16 %v1205, %v1205
  %v1232 = vpack.c.b16 %v1206, %v1206
  %v1233 = vpack.c.b16 %v1207, %v1207
  %1260 = vst [vmem:[%s2] sm:$0xf] %v1208
  %1261 = vst [vmem:[%s2 + $0x4] sm:$0xf] %v1209
  %1262 = vst [vmem:[%s2 + $0x8] sm:$0xf] %v1210
  %1263 = vst [vmem:[%s2 + $0xc] sm:$0xf] %v1211
  %1264 = vst [vmem:[%s2 + $0x10] sm:$0xf] %v1212
  %1265 = vst [vmem:[%s2 + $0x14] sm:$0xf] %v1213
  %1266 = vst [vmem:[%s2 + $0x18] sm:$0xf] %v1214
  %1267 = vst [vmem:[%s2 + $0x1c] sm:$0xf] %v1215
  %1268 = vst [vmem:[%s2 + $0x20] sm:$0xf] %v1216
  %1269 = vst [vmem:[%s2 + $0x24] sm:$0xf] %v1217
  %1270 = vst [vmem:[%s2 + $0x28] sm:$0xf] %v1218
  %1271 = vst [vmem:[%s2 + $0x2c] sm:$0xf] %v1219
  %1272 = vst [vmem:[%s2 + $0x30] sm:$0xf] %v1220
  %1273 = vst [vmem:[%s2 + $0x34] sm:$0xf] %v1221
  %1274 = vst [vmem:[%s2 + $0x38] sm:$0xf] %v1222
  %1275 = vst [vmem:[%s2 + $0x3c] sm:$0xf] %v1223
  %1276 = vst [vmem:[%s2 + $0x40] sm:$0xf] %v1224
  %1277 = vst [vmem:[%s2 + $0x44] sm:$0xf] %v1225
  %1278 = vst [vmem:[%s2 + $0x48] sm:$0xf] %v1226
  %1279 = vst [vmem:[%s2 + $0x4c] sm:$0xf] %v1227
  %1280 = vst [vmem:[%s2 + $0x50] sm:$0xf] %v1228
  %1281 = vst [vmem:[%s2 + $0x54] sm:$0xf] %v1229
  %1282 = vst [vmem:[%s2 + $0x58] sm:$0xf] %v1230
  %1283 = vst [vmem:[%s2 + $0x5c] sm:$0xf] %v1231
  %1284 = vst [vmem:[%s2 + $0x60] sm:$0xf] %v1232
  %1285 = vst [vmem:[%s2 + $0x64] sm:$0xf] %v1233
  %v1286 = vadd.f32 %v1054, %v1057
  %v1287 = vadd.f32 %v1286, %v1062
  %v1288 = vadd.f32 %v1287, %v1065
  %v1289 = vadd.f32 %v1288, %v1070
  %v1290 = vadd.f32 %v1289, %v1073
  %v1291 = vadd.f32 %v1290, %v1078
  %v1292 = vadd.f32 %v1291, %v1081
  %v1293 = vadd.f32 %v1292, %v1086
  %v1294 = vadd.f32 %v1293, %v1089
  %v1295 = vadd.f32 %v1294, %v1094
  %v1296 = vadd.f32 %v1295, %v1097
  %v1297 = vadd.f32 %v1296, %v1102
  %v1298 = vadd.f32 %v1297, %v1105
  %v1299 = vadd.f32 %v1298, %v1110
  %v1300 = vadd.f32 %v1299, %v1113
  %v1301 = vadd.f32 %v1300, %v1118
  %v1302 = vadd.f32 %v1301, %v1121
  %v1303 = vadd.f32 %v1302, %v1126
  %v1304 = vadd.f32 %v1303, %v1129
  %v1305 = vadd.f32 %v1304, %v1134
  %v1306 = vadd.f32 %v1305, %v1137
  %v1307 = vadd.f32 %v1306, %v1142
  %v1308 = vadd.f32 %v1307, %v1145
  %v1309 = vadd.f32 %v1308, %v1150
  %v1310 = vadd.f32 %v1309, %v1153
  %v1311 = vrot.slane %v1310, 4
  %v1312 = vadd.f32 %v1310, %v1311
  %v1313 = vrot.slane %v1312, 2
  %v1314 = vadd.f32 %v1312, %v1313
  %v1315 = vrot.slane %v1314, 1
  %v1316 = vadd.f32 %v1314, %v1315
  %v1317 = vmul.f32 %v1054, %v1054
  %v1318 = vmul.f32 %v1057, %v1057
  %v1319 = vmul.f32 %v1062, %v1062
  %v1320 = vmul.f32 %v1065, %v1065
  %v1321 = vmul.f32 %v1070, %v1070
  %v1322 = vmul.f32 %v1073, %v1073
  %v1323 = vmul.f32 %v1078, %v1078
  %v1324 = vmul.f32 %v1081, %v1081
  %v1325 = vmul.f32 %v1086, %v1086
  %v1326 = vmul.f32 %v1089, %v1089
  %v1327 = vmul.f32 %v1094, %v1094
  %v1328 = vmul.f32 %v1097, %v1097
  %v1329 = vmul.f32 %v1102, %v1102
  %v1330 = vmul.f32 %v1105, %v1105
  %v1331 = vmul.f32 %v1110, %v1110
  %v1332 = vmul.f32 %v1113, %v1113
  %v1333 = vmul.f32 %v1118, %v1118
  %v1334 = vmul.f32 %v1121, %v1121
  %v1335 = vmul.f32 %v1126, %v1126
  %v1336 = vmul.f32 %v1129, %v1129
  %v1337 = vmul.f32 %v1134, %v1134
  %v1338 = vmul.f32 %v1137, %v1137
  %v1339 = vmul.f32 %v1142, %v1142
  %v1340 = vmul.f32 %v1145, %v1145
  %v1341 = vmul.f32 %v1150, %v1150
  %v1342 = vmul.f32 %v1153, %v1153
  %v1343 = vadd.f32 %v1317, %v1318
  %v1344 = vadd.f32 %v1343, %v1319
  %v1345 = vadd.f32 %v1344, %v1320
  %v1346 = vadd.f32 %v1345, %v1321
  %v1347 = vadd.f32 %v1346, %v1322
  %v1348 = vadd.f32 %v1347, %v1323
  %v1349 = vadd.f32 %v1348, %v1324
  %v1350 = vadd.f32 %v1349, %v1325
  %v1351 = vadd.f32 %v1350, %v1326
  %v1352 = vadd.f32 %v1351, %v1327
  %v1353 = vadd.f32 %v1352, %v1328
  %v1354 = vadd.f32 %v1353, %v1329
  %v1355 = vadd.f32 %v1354, %v1330
  %v1356 = vadd.f32 %v1355, %v1331
  %v1357 = vadd.f32 %v1356, %v1332
  %v1358 = vadd.f32 %v1357, %v1333
  %v1359 = vadd.f32 %v1358, %v1334
  %v1360 = vadd.f32 %v1359, %v1335
  %v1361 = vadd.f32 %v1360, %v1336
  %v1362 = vadd.f32 %v1361, %v1337
  %v1363 = vadd.f32 %v1362, %v1338
  %v1364 = vadd.f32 %v1363, %v1339
  %v1365 = vadd.f32 %v1364, %v1340
  %v1366 = vadd.f32 %v1365, %v1341
  %v1367 = vadd.f32 %v1366, %v1342
  %v1368 = vrot.slane %v1367, 4
  %v1369 = vadd.f32 %v1367, %v1368
  %v1370 = vrot.slane %v1369, 2
  %v1371 = vadd.f32 %v1369, %v1370
  %v1372 = vrot.slane %v1371, 1
  %v1373 = vadd.f32 %v1371, %v1372
  %vm1374 = vcmask 1040384
  %v1375 = vsel %vm1374, %v1316, %v1373
  %1376 = vst [vmem:[%s3] sm:$0x3] %v1375
  // Predicated region
  $region10: #{cvae2_pool_forward.16} parent=0 // pred_check
    _
  $region11: #{cvae2_pool_forward.16} parent=0 // pred_check_branch
    %1378 = sbr.rel (0) target = $region13
  $region12: #{cvae2_pool_forward.16} parent=0 // pred_region
    _
  $region13: #{cvae2_pool_forward.16} parent=0 // pred_fallthru
    _
  // Predicated region
  $region14: #{cvae2_pool_forward.16} parent=0 // pred_check
    _
  $region15: #{cvae2_pool_forward.16} parent=0 // pred_check_branch
    %1380 = sbr.rel (0) target = $region17
  $region16: #{cvae2_pool_forward.16} parent=0 // pred_region
    _
  $region17: #{cvae2_pool_forward.16} parent=0 // pred_fallthru
    _
  // Predicated region
  $region18: #{cvae2_pool_forward.16} parent=0 // pred_check
    _
  $region19: #{cvae2_pool_forward.16} parent=0 // pred_check_branch
    %1382 = sbr.rel (0) target = $region21
  $region20: #{cvae2_pool_forward.16} parent=0 // pred_region
    _
  $region21: #{cvae2_pool_forward.16} parent=0 // pred_fallthru
    _
  // Predicated region
  $region22: #{cvae2_pool_forward.16} parent=0 // pred_check
    _
  $region23: #{cvae2_pool_forward.16} parent=0 // pred_check_branch
    %1384 = sbr.rel (0) target = $region25
  $region24: #{cvae2_pool_forward.16} parent=0 // pred_region
    _
  $region25: #{cvae2_pool_forward.16} parent=0 // pred_fallthru
    _

// kernel: cvae2_pool_forward.19
$region0: #{cvae2_pool_forward.19}
  #allocation0 [shape = 'u32[]', space=smem, size = 0x4, offset = 0x4, fixed_abs, tag = 'smem constant byte address 0x4 - core index']
  #allocation1 [shape = 'u32[144,128]{1,0:T(1,128)}', space=vmem, size = 0x12000, scoped, tag = 'internal scratch']
  %s0 = inlined_call_operand.vmem [shape: bf16[32,128], index: 0, kind: input, shape index: {}]
  %s1 = inlined_call_operand.vmem [shape: f32[2,128], index: 1, kind: input, shape index: {}]
  %s2 = inlined_call_operand.vmem [shape: f32[1,128], index: 2, kind: input, shape index: {}]
  %s3 = inlined_call_operand.vmem [shape: f32[1,128], index: 3, kind: input, shape index: {}]
  %s4 = inlined_call_operand.vmem [shape: bf16[32,128], index: 4, kind: output, shape index: {}]
  %s5 = sld [smem:[#allocation0]]
  $region26: #{cvae2_pool_forward.19} parent=0
    _
  %s7 = ssub.s32 1, %s5
  %s8 = scalar_select 0, %s7, %s5
  // Predicated region
  $region2: #{cvae2_pool_forward.19} parent=0 // pred_check
    _
  $region3: #{cvae2_pool_forward.19} parent=0 // pred_check_branch
    %10 = sbr.rel (0) target = $region5
  $region4: #{cvae2_pool_forward.19} parent=0 // pred_region
    _
  $region5: #{cvae2_pool_forward.19} parent=0 // pred_fallthru
    _
  // Predicated region
  $region6: #{cvae2_pool_forward.19} parent=0 // pred_check
    _
  $region7: #{cvae2_pool_forward.19} parent=0 // pred_check_branch
    %12 = sbr.rel (0) target = $region9
  $region8: #{cvae2_pool_forward.19} parent=0 // pred_region
    _
  $region9: #{cvae2_pool_forward.19} parent=0 // pred_fallthru
    _
  // Predicated region
  $region10: #{cvae2_pool_forward.19} parent=0 // pred_check
    _
  $region11: #{cvae2_pool_forward.19} parent=0 // pred_check_branch
    %14 = sbr.rel (0) target = $region13
  $region12: #{cvae2_pool_forward.19} parent=0 // pred_region
    _
  $region13: #{cvae2_pool_forward.19} parent=0 // pred_fallthru
    _
  // Predicated region
  $region14: #{cvae2_pool_forward.19} parent=0 // pred_check
    _
  $region15: #{cvae2_pool_forward.19} parent=0 // pred_check_branch
    %16 = sbr.rel (0) target = $region17
  $region16: #{cvae2_pool_forward.19} parent=0 // pred_region
    _
  $region17: #{cvae2_pool_forward.19} parent=0 // pred_fallthru
    _
  %v17 = vld [vmem:[%s1] sm:$0x1]
  %v18 = vmul.f32 %v17, 0.055555556
  %v19 = vld [vmem:[%s1 + $0x1] sm:$0x1]
  %v20 = vmul.f32 %v19, 0.055555556
  %v21 = vmul.f32 %v18, %v18
  %v22 = vsub.f32 %v20, %v21
  %v23 = vld [vmem:[%s2] sm:$0x1]
  %v24 = vadd.f32 %v22, 1e-05
  %v25 = vrsqrt.pop %v24
  %v26 = vmul.f32 %v23, %v25
  %v27 = vld [vmem:[%s3] sm:$0x1]
  %v28 = vmul.f32 %v18, %v26
  %v29 = vsub.f32 %v27, %v28
  %v30 = vld [vmem:[%s0] sm:$0xf]
  %v31 = vld [vmem:[%s0 + $0x4] sm:$0xf]
  %v32 = vld [vmem:[%s0 + $0x8] sm:$0xf]
  %v33 = vld [vmem:[%s0 + $0xc] sm:$0xf]
  %v34 = vunpack.c.l.bf16 %v30
  %v35 = vunpack.c.l.bf16 %v31
  %v36 = vunpack.c.l.bf16 %v32
  %v37 = vunpack.c.l.bf16 %v33
  %v39 = vlaneseq
  %v40 = vshrl.u32 %v39, 7
  %v41 = vsub.s32 0, %v40
  %v42 = vrot.slane %v26, %v41
  %v44 = vmul.f32 %v34, %v42
  %v45 = vmul.f32 %v35, %v42
  %v46 = vmul.f32 %v36, %v42
  %v47 = vmul.f32 %v37, %v42
  %v49 = vlaneseq
  %v50 = vshrl.u32 %v49, 7
  %v51 = vsub.s32 0, %v50
  %v52 = vrot.slane %v29, %v51
  %v54 = vadd.f32 %v44, %v52
  %v55 = vadd.f32 %v45, %v52
  %v56 = vadd.f32 %v46, %v52
  %v57 = vadd.f32 %v47, %v52
  %v58 = vmax.f32 %v54, 0.0
  %v59 = vmax.f32 %v55, 0.0
  %v60 = vmax.f32 %v56, 0.0
  %v61 = vmax.f32 %v57, 0.0
  %v62 = vpack.c.bf16 %v59, %v58
  %v63 = vpack.c.bf16 %v61, %v60
  %v66 = vunpack.c.l.b16 %v62
  %v67 = vunpack.c.h.b16 %v62
  %v68 = vunpack.c.l.b16 %v63
  %v69 = vunpack.c.h.b16 %v63
  %v70 = vpack.c.b16 %v66, %v66
  %v71 = vpack.c.b16 %v67, %v67
  %v72 = vpack.c.b16 %v68, %v68
  %v73 = vpack.c.b16 %v69, %v69
  %78 = vst [vmem:[%s4] sm:$0xf] %v70
  %79 = vst [vmem:[%s4 + $0x4] sm:$0xf] %v71
  %80 = vst [vmem:[%s4 + $0x8] sm:$0xf] %v72
  %81 = vst [vmem:[%s4 + $0xc] sm:$0xf] %v73
  // Predicated region
  $region18: #{cvae2_pool_forward.19} parent=0 // pred_check
    _
  $region19: #{cvae2_pool_forward.19} parent=0 // pred_check_branch
    %83 = sbr.rel (0) target = $region21
  $region20: #{cvae2_pool_forward.19} parent=0 // pred_region
    _
  $region21: #{cvae2_pool_forward.19} parent=0 // pred_fallthru
    _
  // Predicated region
  $region22: #{cvae2_pool_forward.19} parent=0 // pred_check
    _
  $region23: #{cvae2_pool_forward.19} parent=0 // pred_check_branch
    %85 = sbr.rel (0) target = $region25
  $region24: #{cvae2_pool_forward.19} parent=0 // pred_region
    _
  $region25: #{cvae2_pool_forward.19} parent=0 // pred_fallthru
    _

// kernel: cvae2_pool_forward.18
$region0: #{cvae2_pool_forward.18}
  #allocation0 [shape = 'u32[]', space=smem, size = 0x4, offset = 0x4, fixed_abs, tag = 'smem constant byte address 0x4 - core index']
  #allocation1 [shape = 'u32[144,128]{1,0:T(1,128)}', space=vmem, size = 0x12000, scoped, tag = 'internal scratch']
  %s0 = inlined_call_operand.vmem [shape: bf16[32,1152], index: 0, kind: input, shape index: {}]
  %s1 = inlined_call_operand.vmem [shape: bf16[1152,128], index: 1, kind: input, shape index: {}]
  %s2 = inlined_call_operand.vmem [shape: bf16[32,128], index: 2, kind: output, shape index: {0}]
  %s3 = inlined_call_operand.vmem [shape: f32[1,2,128], index: 3, kind: output, shape index: {1}]
  %4 = xla_tuple %s2, %s3
  %s5 = sld [smem:[#allocation0]]
  $region26: #{cvae2_pool_forward.18} parent=0
    _
  %s7 = ssub.s32 1, %s5
  %s8 = scalar_select 0, %s7, %s5
  // Predicated region
  $region2: #{cvae2_pool_forward.18} parent=0 // pred_check
    _
  $region3: #{cvae2_pool_forward.18} parent=0 // pred_check_branch
    %10 = sbr.rel (0) target = $region5
  $region4: #{cvae2_pool_forward.18} parent=0 // pred_region
    _
  $region5: #{cvae2_pool_forward.18} parent=0 // pred_fallthru
    _
  // Predicated region
  $region6: #{cvae2_pool_forward.18} parent=0 // pred_check
    _
  $region7: #{cvae2_pool_forward.18} parent=0 // pred_check_branch
    %12 = sbr.rel (0) target = $region9
  $region8: #{cvae2_pool_forward.18} parent=0 // pred_region
    _
  $region9: #{cvae2_pool_forward.18} parent=0 // pred_fallthru
    _
  %v14 = vld [vmem:[%s0] sm:$0xff]
  %v15 = vld [vmem:[%s0 + $0x8] sm:$0xff]
  %v16 = vld [vmem:[%s0 + $0x10] sm:$0xff]
  %v17 = vld [vmem:[%s0 + $0x18] sm:$0xff]
  %v18 = vld [vmem:[%s0 + $0x20] sm:$0xf]
  %v19 = vld [vmem:[%s0 + $0x24] sm:$0xff]
  %v20 = vld [vmem:[%s0 + $0x2c] sm:$0xff]
  %v21 = vld [vmem:[%s0 + $0x34] sm:$0xff]
  %v22 = vld [vmem:[%s0 + $0x3c] sm:$0xff]
  %v23 = vld [vmem:[%s0 + $0x44] sm:$0xf]
  %v24 = vld [vmem:[%s0 + $0x48] sm:$0xff]
  %v25 = vld [vmem:[%s0 + $0x50] sm:$0xff]
  %v26 = vld [vmem:[%s0 + $0x58] sm:$0xff]
  %v27 = vld [vmem:[%s0 + $0x60] sm:$0xff]
  %v28 = vld [vmem:[%s0 + $0x68] sm:$0xf]
  %v29 = vld [vmem:[%s0 + $0x6c] sm:$0xff]
  %v30 = vld [vmem:[%s0 + $0x74] sm:$0xff]
  %v31 = vld [vmem:[%s0 + $0x7c] sm:$0xff]
  %v32 = vld [vmem:[%s0 + $0x84] sm:$0xff]
  %v33 = vld [vmem:[%s0 + $0x8c] sm:$0xf]
  %v34 = vld [vmem:[%s1] sm:$0xf]
  %v35 = vld [vmem:[%s1 + $0x4] sm:$0xf]
  %v36 = vld [vmem:[%s1 + $0x8] sm:$0xf]
  %v37 = vld [vmem:[%s1 + $0xc] sm:$0xf]
  %v38 = vld [vmem:[%s1 + $0x10] sm:$0xf]
  %v39 = vld [vmem:[%s1 + $0x14] sm:$0xf]
  %v40 = vld [vmem:[%s1 + $0x18] sm:$0xf]
  %v41 = vld [vmem:[%s1 + $0x1c] sm:$0xf]
  %v42 = vld [vmem:[%s1 + $0x20] sm:$0xf]
  %v43 = vld [vmem:[%s1 + $0x24] sm:$0xf]
  %v44 = vld [vmem:[%s1 + $0x28] sm:$0xf]
  %v45 = vld [vmem:[%s1 + $0x2c] sm:$0xf]
  %v46 = vld [vmem:[%s1 + $0x30] sm:$0xf]
  %v47 = vld [vmem:[%s1 + $0x34] sm:$0xf]
  %v48 = vld [vmem:[%s1 + $0x38] sm:$0xf]
  %v49 = vld [vmem:[%s1 + $0x3c] sm:$0xf]
  %v50 = vld [vmem:[%s1 + $0x40] sm:$0xf]
  %v51 = vld [vmem:[%s1 + $0x44] sm:$0xf]
  %v52 = vld [vmem:[%s1 + $0x48] sm:$0xf]
  %v53 = vld [vmem:[%s1 + $0x4c] sm:$0xf]
  %v54 = vld [vmem:[%s1 + $0x50] sm:$0xf]
  %v55 = vld [vmem:[%s1 + $0x54] sm:$0xf]
  %v56 = vld [vmem:[%s1 + $0x58] sm:$0xf]
  %v57 = vld [vmem:[%s1 + $0x5c] sm:$0xf]
  %v58 = vld [vmem:[%s1 + $0x60] sm:$0xf]
  %v59 = vld [vmem:[%s1 + $0x64] sm:$0xf]
  %v60 = vld [vmem:[%s1 + $0x68] sm:$0xf]
  %v61 = vld [vmem:[%s1 + $0x6c] sm:$0xf]
  %v62 = vld [vmem:[%s1 + $0x70] sm:$0xf]
  %v63 = vld [vmem:[%s1 + $0x74] sm:$0xf]
  %v64 = vld [vmem:[%s1 + $0x78] sm:$0xf]
  %v65 = vld [vmem:[%s1 + $0x7c] sm:$0xf]
  %v66 = vld [vmem:[%s1 + $0x80] sm:$0xf]
  %v67 = vld [vmem:[%s1 + $0x84] sm:$0xf]
  %v68 = vld [vmem:[%s1 + $0x88] sm:$0xf]
  %v69 = vld [vmem:[%s1 + $0x8c] sm:$0xf]
  %v70 = vld [vmem:[%s1 + $0x90] sm:$0xf]
  %v71 = vld [vmem:[%s1 + $0x94] sm:$0xf]
  %v72 = vld [vmem:[%s1 + $0x98] sm:$0xf]
  %v73 = vld [vmem:[%s1 + $0x9c] sm:$0xf]
  %v74 = vld [vmem:[%s1 + $0xa0] sm:$0xf]
  %v75 = vld [vmem:[%s1 + $0xa4] sm:$0xf]
  %v76 = vld [vmem:[%s1 + $0xa8] sm:$0xf]
  %v77 = vld [vmem:[%s1 + $0xac] sm:$0xf]
  %v78 = vld [vmem:[%s1 + $0xb0] sm:$0xf]
  %v79 = vld [vmem:[%s1 + $0xb4] sm:$0xf]
  %v80 = vld [vmem:[%s1 + $0xb8] sm:$0xf]
  %v81 = vld [vmem:[%s1 + $0xbc] sm:$0xf]
  %v82 = vld [vmem:[%s1 + $0xc0] sm:$0xf]
  %v83 = vld [vmem:[%s1 + $0xc4] sm:$0xf]
  %v84 = vld [vmem:[%s1 + $0xc8] sm:$0xf]
  %v85 = vld [vmem:[%s1 + $0xcc] sm:$0xf]
  %v86 = vld [vmem:[%s1 + $0xd0] sm:$0xf]
  %v87 = vld [vmem:[%s1 + $0xd4] sm:$0xf]
  %v88 = vld [vmem:[%s1 + $0xd8] sm:$0xf]
  %v89 = vld [vmem:[%s1 + $0xdc] sm:$0xf]
  %v90 = vld [vmem:[%s1 + $0xe0] sm:$0xf]
  %v91 = vld [vmem:[%s1 + $0xe4] sm:$0xf]
  %v92 = vld [vmem:[%s1 + $0xe8] sm:$0xf]
  %v93 = vld [vmem:[%s1 + $0xec] sm:$0xf]
  %v94 = vld [vmem:[%s1 + $0xf0] sm:$0xf]
  %v95 = vld [vmem:[%s1 + $0xf4] sm:$0xf]
  %v96 = vld [vmem:[%s1 + $0xf8] sm:$0xf]
  %v97 = vld [vmem:[%s1 + $0xfc] sm:$0xf]
  %v98 = vld [vmem:[%s1 + $0x100] sm:$0xf]
  %v99 = vld [vmem:[%s1 + $0x104] sm:$0xf]
  %v100 = vld [vmem:[%s1 + $0x108] sm:$0xf]
  %v101 = vld [vmem:[%s1 + $0x10c] sm:$0xf]
  %v102 = vld [vmem:[%s1 + $0x110] sm:$0xf]
  %v103 = vld [vmem:[%s1 + $0x114] sm:$0xf]
  %v104 = vld [vmem:[%s1 + $0x118] sm:$0xf]
  %v105 = vld [vmem:[%s1 + $0x11c] sm:$0xf]
  %v106 = vld [vmem:[%s1 + $0x120] sm:$0xf]
  %v107 = vld [vmem:[%s1 + $0x124] sm:$0xf]
  %v108 = vld [vmem:[%s1 + $0x128] sm:$0xf]
  %v109 = vld [vmem:[%s1 + $0x12c] sm:$0xf]
  %v110 = vld [vmem:[%s1 + $0x130] sm:$0xf]
  %v111 = vld [vmem:[%s1 + $0x134] sm:$0xf]
  %v112 = vld [vmem:[%s1 + $0x138] sm:$0xf]
  %v113 = vld [vmem:[%s1 + $0x13c] sm:$0xf]
  %v114 = vld [vmem:[%s1 + $0x140] sm:$0xf]
  %v115 = vld [vmem:[%s1 + $0x144] sm:$0xf]
  %v116 = vld [vmem:[%s1 + $0x148] sm:$0xf]
  %v117 = vld [vmem:[%s1 + $0x14c] sm:$0xf]
  %v118 = vld [vmem:[%s1 + $0x150] sm:$0xf]
  %v119 = vld [vmem:[%s1 + $0x154] sm:$0xf]
  %v120 = vld [vmem:[%s1 + $0x158] sm:$0xf]
  %v121 = vld [vmem:[%s1 + $0x15c] sm:$0xf]
  %v122 = vld [vmem:[%s1 + $0x160] sm:$0xf]
  %v123 = vld [vmem:[%s1 + $0x164] sm:$0xf]
  %v124 = vld [vmem:[%s1 + $0x168] sm:$0xf]
  %v125 = vld [vmem:[%s1 + $0x16c] sm:$0xf]
  %v126 = vld [vmem:[%s1 + $0x170] sm:$0xf]
  %v127 = vld [vmem:[%s1 + $0x174] sm:$0xf]
  %v128 = vld [vmem:[%s1 + $0x178] sm:$0xf]
  %v129 = vld [vmem:[%s1 + $0x17c] sm:$0xf]
  %v130 = vld [vmem:[%s1 + $0x180] sm:$0xf]
  %v131 = vld [vmem:[%s1 + $0x184] sm:$0xf]
  %v132 = vld [vmem:[%s1 + $0x188] sm:$0xf]
  %v133 = vld [vmem:[%s1 + $0x18c] sm:$0xf]
  %v134 = vld [vmem:[%s1 + $0x190] sm:$0xf]
  %v135 = vld [vmem:[%s1 + $0x194] sm:$0xf]
  %v136 = vld [vmem:[%s1 + $0x198] sm:$0xf]
  %v137 = vld [vmem:[%s1 + $0x19c] sm:$0xf]
  %v138 = vld [vmem:[%s1 + $0x1a0] sm:$0xf]
  %v139 = vld [vmem:[%s1 + $0x1a4] sm:$0xf]
  %v140 = vld [vmem:[%s1 + $0x1a8] sm:$0xf]
  %v141 = vld [vmem:[%s1 + $0x1ac] sm:$0xf]
  %v142 = vld [vmem:[%s1 + $0x1b0] sm:$0xf]
  %v143 = vld [vmem:[%s1 + $0x1b4] sm:$0xf]
  %v144 = vld [vmem:[%s1 + $0x1b8] sm:$0xf]
  %v145 = vld [vmem:[%s1 + $0x1bc] sm:$0xf]
  %v146 = vld [vmem:[%s1 + $0x1c0] sm:$0xf]
  %v147 = vld [vmem:[%s1 + $0x1c4] sm:$0xf]
  %v148 = vld [vmem:[%s1 + $0x1c8] sm:$0xf]
  %v149 = vld [vmem:[%s1 + $0x1cc] sm:$0xf]
  %v150 = vld [vmem:[%s1 + $0x1d0] sm:$0xf]
  %v151 = vld [vmem:[%s1 + $0x1d4] sm:$0xf]
  %v152 = vld [vmem:[%s1 + $0x1d8] sm:$0xf]
  %v153 = vld [vmem:[%s1 + $0x1dc] sm:$0xf]
  %v154 = vld [vmem:[%s1 + $0x1e0] sm:$0xf]
  %v155 = vld [vmem:[%s1 + $0x1e4] sm:$0xf]
  %v156 = vld [vmem:[%s1 + $0x1e8] sm:$0xf]
  %v157 = vld [vmem:[%s1 + $0x1ec] sm:$0xf]
  %v158 = vld [vmem:[%s1 + $0x1f0] sm:$0xf]
  %v159 = vld [vmem:[%s1 + $0x1f4] sm:$0xf]
  %v160 = vld [vmem:[%s1 + $0x1f8] sm:$0xf]
  %v161 = vld [vmem:[%s1 + $0x1fc] sm:$0xf]
  %v162 = vld [vmem:[%s1 + $0x200] sm:$0xf]
  %v163 = vld [vmem:[%s1 + $0x204] sm:$0xf]
  %v164 = vld [vmem:[%s1 + $0x208] sm:$0xf]
  %v165 = vld [vmem:[%s1 + $0x20c] sm:$0xf]
  %v166 = vld [vmem:[%s1 + $0x210] sm:$0xf]
  %v167 = vld [vmem:[%s1 + $0x214] sm:$0xf]
  %v168 = vld [vmem:[%s1 + $0x218] sm:$0xf]
  %v169 = vld [vmem:[%s1 + $0x21c] sm:$0xf]
  %v170 = vld [vmem:[%s1 + $0x220] sm:$0xf]
  %v171 = vld [vmem:[%s1 + $0x224] sm:$0xf]
  %v172 = vld [vmem:[%s1 + $0x228] sm:$0xf]
  %v173 = vld [vmem:[%s1 + $0x22c] sm:$0xf]
  %v174 = vld [vmem:[%s1 + $0x230] sm:$0xf]
  %v175 = vld [vmem:[%s1 + $0x234] sm:$0xf]
  %v176 = vld [vmem:[%s1 + $0x238] sm:$0xf]
  %v177 = vld [vmem:[%s1 + $0x23c] sm:$0xf]
  %v198 = vunpack.c.l.b16 %v14
  %v199 = vunpack.c.h.b16 %v14
  %v200 = vunpack.c.l.b16 %v15
  %v201 = vunpack.c.h.b16 %v15
  %v202 = vunpack.c.l.b16 %v16
  %v203 = vunpack.c.h.b16 %v16
  %v204 = vunpack.c.l.b16 %v17
  %v205 = vunpack.c.h.b16 %v17
  %v206 = vunpack.c.l.b16 %v18
  %v207 = vunpack.c.l.b16 %v19
  %v208 = vunpack.c.h.b16 %v19
  %v209 = vunpack.c.l.b16 %v20
  %v210 = vunpack.c.h.b16 %v20
  %v211 = vunpack.c.l.b16 %v21
  %v212 = vunpack.c.h.b16 %v21
  %v213 = vunpack.c.l.b16 %v22
  %v214 = vunpack.c.h.b16 %v22
  %v215 = vunpack.c.l.b16 %v23
  %v216 = vunpack.c.l.b16 %v24
  %v217 = vunpack.c.h.b16 %v24
  %v218 = vunpack.c.l.b16 %v25
  %v219 = vunpack.c.h.b16 %v25
  %v220 = vunpack.c.l.b16 %v26
  %v221 = vunpack.c.h.b16 %v26
  %v222 = vunpack.c.l.b16 %v27
  %v223 = vunpack.c.h.b16 %v27
  %v224 = vunpack.c.l.b16 %v28
  %v225 = vunpack.c.l.b16 %v29
  %v226 = vunpack.c.h.b16 %v29
  %v227 = vunpack.c.l.b16 %v30
  %v228 = vunpack.c.h.b16 %v30
  %v229 = vunpack.c.l.b16 %v31
  %v230 = vunpack.c.h.b16 %v31
  %v231 = vunpack.c.l.b16 %v32
  %v232 = vunpack.c.h.b16 %v32
  %v233 = vunpack.c.l.b16 %v33
  %v234 = vpack.c.b16 %v207, %v198
  %v235 = vpack.c.b16 %v208, %v199
  %v236 = vpack.c.b16 %v209, %v200
  %v237 = vpack.c.b16 %v210, %v201
  %v238 = vpack.c.b16 %v211, %v202
  %v239 = vpack.c.b16 %v212, %v203
  %v240 = vpack.c.b16 %v213, %v204
  %v241 = vpack.c.b16 %v214, %v205
  %v242 = vpack.c.b16 %v215, %v206
  %v243 = vpack.c.b16 %v225, %v216
  %v244 = vpack.c.b16 %v226, %v217
  %v245 = vpack.c.b16 %v227, %v218
  %v246 = vpack.c.b16 %v228, %v219
  %v247 = vpack.c.b16 %v229, %v220
  %v248 = vpack.c.b16 %v230, %v221
  %v249 = vpack.c.b16 %v231, %v222
  %v250 = vpack.c.b16 %v232, %v223
  %v251 = vpack.c.b16 %v233, %v224
  %v414 = vunpack.c.l.b16 %v34
  %v415 = vunpack.c.l.b16 %v35
  %v416 = vunpack.c.l.b16 %v36
  %v417 = vunpack.c.l.b16 %v37
  %v418 = vunpack.c.l.b16 %v38
  %v419 = vunpack.c.l.b16 %v39
  %v420 = vunpack.c.l.b16 %v40
  %v421 = vunpack.c.l.b16 %v41
  %v422 = vunpack.c.l.b16 %v42
  %v423 = vunpack.c.l.b16 %v43
  %v424 = vunpack.c.l.b16 %v44
  %v425 = vunpack.c.l.b16 %v45
  %v426 = vunpack.c.l.b16 %v46
  %v427 = vunpack.c.l.b16 %v47
  %v428 = vunpack.c.l.b16 %v48
  %v429 = vunpack.c.l.b16 %v49
  %v430 = vunpack.c.l.b16 %v50
  %v431 = vunpack.c.l.b16 %v51
  %v432 = vunpack.c.l.b16 %v52
  %v433 = vunpack.c.l.b16 %v53
  %v434 = vunpack.c.l.b16 %v54
  %v435 = vunpack.c.l.b16 %v55
  %v436 = vunpack.c.l.b16 %v56
  %v437 = vunpack.c.l.b16 %v57
  %v438 = vunpack.c.l.b16 %v58
  %v439 = vunpack.c.l.b16 %v59
  %v440 = vunpack.c.l.b16 %v60
  %v441 = vunpack.c.l.b16 %v61
  %v442 = vunpack.c.l.b16 %v62
  %v443 = vunpack.c.l.b16 %v63
  %v444 = vunpack.c.l.b16 %v64
  %v445 = vunpack.c.l.b16 %v65
  %v446 = vunpack.c.l.b16 %v66
  %v447 = vunpack.c.l.b16 %v67
  %v448 = vunpack.c.l.b16 %v68
  %v449 = vunpack.c.l.b16 %v69
  %v450 = vunpack.c.l.b16 %v70
  %v451 = vunpack.c.l.b16 %v71
  %v452 = vunpack.c.l.b16 %v72
  %v453 = vunpack.c.l.b16 %v73
  %v454 = vunpack.c.l.b16 %v74
  %v455 = vunpack.c.l.b16 %v75
  %v456 = vunpack.c.l.b16 %v76
  %v457 = vunpack.c.l.b16 %v77
  %v458 = vunpack.c.l.b16 %v78
  %v459 = vunpack.c.l.b16 %v79
  %v460 = vunpack.c.l.b16 %v80
  %v461 = vunpack.c.l.b16 %v81
  %v462 = vunpack.c.l.b16 %v82
  %v463 = vunpack.c.l.b16 %v83
  %v464 = vunpack.c.l.b16 %v84
  %v465 = vunpack.c.l.b16 %v85
  %v466 = vunpack.c.l.b16 %v86
  %v467 = vunpack.c.l.b16 %v87
  %v468 = vunpack.c.l.b16 %v88
  %v469 = vunpack.c.l.b16 %v89
  %v470 = vunpack.c.l.b16 %v90
  %v471 = vunpack.c.l.b16 %v91
  %v472 = vunpack.c.l.b16 %v92
  %v473 = vunpack.c.l.b16 %v93
  %v474 = vunpack.c.l.b16 %v94
  %v475 = vunpack.c.l.b16 %v95
  %v476 = vunpack.c.l.b16 %v96
  %v477 = vunpack.c.l.b16 %v97
  %v478 = vunpack.c.l.b16 %v98
  %v479 = vunpack.c.l.b16 %v99
  %v480 = vunpack.c.l.b16 %v100
  %v481 = vunpack.c.l.b16 %v101
  %v482 = vunpack.c.l.b16 %v102
  %v483 = vunpack.c.l.b16 %v103
  %v484 = vunpack.c.l.b16 %v104
  %v485 = vunpack.c.l.b16 %v105
  %v486 = vunpack.c.l.b16 %v106
  %v487 = vunpack.c.l.b16 %v107
  %v488 = vunpack.c.l.b16 %v108
  %v489 = vunpack.c.l.b16 %v109
  %v490 = vunpack.c.l.b16 %v110
  %v491 = vunpack.c.l.b16 %v111
  %v492 = vunpack.c.l.b16 %v112
  %v493 = vunpack.c.l.b16 %v113
  %v494 = vunpack.c.l.b16 %v114
  %v495 = vunpack.c.l.b16 %v115
  %v496 = vunpack.c.l.b16 %v116
  %v497 = vunpack.c.l.b16 %v117
  %v498 = vunpack.c.l.b16 %v118
  %v499 = vunpack.c.l.b16 %v119
  %v500 = vunpack.c.l.b16 %v120
  %v501 = vunpack.c.l.b16 %v121
  %v502 = vunpack.c.l.b16 %v122
  %v503 = vunpack.c.l.b16 %v123
  %v504 = vunpack.c.l.b16 %v124
  %v505 = vunpack.c.l.b16 %v125
  %v506 = vunpack.c.l.b16 %v126
  %v507 = vunpack.c.l.b16 %v127
  %v508 = vunpack.c.l.b16 %v128
  %v509 = vunpack.c.l.b16 %v129
  %v510 = vunpack.c.l.b16 %v130
  %v511 = vunpack.c.l.b16 %v131
  %v512 = vunpack.c.l.b16 %v132
  %v513 = vunpack.c.l.b16 %v133
  %v514 = vunpack.c.l.b16 %v134
  %v515 = vunpack.c.l.b16 %v135
  %v516 = vunpack.c.l.b16 %v136
  %v517 = vunpack.c.l.b16 %v137
  %v518 = vunpack.c.l.b16 %v138
  %v519 = vunpack.c.l.b16 %v139
  %v520 = vunpack.c.l.b16 %v140
  %v521 = vunpack.c.l.b16 %v141
  %v522 = vunpack.c.l.b16 %v142
  %v523 = vunpack.c.l.b16 %v143
  %v524 = vunpack.c.l.b16 %v144
  %v525 = vunpack.c.l.b16 %v145
  %v526 = vunpack.c.l.b16 %v146
  %v527 = vunpack.c.l.b16 %v147
  %v528 = vunpack.c.l.b16 %v148
  %v529 = vunpack.c.l.b16 %v149
  %v530 = vunpack.c.l.b16 %v150
  %v531 = vunpack.c.l.b16 %v151
  %v532 = vunpack.c.l.b16 %v152
  %v533 = vunpack.c.l.b16 %v153
  %v534 = vunpack.c.l.b16 %v154
  %v535 = vunpack.c.l.b16 %v155
  %v536 = vunpack.c.l.b16 %v156
  %v537 = vunpack.c.l.b16 %v157
  %v538 = vunpack.c.l.b16 %v158
  %v539 = vunpack.c.l.b16 %v159
  %v540 = vunpack.c.l.b16 %v160
  %v541 = vunpack.c.l.b16 %v161
  %v542 = vunpack.c.l.b16 %v162
  %v543 = vunpack.c.l.b16 %v163
  %v544 = vunpack.c.l.b16 %v164
  %v545 = vunpack.c.l.b16 %v165
  %v546 = vunpack.c.l.b16 %v166
  %v547 = vunpack.c.l.b16 %v167
  %v548 = vunpack.c.l.b16 %v168
  %v549 = vunpack.c.l.b16 %v169
  %v550 = vunpack.c.l.b16 %v170
  %v551 = vunpack.c.l.b16 %v171
  %v552 = vunpack.c.l.b16 %v172
  %v553 = vunpack.c.l.b16 %v173
  %v554 = vunpack.c.l.b16 %v174
  %v555 = vunpack.c.l.b16 %v175
  %v556 = vunpack.c.l.b16 %v176
  %v557 = vunpack.c.l.b16 %v177
  %v558 = vpack.c.b16 %v415, %v414
  %v559 = vpack.c.b16 %v417, %v416
  %v560 = vpack.c.b16 %v419, %v418
  %v561 = vpack.c.b16 %v421, %v420
  %v562 = vpack.c.b16 %v423, %v422
  %v563 = vpack.c.b16 %v425, %v424
  %v564 = vpack.c.b16 %v427, %v426
  %v565 = vpack.c.b16 %v429, %v428
  %v566 = vpack.c.b16 %v431, %v430
  %v567 = vpack.c.b16 %v433, %v432
  %v568 = vpack.c.b16 %v435, %v434
  %v569 = vpack.c.b16 %v437, %v436
  %v570 = vpack.c.b16 %v439, %v438
  %v571 = vpack.c.b16 %v441, %v440
  %v572 = vpack.c.b16 %v443, %v442
  %v573 = vpack.c.b16 %v445, %v444
  %v574 = vpack.c.b16 %v447, %v446
  %v575 = vpack.c.b16 %v449, %v448
  %v576 = vpack.c.b16 %v451, %v450
  %v577 = vpack.c.b16 %v453, %v452
  %v578 = vpack.c.b16 %v455, %v454
  %v579 = vpack.c.b16 %v457, %v456
  %v580 = vpack.c.b16 %v459, %v458
  %v581 = vpack.c.b16 %v461, %v460
  %v582 = vpack.c.b16 %v463, %v462
  %v583 = vpack.c.b16 %v465, %v464
  %v584 = vpack.c.b16 %v467, %v466
  %v585 = vpack.c.b16 %v469, %v468
  %v586 = vpack.c.b16 %v471, %v470
  %v587 = vpack.c.b16 %v473, %v472
  %v588 = vpack.c.b16 %v475, %v474
  %v589 = vpack.c.b16 %v477, %v476
  %v590 = vpack.c.b16 %v479, %v478
  %v591 = vpack.c.b16 %v481, %v480
  %v592 = vpack.c.b16 %v483, %v482
  %v593 = vpack.c.b16 %v485, %v484
  %v594 = vpack.c.b16 %v487, %v486
  %v595 = vpack.c.b16 %v489, %v488
  %v596 = vpack.c.b16 %v491, %v490
  %v597 = vpack.c.b16 %v493, %v492
  %v598 = vpack.c.b16 %v495, %v494
  %v599 = vpack.c.b16 %v497, %v496
  %v600 = vpack.c.b16 %v499, %v498
  %v601 = vpack.c.b16 %v501, %v500
  %v602 = vpack.c.b16 %v503, %v502
  %v603 = vpack.c.b16 %v505, %v504
  %v604 = vpack.c.b16 %v507, %v506
  %v605 = vpack.c.b16 %v509, %v508
  %v606 = vpack.c.b16 %v511, %v510
  %v607 = vpack.c.b16 %v513, %v512
  %v608 = vpack.c.b16 %v515, %v514
  %v609 = vpack.c.b16 %v517, %v516
  %v610 = vpack.c.b16 %v519, %v518
  %v611 = vpack.c.b16 %v521, %v520
  %v612 = vpack.c.b16 %v523, %v522
  %v613 = vpack.c.b16 %v525, %v524
  %v614 = vpack.c.b16 %v527, %v526
  %v615 = vpack.c.b16 %v529, %v528
  %v616 = vpack.c.b16 %v531, %v530
  %v617 = vpack.c.b16 %v533, %v532
  %v618 = vpack.c.b16 %v535, %v534
  %v619 = vpack.c.b16 %v537, %v536
  %v620 = vpack.c.b16 %v539, %v538
  %v621 = vpack.c.b16 %v541, %v540
  %v622 = vpack.c.b16 %v543, %v542
  %v623 = vpack.c.b16 %v545, %v544
  %v624 = vpack.c.b16 %v547, %v546
  %v625 = vpack.c.b16 %v549, %v548
  %v626 = vpack.c.b16 %v551, %v550
  %v627 = vpack.c.b16 %v553, %v552
  %v628 = vpack.c.b16 %v555, %v554
  %v629 = vpack.c.b16 %v557, %v556
  %702 = vmatprep.subr.bf16.mxu0 0
  %703 = vmatpush1.bf16.msra.mxu0 %v558
  %704 = vmatprep.subr.bf16.mxu0 0
  %705 = vmatpush1.bf16.msra.mxu0 %v559
  %706 = vmatprep.subr.bf16.mxu0 0
  %707 = vmatpush1.bf16.msra.mxu0 %v560
  %708 = vmatprep.subr.bf16.mxu0 0
  %709 = vmatpush1.bf16.msra.mxu0 %v561
  %710 = vmatprep.subr.bf16.mxu0 0
  %711 = vmatpush1.bf16.msra.mxu0 %v562
  %712 = vmatprep.subr.bf16.mxu0 0
  %713 = vmatpush1.bf16.msra.mxu0 %v563
  %714 = vmatprep.subr.bf16.mxu0 0
  %715 = vmatpush1.bf16.msra.mxu0 %v564
  %716 = vmatprep.subr.bf16.mxu0 0
  %717 = vmatpush1.bf16.msra.mxu0 %v565
  %718 = vmatprep.subr.bf16.mxu0 0
  %719 = vmatpush1.bf16.msra.mxu0 %v566
  %720 = vmatprep.subr.bf16.mxu0 0
  %721 = vmatpush1.bf16.msra.mxu0 %v567
  %722 = vmatprep.subr.bf16.mxu0 0
  %723 = vmatpush1.bf16.msra.mxu0 %v568
  %724 = vmatprep.subr.bf16.mxu0 0
  %725 = vmatpush1.bf16.msra.mxu0 %v569
  %726 = vmatprep.subr.bf16.mxu0 0
  %727 = vmatpush1.bf16.msra.mxu0 %v570
  %728 = vmatprep.subr.bf16.mxu0 0
  %729 = vmatpush1.bf16.msra.mxu0 %v571
  %730 = vmatprep.subr.bf16.mxu0 0
  %731 = vmatpush1.bf16.msra.mxu0 %v572
  %732 = vmatprep.subr.bf16.mxu0 0
  %733 = vmatpush1.bf16.msra.mxu0 %v573
  %734 = vmatprep.mubr.bf16.mxu0 %v235
  %735 = vmatmul.mubr.bf16.gmra.mrb[0].mxu0 %v234
  %v736 = vpop.f32.mrb[0].mxu0
  %v737 = vadd.f32 0.0, %v736
  %v738 = vpop.f32.mrb[0].mxu0
  %v739 = vpop.f32.mrb[0].mxu0
  %v740 = vadd.f32 0.0, %v739
  %v741 = vpop.f32.mrb[0].mxu0
  %742 = vmatprep.mubr.bf16.mxu0 %v244
  %743 = vmatmul.mubr.bf16.gmra.mrb[0].mxu0 %v243
  %v744 = vpop.f32.mrb[0].mxu0
  %v745 = vadd.f32 0.0, %v744
  %v746 = vpop.f32.mrb[0].mxu0
  %v747 = vpop.f32.mrb[0].mxu0
  %v748 = vadd.f32 0.0, %v747
  %v749 = vpop.f32.mrb[0].mxu0
  %750 = vdwg.mxu0
  %751 = vmatprep.subr.bf16.mxu0 0
  %752 = vmatpush1.bf16.msra.mxu0 %v574
  %753 = vmatprep.subr.bf16.mxu0 0
  %754 = vmatpush1.bf16.msra.mxu0 %v575
  %755 = vmatprep.subr.bf16.mxu0 0
  %756 = vmatpush1.bf16.msra.mxu0 %v576
  %757 = vmatprep.subr.bf16.mxu0 0
  %758 = vmatpush1.bf16.msra.mxu0 %v577
  %759 = vmatprep.subr.bf16.mxu0 0
  %760 = vmatpush1.bf16.msra.mxu0 %v578
  %761 = vmatprep.subr.bf16.mxu0 0
  %762 = vmatpush1.bf16.msra.mxu0 %v579
  %763 = vmatprep.subr.bf16.mxu0 0
  %764 = vmatpush1.bf16.msra.mxu0 %v580
  %765 = vmatprep.subr.bf16.mxu0 0
  %766 = vmatpush1.bf16.msra.mxu0 %v581
  %767 = vmatprep.subr.bf16.mxu0 0
  %768 = vmatpush1.bf16.msra.mxu0 %v582
  %769 = vmatprep.subr.bf16.mxu0 0
  %770 = vmatpush1.bf16.msra.mxu0 %v583
  %771 = vmatprep.subr.bf16.mxu0 0
  %772 = vmatpush1.bf16.msra.mxu0 %v584
  %773 = vmatprep.subr.bf16.mxu0 0
  %774 = vmatpush1.bf16.msra.mxu0 %v585
  %775 = vmatprep.subr.bf16.mxu0 0
  %776 = vmatpush1.bf16.msra.mxu0 %v586
  %777 = vmatprep.subr.bf16.mxu0 0
  %778 = vmatpush1.bf16.msra.mxu0 %v587
  %779 = vmatprep.subr.bf16.mxu0 0
  %780 = vmatpush1.bf16.msra.mxu0 %v588
  %781 = vmatprep.subr.bf16.mxu0 0
  %782 = vmatpush1.bf16.msra.mxu0 %v589
  %783 = vmatprep.mubr.bf16.mxu0 %v237
  %784 = vmatmul.mubr.bf16.gmra.mrb[0].mxu0 %v236
  %v785 = vpop.f32.mrb[0].mxu0
  %v786 = vadd.f32 %v737, %v785
  %v787 = vpop.f32.mrb[0].mxu0
  %v788 = vpop.f32.mrb[0].mxu0
  %v789 = vadd.f32 %v740, %v788
  %v790 = vpop.f32.mrb[0].mxu0
  %791 = vmatprep.mubr.bf16.mxu0 %v246
  %792 = vmatmul.mubr.bf16.gmra.mrb[0].mxu0 %v245
  %v793 = vpop.f32.mrb[0].mxu0
  %v794 = vadd.f32 %v745, %v793
  %v795 = vpop.f32.mrb[0].mxu0
  %v796 = vpop.f32.mrb[0].mxu0
  %v797 = vadd.f32 %v748, %v796
  %v798 = vpop.f32.mrb[0].mxu0
  %799 = vdwg.mxu0
  %800 = vmatprep.subr.bf16.mxu0 0
  %801 = vmatpush1.bf16.msra.mxu0 %v590
  %802 = vmatprep.subr.bf16.mxu0 0
  %803 = vmatpush1.bf16.msra.mxu0 %v591
  %804 = vmatprep.subr.bf16.mxu0 0
  %805 = vmatpush1.bf16.msra.mxu0 %v592
  %806 = vmatprep.subr.bf16.mxu0 0
  %807 = vmatpush1.bf16.msra.mxu0 %v593
  %808 = vmatprep.subr.bf16.mxu0 0
  %809 = vmatpush1.bf16.msra.mxu0 %v594
  %810 = vmatprep.subr.bf16.mxu0 0
  %811 = vmatpush1.bf16.msra.mxu0 %v595
  %812 = vmatprep.subr.bf16.mxu0 0
  %813 = vmatpush1.bf16.msra.mxu0 %v596
  %814 = vmatprep.subr.bf16.mxu0 0
  %815 = vmatpush1.bf16.msra.mxu0 %v597
  %816 = vmatprep.subr.bf16.mxu0 0
  %817 = vmatpush1.bf16.msra.mxu0 %v598
  %818 = vmatprep.subr.bf16.mxu0 0
  %819 = vmatpush1.bf16.msra.mxu0 %v599
  %820 = vmatprep.subr.bf16.mxu0 0
  %821 = vmatpush1.bf16.msra.mxu0 %v600
  %822 = vmatprep.subr.bf16.mxu0 0
  %823 = vmatpush1.bf16.msra.mxu0 %v601
  %824 = vmatprep.subr.bf16.mxu0 0
  %825 = vmatpush1.bf16.msra.mxu0 %v602
  %826 = vmatprep.subr.bf16.mxu0 0
  %827 = vmatpush1.bf16.msra.mxu0 %v603
  %828 = vmatprep.subr.bf16.mxu0 0
  %829 = vmatpush1.bf16.msra.mxu0 %v604
  %830 = vmatprep.subr.bf16.mxu0 0
  %831 = vmatpush1.bf16.msra.mxu0 %v605
  %832 = vmatprep.mubr.bf16.mxu0 %v239
  %833 = vmatmul.mubr.bf16.gmra.mrb[0].mxu0 %v238
  %v834 = vpop.f32.mrb[0].mxu0
  %v835 = vadd.f32 %v786, %v834
  %v836 = vpop.f32.mrb[0].mxu0
  %v837 = vpop.f32.mrb[0].mxu0
  %v838 = vadd.f32 %v789, %v837
  %v839 = vpop.f32.mrb[0].mxu0
  %840 = vmatprep.mubr.bf16.mxu0 %v248
  %841 = vmatmul.mubr.bf16.gmra.mrb[0].mxu0 %v247
  %v842 = vpop.f32.mrb[0].mxu0
  %v843 = vadd.f32 %v794, %v842
  %v844 = vpop.f32.mrb[0].mxu0
  %v845 = vpop.f32.mrb[0].mxu0
  %v846 = vadd.f32 %v797, %v845
  %v847 = vpop.f32.mrb[0].mxu0
  %848 = vdwg.mxu0
  %849 = vmatprep.subr.bf16.mxu0 0
  %850 = vmatpush1.bf16.msra.mxu0 %v606
  %851 = vmatprep.subr.bf16.mxu0 0
  %852 = vmatpush1.bf16.msra.mxu0 %v607
  %853 = vmatprep.subr.bf16.mxu0 0
  %854 = vmatpush1.bf16.msra.mxu0 %v608
  %855 = vmatprep.subr.bf16.mxu0 0
  %856 = vmatpush1.bf16.msra.mxu0 %v609
  %857 = vmatprep.subr.bf16.mxu0 0
  %858 = vmatpush1.bf16.msra.mxu0 %v610
  %859 = vmatprep.subr.bf16.mxu0 0
  %860 = vmatpush1.bf16.msra.mxu0 %v611
  %861 = vmatprep.subr.bf16.mxu0 0
  %862 = vmatpush1.bf16.msra.mxu0 %v612
  %863 = vmatprep.subr.bf16.mxu0 0
  %864 = vmatpush1.bf16.msra.mxu0 %v613
  %865 = vmatprep.subr.bf16.mxu0 0
  %866 = vmatpush1.bf16.msra.mxu0 %v614
  %867 = vmatprep.subr.bf16.mxu0 0
  %868 = vmatpush1.bf16.msra.mxu0 %v615
  %869 = vmatprep.subr.bf16.mxu0 0
  %870 = vmatpush1.bf16.msra.mxu0 %v616
  %871 = vmatprep.subr.bf16.mxu0 0
  %872 = vmatpush1.bf16.msra.mxu0 %v617
  %873 = vmatprep.subr.bf16.mxu0 0
  %874 = vmatpush1.bf16.msra.mxu0 %v618
  %875 = vmatprep.subr.bf16.mxu0 0
  %876 = vmatpush1.bf16.msra.mxu0 %v619
  %877 = vmatprep.subr.bf16.mxu0 0
  %878 = vmatpush1.bf16.msra.mxu0 %v620
  %879 = vmatprep.subr.bf16.mxu0 0
  %880 = vmatpush1.bf16.msra.mxu0 %v621
  %881 = vmatprep.mubr.bf16.mxu0 %v241
  %882 = vmatmul.mubr.bf16.gmra.mrb[0].mxu0 %v240
  %v883 = vpop.f32.mrb[0].mxu0
  %v884 = vadd.f32 %v835, %v883
  %v885 = vpop.f32.mrb[0].mxu0
  %v886 = vpop.f32.mrb[0].mxu0
  %v887 = vadd.f32 %v838, %v886
  %v888 = vpop.f32.mrb[0].mxu0
  %889 = vmatprep.mubr.bf16.mxu0 %v250
  %890 = vmatmul.mubr.bf16.gmra.mrb[0].mxu0 %v249
  %v891 = vpop.f32.mrb[0].mxu0
  %v892 = vadd.f32 %v843, %v891
  %v893 = vpop.f32.mrb[0].mxu0
  %v894 = vpop.f32.mrb[0].mxu0
  %v895 = vadd.f32 %v846, %v894
  %v896 = vpop.f32.mrb[0].mxu0
  %897 = vdwg.mxu0
  %898 = vmatprep.subr.bf16.mxu0 0
  %899 = vmatpush1.bf16.msra.mxu0 %v622
  %900 = vmatprep.subr.bf16.mxu0 0
  %901 = vmatpush1.bf16.msra.mxu0 %v623
  %902 = vmatprep.subr.bf16.mxu0 0
  %903 = vmatpush1.bf16.msra.mxu0 %v624
  %904 = vmatprep.subr.bf16.mxu0 0
  %905 = vmatpush1.bf16.msra.mxu0 %v625
  %906 = vmatprep.subr.bf16.mxu0 0
  %907 = vmatpush1.bf16.msra.mxu0 %v626
  %908 = vmatprep.subr.bf16.mxu0 0
  %909 = vmatpush1.bf16.msra.mxu0 %v627
  %910 = vmatprep.subr.bf16.mxu0 0
  %911 = vmatpush1.bf16.msra.mxu0 %v628
  %912 = vmatprep.subr.bf16.mxu0 0
  %913 = vmatpush1.bf16.msra.mxu0 %v629
  %914 = vmatprep.subr.bf16.mxu0 0
  %915 = vmatpush1.bf16.msra.mxu0 0
  %916 = vmatprep.subr.bf16.mxu0 0
  %917 = vmatpush1.bf16.msra.mxu0 0
  %918 = vmatprep.subr.bf16.mxu0 0
  %919 = vmatpush1.bf16.msra.mxu0 0
  %920 = vmatprep.subr.bf16.mxu0 0
  %921 = vmatpush1.bf16.msra.mxu0 0
  %922 = vmatprep.subr.bf16.mxu0 0
  %923 = vmatpush1.bf16.msra.mxu0 0
  %924 = vmatprep.subr.bf16.mxu0 0
  %925 = vmatpush1.bf16.msra.mxu0 0
  %926 = vmatprep.subr.bf16.mxu0 0
  %927 = vmatpush1.bf16.msra.mxu0 0
  %928 = vmatprep.subr.bf16.mxu0 0
  %929 = vmatpush1.bf16.msra.mxu0 0
  %930 = vmatprep.mubr.bf16.mxu0 0
  %931 = vmatmul.mubr.bf16.gmra.mrb[0].mxu0 %v242
  %v932 = vpop.f32.mrb[0].mxu0
  %v933 = vadd.f32 %v884, %v932
  %v934 = vpop.f32.mrb[0].mxu0
  %v935 = vpop.f32.mrb[0].mxu0
  %v936 = vadd.f32 %v887, %v935
  %v937 = vpop.f32.mrb[0].mxu0
  %938 = vmatprep.mubr.bf16.mxu0 0
  %939 = vmatmul.mubr.bf16.gmra.mrb[0].mxu0 %v251
  %v940 = vpop.f32.mrb[0].mxu0
  %v941 = vadd.f32 %v892, %v940
  %v942 = vpop.f32.mrb[0].mxu0
  %v943 = vpop.f32.mrb[0].mxu0
  %v944 = vadd.f32 %v895, %v943
  %v945 = vpop.f32.mrb[0].mxu0
  %946 = vdwg.mxu0
  %v947 = vpack.c.bf16 %v936, %v933
  %v948 = vpack.c.bf16 %v944, %v941
  %v951 = vunpack.c.l.b16 %v947
  %v952 = vunpack.c.h.b16 %v947
  %v953 = vunpack.c.l.b16 %v948
  %v954 = vunpack.c.h.b16 %v948
  %v955 = vpack.c.b16 %v951, %v951
  %v956 = vpack.c.b16 %v952, %v952
  %v957 = vpack.c.b16 %v953, %v953
  %v958 = vpack.c.b16 %v954, %v954
  %963 = vst [vmem:[%s2] sm:$0xf] %v955
  %964 = vst [vmem:[%s2 + $0x4] sm:$0xf] %v956
  %965 = vst [vmem:[%s2 + $0x8] sm:$0xf] %v957
  %966 = vst [vmem:[%s2 + $0xc] sm:$0xf] %v958
  %v967 = vadd.f32 %v933, %v936
  %v968 = vadd.f32 %v967, %v941
  %v969 = vadd.f32 %v968, %v944
  %v970 = vrot.slane %v969, 4
  %v971 = vadd.f32 %v969, %v970
  %v972 = vrot.slane %v971, 2
  %v973 = vadd.f32 %v971, %v972
  %v974 = vrot.slane %v973, 1
  %v975 = vadd.f32 %v973, %v974
  %v976 = vmul.f32 %v933, %v933
  %v977 = vmul.f32 %v936, %v936
  %v978 = vmul.f32 %v941, %v941
  %v979 = vmul.f32 %v944, %v944
  %v980 = vadd.f32 %v976, %v977
  %v981 = vadd.f32 %v980, %v978
  %v982 = vadd.f32 %v981, %v979
  %v983 = vrot.slane %v982, 4
  %v984 = vadd.f32 %v982, %v983
  %v985 = vrot.slane %v984, 2
  %v986 = vadd.f32 %v984, %v985
  %v987 = vrot.slane %v986, 1
  %v988 = vadd.f32 %v986, %v987
  %vm989 = vcmask 1040384
  %v990 = vsel %vm989, %v975, %v988
  %991 = vst [vmem:[%s3] sm:$0x3] %v990
  // Predicated region
  $region10: #{cvae2_pool_forward.18} parent=0 // pred_check
    _
  $region11: #{cvae2_pool_forward.18} parent=0 // pred_check_branch
    %993 = sbr.rel (0) target = $region13
  $region12: #{cvae2_pool_forward.18} parent=0 // pred_region
    _
  $region13: #{cvae2_pool_forward.18} parent=0 // pred_fallthru
    _
  // Predicated region
  $region14: #{cvae2_pool_forward.18} parent=0 // pred_check
    _
  $region15: #{cvae2_pool_forward.18} parent=0 // pred_check_branch
    %995 = sbr.rel (0) target = $region17
  $region16: #{cvae2_pool_forward.18} parent=0 // pred_region
    _
  $region17: #{cvae2_pool_forward.18} parent=0 // pred_fallthru
    _
  // Predicated region
  $region18: #{cvae2_pool_forward.18} parent=0 // pred_check
    _
  $region19: #{cvae2_pool_forward.18} parent=0 // pred_check_branch
    %997 = sbr.rel (0) target = $region21
  $region20: #{cvae2_pool_forward.18} parent=0 // pred_region
    _
  $region21: #{cvae2_pool_forward.18} parent=0 // pred_fallthru
    _
  // Predicated region
  $region22: #{cvae2_pool_forward.18} parent=0 // pred_check
    _
  $region23: #{cvae2_pool_forward.18} parent=0 // pred_check_branch
    %999 = sbr.rel (0) target = $region25
  $region24: #{cvae2_pool_forward.18} parent=0 // pred_region
    _
  $region25: #{cvae2_pool_forward.18} parent=0 // pred_fallthru
    _

// kernel: cvae2_pool_forward.20
$region0: #{cvae2_pool_forward.20}
  #allocation0 [shape = 'u32[]', space=smem, size = 0x4, offset = 0x4, fixed_abs, tag = 'smem constant byte address 0x4 - core index']
  #allocation1 [shape = 'u32[144,128]{1,0:T(1,128)}', space=vmem, size = 0x12000, scoped, tag = 'internal scratch']
  %s0 = inlined_call_operand.vmem [shape: bf16[16,128], index: 0, kind: input, shape index: {}]
  %s1 = inlined_call_operand.vmem [shape: bf16[128,128], index: 1, kind: input, shape index: {}]
  %s2 = inlined_call_operand.vmem [shape: f32[1,128], index: 2, kind: input, shape index: {}]
  %s3 = inlined_call_operand.vmem [shape: f32[16,20], index: 3, kind: output, shape index: {}]
  %s4 = sld [smem:[#allocation0]]
  $region22: #{cvae2_pool_forward.20} parent=0
    _
  %s6 = ssub.s32 1, %s4
  %s7 = scalar_select 0, %s6, %s4
  // Predicated region
  $region2: #{cvae2_pool_forward.20} parent=0 // pred_check
    _
  $region3: #{cvae2_pool_forward.20} parent=0 // pred_check_branch
    %9 = sbr.rel (0) target = $region5
  $region4: #{cvae2_pool_forward.20} parent=0 // pred_region
    _
  $region5: #{cvae2_pool_forward.20} parent=0 // pred_fallthru
    _
  // Predicated region
  $region6: #{cvae2_pool_forward.20} parent=0 // pred_check
    _
  $region7: #{cvae2_pool_forward.20} parent=0 // pred_check_branch
    %11 = sbr.rel (0) target = $region9
  $region8: #{cvae2_pool_forward.20} parent=0 // pred_region
    _
  $region9: #{cvae2_pool_forward.20} parent=0 // pred_fallthru
    _
  // Predicated region
  $region10: #{cvae2_pool_forward.20} parent=0 // pred_check
    _
  $region11: #{cvae2_pool_forward.20} parent=0 // pred_check_branch
    %13 = sbr.rel (0) target = $region13
  $region12: #{cvae2_pool_forward.20} parent=0 // pred_region
    _
  $region13: #{cvae2_pool_forward.20} parent=0 // pred_fallthru
    _
  %v15 = vld [vmem:[%s0] sm:$0xf]
  %v16 = vld [vmem:[%s0 + $0x4] sm:$0xf]
  %v17 = vld [vmem:[%s1] sm:$0xf]
  %v18 = vld [vmem:[%s1 + $0x4] sm:$0xf]
  %v19 = vld [vmem:[%s1 + $0x8] sm:$0xf]
  %v20 = vld [vmem:[%s1 + $0xc] sm:$0xf]
  %v21 = vld [vmem:[%s1 + $0x10] sm:$0xf]
  %v22 = vld [vmem:[%s1 + $0x14] sm:$0xf]
  %v23 = vld [vmem:[%s1 + $0x18] sm:$0xf]
  %v24 = vld [vmem:[%s1 + $0x1c] sm:$0xf]
  %v25 = vld [vmem:[%s1 + $0x20] sm:$0xf]
  %v26 = vld [vmem:[%s1 + $0x24] sm:$0xf]
  %v27 = vld [vmem:[%s1 + $0x28] sm:$0xf]
  %v28 = vld [vmem:[%s1 + $0x2c] sm:$0xf]
  %v29 = vld [vmem:[%s1 + $0x30] sm:$0xf]
  %v30 = vld [vmem:[%s1 + $0x34] sm:$0xf]
  %v31 = vld [vmem:[%s1 + $0x38] sm:$0xf]
  %v32 = vld [vmem:[%s1 + $0x3c] sm:$0xf]
  %v33 = vld [vmem:[%s2] sm:$0x1]
  %v35 = vlaneseq
  %v36 = vshrl.u32 %v35, 7
  %v37 = vsub.s32 0, %v36
  %v38 = vrot.slane %v33, %v37
  %v42 = vunpack.c.l.b16 %v15
  %v43 = vunpack.c.l.b16 %v16
  %v44 = vpack.c.b16 %v43, %v42
  %v62 = vunpack.c.l.b16 %v17
  %v63 = vunpack.c.l.b16 %v18
  %v64 = vunpack.c.l.b16 %v19
  %v65 = vunpack.c.l.b16 %v20
  %v66 = vunpack.c.l.b16 %v21
  %v67 = vunpack.c.l.b16 %v22
  %v68 = vunpack.c.l.b16 %v23
  %v69 = vunpack.c.l.b16 %v24
  %v70 = vunpack.c.l.b16 %v25
  %v71 = vunpack.c.l.b16 %v26
  %v72 = vunpack.c.l.b16 %v27
  %v73 = vunpack.c.l.b16 %v28
  %v74 = vunpack.c.l.b16 %v29
  %v75 = vunpack.c.l.b16 %v30
  %v76 = vunpack.c.l.b16 %v31
  %v77 = vunpack.c.l.b16 %v32
  %v78 = vpack.c.b16 %v63, %v62
  %v79 = vpack.c.b16 %v65, %v64
  %v80 = vpack.c.b16 %v67, %v66
  %v81 = vpack.c.b16 %v69, %v68
  %v82 = vpack.c.b16 %v71, %v70
  %v83 = vpack.c.b16 %v73, %v72
  %v84 = vpack.c.b16 %v75, %v74
  %v85 = vpack.c.b16 %v77, %v76
  %94 = vmatprep.subr.bf16.mxu0 0
  %95 = vmatpush1.bf16.msra.mxu0 %v78
  %96 = vmatprep.subr.bf16.mxu0 0
  %97 = vmatpush1.bf16.msra.mxu0 %v79
  %98 = vmatprep.subr.bf16.mxu0 0
  %99 = vmatpush1.bf16.msra.mxu0 %v80
  %100 = vmatprep.subr.bf16.mxu0 0
  %101 = vmatpush1.bf16.msra.mxu0 %v81
  %102 = vmatprep.subr.bf16.mxu0 0
  %103 = vmatpush1.bf16.msra.mxu0 %v82
  %104 = vmatprep.subr.bf16.mxu0 0
  %105 = vmatpush1.bf16.msra.mxu0 %v83
  %106 = vmatprep.subr.bf16.mxu0 0
  %107 = vmatpush1.bf16.msra.mxu0 %v84
  %108 = vmatprep.subr.bf16.mxu0 0
  %109 = vmatpush1.bf16.msra.mxu0 %v85
  %110 = vmatprep.subr.bf16.mxu0 0
  %111 = vmatpush1.bf16.msra.mxu0 0
  %112 = vmatprep.subr.bf16.mxu0 0
  %113 = vmatpush1.bf16.msra.mxu0 0
  %114 = vmatprep.subr.bf16.mxu0 0
  %115 = vmatpush1.bf16.msra.mxu0 0
  %116 = vmatprep.subr.bf16.mxu0 0
  %117 = vmatpush1.bf16.msra.mxu0 0
  %118 = vmatprep.subr.bf16.mxu0 0
  %119 = vmatpush1.bf16.msra.mxu0 0
  %120 = vmatprep.subr.bf16.mxu0 0
  %121 = vmatpush1.bf16.msra.mxu0 0
  %122 = vmatprep.subr.bf16.mxu0 0
  %123 = vmatpush1.bf16.msra.mxu0 0
  %124 = vmatprep.subr.bf16.mxu0 0
  %125 = vmatpush1.bf16.msra.mxu0 0
  %126 = vmatprep.mubr.bf16.mxu0 0
  %127 = vmatmul.mubr.bf16.gmra.mrb[0].mxu0 %v44
  %v128 = vpop.f32.mrb[0].mxu0
  %v129 = vadd.f32 %v38, %v128
  %v130 = vpop.f32.mrb[0].mxu0
  %v131 = vpop.f32.mrb[0].mxu0
  %v132 = vadd.f32 %v38, %v131
  %v133 = vpop.f32.mrb[0].mxu0
  %134 = vdwg.mxu0
  %vm135 = vcmask 162816
  %136 = vst.msk [vmem:[%s3] sm:$0xff] %vm135, %v129
  %137 = vst.msk [vmem:[%s3 + $0x8] sm:$0xff] %vm135, %v132
  // Predicated region
  $region14: #{cvae2_pool_forward.20} parent=0 // pred_check
    _
  $region15: #{cvae2_pool_forward.20} parent=0 // pred_check_branch
    %139 = sbr.rel (0) target = $region17
  $region16: #{cvae2_pool_forward.20} parent=0 // pred_region
    _
  $region17: #{cvae2_pool_forward.20} parent=0 // pred_fallthru
    _
  // Predicated region
  $region18: #{cvae2_pool_forward.20} parent=0 // pred_check
    _
  $region19: #{cvae2_pool_forward.20} parent=0 // pred_check_branch
    %141 = sbr.rel (0) target = $region21
  $region20: #{cvae2_pool_forward.20} parent=0 // pred_region
    _
  $region21: #{cvae2_pool_forward.20} parent=0 // pred_fallthru
    _

// kernel: cvae2_pool_forward.22
$region0: #{cvae2_pool_forward.22}
  #allocation0 [shape = 'u32[]', space=smem, size = 0x4, offset = 0x4, fixed_abs, tag = 'smem constant byte address 0x4 - core index']
  #allocation1 [shape = 'u32[144,128]{1,0:T(1,128)}', space=vmem, size = 0x12000, scoped, tag = 'internal scratch']
  %s0 = inlined_call_operand.vmem [shape: bf16[16,128], index: 0, kind: input, shape index: {}]
  %s1 = inlined_call_operand.vmem [shape: f32[2,128], index: 1, kind: input, shape index: {}]
  %s2 = inlined_call_operand.vmem [shape: f32[1,128], index: 2, kind: input, shape index: {}]
  %s3 = inlined_call_operand.vmem [shape: f32[1,128], index: 3, kind: input, shape index: {}]
  %s4 = inlined_call_operand.vmem [shape: bf16[16,128], index: 4, kind: output, shape index: {}]
  %s5 = sld [smem:[#allocation0]]
  $region26: #{cvae2_pool_forward.22} parent=0
    _
  %s7 = ssub.s32 1, %s5
  %s8 = scalar_select 0, %s7, %s5
  // Predicated region
  $region2: #{cvae2_pool_forward.22} parent=0 // pred_check
    _
  $region3: #{cvae2_pool_forward.22} parent=0 // pred_check_branch
    %10 = sbr.rel (0) target = $region5
  $region4: #{cvae2_pool_forward.22} parent=0 // pred_region
    _
  $region5: #{cvae2_pool_forward.22} parent=0 // pred_fallthru
    _
  // Predicated region
  $region6: #{cvae2_pool_forward.22} parent=0 // pred_check
    _
  $region7: #{cvae2_pool_forward.22} parent=0 // pred_check_branch
    %12 = sbr.rel (0) target = $region9
  $region8: #{cvae2_pool_forward.22} parent=0 // pred_region
    _
  $region9: #{cvae2_pool_forward.22} parent=0 // pred_fallthru
    _
  // Predicated region
  $region10: #{cvae2_pool_forward.22} parent=0 // pred_check
    _
  $region11: #{cvae2_pool_forward.22} parent=0 // pred_check_branch
    %14 = sbr.rel (0) target = $region13
  $region12: #{cvae2_pool_forward.22} parent=0 // pred_region
    _
  $region13: #{cvae2_pool_forward.22} parent=0 // pred_fallthru
    _
  // Predicated region
  $region14: #{cvae2_pool_forward.22} parent=0 // pred_check
    _
  $region15: #{cvae2_pool_forward.22} parent=0 // pred_check_branch
    %16 = sbr.rel (0) target = $region17
  $region16: #{cvae2_pool_forward.22} parent=0 // pred_region
    _
  $region17: #{cvae2_pool_forward.22} parent=0 // pred_fallthru
    _
  %v17 = vld [vmem:[%s1] sm:$0x1]
  %v18 = vmul.f32 %v17, 0.5
  %v19 = vld [vmem:[%s1 + $0x1] sm:$0x1]
  %v20 = vmul.f32 %v19, 0.5
  %v21 = vmul.f32 %v18, %v18
  %v22 = vsub.f32 %v20, %v21
  %v23 = vld [vmem:[%s2] sm:$0x1]
  %v24 = vadd.f32 %v22, 1e-05
  %v25 = vrsqrt.pop %v24
  %v26 = vmul.f32 %v23, %v25
  %v27 = vld [vmem:[%s3] sm:$0x1]
  %v28 = vmul.f32 %v18, %v26
  %v29 = vsub.f32 %v27, %v28
  %v30 = vld [vmem:[%s0] sm:$0xf]
  %v31 = vld [vmem:[%s0 + $0x4] sm:$0xf]
  %v32 = vunpack.c.l.bf16 %v30
  %v33 = vunpack.c.l.bf16 %v31
  %v35 = vlaneseq
  %v36 = vshrl.u32 %v35, 7
  %v37 = vsub.s32 0, %v36
  %v38 = vrot.slane %v26, %v37
  %v40 = vmul.f32 %v32, %v38
  %v41 = vmul.f32 %v33, %v38
  %v43 = vlaneseq
  %v44 = vshrl.u32 %v43, 7
  %v45 = vsub.s32 0, %v44
  %v46 = vrot.slane %v29, %v45
  %v48 = vadd.f32 %v40, %v46
  %v49 = vadd.f32 %v41, %v46
  %v50 = vmax.f32 %v48, 0.0
  %v51 = vmax.f32 %v49, 0.0
  %v52 = vpack.c.bf16 %v51, %v50
  %v54 = vunpack.c.l.b16 %v52
  %v55 = vunpack.c.h.b16 %v52
  %v56 = vpack.c.b16 %v54, %v54
  %v57 = vpack.c.b16 %v55, %v55
  %60 = vst [vmem:[%s4] sm:$0xf] %v56
  %61 = vst [vmem:[%s4 + $0x4] sm:$0xf] %v57
  // Predicated region
  $region18: #{cvae2_pool_forward.22} parent=0 // pred_check
    _
  $region19: #{cvae2_pool_forward.22} parent=0 // pred_check_branch
    %63 = sbr.rel (0) target = $region21
  $region20: #{cvae2_pool_forward.22} parent=0 // pred_region
    _
  $region21: #{cvae2_pool_forward.22} parent=0 // pred_fallthru
    _
  // Predicated region
  $region22: #{cvae2_pool_forward.22} parent=0 // pred_check
    _
  $region23: #{cvae2_pool_forward.22} parent=0 // pred_check_branch
    %65 = sbr.rel (0) target = $region25
  $region24: #{cvae2_pool_forward.22} parent=0 // pred_region
    _
  $region25: #{cvae2_pool_forward.22} parent=0 // pred_fallthru
    _

// kernel: cvae2_pool_forward.21
$region0: #{cvae2_pool_forward.21}
  #allocation0 [shape = 'u32[]', space=smem, size = 0x4, offset = 0x4, fixed_abs, tag = 'smem constant byte address 0x4 - core index']
  #allocation1 [shape = 'u32[144,128]{1,0:T(1,128)}', space=vmem, size = 0x12000, scoped, tag = 'internal scratch']
  %s0 = inlined_call_operand.vmem [shape: bf16[16,16], index: 0, kind: input, shape index: {}]
  %s1 = inlined_call_operand.vmem [shape: bf16[16,128], index: 1, kind: input, shape index: {}]
  %s2 = inlined_call_operand.vmem [shape: bf16[16,128], index: 2, kind: output, shape index: {0}]
  %s3 = inlined_call_operand.vmem [shape: f32[1,2,128], index: 3, kind: output, shape index: {1}]
  %4 = xla_tuple %s2, %s3
  %s5 = sld [smem:[#allocation0]]
  $region26: #{cvae2_pool_forward.21} parent=0
    _
  %s7 = ssub.s32 1, %s5
  %s8 = scalar_select 0, %s7, %s5
  // Predicated region
  $region2: #{cvae2_pool_forward.21} parent=0 // pred_check
    _
  $region3: #{cvae2_pool_forward.21} parent=0 // pred_check_branch
    %10 = sbr.rel (0) target = $region5
  $region4: #{cvae2_pool_forward.21} parent=0 // pred_region
    _
  $region5: #{cvae2_pool_forward.21} parent=0 // pred_fallthru
    _
  // Predicated region
  $region6: #{cvae2_pool_forward.21} parent=0 // pred_check
    _
  $region7: #{cvae2_pool_forward.21} parent=0 // pred_check_branch
    %12 = sbr.rel (0) target = $region9
  $region8: #{cvae2_pool_forward.21} parent=0 // pred_region
    _
  $region9: #{cvae2_pool_forward.21} parent=0 // pred_fallthru
    _
  %v14 = vld [vmem:[%s0] sm:$0xf]
  %v15 = vld [vmem:[%s0 + $0x4] sm:$0xf]
  %v16 = vld [vmem:[%s1] sm:$0xf]
  %v17 = vld [vmem:[%s1 + $0x4] sm:$0xf]
  %v20 = vunpack.c.l.b16 %v14
  %v21 = vunpack.c.l.b16 %v15
  %v22 = vpack.c.b16 %v21, %v20
  %v25 = vunpack.c.l.b16 %v16
  %v26 = vunpack.c.l.b16 %v17
  %v27 = vpack.c.b16 %v26, %v25
  %vm29 = vcmask 130048
  %v31 = vsel %vm29, %v22, 0
  %33 = vmatprep.subr.bf16.mxu0 0
  %34 = vmatpush1.bf16.msra.mxu0 %v27
  %35 = vmatprep.subr.bf16.mxu0 0
  %36 = vmatpush1.bf16.msra.mxu0 0
  %37 = vmatprep.subr.bf16.mxu0 0
  %38 = vmatpush1.bf16.msra.mxu0 0
  %39 = vmatprep.subr.bf16.mxu0 0
  %40 = vmatpush1.bf16.msra.mxu0 0
  %41 = vmatprep.subr.bf16.mxu0 0
  %42 = vmatpush1.bf16.msra.mxu0 0
  %43 = vmatprep.subr.bf16.mxu0 0
  %44 = vmatpush1.bf16.msra.mxu0 0
  %45 = vmatprep.subr.bf16.mxu0 0
  %46 = vmatpush1.bf16.msra.mxu0 0
  %47 = vmatprep.subr.bf16.mxu0 0
  %48 = vmatpush1.bf16.msra.mxu0 0
  %49 = vmatprep.subr.bf16.mxu0 0
  %50 = vmatpush1.bf16.msra.mxu0 0
  %51 = vmatprep.subr.bf16.mxu0 0
  %52 = vmatpush1.bf16.msra.mxu0 0
  %53 = vmatprep.subr.bf16.mxu0 0
  %54 = vmatpush1.bf16.msra.mxu0 0
  %55 = vmatprep.subr.bf16.mxu0 0
  %56 = vmatpush1.bf16.msra.mxu0 0
  %57 = vmatprep.subr.bf16.mxu0 0
  %58 = vmatpush1.bf16.msra.mxu0 0
  %59 = vmatprep.subr.bf16.mxu0 0
  %60 = vmatpush1.bf16.msra.mxu0 0
  %61 = vmatprep.subr.bf16.mxu0 0
  %62 = vmatpush1.bf16.msra.mxu0 0
  %63 = vmatprep.subr.bf16.mxu0 0
  %64 = vmatpush1.bf16.msra.mxu0 0
  %65 = vmatprep.mubr.bf16.mxu0 0
  %66 = vmatmul.mubr.bf16.gmra.mrb[0].mxu0 %v31
  %v67 = vpop.f32.mrb[0].mxu0
  %v68 = vadd.f32 0.0, %v67
  %v69 = vpop.f32.mrb[0].mxu0
  %v70 = vpop.f32.mrb[0].mxu0
  %v71 = vadd.f32 0.0, %v70
  %v72 = vpop.f32.mrb[0].mxu0
  %73 = vdwg.mxu0
  %v74 = vpack.c.bf16 %v71, %v68
  %v76 = vunpack.c.l.b16 %v74
  %v77 = vunpack.c.h.b16 %v74
  %v78 = vpack.c.b16 %v76, %v76
  %v79 = vpack.c.b16 %v77, %v77
  %82 = vst [vmem:[%s2] sm:$0xf] %v78
  %83 = vst [vmem:[%s2 + $0x4] sm:$0xf] %v79
  %v84 = vadd.f32 %v68, %v71
  %v85 = vrot.slane %v84, 4
  %v86 = vadd.f32 %v84, %v85
  %v87 = vrot.slane %v86, 2
  %v88 = vadd.f32 %v86, %v87
  %v89 = vrot.slane %v88, 1
  %v90 = vadd.f32 %v88, %v89
  %v91 = vmul.f32 %v68, %v68
  %v92 = vmul.f32 %v71, %v71
  %v93 = vadd.f32 %v91, %v92
  %v94 = vrot.slane %v93, 4
  %v95 = vadd.f32 %v93, %v94
  %v96 = vrot.slane %v95, 2
  %v97 = vadd.f32 %v95, %v96
  %v98 = vrot.slane %v97, 1
  %v99 = vadd.f32 %v97, %v98
  %vm100 = vcmask 1040384
  %v101 = vsel %vm100, %v90, %v99
  %102 = vst [vmem:[%s3] sm:$0x3] %v101
  // Predicated region
  $region10: #{cvae2_pool_forward.21} parent=0 // pred_check
    _
  $region11: #{cvae2_pool_forward.21} parent=0 // pred_check_branch
    %104 = sbr.rel (0) target = $region13
  $region12: #{cvae2_pool_forward.21} parent=0 // pred_region
    _
  $region13: #{cvae2_pool_forward.21} parent=0 // pred_fallthru
    _
  // Predicated region
  $region14: #{cvae2_pool_forward.21} parent=0 // pred_check
    _
  $region15: #{cvae2_pool_forward.21} parent=0 // pred_check_branch
    %106 = sbr.rel (0) target = $region17
  $region16: #{cvae2_pool_forward.21} parent=0 // pred_region
    _
  $region17: #{cvae2_pool_forward.21} parent=0 // pred_fallthru
    _
  // Predicated region
  $region18: #{cvae2_pool_forward.21} parent=0 // pred_check
    _
  $region19: #{cvae2_pool_forward.21} parent=0 // pred_check_branch
    %108 = sbr.rel (0) target = $region21
  $region20: #{cvae2_pool_forward.21} parent=0 // pred_region
    _
  $region21: #{cvae2_pool_forward.21} parent=0 // pred_fallthru
    _
  // Predicated region
  $region22: #{cvae2_pool_forward.21} parent=0 // pred_check
    _
  $region23: #{cvae2_pool_forward.21} parent=0 // pred_check_branch
    %110 = sbr.rel (0) target = $region25
  $region24: #{cvae2_pool_forward.21} parent=0 // pred_region
    _
  $region25: #{cvae2_pool_forward.21} parent=0 // pred_fallthru
    _

// kernel: cvae2_pool_forward.24
$region0: #{cvae2_pool_forward.24}
  #allocation0 [shape = 'u32[]', space=smem, size = 0x4, offset = 0x4, fixed_abs, tag = 'smem constant byte address 0x4 - core index']
  #allocation1 [shape = 'u32[144,128]{1,0:T(1,128)}', space=vmem, size = 0x12000, scoped, tag = 'internal scratch']
  %s0 = inlined_call_operand.vmem [shape: bf16[64,128], index: 0, kind: input, shape index: {}]
  %s1 = inlined_call_operand.vmem [shape: f32[2,128], index: 1, kind: input, shape index: {}]
  %s2 = inlined_call_operand.vmem [shape: f32[1,128], index: 2, kind: input, shape index: {}]
  %s3 = inlined_call_operand.vmem [shape: f32[1,128], index: 3, kind: input, shape index: {}]
  %s4 = inlined_call_operand.vmem [shape: bf16[64,128], index: 4, kind: output, shape index: {}]
  %s5 = sld [smem:[#allocation0]]
  $region26: #{cvae2_pool_forward.24} parent=0
    _
  %s7 = ssub.s32 1, %s5
  %s8 = scalar_select 0, %s7, %s5
  // Predicated region
  $region2: #{cvae2_pool_forward.24} parent=0 // pred_check
    _
  $region3: #{cvae2_pool_forward.24} parent=0 // pred_check_branch
    %10 = sbr.rel (0) target = $region5
  $region4: #{cvae2_pool_forward.24} parent=0 // pred_region
    _
  $region5: #{cvae2_pool_forward.24} parent=0 // pred_fallthru
    _
  // Predicated region
  $region6: #{cvae2_pool_forward.24} parent=0 // pred_check
    _
  $region7: #{cvae2_pool_forward.24} parent=0 // pred_check_branch
    %12 = sbr.rel (0) target = $region9
  $region8: #{cvae2_pool_forward.24} parent=0 // pred_region
    _
  $region9: #{cvae2_pool_forward.24} parent=0 // pred_fallthru
    _
  // Predicated region
  $region10: #{cvae2_pool_forward.24} parent=0 // pred_check
    _
  $region11: #{cvae2_pool_forward.24} parent=0 // pred_check_branch
    %14 = sbr.rel (0) target = $region13
  $region12: #{cvae2_pool_forward.24} parent=0 // pred_region
    _
  $region13: #{cvae2_pool_forward.24} parent=0 // pred_fallthru
    _
  // Predicated region
  $region14: #{cvae2_pool_forward.24} parent=0 // pred_check
    _
  $region15: #{cvae2_pool_forward.24} parent=0 // pred_check_branch
    %16 = sbr.rel (0) target = $region17
  $region16: #{cvae2_pool_forward.24} parent=0 // pred_region
    _
  $region17: #{cvae2_pool_forward.24} parent=0 // pred_fallthru
    _
  %v17 = vld [vmem:[%s1] sm:$0x1]
  %v18 = vmul.f32 %v17, 0.02
  %v19 = vld [vmem:[%s1 + $0x1] sm:$0x1]
  %v20 = vmul.f32 %v19, 0.02
  %v21 = vmul.f32 %v18, %v18
  %v22 = vsub.f32 %v20, %v21
  %v23 = vld [vmem:[%s2] sm:$0x1]
  %v24 = vadd.f32 %v22, 1e-05
  %v25 = vrsqrt.pop %v24
  %v26 = vmul.f32 %v23, %v25
  %v27 = vld [vmem:[%s3] sm:$0x1]
  %v28 = vmul.f32 %v18, %v26
  %v29 = vsub.f32 %v27, %v28
  %v30 = vld [vmem:[%s0] sm:$0xf]
  %v31 = vld [vmem:[%s0 + $0x4] sm:$0xf]
  %v32 = vld [vmem:[%s0 + $0x8] sm:$0xf]
  %v33 = vld [vmem:[%s0 + $0xc] sm:$0xf]
  %v34 = vld [vmem:[%s0 + $0x10] sm:$0xf]
  %v35 = vld [vmem:[%s0 + $0x14] sm:$0xf]
  %v36 = vld [vmem:[%s0 + $0x18] sm:$0xf]
  %v37 = vld [vmem:[%s0 + $0x1c] sm:$0xf]
  %v38 = vunpack.c.l.bf16 %v30
  %v39 = vunpack.c.l.bf16 %v31
  %v40 = vunpack.c.l.bf16 %v32
  %v41 = vunpack.c.l.bf16 %v33
  %v42 = vunpack.c.l.bf16 %v34
  %v43 = vunpack.c.l.bf16 %v35
  %v44 = vunpack.c.l.bf16 %v36
  %v45 = vunpack.c.l.bf16 %v37
  %v47 = vlaneseq
  %v48 = vshrl.u32 %v47, 7
  %v49 = vsub.s32 0, %v48
  %v50 = vrot.slane %v26, %v49
  %v52 = vmul.f32 %v38, %v50
  %v53 = vmul.f32 %v39, %v50
  %v54 = vmul.f32 %v40, %v50
  %v55 = vmul.f32 %v41, %v50
  %v56 = vmul.f32 %v42, %v50
  %v57 = vmul.f32 %v43, %v50
  %v58 = vmul.f32 %v44, %v50
  %v59 = vmul.f32 %v45, %v50
  %v61 = vlaneseq
  %v62 = vshrl.u32 %v61, 7
  %v63 = vsub.s32 0, %v62
  %v64 = vrot.slane %v29, %v63
  %v66 = vadd.f32 %v52, %v64
  %v67 = vadd.f32 %v53, %v64
  %v68 = vadd.f32 %v54, %v64
  %v69 = vadd.f32 %v55, %v64
  %v70 = vadd.f32 %v56, %v64
  %v71 = vadd.f32 %v57, %v64
  %v72 = vadd.f32 %v58, %v64
  %v73 = vadd.f32 %v59, %v64
  %v74 = vmax.f32 %v66, 0.0
  %v75 = vmax.f32 %v67, 0.0
  %v76 = vmax.f32 %v68, 0.0
  %v77 = vmax.f32 %v69, 0.0
  %v78 = vmax.f32 %v70, 0.0
  %v79 = vmax.f32 %v71, 0.0
  %v80 = vmax.f32 %v72, 0.0
  %v81 = vmax.f32 %v73, 0.0
  %v82 = vpack.c.bf16 %v75, %v74
  %v83 = vpack.c.bf16 %v77, %v76
  %v84 = vpack.c.bf16 %v79, %v78
  %v85 = vpack.c.bf16 %v81, %v80
  %v90 = vunpack.c.l.b16 %v82
  %v91 = vunpack.c.h.b16 %v82
  %v92 = vunpack.c.l.b16 %v83
  %v93 = vunpack.c.h.b16 %v83
  %v94 = vunpack.c.l.b16 %v84
  %v95 = vunpack.c.h.b16 %v84
  %v96 = vunpack.c.l.b16 %v85
  %v97 = vunpack.c.h.b16 %v85
  %v98 = vpack.c.b16 %v90, %v90
  %v99 = vpack.c.b16 %v91, %v91
  %v100 = vpack.c.b16 %v92, %v92
  %v101 = vpack.c.b16 %v93, %v93
  %v102 = vpack.c.b16 %v94, %v94
  %v103 = vpack.c.b16 %v95, %v95
  %v104 = vpack.c.b16 %v96, %v96
  %v105 = vpack.c.b16 %v97, %v97
  %114 = vst [vmem:[%s4] sm:$0xf] %v98
  %115 = vst [vmem:[%s4 + $0x4] sm:$0xf] %v99
  %116 = vst [vmem:[%s4 + $0x8] sm:$0xf] %v100
  %117 = vst [vmem:[%s4 + $0xc] sm:$0xf] %v101
  %118 = vst [vmem:[%s4 + $0x10] sm:$0xf] %v102
  %119 = vst [vmem:[%s4 + $0x14] sm:$0xf] %v103
  %120 = vst [vmem:[%s4 + $0x18] sm:$0xf] %v104
  %121 = vst [vmem:[%s4 + $0x1c] sm:$0xf] %v105
  // Predicated region
  $region18: #{cvae2_pool_forward.24} parent=0 // pred_check
    _
  $region19: #{cvae2_pool_forward.24} parent=0 // pred_check_branch
    %123 = sbr.rel (0) target = $region21
  $region20: #{cvae2_pool_forward.24} parent=0 // pred_region
    _
  $region21: #{cvae2_pool_forward.24} parent=0 // pred_fallthru
    _
  // Predicated region
  $region22: #{cvae2_pool_forward.24} parent=0 // pred_check
    _
  $region23: #{cvae2_pool_forward.24} parent=0 // pred_check_branch
    %125 = sbr.rel (0) target = $region25
  $region24: #{cvae2_pool_forward.24} parent=0 // pred_region
    _
  $region25: #{cvae2_pool_forward.24} parent=0 // pred_fallthru
    _

// kernel: cvae2_pool_forward.23
$region0: #{cvae2_pool_forward.23}
  #allocation0 [shape = 'u32[]', space=smem, size = 0x4, offset = 0x4, fixed_abs, tag = 'smem constant byte address 0x4 - core index']
  #allocation1 [shape = 'u32[144,128]{1,0:T(1,128)}', space=vmem, size = 0x12000, scoped, tag = 'internal scratch']
  %s0 = inlined_call_operand.vmem [shape: bf16[64,1152], index: 0, kind: input, shape index: {}]
  %s1 = inlined_call_operand.vmem [shape: bf16[1152,128], index: 1, kind: input, shape index: {}]
  %s2 = inlined_call_operand.vmem [shape: bf16[64,128], index: 2, kind: output, shape index: {0}]
  %s3 = inlined_call_operand.vmem [shape: f32[1,2,128], index: 3, kind: output, shape index: {1}]
  %4 = xla_tuple %s2, %s3
  %s5 = sld [smem:[#allocation0]]
  $region26: #{cvae2_pool_forward.23} parent=0
    _
  %s7 = ssub.s32 1, %s5
  %s8 = scalar_select 0, %s7, %s5
  // Predicated region
  $region2: #{cvae2_pool_forward.23} parent=0 // pred_check
    _
  $region3: #{cvae2_pool_forward.23} parent=0 // pred_check_branch
    %10 = sbr.rel (0) target = $region5
  $region4: #{cvae2_pool_forward.23} parent=0 // pred_region
    _
  $region5: #{cvae2_pool_forward.23} parent=0 // pred_fallthru
    _
  // Predicated region
  $region6: #{cvae2_pool_forward.23} parent=0 // pred_check
    _
  $region7: #{cvae2_pool_forward.23} parent=0 // pred_check_branch
    %12 = sbr.rel (0) target = $region9
  $region8: #{cvae2_pool_forward.23} parent=0 // pred_region
    _
  $region9: #{cvae2_pool_forward.23} parent=0 // pred_fallthru
    _
  %v14 = vld [vmem:[%s0] sm:$0xff]
  %v15 = vld [vmem:[%s0 + $0x8] sm:$0xff]
  %v16 = vld [vmem:[%s0 + $0x10] sm:$0xff]
  %v17 = vld [vmem:[%s0 + $0x18] sm:$0xff]
  %v18 = vld [vmem:[%s0 + $0x20] sm:$0xf]
  %v19 = vld [vmem:[%s0 + $0x24] sm:$0xff]
  %v20 = vld [vmem:[%s0 + $0x2c] sm:$0xff]
  %v21 = vld [vmem:[%s0 + $0x34] sm:$0xff]
  %v22 = vld [vmem:[%s0 + $0x3c] sm:$0xff]
  %v23 = vld [vmem:[%s0 + $0x44] sm:$0xf]
  %v24 = vld [vmem:[%s0 + $0x48] sm:$0xff]
  %v25 = vld [vmem:[%s0 + $0x50] sm:$0xff]
  %v26 = vld [vmem:[%s0 + $0x58] sm:$0xff]
  %v27 = vld [vmem:[%s0 + $0x60] sm:$0xff]
  %v28 = vld [vmem:[%s0 + $0x68] sm:$0xf]
  %v29 = vld [vmem:[%s0 + $0x6c] sm:$0xff]
  %v30 = vld [vmem:[%s0 + $0x74] sm:$0xff]
  %v31 = vld [vmem:[%s0 + $0x7c] sm:$0xff]
  %v32 = vld [vmem:[%s0 + $0x84] sm:$0xff]
  %v33 = vld [vmem:[%s0 + $0x8c] sm:$0xf]
  %v34 = vld [vmem:[%s0 + $0x90] sm:$0xff]
  %v35 = vld [vmem:[%s0 + $0x98] sm:$0xff]
  %v36 = vld [vmem:[%s0 + $0xa0] sm:$0xff]
  %v37 = vld [vmem:[%s0 + $0xa8] sm:$0xff]
  %v38 = vld [vmem:[%s0 + $0xb0] sm:$0xf]
  %v39 = vld [vmem:[%s0 + $0xb4] sm:$0xff]
  %v40 = vld [vmem:[%s0 + $0xbc] sm:$0xff]
  %v41 = vld [vmem:[%s0 + $0xc4] sm:$0xff]
  %v42 = vld [vmem:[%s0 + $0xcc] sm:$0xff]
  %v43 = vld [vmem:[%s0 + $0xd4] sm:$0xf]
  %v44 = vld [vmem:[%s0 + $0xd8] sm:$0xff]
  %v45 = vld [vmem:[%s0 + $0xe0] sm:$0xff]
  %v46 = vld [vmem:[%s0 + $0xe8] sm:$0xff]
  %v47 = vld [vmem:[%s0 + $0xf0] sm:$0xff]
  %v48 = vld [vmem:[%s0 + $0xf8] sm:$0xf]
  %v49 = vld [vmem:[%s0 + $0xfc] sm:$0xff]
  %v50 = vld [vmem:[%s0 + $0x104] sm:$0xff]
  %v51 = vld [vmem:[%s0 + $0x10c] sm:$0xff]
  %v52 = vld [vmem:[%s0 + $0x114] sm:$0xff]
  %v53 = vld [vmem:[%s0 + $0x11c] sm:$0xf]
  %v54 = vld [vmem:[%s1] sm:$0xf]
  %v55 = vld [vmem:[%s1 + $0x4] sm:$0xf]
  %v56 = vld [vmem:[%s1 + $0x8] sm:$0xf]
  %v57 = vld [vmem:[%s1 + $0xc] sm:$0xf]
  %v58 = vld [vmem:[%s1 + $0x10] sm:$0xf]
  %v59 = vld [vmem:[%s1 + $0x14] sm:$0xf]
  %v60 = vld [vmem:[%s1 + $0x18] sm:$0xf]
  %v61 = vld [vmem:[%s1 + $0x1c] sm:$0xf]
  %v62 = vld [vmem:[%s1 + $0x20] sm:$0xf]
  %v63 = vld [vmem:[%s1 + $0x24] sm:$0xf]
  %v64 = vld [vmem:[%s1 + $0x28] sm:$0xf]
  %v65 = vld [vmem:[%s1 + $0x2c] sm:$0xf]
  %v66 = vld [vmem:[%s1 + $0x30] sm:$0xf]
  %v67 = vld [vmem:[%s1 + $0x34] sm:$0xf]
  %v68 = vld [vmem:[%s1 + $0x38] sm:$0xf]
  %v69 = vld [vmem:[%s1 + $0x3c] sm:$0xf]
  %v70 = vld [vmem:[%s1 + $0x40] sm:$0xf]
  %v71 = vld [vmem:[%s1 + $0x44] sm:$0xf]
  %v72 = vld [vmem:[%s1 + $0x48] sm:$0xf]
  %v73 = vld [vmem:[%s1 + $0x4c] sm:$0xf]
  %v74 = vld [vmem:[%s1 + $0x50] sm:$0xf]
  %v75 = vld [vmem:[%s1 + $0x54] sm:$0xf]
  %v76 = vld [vmem:[%s1 + $0x58] sm:$0xf]
  %v77 = vld [vmem:[%s1 + $0x5c] sm:$0xf]
  %v78 = vld [vmem:[%s1 + $0x60] sm:$0xf]
  %v79 = vld [vmem:[%s1 + $0x64] sm:$0xf]
  %v80 = vld [vmem:[%s1 + $0x68] sm:$0xf]
  %v81 = vld [vmem:[%s1 + $0x6c] sm:$0xf]
  %v82 = vld [vmem:[%s1 + $0x70] sm:$0xf]
  %v83 = vld [vmem:[%s1 + $0x74] sm:$0xf]
  %v84 = vld [vmem:[%s1 + $0x78] sm:$0xf]
  %v85 = vld [vmem:[%s1 + $0x7c] sm:$0xf]
  %v86 = vld [vmem:[%s1 + $0x80] sm:$0xf]
  %v87 = vld [vmem:[%s1 + $0x84] sm:$0xf]
  %v88 = vld [vmem:[%s1 + $0x88] sm:$0xf]
  %v89 = vld [vmem:[%s1 + $0x8c] sm:$0xf]
  %v90 = vld [vmem:[%s1 + $0x90] sm:$0xf]
  %v91 = vld [vmem:[%s1 + $0x94] sm:$0xf]
  %v92 = vld [vmem:[%s1 + $0x98] sm:$0xf]
  %v93 = vld [vmem:[%s1 + $0x9c] sm:$0xf]
  %v94 = vld [vmem:[%s1 + $0xa0] sm:$0xf]
  %v95 = vld [vmem:[%s1 + $0xa4] sm:$0xf]
  %v96 = vld [vmem:[%s1 + $0xa8] sm:$0xf]
  %v97 = vld [vmem:[%s1 + $0xac] sm:$0xf]
  %v98 = vld [vmem:[%s1 + $0xb0] sm:$0xf]
  %v99 = vld [vmem:[%s1 + $0xb4] sm:$0xf]
  %v100 = vld [vmem:[%s1 + $0xb8] sm:$0xf]
  %v101 = vld [vmem:[%s1 + $0xbc] sm:$0xf]
  %v102 = vld [vmem:[%s1 + $0xc0] sm:$0xf]
  %v103 = vld [vmem:[%s1 + $0xc4] sm:$0xf]
  %v104 = vld [vmem:[%s1 + $0xc8] sm:$0xf]
  %v105 = vld [vmem:[%s1 + $0xcc] sm:$0xf]
  %v106 = vld [vmem:[%s1 + $0xd0] sm:$0xf]
  %v107 = vld [vmem:[%s1 + $0xd4] sm:$0xf]
  %v108 = vld [vmem:[%s1 + $0xd8] sm:$0xf]
  %v109 = vld [vmem:[%s1 + $0xdc] sm:$0xf]
  %v110 = vld [vmem:[%s1 + $0xe0] sm:$0xf]
  %v111 = vld [vmem:[%s1 + $0xe4] sm:$0xf]
  %v112 = vld [vmem:[%s1 + $0xe8] sm:$0xf]
  %v113 = vld [vmem:[%s1 + $0xec] sm:$0xf]
  %v114 = vld [vmem:[%s1 + $0xf0] sm:$0xf]
  %v115 = vld [vmem:[%s1 + $0xf4] sm:$0xf]
  %v116 = vld [vmem:[%s1 + $0xf8] sm:$0xf]
  %v117 = vld [vmem:[%s1 + $0xfc] sm:$0xf]
  %v118 = vld [vmem:[%s1 + $0x100] sm:$0xf]
  %v119 = vld [vmem:[%s1 + $0x104] sm:$0xf]
  %v120 = vld [vmem:[%s1 + $0x108] sm:$0xf]
  %v121 = vld [vmem:[%s1 + $0x10c] sm:$0xf]
  %v122 = vld [vmem:[%s1 + $0x110] sm:$0xf]
  %v123 = vld [vmem:[%s1 + $0x114] sm:$0xf]
  %v124 = vld [vmem:[%s1 + $0x118] sm:$0xf]
  %v125 = vld [vmem:[%s1 + $0x11c] sm:$0xf]
  %v126 = vld [vmem:[%s1 + $0x120] sm:$0xf]
  %v127 = vld [vmem:[%s1 + $0x124] sm:$0xf]
  %v128 = vld [vmem:[%s1 + $0x128] sm:$0xf]
  %v129 = vld [vmem:[%s1 + $0x12c] sm:$0xf]
  %v130 = vld [vmem:[%s1 + $0x130] sm:$0xf]
  %v131 = vld [vmem:[%s1 + $0x134] sm:$0xf]
  %v132 = vld [vmem:[%s1 + $0x138] sm:$0xf]
  %v133 = vld [vmem:[%s1 + $0x13c] sm:$0xf]
  %v134 = vld [vmem:[%s1 + $0x140] sm:$0xf]
  %v135 = vld [vmem:[%s1 + $0x144] sm:$0xf]
  %v136 = vld [vmem:[%s1 + $0x148] sm:$0xf]
  %v137 = vld [vmem:[%s1 + $0x14c] sm:$0xf]
  %v138 = vld [vmem:[%s1 + $0x150] sm:$0xf]
  %v139 = vld [vmem:[%s1 + $0x154] sm:$0xf]
  %v140 = vld [vmem:[%s1 + $0x158] sm:$0xf]
  %v141 = vld [vmem:[%s1 + $0x15c] sm:$0xf]
  %v142 = vld [vmem:[%s1 + $0x160] sm:$0xf]
  %v143 = vld [vmem:[%s1 + $0x164] sm:$0xf]
  %v144 = vld [vmem:[%s1 + $0x168] sm:$0xf]
  %v145 = vld [vmem:[%s1 + $0x16c] sm:$0xf]
  %v146 = vld [vmem:[%s1 + $0x170] sm:$0xf]
  %v147 = vld [vmem:[%s1 + $0x174] sm:$0xf]
  %v148 = vld [vmem:[%s1 + $0x178] sm:$0xf]
  %v149 = vld [vmem:[%s1 + $0x17c] sm:$0xf]
  %v150 = vld [vmem:[%s1 + $0x180] sm:$0xf]
  %v151 = vld [vmem:[%s1 + $0x184] sm:$0xf]
  %v152 = vld [vmem:[%s1 + $0x188] sm:$0xf]
  %v153 = vld [vmem:[%s1 + $0x18c] sm:$0xf]
  %v154 = vld [vmem:[%s1 + $0x190] sm:$0xf]
  %v155 = vld [vmem:[%s1 + $0x194] sm:$0xf]
  %v156 = vld [vmem:[%s1 + $0x198] sm:$0xf]
  %v157 = vld [vmem:[%s1 + $0x19c] sm:$0xf]
  %v158 = vld [vmem:[%s1 + $0x1a0] sm:$0xf]
  %v159 = vld [vmem:[%s1 + $0x1a4] sm:$0xf]
  %v160 = vld [vmem:[%s1 + $0x1a8] sm:$0xf]
  %v161 = vld [vmem:[%s1 + $0x1ac] sm:$0xf]
  %v162 = vld [vmem:[%s1 + $0x1b0] sm:$0xf]
  %v163 = vld [vmem:[%s1 + $0x1b4] sm:$0xf]
  %v164 = vld [vmem:[%s1 + $0x1b8] sm:$0xf]
  %v165 = vld [vmem:[%s1 + $0x1bc] sm:$0xf]
  %v166 = vld [vmem:[%s1 + $0x1c0] sm:$0xf]
  %v167 = vld [vmem:[%s1 + $0x1c4] sm:$0xf]
  %v168 = vld [vmem:[%s1 + $0x1c8] sm:$0xf]
  %v169 = vld [vmem:[%s1 + $0x1cc] sm:$0xf]
  %v170 = vld [vmem:[%s1 + $0x1d0] sm:$0xf]
  %v171 = vld [vmem:[%s1 + $0x1d4] sm:$0xf]
  %v172 = vld [vmem:[%s1 + $0x1d8] sm:$0xf]
  %v173 = vld [vmem:[%s1 + $0x1dc] sm:$0xf]
  %v174 = vld [vmem:[%s1 + $0x1e0] sm:$0xf]
  %v175 = vld [vmem:[%s1 + $0x1e4] sm:$0xf]
  %v176 = vld [vmem:[%s1 + $0x1e8] sm:$0xf]
  %v177 = vld [vmem:[%s1 + $0x1ec] sm:$0xf]
  %v178 = vld [vmem:[%s1 + $0x1f0] sm:$0xf]
  %v179 = vld [vmem:[%s1 + $0x1f4] sm:$0xf]
  %v180 = vld [vmem:[%s1 + $0x1f8] sm:$0xf]
  %v181 = vld [vmem:[%s1 + $0x1fc] sm:$0xf]
  %v182 = vld [vmem:[%s1 + $0x200] sm:$0xf]
  %v183 = vld [vmem:[%s1 + $0x204] sm:$0xf]
  %v184 = vld [vmem:[%s1 + $0x208] sm:$0xf]
  %v185 = vld [vmem:[%s1 + $0x20c] sm:$0xf]
  %v186 = vld [vmem:[%s1 + $0x210] sm:$0xf]
  %v187 = vld [vmem:[%s1 + $0x214] sm:$0xf]
  %v188 = vld [vmem:[%s1 + $0x218] sm:$0xf]
  %v189 = vld [vmem:[%s1 + $0x21c] sm:$0xf]
  %v190 = vld [vmem:[%s1 + $0x220] sm:$0xf]
  %v191 = vld [vmem:[%s1 + $0x224] sm:$0xf]
  %v192 = vld [vmem:[%s1 + $0x228] sm:$0xf]
  %v193 = vld [vmem:[%s1 + $0x22c] sm:$0xf]
  %v194 = vld [vmem:[%s1 + $0x230] sm:$0xf]
  %v195 = vld [vmem:[%s1 + $0x234] sm:$0xf]
  %v196 = vld [vmem:[%s1 + $0x238] sm:$0xf]
  %v197 = vld [vmem:[%s1 + $0x23c] sm:$0xf]
  %v238 = vunpack.c.l.b16 %v14
  %v239 = vunpack.c.h.b16 %v14
  %v240 = vunpack.c.l.b16 %v15
  %v241 = vunpack.c.h.b16 %v15
  %v242 = vunpack.c.l.b16 %v16
  %v243 = vunpack.c.h.b16 %v16
  %v244 = vunpack.c.l.b16 %v17
  %v245 = vunpack.c.h.b16 %v17
  %v246 = vunpack.c.l.b16 %v18
  %v247 = vunpack.c.l.b16 %v19
  %v248 = vunpack.c.h.b16 %v19
  %v249 = vunpack.c.l.b16 %v20
  %v250 = vunpack.c.h.b16 %v20
  %v251 = vunpack.c.l.b16 %v21
  %v252 = vunpack.c.h.b16 %v21
  %v253 = vunpack.c.l.b16 %v22
  %v254 = vunpack.c.h.b16 %v22
  %v255 = vunpack.c.l.b16 %v23
  %v256 = vunpack.c.l.b16 %v24
  %v257 = vunpack.c.h.b16 %v24
  %v258 = vunpack.c.l.b16 %v25
  %v259 = vunpack.c.h.b16 %v25
  %v260 = vunpack.c.l.b16 %v26
  %v261 = vunpack.c.h.b16 %v26
  %v262 = vunpack.c.l.b16 %v27
  %v263 = vunpack.c.h.b16 %v27
  %v264 = vunpack.c.l.b16 %v28
  %v265 = vunpack.c.l.b16 %v29
  %v266 = vunpack.c.h.b16 %v29
  %v267 = vunpack.c.l.b16 %v30
  %v268 = vunpack.c.h.b16 %v30
  %v269 = vunpack.c.l.b16 %v31
  %v270 = vunpack.c.h.b16 %v31
  %v271 = vunpack.c.l.b16 %v32
  %v272 = vunpack.c.h.b16 %v32
  %v273 = vunpack.c.l.b16 %v33
  %v274 = vunpack.c.l.b16 %v34
  %v275 = vunpack.c.h.b16 %v34
  %v276 = vunpack.c.l.b16 %v35
  %v277 = vunpack.c.h.b16 %v35
  %v278 = vunpack.c.l.b16 %v36
  %v279 = vunpack.c.h.b16 %v36
  %v280 = vunpack.c.l.b16 %v37
  %v281 = vunpack.c.h.b16 %v37
  %v282 = vunpack.c.l.b16 %v38
  %v283 = vunpack.c.l.b16 %v39
  %v284 = vunpack.c.h.b16 %v39
  %v285 = vunpack.c.l.b16 %v40
  %v286 = vunpack.c.h.b16 %v40
  %v287 = vunpack.c.l.b16 %v41
  %v288 = vunpack.c.h.b16 %v41
  %v289 = vunpack.c.l.b16 %v42
  %v290 = vunpack.c.h.b16 %v42
  %v291 = vunpack.c.l.b16 %v43
  %v292 = vunpack.c.l.b16 %v44
  %v293 = vunpack.c.h.b16 %v44
  %v294 = vunpack.c.l.b16 %v45
  %v295 = vunpack.c.h.b16 %v45
  %v296 = vunpack.c.l.b16 %v46
  %v297 = vunpack.c.h.b16 %v46
  %v298 = vunpack.c.l.b16 %v47
  %v299 = vunpack.c.h.b16 %v47
  %v300 = vunpack.c.l.b16 %v48
  %v301 = vunpack.c.l.b16 %v49
  %v302 = vunpack.c.h.b16 %v49
  %v303 = vunpack.c.l.b16 %v50
  %v304 = vunpack.c.h.b16 %v50
  %v305 = vunpack.c.l.b16 %v51
  %v306 = vunpack.c.h.b16 %v51
  %v307 = vunpack.c.l.b16 %v52
  %v308 = vunpack.c.h.b16 %v52
  %v309 = vunpack.c.l.b16 %v53
  %v310 = vpack.c.b16 %v247, %v238
  %v311 = vpack.c.b16 %v248, %v239
  %v312 = vpack.c.b16 %v249, %v240
  %v313 = vpack.c.b16 %v250, %v241
  %v314 = vpack.c.b16 %v251, %v242
  %v315 = vpack.c.b16 %v252, %v243
  %v316 = vpack.c.b16 %v253, %v244
  %v317 = vpack.c.b16 %v254, %v245
  %v318 = vpack.c.b16 %v255, %v246
  %v319 = vpack.c.b16 %v265, %v256
  %v320 = vpack.c.b16 %v266, %v257
  %v321 = vpack.c.b16 %v267, %v258
  %v322 = vpack.c.b16 %v268, %v259
  %v323 = vpack.c.b16 %v269, %v260
  %v324 = vpack.c.b16 %v270, %v261
  %v325 = vpack.c.b16 %v271, %v262
  %v326 = vpack.c.b16 %v272, %v263
  %v327 = vpack.c.b16 %v273, %v264
  %v328 = vpack.c.b16 %v283, %v274
  %v329 = vpack.c.b16 %v284, %v275
  %v330 = vpack.c.b16 %v285, %v276
  %v331 = vpack.c.b16 %v286, %v277
  %v332 = vpack.c.b16 %v287, %v278
  %v333 = vpack.c.b16 %v288, %v279
  %v334 = vpack.c.b16 %v289, %v280
  %v335 = vpack.c.b16 %v290, %v281
  %v336 = vpack.c.b16 %v291, %v282
  %v337 = vpack.c.b16 %v301, %v292
  %v338 = vpack.c.b16 %v302, %v293
  %v339 = vpack.c.b16 %v303, %v294
  %v340 = vpack.c.b16 %v304, %v295
  %v341 = vpack.c.b16 %v305, %v296
  %v342 = vpack.c.b16 %v306, %v297
  %v343 = vpack.c.b16 %v307, %v298
  %v344 = vpack.c.b16 %v308, %v299
  %v345 = vpack.c.b16 %v309, %v300
  %v526 = vunpack.c.l.b16 %v54
  %v527 = vunpack.c.l.b16 %v55
  %v528 = vunpack.c.l.b16 %v56
  %v529 = vunpack.c.l.b16 %v57
  %v530 = vunpack.c.l.b16 %v58
  %v531 = vunpack.c.l.b16 %v59
  %v532 = vunpack.c.l.b16 %v60
  %v533 = vunpack.c.l.b16 %v61
  %v534 = vunpack.c.l.b16 %v62
  %v535 = vunpack.c.l.b16 %v63
  %v536 = vunpack.c.l.b16 %v64
  %v537 = vunpack.c.l.b16 %v65
  %v538 = vunpack.c.l.b16 %v66
  %v539 = vunpack.c.l.b16 %v67
  %v540 = vunpack.c.l.b16 %v68
  %v541 = vunpack.c.l.b16 %v69
  %v542 = vunpack.c.l.b16 %v70
  %v543 = vunpack.c.l.b16 %v71
  %v544 = vunpack.c.l.b16 %v72
  %v545 = vunpack.c.l.b16 %v73
  %v546 = vunpack.c.l.b16 %v74
  %v547 = vunpack.c.l.b16 %v75
  %v548 = vunpack.c.l.b16 %v76
  %v549 = vunpack.c.l.b16 %v77
  %v550 = vunpack.c.l.b16 %v78
  %v551 = vunpack.c.l.b16 %v79
  %v552 = vunpack.c.l.b16 %v80
  %v553 = vunpack.c.l.b16 %v81
  %v554 = vunpack.c.l.b16 %v82
  %v555 = vunpack.c.l.b16 %v83
  %v556 = vunpack.c.l.b16 %v84
  %v557 = vunpack.c.l.b16 %v85
  %v558 = vunpack.c.l.b16 %v86
  %v559 = vunpack.c.l.b16 %v87
  %v560 = vunpack.c.l.b16 %v88
  %v561 = vunpack.c.l.b16 %v89
  %v562 = vunpack.c.l.b16 %v90
  %v563 = vunpack.c.l.b16 %v91
  %v564 = vunpack.c.l.b16 %v92
  %v565 = vunpack.c.l.b16 %v93
  %v566 = vunpack.c.l.b16 %v94
  %v567 = vunpack.c.l.b16 %v95
  %v568 = vunpack.c.l.b16 %v96
  %v569 = vunpack.c.l.b16 %v97
  %v570 = vunpack.c.l.b16 %v98
  %v571 = vunpack.c.l.b16 %v99
  %v572 = vunpack.c.l.b16 %v100
  %v573 = vunpack.c.l.b16 %v101
  %v574 = vunpack.c.l.b16 %v102
  %v575 = vunpack.c.l.b16 %v103
  %v576 = vunpack.c.l.b16 %v104
  %v577 = vunpack.c.l.b16 %v105
  %v578 = vunpack.c.l.b16 %v106
  %v579 = vunpack.c.l.b16 %v107
  %v580 = vunpack.c.l.b16 %v108
  %v581 = vunpack.c.l.b16 %v109
  %v582 = vunpack.c.l.b16 %v110
  %v583 = vunpack.c.l.b16 %v111
  %v584 = vunpack.c.l.b16 %v112
  %v585 = vunpack.c.l.b16 %v113
  %v586 = vunpack.c.l.b16 %v114
  %v587 = vunpack.c.l.b16 %v115
  %v588 = vunpack.c.l.b16 %v116
  %v589 = vunpack.c.l.b16 %v117
  %v590 = vunpack.c.l.b16 %v118
  %v591 = vunpack.c.l.b16 %v119
  %v592 = vunpack.c.l.b16 %v120
  %v593 = vunpack.c.l.b16 %v121
  %v594 = vunpack.c.l.b16 %v122
  %v595 = vunpack.c.l.b16 %v123
  %v596 = vunpack.c.l.b16 %v124
  %v597 = vunpack.c.l.b16 %v125
  %v598 = vunpack.c.l.b16 %v126
  %v599 = vunpack.c.l.b16 %v127
  %v600 = vunpack.c.l.b16 %v128
  %v601 = vunpack.c.l.b16 %v129
  %v602 = vunpack.c.l.b16 %v130
  %v603 = vunpack.c.l.b16 %v131
  %v604 = vunpack.c.l.b16 %v132
  %v605 = vunpack.c.l.b16 %v133
  %v606 = vunpack.c.l.b16 %v134
  %v607 = vunpack.c.l.b16 %v135
  %v608 = vunpack.c.l.b16 %v136
  %v609 = vunpack.c.l.b16 %v137
  %v610 = vunpack.c.l.b16 %v138
  %v611 = vunpack.c.l.b16 %v139
  %v612 = vunpack.c.l.b16 %v140
  %v613 = vunpack.c.l.b16 %v141
  %v614 = vunpack.c.l.b16 %v142
  %v615 = vunpack.c.l.b16 %v143
  %v616 = vunpack.c.l.b16 %v144
  %v617 = vunpack.c.l.b16 %v145
  %v618 = vunpack.c.l.b16 %v146
  %v619 = vunpack.c.l.b16 %v147
  %v620 = vunpack.c.l.b16 %v148
  %v621 = vunpack.c.l.b16 %v149
  %v622 = vunpack.c.l.b16 %v150
  %v623 = vunpack.c.l.b16 %v151
  %v624 = vunpack.c.l.b16 %v152
  %v625 = vunpack.c.l.b16 %v153
  %v626 = vunpack.c.l.b16 %v154
  %v627 = vunpack.c.l.b16 %v155
  %v628 = vunpack.c.l.b16 %v156
  %v629 = vunpack.c.l.b16 %v157
  %v630 = vunpack.c.l.b16 %v158
  %v631 = vunpack.c.l.b16 %v159
  %v632 = vunpack.c.l.b16 %v160
  %v633 = vunpack.c.l.b16 %v161
  %v634 = vunpack.c.l.b16 %v162
  %v635 = vunpack.c.l.b16 %v163
  %v636 = vunpack.c.l.b16 %v164
  %v637 = vunpack.c.l.b16 %v165
  %v638 = vunpack.c.l.b16 %v166
  %v639 = vunpack.c.l.b16 %v167
  %v640 = vunpack.c.l.b16 %v168
  %v641 = vunpack.c.l.b16 %v169
  %v642 = vunpack.c.l.b16 %v170
  %v643 = vunpack.c.l.b16 %v171
  %v644 = vunpack.c.l.b16 %v172
  %v645 = vunpack.c.l.b16 %v173
  %v646 = vunpack.c.l.b16 %v174
  %v647 = vunpack.c.l.b16 %v175
  %v648 = vunpack.c.l.b16 %v176
  %v649 = vunpack.c.l.b16 %v177
  %v650 = vunpack.c.l.b16 %v178
  %v651 = vunpack.c.l.b16 %v179
  %v652 = vunpack.c.l.b16 %v180
  %v653 = vunpack.c.l.b16 %v181
  %v654 = vunpack.c.l.b16 %v182
  %v655 = vunpack.c.l.b16 %v183
  %v656 = vunpack.c.l.b16 %v184
  %v657 = vunpack.c.l.b16 %v185
  %v658 = vunpack.c.l.b16 %v186
  %v659 = vunpack.c.l.b16 %v187
  %v660 = vunpack.c.l.b16 %v188
  %v661 = vunpack.c.l.b16 %v189
  %v662 = vunpack.c.l.b16 %v190
  %v663 = vunpack.c.l.b16 %v191
  %v664 = vunpack.c.l.b16 %v192
  %v665 = vunpack.c.l.b16 %v193
  %v666 = vunpack.c.l.b16 %v194
  %v667 = vunpack.c.l.b16 %v195
  %v668 = vunpack.c.l.b16 %v196
  %v669 = vunpack.c.l.b16 %v197
  %v670 = vpack.c.b16 %v527, %v526
  %v671 = vpack.c.b16 %v529, %v528
  %v672 = vpack.c.b16 %v531, %v530
  %v673 = vpack.c.b16 %v533, %v532
  %v674 = vpack.c.b16 %v535, %v534
  %v675 = vpack.c.b16 %v537, %v536
  %v676 = vpack.c.b16 %v539, %v538
  %v677 = vpack.c.b16 %v541, %v540
  %v678 = vpack.c.b16 %v543, %v542
  %v679 = vpack.c.b16 %v545, %v544
  %v680 = vpack.c.b16 %v547, %v546
  %v681 = vpack.c.b16 %v549, %v548
  %v682 = vpack.c.b16 %v551, %v550
  %v683 = vpack.c.b16 %v553, %v552
  %v684 = vpack.c.b16 %v555, %v554
  %v685 = vpack.c.b16 %v557, %v556
  %v686 = vpack.c.b16 %v559, %v558
  %v687 = vpack.c.b16 %v561, %v560
  %v688 = vpack.c.b16 %v563, %v562
  %v689 = vpack.c.b16 %v565, %v564
  %v690 = vpack.c.b16 %v567, %v566
  %v691 = vpack.c.b16 %v569, %v568
  %v692 = vpack.c.b16 %v571, %v570
  %v693 = vpack.c.b16 %v573, %v572
  %v694 = vpack.c.b16 %v575, %v574
  %v695 = vpack.c.b16 %v577, %v576
  %v696 = vpack.c.b16 %v579, %v578
  %v697 = vpack.c.b16 %v581, %v580
  %v698 = vpack.c.b16 %v583, %v582
  %v699 = vpack.c.b16 %v585, %v584
  %v700 = vpack.c.b16 %v587, %v586
  %v701 = vpack.c.b16 %v589, %v588
  %v702 = vpack.c.b16 %v591, %v590
  %v703 = vpack.c.b16 %v593, %v592
  %v704 = vpack.c.b16 %v595, %v594
  %v705 = vpack.c.b16 %v597, %v596
  %v706 = vpack.c.b16 %v599, %v598
  %v707 = vpack.c.b16 %v601, %v600
  %v708 = vpack.c.b16 %v603, %v602
  %v709 = vpack.c.b16 %v605, %v604
  %v710 = vpack.c.b16 %v607, %v606
  %v711 = vpack.c.b16 %v609, %v608
  %v712 = vpack.c.b16 %v611, %v610
  %v713 = vpack.c.b16 %v613, %v612
  %v714 = vpack.c.b16 %v615, %v614
  %v715 = vpack.c.b16 %v617, %v616
  %v716 = vpack.c.b16 %v619, %v618
  %v717 = vpack.c.b16 %v621, %v620
  %v718 = vpack.c.b16 %v623, %v622
  %v719 = vpack.c.b16 %v625, %v624
  %v720 = vpack.c.b16 %v627, %v626
  %v721 = vpack.c.b16 %v629, %v628
  %v722 = vpack.c.b16 %v631, %v630
  %v723 = vpack.c.b16 %v633, %v632
  %v724 = vpack.c.b16 %v635, %v634
  %v725 = vpack.c.b16 %v637, %v636
  %v726 = vpack.c.b16 %v639, %v638
  %v727 = vpack.c.b16 %v641, %v640
  %v728 = vpack.c.b16 %v643, %v642
  %v729 = vpack.c.b16 %v645, %v644
  %v730 = vpack.c.b16 %v647, %v646
  %v731 = vpack.c.b16 %v649, %v648
  %v732 = vpack.c.b16 %v651, %v650
  %v733 = vpack.c.b16 %v653, %v652
  %v734 = vpack.c.b16 %v655, %v654
  %v735 = vpack.c.b16 %v657, %v656
  %v736 = vpack.c.b16 %v659, %v658
  %v737 = vpack.c.b16 %v661, %v660
  %v738 = vpack.c.b16 %v663, %v662
  %v739 = vpack.c.b16 %v665, %v664
  %v740 = vpack.c.b16 %v667, %v666
  %v741 = vpack.c.b16 %v669, %v668
  %814 = vmatprep.subr.bf16.mxu0 0
  %815 = vmatpush1.bf16.msra.mxu0 %v670
  %816 = vmatprep.subr.bf16.mxu0 0
  %817 = vmatpush1.bf16.msra.mxu0 %v671
  %818 = vmatprep.subr.bf16.mxu0 0
  %819 = vmatpush1.bf16.msra.mxu0 %v672
  %820 = vmatprep.subr.bf16.mxu0 0
  %821 = vmatpush1.bf16.msra.mxu0 %v673
  %822 = vmatprep.subr.bf16.mxu0 0
  %823 = vmatpush1.bf16.msra.mxu0 %v674
  %824 = vmatprep.subr.bf16.mxu0 0
  %825 = vmatpush1.bf16.msra.mxu0 %v675
  %826 = vmatprep.subr.bf16.mxu0 0
  %827 = vmatpush1.bf16.msra.mxu0 %v676
  %828 = vmatprep.subr.bf16.mxu0 0
  %829 = vmatpush1.bf16.msra.mxu0 %v677
  %830 = vmatprep.subr.bf16.mxu0 0
  %831 = vmatpush1.bf16.msra.mxu0 %v678
  %832 = vmatprep.subr.bf16.mxu0 0
  %833 = vmatpush1.bf16.msra.mxu0 %v679
  %834 = vmatprep.subr.bf16.mxu0 0
  %835 = vmatpush1.bf16.msra.mxu0 %v680
  %836 = vmatprep.subr.bf16.mxu0 0
  %837 = vmatpush1.bf16.msra.mxu0 %v681
  %838 = vmatprep.subr.bf16.mxu0 0
  %839 = vmatpush1.bf16.msra.mxu0 %v682
  %840 = vmatprep.subr.bf16.mxu0 0
  %841 = vmatpush1.bf16.msra.mxu0 %v683
  %842 = vmatprep.subr.bf16.mxu0 0
  %843 = vmatpush1.bf16.msra.mxu0 %v684
  %844 = vmatprep.subr.bf16.mxu0 0
  %845 = vmatpush1.bf16.msra.mxu0 %v685
  %846 = vmatprep.mubr.bf16.mxu0 %v311
  %847 = vmatmul.mubr.bf16.gmra.mrb[0].mxu0 %v310
  %v848 = vpop.f32.mrb[0].mxu0
  %v849 = vadd.f32 0.0, %v848
  %v850 = vpop.f32.mrb[0].mxu0
  %v851 = vpop.f32.mrb[0].mxu0
  %v852 = vadd.f32 0.0, %v851
  %v853 = vpop.f32.mrb[0].mxu0
  %854 = vmatprep.mubr.bf16.mxu0 %v320
  %855 = vmatmul.mubr.bf16.gmra.mrb[0].mxu0 %v319
  %v856 = vpop.f32.mrb[0].mxu0
  %v857 = vadd.f32 0.0, %v856
  %v858 = vpop.f32.mrb[0].mxu0
  %v859 = vpop.f32.mrb[0].mxu0
  %v860 = vadd.f32 0.0, %v859
  %v861 = vpop.f32.mrb[0].mxu0
  %862 = vmatprep.mubr.bf16.mxu0 %v329
  %863 = vmatmul.mubr.bf16.gmra.mrb[0].mxu0 %v328
  %v864 = vpop.f32.mrb[0].mxu0
  %v865 = vadd.f32 0.0, %v864
  %v866 = vpop.f32.mrb[0].mxu0
  %v867 = vpop.f32.mrb[0].mxu0
  %v868 = vadd.f32 0.0, %v867
  %v869 = vpop.f32.mrb[0].mxu0
  %870 = vmatprep.mubr.bf16.mxu0 %v338
  %871 = vmatmul.mubr.bf16.gmra.mrb[0].mxu0 %v337
  %v872 = vpop.f32.mrb[0].mxu0
  %v873 = vadd.f32 0.0, %v872
  %v874 = vpop.f32.mrb[0].mxu0
  %v875 = vpop.f32.mrb[0].mxu0
  %v876 = vadd.f32 0.0, %v875
  %v877 = vpop.f32.mrb[0].mxu0
  %878 = vdwg.mxu0
  %879 = vmatprep.subr.bf16.mxu0 0
  %880 = vmatpush1.bf16.msra.mxu0 %v686
  %881 = vmatprep.subr.bf16.mxu0 0
  %882 = vmatpush1.bf16.msra.mxu0 %v687
  %883 = vmatprep.subr.bf16.mxu0 0
  %884 = vmatpush1.bf16.msra.mxu0 %v688
  %885 = vmatprep.subr.bf16.mxu0 0
  %886 = vmatpush1.bf16.msra.mxu0 %v689
  %887 = vmatprep.subr.bf16.mxu0 0
  %888 = vmatpush1.bf16.msra.mxu0 %v690
  %889 = vmatprep.subr.bf16.mxu0 0
  %890 = vmatpush1.bf16.msra.mxu0 %v691
  %891 = vmatprep.subr.bf16.mxu0 0
  %892 = vmatpush1.bf16.msra.mxu0 %v692
  %893 = vmatprep.subr.bf16.mxu0 0
  %894 = vmatpush1.bf16.msra.mxu0 %v693
  %895 = vmatprep.subr.bf16.mxu0 0
  %896 = vmatpush1.bf16.msra.mxu0 %v694
  %897 = vmatprep.subr.bf16.mxu0 0
  %898 = vmatpush1.bf16.msra.mxu0 %v695
  %899 = vmatprep.subr.bf16.mxu0 0
  %900 = vmatpush1.bf16.msra.mxu0 %v696
  %901 = vmatprep.subr.bf16.mxu0 0
  %902 = vmatpush1.bf16.msra.mxu0 %v697
  %903 = vmatprep.subr.bf16.mxu0 0
  %904 = vmatpush1.bf16.msra.mxu0 %v698
  %905 = vmatprep.subr.bf16.mxu0 0
  %906 = vmatpush1.bf16.msra.mxu0 %v699
  %907 = vmatprep.subr.bf16.mxu0 0
  %908 = vmatpush1.bf16.msra.mxu0 %v700
  %909 = vmatprep.subr.bf16.mxu0 0
  %910 = vmatpush1.bf16.msra.mxu0 %v701
  %911 = vmatprep.mubr.bf16.mxu0 %v313
  %912 = vmatmul.mubr.bf16.gmra.mrb[0].mxu0 %v312
  %v913 = vpop.f32.mrb[0].mxu0
  %v914 = vadd.f32 %v849, %v913
  %v915 = vpop.f32.mrb[0].mxu0
  %v916 = vpop.f32.mrb[0].mxu0
  %v917 = vadd.f32 %v852, %v916
  %v918 = vpop.f32.mrb[0].mxu0
  %919 = vmatprep.mubr.bf16.mxu0 %v322
  %920 = vmatmul.mubr.bf16.gmra.mrb[0].mxu0 %v321
  %v921 = vpop.f32.mrb[0].mxu0
  %v922 = vadd.f32 %v857, %v921
  %v923 = vpop.f32.mrb[0].mxu0
  %v924 = vpop.f32.mrb[0].mxu0
  %v925 = vadd.f32 %v860, %v924
  %v926 = vpop.f32.mrb[0].mxu0
  %927 = vmatprep.mubr.bf16.mxu0 %v331
  %928 = vmatmul.mubr.bf16.gmra.mrb[0].mxu0 %v330
  %v929 = vpop.f32.mrb[0].mxu0
  %v930 = vadd.f32 %v865, %v929
  %v931 = vpop.f32.mrb[0].mxu0
  %v932 = vpop.f32.mrb[0].mxu0
  %v933 = vadd.f32 %v868, %v932
  %v934 = vpop.f32.mrb[0].mxu0
  %935 = vmatprep.mubr.bf16.mxu0 %v340
  %936 = vmatmul.mubr.bf16.gmra.mrb[0].mxu0 %v339
  %v937 = vpop.f32.mrb[0].mxu0
  %v938 = vadd.f32 %v873, %v937
  %v939 = vpop.f32.mrb[0].mxu0
  %v940 = vpop.f32.mrb[0].mxu0
  %v941 = vadd.f32 %v876, %v940
  %v942 = vpop.f32.mrb[0].mxu0
  %943 = vdwg.mxu0
  %944 = vmatprep.subr.bf16.mxu0 0
  %945 = vmatpush1.bf16.msra.mxu0 %v702
  %946 = vmatprep.subr.bf16.mxu0 0
  %947 = vmatpush1.bf16.msra.mxu0 %v703
  %948 = vmatprep.subr.bf16.mxu0 0
  %949 = vmatpush1.bf16.msra.mxu0 %v704
  %950 = vmatprep.subr.bf16.mxu0 0
  %951 = vmatpush1.bf16.msra.mxu0 %v705
  %952 = vmatprep.subr.bf16.mxu0 0
  %953 = vmatpush1.bf16.msra.mxu0 %v706
  %954 = vmatprep.subr.bf16.mxu0 0
  %955 = vmatpush1.bf16.msra.mxu0 %v707
  %956 = vmatprep.subr.bf16.mxu0 0
  %957 = vmatpush1.bf16.msra.mxu0 %v708
  %958 = vmatprep.subr.bf16.mxu0 0
  %959 = vmatpush1.bf16.msra.mxu0 %v709
  %960 = vmatprep.subr.bf16.mxu0 0
  %961 = vmatpush1.bf16.msra.mxu0 %v710
  %962 = vmatprep.subr.bf16.mxu0 0
  %963 = vmatpush1.bf16.msra.mxu0 %v711
  %964 = vmatprep.subr.bf16.mxu0 0
  %965 = vmatpush1.bf16.msra.mxu0 %v712
  %966 = vmatprep.subr.bf16.mxu0 0
  %967 = vmatpush1.bf16.msra.mxu0 %v713
  %968 = vmatprep.subr.bf16.mxu0 0
  %969 = vmatpush1.bf16.msra.mxu0 %v714
  %970 = vmatprep.subr.bf16.mxu0 0
  %971 = vmatpush1.bf16.msra.mxu0 %v715
  %972 = vmatprep.subr.bf16.mxu0 0
  %973 = vmatpush1.bf16.msra.mxu0 %v716
  %974 = vmatprep.subr.bf16.mxu0 0
  %975 = vmatpush1.bf16.msra.mxu0 %v717
  %976 = vmatprep.mubr.bf16.mxu0 %v315
  %977 = vmatmul.mubr.bf16.gmra.mrb[0].mxu0 %v314
  %v978 = vpop.f32.mrb[0].mxu0
  %v979 = vadd.f32 %v914, %v978
  %v980 = vpop.f32.mrb[0].mxu0
  %v981 = vpop.f32.mrb[0].mxu0
  %v982 = vadd.f32 %v917, %v981
  %v983 = vpop.f32.mrb[0].mxu0
  %984 = vmatprep.mubr.bf16.mxu0 %v324
  %985 = vmatmul.mubr.bf16.gmra.mrb[0].mxu0 %v323
  %v986 = vpop.f32.mrb[0].mxu0
  %v987 = vadd.f32 %v922, %v986
  %v988 = vpop.f32.mrb[0].mxu0
  %v989 = vpop.f32.mrb[0].mxu0
  %v990 = vadd.f32 %v925, %v989
  %v991 = vpop.f32.mrb[0].mxu0
  %992 = vmatprep.mubr.bf16.mxu0 %v333
  %993 = vmatmul.mubr.bf16.gmra.mrb[0].mxu0 %v332
  %v994 = vpop.f32.mrb[0].mxu0
  %v995 = vadd.f32 %v930, %v994
  %v996 = vpop.f32.mrb[0].mxu0
  %v997 = vpop.f32.mrb[0].mxu0
  %v998 = vadd.f32 %v933, %v997
  %v999 = vpop.f32.mrb[0].mxu0
  %1000 = vmatprep.mubr.bf16.mxu0 %v342
  %1001 = vmatmul.mubr.bf16.gmra.mrb[0].mxu0 %v341
  %v1002 = vpop.f32.mrb[0].mxu0
  %v1003 = vadd.f32 %v938, %v1002
  %v1004 = vpop.f32.mrb[0].mxu0
  %v1005 = vpop.f32.mrb[0].mxu0
  %v1006 = vadd.f32 %v941, %v1005
  %v1007 = vpop.f32.mrb[0].mxu0
  %1008 = vdwg.mxu0
  %1009 = vmatprep.subr.bf16.mxu0 0
  %1010 = vmatpush1.bf16.msra.mxu0 %v718
  %1011 = vmatprep.subr.bf16.mxu0 0
  %1012 = vmatpush1.bf16.msra.mxu0 %v719
  %1013 = vmatprep.subr.bf16.mxu0 0
  %1014 = vmatpush1.bf16.msra.mxu0 %v720
  %1015 = vmatprep.subr.bf16.mxu0 0
  %1016 = vmatpush1.bf16.msra.mxu0 %v721
  %1017 = vmatprep.subr.bf16.mxu0 0
  %1018 = vmatpush1.bf16.msra.mxu0 %v722
  %1019 = vmatprep.subr.bf16.mxu0 0
  %1020 = vmatpush1.bf16.msra.mxu0 %v723
  %1021 = vmatprep.subr.bf16.mxu0 0
  %1022 = vmatpush1.bf16.msra.mxu0 %v724
  %1023 = vmatprep.subr.bf16.mxu0 0
  %1024 = vmatpush1.bf16.msra.mxu0 %v725
  %1025 = vmatprep.subr.bf16.mxu0 0
  %1026 = vmatpush1.bf16.msra.mxu0 %v726
  %1027 = vmatprep.subr.bf16.mxu0 0
  %1028 = vmatpush1.bf16.msra.mxu0 %v727
  %1029 = vmatprep.subr.bf16.mxu0 0
  %1030 = vmatpush1.bf16.msra.mxu0 %v728
  %1031 = vmatprep.subr.bf16.mxu0 0
  %1032 = vmatpush1.bf16.msra.mxu0 %v729
  %1033 = vmatprep.subr.bf16.mxu0 0
  %1034 = vmatpush1.bf16.msra.mxu0 %v730
  %1035 = vmatprep.subr.bf16.mxu0 0
  %1036 = vmatpush1.bf16.msra.mxu0 %v731
  %1037 = vmatprep.subr.bf16.mxu0 0
  %1038 = vmatpush1.bf16.msra.mxu0 %v732
  %1039 = vmatprep.subr.bf16.mxu0 0
  %1040 = vmatpush1.bf16.msra.mxu0 %v733
  %1041 = vmatprep.mubr.bf16.mxu0 %v317
  %1042 = vmatmul.mubr.bf16.gmra.mrb[0].mxu0 %v316
  %v1043 = vpop.f32.mrb[0].mxu0
  %v1044 = vadd.f32 %v979, %v1043
  %v1045 = vpop.f32.mrb[0].mxu0
  %v1046 = vpop.f32.mrb[0].mxu0
  %v1047 = vadd.f32 %v982, %v1046
  %v1048 = vpop.f32.mrb[0].mxu0
  %1049 = vmatprep.mubr.bf16.mxu0 %v326
  %1050 = vmatmul.mubr.bf16.gmra.mrb[0].mxu0 %v325
  %v1051 = vpop.f32.mrb[0].mxu0
  %v1052 = vadd.f32 %v987, %v1051
  %v1053 = vpop.f32.mrb[0].mxu0
  %v1054 = vpop.f32.mrb[0].mxu0
  %v1055 = vadd.f32 %v990, %v1054
  %v1056 = vpop.f32.mrb[0].mxu0
  %1057 = vmatprep.mubr.bf16.mxu0 %v335
  %1058 = vmatmul.mubr.bf16.gmra.mrb[0].mxu0 %v334
  %v1059 = vpop.f32.mrb[0].mxu0
  %v1060 = vadd.f32 %v995, %v1059
  %v1061 = vpop.f32.mrb[0].mxu0
  %v1062 = vpop.f32.mrb[0].mxu0
  %v1063 = vadd.f32 %v998, %v1062
  %v1064 = vpop.f32.mrb[0].mxu0
  %1065 = vmatprep.mubr.bf16.mxu0 %v344
  %1066 = vmatmul.mubr.bf16.gmra.mrb[0].mxu0 %v343
  %v1067 = vpop.f32.mrb[0].mxu0
  %v1068 = vadd.f32 %v1003, %v1067
  %v1069 = vpop.f32.mrb[0].mxu0
  %v1070 = vpop.f32.mrb[0].mxu0
  %v1071 = vadd.f32 %v1006, %v1070
  %v1072 = vpop.f32.mrb[0].mxu0
  %1073 = vdwg.mxu0
  %1074 = vmatprep.subr.bf16.mxu0 0
  %1075 = vmatpush1.bf16.msra.mxu0 %v734
  %1076 = vmatprep.subr.bf16.mxu0 0
  %1077 = vmatpush1.bf16.msra.mxu0 %v735
  %1078 = vmatprep.subr.bf16.mxu0 0
  %1079 = vmatpush1.bf16.msra.mxu0 %v736
  %1080 = vmatprep.subr.bf16.mxu0 0
  %1081 = vmatpush1.bf16.msra.mxu0 %v737
  %1082 = vmatprep.subr.bf16.mxu0 0
  %1083 = vmatpush1.bf16.msra.mxu0 %v738
  %1084 = vmatprep.subr.bf16.mxu0 0
  %1085 = vmatpush1.bf16.msra.mxu0 %v739
  %1086 = vmatprep.subr.bf16.mxu0 0
  %1087 = vmatpush1.bf16.msra.mxu0 %v740
  %1088 = vmatprep.subr.bf16.mxu0 0
  %1089 = vmatpush1.bf16.msra.mxu0 %v741
  %1090 = vmatprep.subr.bf16.mxu0 0
  %1091 = vmatpush1.bf16.msra.mxu0 0
  %1092 = vmatprep.subr.bf16.mxu0 0
  %1093 = vmatpush1.bf16.msra.mxu0 0
  %1094 = vmatprep.subr.bf16.mxu0 0
  %1095 = vmatpush1.bf16.msra.mxu0 0
  %1096 = vmatprep.subr.bf16.mxu0 0
  %1097 = vmatpush1.bf16.msra.mxu0 0
  %1098 = vmatprep.subr.bf16.mxu0 0
  %1099 = vmatpush1.bf16.msra.mxu0 0
  %1100 = vmatprep.subr.bf16.mxu0 0
  %1101 = vmatpush1.bf16.msra.mxu0 0
  %1102 = vmatprep.subr.bf16.mxu0 0
  %1103 = vmatpush1.bf16.msra.mxu0 0
  %1104 = vmatprep.subr.bf16.mxu0 0
  %1105 = vmatpush1.bf16.msra.mxu0 0
  %1106 = vmatprep.mubr.bf16.mxu0 0
  %1107 = vmatmul.mubr.bf16.gmra.mrb[0].mxu0 %v318
  %v1108 = vpop.f32.mrb[0].mxu0
  %v1109 = vadd.f32 %v1044, %v1108
  %v1110 = vpop.f32.mrb[0].mxu0
  %v1111 = vpop.f32.mrb[0].mxu0
  %v1112 = vadd.f32 %v1047, %v1111
  %v1113 = vpop.f32.mrb[0].mxu0
  %1114 = vmatprep.mubr.bf16.mxu0 0
  %1115 = vmatmul.mubr.bf16.gmra.mrb[0].mxu0 %v327
  %v1116 = vpop.f32.mrb[0].mxu0
  %v1117 = vadd.f32 %v1052, %v1116
  %v1118 = vpop.f32.mrb[0].mxu0
  %v1119 = vpop.f32.mrb[0].mxu0
  %v1120 = vadd.f32 %v1055, %v1119
  %v1121 = vpop.f32.mrb[0].mxu0
  %1122 = vmatprep.mubr.bf16.mxu0 0
  %1123 = vmatmul.mubr.bf16.gmra.mrb[0].mxu0 %v336
  %v1124 = vpop.f32.mrb[0].mxu0
  %v1125 = vadd.f32 %v1060, %v1124
  %v1126 = vpop.f32.mrb[0].mxu0
  %v1127 = vpop.f32.mrb[0].mxu0
  %v1128 = vadd.f32 %v1063, %v1127
  %v1129 = vpop.f32.mrb[0].mxu0
  %1130 = vmatprep.mubr.bf16.mxu0 0
  %1131 = vmatmul.mubr.bf16.gmra.mrb[0].mxu0 %v345
  %v1132 = vpop.f32.mrb[0].mxu0
  %v1133 = vadd.f32 %v1068, %v1132
  %v1134 = vpop.f32.mrb[0].mxu0
  %v1135 = vpop.f32.mrb[0].mxu0
  %v1136 = vadd.f32 %v1071, %v1135
  %v1137 = vpop.f32.mrb[0].mxu0
  %1138 = vdwg.mxu0
  %v1139 = vpack.c.bf16 %v1112, %v1109
  %v1140 = vpack.c.bf16 %v1120, %v1117
  %v1141 = vpack.c.bf16 %v1128, %v1125
  %v1142 = vpack.c.bf16 %v1136, %v1133
  %v1147 = vunpack.c.l.b16 %v1139
  %v1148 = vunpack.c.h.b16 %v1139
  %v1149 = vunpack.c.l.b16 %v1140
  %v1150 = vunpack.c.h.b16 %v1140
  %v1151 = vunpack.c.l.b16 %v1141
  %v1152 = vunpack.c.h.b16 %v1141
  %v1153 = vunpack.c.l.b16 %v1142
  %v1154 = vunpack.c.h.b16 %v1142
  %v1155 = vpack.c.b16 %v1147, %v1147
  %v1156 = vpack.c.b16 %v1148, %v1148
  %v1157 = vpack.c.b16 %v1149, %v1149
  %v1158 = vpack.c.b16 %v1150, %v1150
  %v1159 = vpack.c.b16 %v1151, %v1151
  %v1160 = vpack.c.b16 %v1152, %v1152
  %v1161 = vpack.c.b16 %v1153, %v1153
  %v1162 = vpack.c.b16 %v1154, %v1154
  %1171 = vst [vmem:[%s2] sm:$0xf] %v1155
  %1172 = vst [vmem:[%s2 + $0x4] sm:$0xf] %v1156
  %1173 = vst [vmem:[%s2 + $0x8] sm:$0xf] %v1157
  %1174 = vst [vmem:[%s2 + $0xc] sm:$0xf] %v1158
  %1175 = vst [vmem:[%s2 + $0x10] sm:$0xf] %v1159
  %1176 = vst [vmem:[%s2 + $0x14] sm:$0xf] %v1160
  %1177 = vst [vmem:[%s2 + $0x18] sm:$0xf] %v1161
  %1178 = vst [vmem:[%s2 + $0x1c] sm:$0xf] %v1162
  %v1179 = vadd.f32 %v1109, %v1112
  %v1180 = vadd.f32 %v1179, %v1117
  %v1181 = vadd.f32 %v1180, %v1120
  %v1182 = vadd.f32 %v1181, %v1125
  %v1183 = vadd.f32 %v1182, %v1128
  %v1184 = vadd.f32 %v1183, %v1133
  %v1185 = vadd.f32 %v1184, %v1136
  %v1186 = vrot.slane %v1185, 4
  %v1187 = vadd.f32 %v1185, %v1186
  %v1188 = vrot.slane %v1187, 2
  %v1189 = vadd.f32 %v1187, %v1188
  %v1190 = vrot.slane %v1189, 1
  %v1191 = vadd.f32 %v1189, %v1190
  %v1192 = vmul.f32 %v1109, %v1109
  %v1193 = vmul.f32 %v1112, %v1112
  %v1194 = vmul.f32 %v1117, %v1117
  %v1195 = vmul.f32 %v1120, %v1120
  %v1196 = vmul.f32 %v1125, %v1125
  %v1197 = vmul.f32 %v1128, %v1128
  %v1198 = vmul.f32 %v1133, %v1133
  %v1199 = vmul.f32 %v1136, %v1136
  %v1200 = vadd.f32 %v1192, %v1193
  %v1201 = vadd.f32 %v1200, %v1194
  %v1202 = vadd.f32 %v1201, %v1195
  %v1203 = vadd.f32 %v1202, %v1196
  %v1204 = vadd.f32 %v1203, %v1197
  %v1205 = vadd.f32 %v1204, %v1198
  %v1206 = vadd.f32 %v1205, %v1199
  %v1207 = vrot.slane %v1206, 4
  %v1208 = vadd.f32 %v1206, %v1207
  %v1209 = vrot.slane %v1208, 2
  %v1210 = vadd.f32 %v1208, %v1209
  %v1211 = vrot.slane %v1210, 1
  %v1212 = vadd.f32 %v1210, %v1211
  %vm1213 = vcmask 1040384
  %v1214 = vsel %vm1213, %v1191, %v1212
  %1215 = vst [vmem:[%s3] sm:$0x3] %v1214
  // Predicated region
  $region10: #{cvae2_pool_forward.23} parent=0 // pred_check
    _
  $region11: #{cvae2_pool_forward.23} parent=0 // pred_check_branch
    %1217 = sbr.rel (0) target = $region13
  $region12: #{cvae2_pool_forward.23} parent=0 // pred_region
    _
  $region13: #{cvae2_pool_forward.23} parent=0 // pred_fallthru
    _
  // Predicated region
  $region14: #{cvae2_pool_forward.23} parent=0 // pred_check
    _
  $region15: #{cvae2_pool_forward.23} parent=0 // pred_check_branch
    %1219 = sbr.rel (0) target = $region17
  $region16: #{cvae2_pool_forward.23} parent=0 // pred_region
    _
  $region17: #{cvae2_pool_forward.23} parent=0 // pred_fallthru
    _
  // Predicated region
  $region18: #{cvae2_pool_forward.23} parent=0 // pred_check
    _
  $region19: #{cvae2_pool_forward.23} parent=0 // pred_check_branch
    %1221 = sbr.rel (0) target = $region21
  $region20: #{cvae2_pool_forward.23} parent=0 // pred_region
    _
  $region21: #{cvae2_pool_forward.23} parent=0 // pred_fallthru
    _
  // Predicated region
  $region22: #{cvae2_pool_forward.23} parent=0 // pred_check
    _
  $region23: #{cvae2_pool_forward.23} parent=0 // pred_check_branch
    %1223 = sbr.rel (0) target = $region25
  $region24: #{cvae2_pool_forward.23} parent=0 // pred_region
    _
  $region25: #{cvae2_pool_forward.23} parent=0 // pred_fallthru
    _

// kernel: cvae2_pool_forward.26
$region0: #{cvae2_pool_forward.26}
  #allocation0 [shape = 'u32[]', space=smem, size = 0x4, offset = 0x4, fixed_abs, tag = 'smem constant byte address 0x4 - core index']
  #allocation1 [shape = 'u32[144,128]{1,0:T(1,128)}', space=vmem, size = 0x12000, scoped, tag = 'internal scratch']
  %s0 = inlined_call_operand.vmem [shape: bf16[288,128], index: 0, kind: input, shape index: {}]
  %s1 = inlined_call_operand.vmem [shape: f32[2,128], index: 1, kind: input, shape index: {}]
  %s2 = inlined_call_operand.vmem [shape: f32[1,128], index: 2, kind: input, shape index: {}]
  %s3 = inlined_call_operand.vmem [shape: f32[1,128], index: 3, kind: input, shape index: {}]
  %s4 = inlined_call_operand.vmem [shape: bf16[288,64], index: 4, kind: output, shape index: {}]
  %s5 = sld [smem:[#allocation0]]
  $region26: #{cvae2_pool_forward.26} parent=0
    _
  %s7 = ssub.s32 1, %s5
  %s8 = scalar_select 0, %s7, %s5
  // Predicated region
  $region2: #{cvae2_pool_forward.26} parent=0 // pred_check
    _
  $region3: #{cvae2_pool_forward.26} parent=0 // pred_check_branch
    %10 = sbr.rel (0) target = $region5
  $region4: #{cvae2_pool_forward.26} parent=0 // pred_region
    _
  $region5: #{cvae2_pool_forward.26} parent=0 // pred_fallthru
    _
  // Predicated region
  $region6: #{cvae2_pool_forward.26} parent=0 // pred_check
    _
  $region7: #{cvae2_pool_forward.26} parent=0 // pred_check_branch
    %12 = sbr.rel (0) target = $region9
  $region8: #{cvae2_pool_forward.26} parent=0 // pred_region
    _
  $region9: #{cvae2_pool_forward.26} parent=0 // pred_fallthru
    _
  // Predicated region
  $region10: #{cvae2_pool_forward.26} parent=0 // pred_check
    _
  $region11: #{cvae2_pool_forward.26} parent=0 // pred_check_branch
    %14 = sbr.rel (0) target = $region13
  $region12: #{cvae2_pool_forward.26} parent=0 // pred_region
    _
  $region13: #{cvae2_pool_forward.26} parent=0 // pred_fallthru
    _
  // Predicated region
  $region14: #{cvae2_pool_forward.26} parent=0 // pred_check
    _
  $region15: #{cvae2_pool_forward.26} parent=0 // pred_check_branch
    %16 = sbr.rel (0) target = $region17
  $region16: #{cvae2_pool_forward.26} parent=0 // pred_region
    _
  $region17: #{cvae2_pool_forward.26} parent=0 // pred_fallthru
    _
  %v17 = vld [vmem:[%s1] sm:$0x1]
  %v18 = vmul.f32 %v17, 0.0034722222
  %v19 = vld [vmem:[%s1 + $0x1] sm:$0x1]
  %v20 = vmul.f32 %v19, 0.0034722222
  %v21 = vmul.f32 %v18, %v18
  %v22 = vsub.f32 %v20, %v21
  %v23 = vld [vmem:[%s2] sm:$0x1]
  %v24 = vadd.f32 %v22, 1e-05
  %v25 = vrsqrt.pop %v24
  %v26 = vmul.f32 %v23, %v25
  %v27 = vld [vmem:[%s3] sm:$0x1]
  %v28 = vmul.f32 %v18, %v26
  %v29 = vsub.f32 %v27, %v28
  %v30 = vld [vmem:[%s0] sm:$0xf]
  %v31 = vld [vmem:[%s0 + $0x4] sm:$0xf]
  %v32 = vld [vmem:[%s0 + $0x8] sm:$0xf]
  %v33 = vld [vmem:[%s0 + $0xc] sm:$0xf]
  %v34 = vld [vmem:[%s0 + $0x10] sm:$0xf]
  %v35 = vld [vmem:[%s0 + $0x14] sm:$0xf]
  %v36 = vld [vmem:[%s0 + $0x18] sm:$0xf]
  %v37 = vld [vmem:[%s0 + $0x1c] sm:$0xf]
  %v38 = vld [vmem:[%s0 + $0x20] sm:$0xf]
  %v39 = vld [vmem:[%s0 + $0x24] sm:$0xf]
  %v40 = vld [vmem:[%s0 + $0x28] sm:$0xf]
  %v41 = vld [vmem:[%s0 + $0x2c] sm:$0xf]
  %v42 = vld [vmem:[%s0 + $0x30] sm:$0xf]
  %v43 = vld [vmem:[%s0 + $0x34] sm:$0xf]
  %v44 = vld [vmem:[%s0 + $0x38] sm:$0xf]
  %v45 = vld [vmem:[%s0 + $0x3c] sm:$0xf]
  %v46 = vld [vmem:[%s0 + $0x40] sm:$0xf]
  %v47 = vld [vmem:[%s0 + $0x44] sm:$0xf]
  %v48 = vld [vmem:[%s0 + $0x48] sm:$0xf]
  %v49 = vld [vmem:[%s0 + $0x4c] sm:$0xf]
  %v50 = vld [vmem:[%s0 + $0x50] sm:$0xf]
  %v51 = vld [vmem:[%s0 + $0x54] sm:$0xf]
  %v52 = vld [vmem:[%s0 + $0x58] sm:$0xf]
  %v53 = vld [vmem:[%s0 + $0x5c] sm:$0xf]
  %v54 = vld [vmem:[%s0 + $0x60] sm:$0xf]
  %v55 = vld [vmem:[%s0 + $0x64] sm:$0xf]
  %v56 = vld [vmem:[%s0 + $0x68] sm:$0xf]
  %v57 = vld [vmem:[%s0 + $0x6c] sm:$0xf]
  %v58 = vld [vmem:[%s0 + $0x70] sm:$0xf]
  %v59 = vld [vmem:[%s0 + $0x74] sm:$0xf]
  %v60 = vld [vmem:[%s0 + $0x78] sm:$0xf]
  %v61 = vld [vmem:[%s0 + $0x7c] sm:$0xf]
  %v62 = vld [vmem:[%s0 + $0x80] sm:$0xf]
  %v63 = vld [vmem:[%s0 + $0x84] sm:$0xf]
  %v64 = vld [vmem:[%s0 + $0x88] sm:$0xf]
  %v65 = vld [vmem:[%s0 + $0x8c] sm:$0xf]
  %v66 = vunpack.c.l.bf16 %v30
  %v67 = vunpack.c.l.bf16 %v31
  %v68 = vunpack.c.l.bf16 %v32
  %v69 = vunpack.c.l.bf16 %v33
  %v70 = vunpack.c.l.bf16 %v34
  %v71 = vunpack.c.l.bf16 %v35
  %v72 = vunpack.c.l.bf16 %v36
  %v73 = vunpack.c.l.bf16 %v37
  %v74 = vunpack.c.l.bf16 %v38
  %v75 = vunpack.c.l.bf16 %v39
  %v76 = vunpack.c.l.bf16 %v40
  %v77 = vunpack.c.l.bf16 %v41
  %v78 = vunpack.c.l.bf16 %v42
  %v79 = vunpack.c.l.bf16 %v43
  %v80 = vunpack.c.l.bf16 %v44
  %v81 = vunpack.c.l.bf16 %v45
  %v82 = vunpack.c.l.bf16 %v46
  %v83 = vunpack.c.l.bf16 %v47
  %v84 = vunpack.c.l.bf16 %v48
  %v85 = vunpack.c.l.bf16 %v49
  %v86 = vunpack.c.l.bf16 %v50
  %v87 = vunpack.c.l.bf16 %v51
  %v88 = vunpack.c.l.bf16 %v52
  %v89 = vunpack.c.l.bf16 %v53
  %v90 = vunpack.c.l.bf16 %v54
  %v91 = vunpack.c.l.bf16 %v55
  %v92 = vunpack.c.l.bf16 %v56
  %v93 = vunpack.c.l.bf16 %v57
  %v94 = vunpack.c.l.bf16 %v58
  %v95 = vunpack.c.l.bf16 %v59
  %v96 = vunpack.c.l.bf16 %v60
  %v97 = vunpack.c.l.bf16 %v61
  %v98 = vunpack.c.l.bf16 %v62
  %v99 = vunpack.c.l.bf16 %v63
  %v100 = vunpack.c.l.bf16 %v64
  %v101 = vunpack.c.l.bf16 %v65
  %v103 = vlaneseq
  %v104 = vshrl.u32 %v103, 7
  %v105 = vsub.s32 0, %v104
  %v106 = vrot.slane %v26, %v105
  %v108 = vmul.f32 %v66, %v106
  %v109 = vmul.f32 %v67, %v106
  %v110 = vmul.f32 %v68, %v106
  %v111 = vmul.f32 %v69, %v106
  %v112 = vmul.f32 %v70, %v106
  %v113 = vmul.f32 %v71, %v106
  %v114 = vmul.f32 %v72, %v106
  %v115 = vmul.f32 %v73, %v106
  %v116 = vmul.f32 %v74, %v106
  %v117 = vmul.f32 %v75, %v106
  %v118 = vmul.f32 %v76, %v106
  %v119 = vmul.f32 %v77, %v106
  %v120 = vmul.f32 %v78, %v106
  %v121 = vmul.f32 %v79, %v106
  %v122 = vmul.f32 %v80, %v106
  %v123 = vmul.f32 %v81, %v106
  %v124 = vmul.f32 %v82, %v106
  %v125 = vmul.f32 %v83, %v106
  %v126 = vmul.f32 %v84, %v106
  %v127 = vmul.f32 %v85, %v106
  %v128 = vmul.f32 %v86, %v106
  %v129 = vmul.f32 %v87, %v106
  %v130 = vmul.f32 %v88, %v106
  %v131 = vmul.f32 %v89, %v106
  %v132 = vmul.f32 %v90, %v106
  %v133 = vmul.f32 %v91, %v106
  %v134 = vmul.f32 %v92, %v106
  %v135 = vmul.f32 %v93, %v106
  %v136 = vmul.f32 %v94, %v106
  %v137 = vmul.f32 %v95, %v106
  %v138 = vmul.f32 %v96, %v106
  %v139 = vmul.f32 %v97, %v106
  %v140 = vmul.f32 %v98, %v106
  %v141 = vmul.f32 %v99, %v106
  %v142 = vmul.f32 %v100, %v106
  %v143 = vmul.f32 %v101, %v106
  %v145 = vlaneseq
  %v146 = vshrl.u32 %v145, 7
  %v147 = vsub.s32 0, %v146
  %v148 = vrot.slane %v29, %v147
  %v150 = vadd.f32 %v108, %v148
  %v151 = vadd.f32 %v109, %v148
  %v152 = vadd.f32 %v110, %v148
  %v153 = vadd.f32 %v111, %v148
  %v154 = vadd.f32 %v112, %v148
  %v155 = vadd.f32 %v113, %v148
  %v156 = vadd.f32 %v114, %v148
  %v157 = vadd.f32 %v115, %v148
  %v158 = vadd.f32 %v116, %v148
  %v159 = vadd.f32 %v117, %v148
  %v160 = vadd.f32 %v118, %v148
  %v161 = vadd.f32 %v119, %v148
  %v162 = vadd.f32 %v120, %v148
  %v163 = vadd.f32 %v121, %v148
  %v164 = vadd.f32 %v122, %v148
  %v165 = vadd.f32 %v123, %v148
  %v166 = vadd.f32 %v124, %v148
  %v167 = vadd.f32 %v125, %v148
  %v168 = vadd.f32 %v126, %v148
  %v169 = vadd.f32 %v127, %v148
  %v170 = vadd.f32 %v128, %v148
  %v171 = vadd.f32 %v129, %v148
  %v172 = vadd.f32 %v130, %v148
  %v173 = vadd.f32 %v131, %v148
  %v174 = vadd.f32 %v132, %v148
  %v175 = vadd.f32 %v133, %v148
  %v176 = vadd.f32 %v134, %v148
  %v177 = vadd.f32 %v135, %v148
  %v178 = vadd.f32 %v136, %v148
  %v179 = vadd.f32 %v137, %v148
  %v180 = vadd.f32 %v138, %v148
  %v181 = vadd.f32 %v139, %v148
  %v182 = vadd.f32 %v140, %v148
  %v183 = vadd.f32 %v141, %v148
  %v184 = vadd.f32 %v142, %v148
  %v185 = vadd.f32 %v143, %v148
  %v186 = vmax.f32 %v150, 0.0
  %v187 = vmax.f32 %v151, 0.0
  %v188 = vmax.f32 %v152, 0.0
  %v189 = vmax.f32 %v153, 0.0
  %v190 = vmax.f32 %v154, 0.0
  %v191 = vmax.f32 %v155, 0.0
  %v192 = vmax.f32 %v156, 0.0
  %v193 = vmax.f32 %v157, 0.0
  %v194 = vmax.f32 %v158, 0.0
  %v195 = vmax.f32 %v159, 0.0
  %v196 = vmax.f32 %v160, 0.0
  %v197 = vmax.f32 %v161, 0.0
  %v198 = vmax.f32 %v162, 0.0
  %v199 = vmax.f32 %v163, 0.0
  %v200 = vmax.f32 %v164, 0.0
  %v201 = vmax.f32 %v165, 0.0
  %v202 = vmax.f32 %v166, 0.0
  %v203 = vmax.f32 %v167, 0.0
  %v204 = vmax.f32 %v168, 0.0
  %v205 = vmax.f32 %v169, 0.0
  %v206 = vmax.f32 %v170, 0.0
  %v207 = vmax.f32 %v171, 0.0
  %v208 = vmax.f32 %v172, 0.0
  %v209 = vmax.f32 %v173, 0.0
  %v210 = vmax.f32 %v174, 0.0
  %v211 = vmax.f32 %v175, 0.0
  %v212 = vmax.f32 %v176, 0.0
  %v213 = vmax.f32 %v177, 0.0
  %v214 = vmax.f32 %v178, 0.0
  %v215 = vmax.f32 %v179, 0.0
  %v216 = vmax.f32 %v180, 0.0
  %v217 = vmax.f32 %v181, 0.0
  %v218 = vmax.f32 %v182, 0.0
  %v219 = vmax.f32 %v183, 0.0
  %v220 = vmax.f32 %v184, 0.0
  %v221 = vmax.f32 %v185, 0.0
  %v222 = vpack.c.bf16 %v187, %v186
  %v223 = vpack.c.bf16 %v189, %v188
  %v224 = vpack.c.bf16 %v191, %v190
  %v225 = vpack.c.bf16 %v193, %v192
  %v226 = vpack.c.bf16 %v195, %v194
  %v227 = vpack.c.bf16 %v197, %v196
  %v228 = vpack.c.bf16 %v199, %v198
  %v229 = vpack.c.bf16 %v201, %v200
  %v230 = vpack.c.bf16 %v203, %v202
  %v231 = vpack.c.bf16 %v205, %v204
  %v232 = vpack.c.bf16 %v207, %v206
  %v233 = vpack.c.bf16 %v209, %v208
  %v234 = vpack.c.bf16 %v211, %v210
  %v235 = vpack.c.bf16 %v213, %v212
  %v236 = vpack.c.bf16 %v215, %v214
  %v237 = vpack.c.bf16 %v217, %v216
  %v238 = vpack.c.bf16 %v219, %v218
  %v239 = vpack.c.bf16 %v221, %v220
  %v258 = vunpack.c.l.b16 %v222
  %v259 = vunpack.c.h.b16 %v222
  %v260 = vunpack.c.l.b16 %v223
  %v261 = vunpack.c.h.b16 %v223
  %v262 = vunpack.c.l.b16 %v224
  %v263 = vunpack.c.h.b16 %v224
  %v264 = vunpack.c.l.b16 %v225
  %v265 = vunpack.c.h.b16 %v225
  %v266 = vunpack.c.l.b16 %v226
  %v267 = vunpack.c.h.b16 %v226
  %v268 = vunpack.c.l.b16 %v227
  %v269 = vunpack.c.h.b16 %v227
  %v270 = vunpack.c.l.b16 %v228
  %v271 = vunpack.c.h.b16 %v228
  %v272 = vunpack.c.l.b16 %v229
  %v273 = vunpack.c.h.b16 %v229
  %v274 = vunpack.c.l.b16 %v230
  %v275 = vunpack.c.h.b16 %v230
  %v276 = vunpack.c.l.b16 %v231
  %v277 = vunpack.c.h.b16 %v231
  %v278 = vunpack.c.l.b16 %v232
  %v279 = vunpack.c.h.b16 %v232
  %v280 = vunpack.c.l.b16 %v233
  %v281 = vunpack.c.h.b16 %v233
  %v282 = vunpack.c.l.b16 %v234
  %v283 = vunpack.c.h.b16 %v234
  %v284 = vunpack.c.l.b16 %v235
  %v285 = vunpack.c.h.b16 %v235
  %v286 = vunpack.c.l.b16 %v236
  %v287 = vunpack.c.h.b16 %v236
  %v288 = vunpack.c.l.b16 %v237
  %v289 = vunpack.c.h.b16 %v237
  %v290 = vunpack.c.l.b16 %v238
  %v291 = vunpack.c.h.b16 %v238
  %v292 = vunpack.c.l.b16 %v239
  %v293 = vunpack.c.h.b16 %v239
  %v294 = vpack.c.b16 %v258, %v258
  %v295 = vpack.c.b16 %v259, %v259
  %v296 = vpack.c.b16 %v260, %v260
  %v297 = vpack.c.b16 %v261, %v261
  %v298 = vpack.c.b16 %v262, %v262
  %v299 = vpack.c.b16 %v263, %v263
  %v300 = vpack.c.b16 %v264, %v264
  %v301 = vpack.c.b16 %v265, %v265
  %v302 = vpack.c.b16 %v266, %v266
  %v303 = vpack.c.b16 %v267, %v267
  %v304 = vpack.c.b16 %v268, %v268
  %v305 = vpack.c.b16 %v269, %v269
  %v306 = vpack.c.b16 %v270, %v270
  %v307 = vpack.c.b16 %v271, %v271
  %v308 = vpack.c.b16 %v272, %v272
  %v309 = vpack.c.b16 %v273, %v273
  %v310 = vpack.c.b16 %v274, %v274
  %v311 = vpack.c.b16 %v275, %v275
  %v312 = vpack.c.b16 %v276, %v276
  %v313 = vpack.c.b16 %v277, %v277
  %v314 = vpack.c.b16 %v278, %v278
  %v315 = vpack.c.b16 %v279, %v279
  %v316 = vpack.c.b16 %v280, %v280
  %v317 = vpack.c.b16 %v281, %v281
  %v318 = vpack.c.b16 %v282, %v282
  %v319 = vpack.c.b16 %v283, %v283
  %v320 = vpack.c.b16 %v284, %v284
  %v321 = vpack.c.b16 %v285, %v285
  %v322 = vpack.c.b16 %v286, %v286
  %v323 = vpack.c.b16 %v287, %v287
  %v324 = vpack.c.b16 %v288, %v288
  %v325 = vpack.c.b16 %v289, %v289
  %v326 = vpack.c.b16 %v290, %v290
  %v327 = vpack.c.b16 %v291, %v291
  %v328 = vpack.c.b16 %v292, %v292
  %v329 = vpack.c.b16 %v293, %v293
  %vm366 = vcmask 519168
  %367 = vst.msk [vmem:[%s4] sm:$0xf] %vm366, %v294
  %368 = vst.msk [vmem:[%s4 + $0x4] sm:$0xf] %vm366, %v295
  %369 = vst.msk [vmem:[%s4 + $0x8] sm:$0xf] %vm366, %v296
  %370 = vst.msk [vmem:[%s4 + $0xc] sm:$0xf] %vm366, %v297
  %371 = vst.msk [vmem:[%s4 + $0x10] sm:$0xf] %vm366, %v298
  %372 = vst.msk [vmem:[%s4 + $0x14] sm:$0xf] %vm366, %v299
  %373 = vst.msk [vmem:[%s4 + $0x18] sm:$0xf] %vm366, %v300
  %374 = vst.msk [vmem:[%s4 + $0x1c] sm:$0xf] %vm366, %v301
  %375 = vst.msk [vmem:[%s4 + $0x20] sm:$0xf] %vm366, %v302
  %376 = vst.msk [vmem:[%s4 + $0x24] sm:$0xf] %vm366, %v303
  %377 = vst.msk [vmem:[%s4 + $0x28] sm:$0xf] %vm366, %v304
  %378 = vst.msk [vmem:[%s4 + $0x2c] sm:$0xf] %vm366, %v305
  %379 = vst.msk [vmem:[%s4 + $0x30] sm:$0xf] %vm366, %v306
  %380 = vst.msk [vmem:[%s4 + $0x34] sm:$0xf] %vm366, %v307
  %381 = vst.msk [vmem:[%s4 + $0x38] sm:$0xf] %vm366, %v308
  %382 = vst.msk [vmem:[%s4 + $0x3c] sm:$0xf] %vm366, %v309
  %383 = vst.msk [vmem:[%s4 + $0x40] sm:$0xf] %vm366, %v310
  %384 = vst.msk [vmem:[%s4 + $0x44] sm:$0xf] %vm366, %v311
  %385 = vst.msk [vmem:[%s4 + $0x48] sm:$0xf] %vm366, %v312
  %386 = vst.msk [vmem:[%s4 + $0x4c] sm:$0xf] %vm366, %v313
  %387 = vst.msk [vmem:[%s4 + $0x50] sm:$0xf] %vm366, %v314
  %388 = vst.msk [vmem:[%s4 + $0x54] sm:$0xf] %vm366, %v315
  %389 = vst.msk [vmem:[%s4 + $0x58] sm:$0xf] %vm366, %v316
  %390 = vst.msk [vmem:[%s4 + $0x5c] sm:$0xf] %vm366, %v317
  %391 = vst.msk [vmem:[%s4 + $0x60] sm:$0xf] %vm366, %v318
  %392 = vst.msk [vmem:[%s4 + $0x64] sm:$0xf] %vm366, %v319
  %393 = vst.msk [vmem:[%s4 + $0x68] sm:$0xf] %vm366, %v320
  %394 = vst.msk [vmem:[%s4 + $0x6c] sm:$0xf] %vm366, %v321
  %395 = vst.msk [vmem:[%s4 + $0x70] sm:$0xf] %vm366, %v322
  %396 = vst.msk [vmem:[%s4 + $0x74] sm:$0xf] %vm366, %v323
  %397 = vst.msk [vmem:[%s4 + $0x78] sm:$0xf] %vm366, %v324
  %398 = vst.msk [vmem:[%s4 + $0x7c] sm:$0xf] %vm366, %v325
  %399 = vst.msk [vmem:[%s4 + $0x80] sm:$0xf] %vm366, %v326
  %400 = vst.msk [vmem:[%s4 + $0x84] sm:$0xf] %vm366, %v327
  %401 = vst.msk [vmem:[%s4 + $0x88] sm:$0xf] %vm366, %v328
  %402 = vst.msk [vmem:[%s4 + $0x8c] sm:$0xf] %vm366, %v329
  // Predicated region
  $region18: #{cvae2_pool_forward.26} parent=0 // pred_check
    _
  $region19: #{cvae2_pool_forward.26} parent=0 // pred_check_branch
    %404 = sbr.rel (0) target = $region21
  $region20: #{cvae2_pool_forward.26} parent=0 // pred_region
    _
  $region21: #{cvae2_pool_forward.26} parent=0 // pred_fallthru
    _
  // Predicated region
  $region22: #{cvae2_pool_forward.26} parent=0 // pred_check
    _
  $region23: #{cvae2_pool_forward.26} parent=0 // pred_check_branch
    %406 = sbr.rel (0) target = $region25
  $region24: #{cvae2_pool_forward.26} parent=0 // pred_region
    _
  $region25: #{cvae2_pool_forward.26} parent=0 // pred_fallthru
    _

// kernel: cvae2_pool_forward.25
$region0: #{cvae2_pool_forward.25}
  #allocation0 [shape = 'u32[]', space=smem, size = 0x4, offset = 0x4, fixed_abs, tag = 'smem constant byte address 0x4 - core index']
  #allocation1 [shape = 'u32[144,128]{1,0:T(1,128)}', space=vmem, size = 0x12000, scoped, tag = 'internal scratch']
  %s0 = inlined_call_operand.vmem [shape: bf16[288,1152], index: 0, kind: input, shape index: {}]
  %s1 = inlined_call_operand.vmem [shape: bf16[1152,128], index: 1, kind: input, shape index: {}]
  %s2 = inlined_call_operand.vmem [shape: bf16[288,128], index: 2, kind: output, shape index: {0}]
  %s3 = inlined_call_operand.vmem [shape: f32[1,2,128], index: 3, kind: output, shape index: {1}]
  %4 = xla_tuple %s2, %s3
  %s5 = sld [smem:[#allocation0]]
  $region26: #{cvae2_pool_forward.25} parent=0
    _
  %s7 = ssub.s32 1, %s5
  %s8 = scalar_select 0, %s7, %s5
  // Predicated region
  $region2: #{cvae2_pool_forward.25} parent=0 // pred_check
    _
  $region3: #{cvae2_pool_forward.25} parent=0 // pred_check_branch
    %10 = sbr.rel (0) target = $region5
  $region4: #{cvae2_pool_forward.25} parent=0 // pred_region
    _
  $region5: #{cvae2_pool_forward.25} parent=0 // pred_fallthru
    _
  // Predicated region
  $region6: #{cvae2_pool_forward.25} parent=0 // pred_check
    _
  $region7: #{cvae2_pool_forward.25} parent=0 // pred_check_branch
    %12 = sbr.rel (0) target = $region9
  $region8: #{cvae2_pool_forward.25} parent=0 // pred_region
    _
  $region9: #{cvae2_pool_forward.25} parent=0 // pred_fallthru
    _
  %v14 = vld [vmem:[%s0] sm:$0xff]
  %v15 = vld [vmem:[%s0 + $0x8] sm:$0xff]
  %v16 = vld [vmem:[%s0 + $0x10] sm:$0xff]
  %v17 = vld [vmem:[%s0 + $0x18] sm:$0xff]
  %v18 = vld [vmem:[%s0 + $0x20] sm:$0xf]
  %v19 = vld [vmem:[%s0 + $0x24] sm:$0xff]
  %v20 = vld [vmem:[%s0 + $0x2c] sm:$0xff]
  %v21 = vld [vmem:[%s0 + $0x34] sm:$0xff]
  %v22 = vld [vmem:[%s0 + $0x3c] sm:$0xff]
  %v23 = vld [vmem:[%s0 + $0x44] sm:$0xf]
  %v24 = vld [vmem:[%s0 + $0x48] sm:$0xff]
  %v25 = vld [vmem:[%s0 + $0x50] sm:$0xff]
  %v26 = vld [vmem:[%s0 + $0x58] sm:$0xff]
  %v27 = vld [vmem:[%s0 + $0x60] sm:$0xff]
  %v28 = vld [vmem:[%s0 + $0x68] sm:$0xf]
  %v29 = vld [vmem:[%s0 + $0x6c] sm:$0xff]
  %v30 = vld [vmem:[%s0 + $0x74] sm:$0xff]
  %v31 = vld [vmem:[%s0 + $0x7c] sm:$0xff]
  %v32 = vld [vmem:[%s0 + $0x84] sm:$0xff]
  %v33 = vld [vmem:[%s0 + $0x8c] sm:$0xf]
  %v34 = vld [vmem:[%s0 + $0x90] sm:$0xff]
  %v35 = vld [vmem:[%s0 + $0x98] sm:$0xff]
  %v36 = vld [vmem:[%s0 + $0xa0] sm:$0xff]
  %v37 = vld [vmem:[%s0 + $0xa8] sm:$0xff]
  %v38 = vld [vmem:[%s0 + $0xb0] sm:$0xf]
  %v39 = vld [vmem:[%s0 + $0xb4] sm:$0xff]
  %v40 = vld [vmem:[%s0 + $0xbc] sm:$0xff]
  %v41 = vld [vmem:[%s0 + $0xc4] sm:$0xff]
  %v42 = vld [vmem:[%s0 + $0xcc] sm:$0xff]
  %v43 = vld [vmem:[%s0 + $0xd4] sm:$0xf]
  %v44 = vld [vmem:[%s0 + $0xd8] sm:$0xff]
  %v45 = vld [vmem:[%s0 + $0xe0] sm:$0xff]
  %v46 = vld [vmem:[%s0 + $0xe8] sm:$0xff]
  %v47 = vld [vmem:[%s0 + $0xf0] sm:$0xff]
  %v48 = vld [vmem:[%s0 + $0xf8] sm:$0xf]
  %v49 = vld [vmem:[%s0 + $0xfc] sm:$0xff]
  %v50 = vld [vmem:[%s0 + $0x104] sm:$0xff]
  %v51 = vld [vmem:[%s0 + $0x10c] sm:$0xff]
  %v52 = vld [vmem:[%s0 + $0x114] sm:$0xff]
  %v53 = vld [vmem:[%s0 + $0x11c] sm:$0xf]
  %v54 = vld [vmem:[%s0 + $0x120] sm:$0xff]
  %v55 = vld [vmem:[%s0 + $0x128] sm:$0xff]
  %v56 = vld [vmem:[%s0 + $0x130] sm:$0xff]
  %v57 = vld [vmem:[%s0 + $0x138] sm:$0xff]
  %v58 = vld [vmem:[%s0 + $0x140] sm:$0xf]
  %v59 = vld [vmem:[%s0 + $0x144] sm:$0xff]
  %v60 = vld [vmem:[%s0 + $0x14c] sm:$0xff]
  %v61 = vld [vmem:[%s0 + $0x154] sm:$0xff]
  %v62 = vld [vmem:[%s0 + $0x15c] sm:$0xff]
  %v63 = vld [vmem:[%s0 + $0x164] sm:$0xf]
  %v64 = vld [vmem:[%s0 + $0x168] sm:$0xff]
  %v65 = vld [vmem:[%s0 + $0x170] sm:$0xff]
  %v66 = vld [vmem:[%s0 + $0x178] sm:$0xff]
  %v67 = vld [vmem:[%s0 + $0x180] sm:$0xff]
  %v68 = vld [vmem:[%s0 + $0x188] sm:$0xf]
  %v69 = vld [vmem:[%s0 + $0x18c] sm:$0xff]
  %v70 = vld [vmem:[%s0 + $0x194] sm:$0xff]
  %v71 = vld [vmem:[%s0 + $0x19c] sm:$0xff]
  %v72 = vld [vmem:[%s0 + $0x1a4] sm:$0xff]
  %v73 = vld [vmem:[%s0 + $0x1ac] sm:$0xf]
  %v74 = vld [vmem:[%s0 + $0x1b0] sm:$0xff]
  %v75 = vld [vmem:[%s0 + $0x1b8] sm:$0xff]
  %v76 = vld [vmem:[%s0 + $0x1c0] sm:$0xff]
  %v77 = vld [vmem:[%s0 + $0x1c8] sm:$0xff]
  %v78 = vld [vmem:[%s0 + $0x1d0] sm:$0xf]
  %v79 = vld [vmem:[%s0 + $0x1d4] sm:$0xff]
  %v80 = vld [vmem:[%s0 + $0x1dc] sm:$0xff]
  %v81 = vld [vmem:[%s0 + $0x1e4] sm:$0xff]
  %v82 = vld [vmem:[%s0 + $0x1ec] sm:$0xff]
  %v83 = vld [vmem:[%s0 + $0x1f4] sm:$0xf]
  %v84 = vld [vmem:[%s0 + $0x1f8] sm:$0xff]
  %v85 = vld [vmem:[%s0 + $0x200] sm:$0xff]
  %v86 = vld [vmem:[%s0 + $0x208] sm:$0xff]
  %v87 = vld [vmem:[%s0 + $0x210] sm:$0xff]
  %v88 = vld [vmem:[%s0 + $0x218] sm:$0xf]
  %v89 = vld [vmem:[%s0 + $0x21c] sm:$0xff]
  %v90 = vld [vmem:[%s0 + $0x224] sm:$0xff]
  %v91 = vld [vmem:[%s0 + $0x22c] sm:$0xff]
  %v92 = vld [vmem:[%s0 + $0x234] sm:$0xff]
  %v93 = vld [vmem:[%s0 + $0x23c] sm:$0xf]
  %v94 = vld [vmem:[%s0 + $0x240] sm:$0xff]
  %v95 = vld [vmem:[%s0 + $0x248] sm:$0xff]
  %v96 = vld [vmem:[%s0 + $0x250] sm:$0xff]
  %v97 = vld [vmem:[%s0 + $0x258] sm:$0xff]
  %v98 = vld [vmem:[%s0 + $0x260] sm:$0xf]
  %v99 = vld [vmem:[%s0 + $0x264] sm:$0xff]
  %v100 = vld [vmem:[%s0 + $0x26c] sm:$0xff]
  %v101 = vld [vmem:[%s0 + $0x274] sm:$0xff]
  %v102 = vld [vmem:[%s0 + $0x27c] sm:$0xff]
  %v103 = vld [vmem:[%s0 + $0x284] sm:$0xf]
  %v104 = vld [vmem:[%s0 + $0x288] sm:$0xff]
  %v105 = vld [vmem:[%s0 + $0x290] sm:$0xff]
  %v106 = vld [vmem:[%s0 + $0x298] sm:$0xff]
  %v107 = vld [vmem:[%s0 + $0x2a0] sm:$0xff]
  %v108 = vld [vmem:[%s0 + $0x2a8] sm:$0xf]
  %v109 = vld [vmem:[%s0 + $0x2ac] sm:$0xff]
  %v110 = vld [vmem:[%s0 + $0x2b4] sm:$0xff]
  %v111 = vld [vmem:[%s0 + $0x2bc] sm:$0xff]
  %v112 = vld [vmem:[%s0 + $0x2c4] sm:$0xff]
  %v113 = vld [vmem:[%s0 + $0x2cc] sm:$0xf]
  %v114 = vld [vmem:[%s0 + $0x2d0] sm:$0xff]
  %v115 = vld [vmem:[%s0 + $0x2d8] sm:$0xff]
  %v116 = vld [vmem:[%s0 + $0x2e0] sm:$0xff]
  %v117 = vld [vmem:[%s0 + $0x2e8] sm:$0xff]
  %v118 = vld [vmem:[%s0 + $0x2f0] sm:$0xf]
  %v119 = vld [vmem:[%s0 + $0x2f4] sm:$0xff]
  %v120 = vld [vmem:[%s0 + $0x2fc] sm:$0xff]
  %v121 = vld [vmem:[%s0 + $0x304] sm:$0xff]
  %v122 = vld [vmem:[%s0 + $0x30c] sm:$0xff]
  %v123 = vld [vmem:[%s0 + $0x314] sm:$0xf]
  %v124 = vld [vmem:[%s0 + $0x318] sm:$0xff]
  %v125 = vld [vmem:[%s0 + $0x320] sm:$0xff]
  %v126 = vld [vmem:[%s0 + $0x328] sm:$0xff]
  %v127 = vld [vmem:[%s0 + $0x330] sm:$0xff]
  %v128 = vld [vmem:[%s0 + $0x338] sm:$0xf]
  %v129 = vld [vmem:[%s0 + $0x33c] sm:$0xff]
  %v130 = vld [vmem:[%s0 + $0x344] sm:$0xff]
  %v131 = vld [vmem:[%s0 + $0x34c] sm:$0xff]
  %v132 = vld [vmem:[%s0 + $0x354] sm:$0xff]
  %v133 = vld [vmem:[%s0 + $0x35c] sm:$0xf]
  %v134 = vld [vmem:[%s0 + $0x360] sm:$0xff]
  %v135 = vld [vmem:[%s0 + $0x368] sm:$0xff]
  %v136 = vld [vmem:[%s0 + $0x370] sm:$0xff]
  %v137 = vld [vmem:[%s0 + $0x378] sm:$0xff]
  %v138 = vld [vmem:[%s0 + $0x380] sm:$0xf]
  %v139 = vld [vmem:[%s0 + $0x384] sm:$0xff]
  %v140 = vld [vmem:[%s0 + $0x38c] sm:$0xff]
  %v141 = vld [vmem:[%s0 + $0x394] sm:$0xff]
  %v142 = vld [vmem:[%s0 + $0x39c] sm:$0xff]
  %v143 = vld [vmem:[%s0 + $0x3a4] sm:$0xf]
  %v144 = vld [vmem:[%s0 + $0x3a8] sm:$0xff]
  %v145 = vld [vmem:[%s0 + $0x3b0] sm:$0xff]
  %v146 = vld [vmem:[%s0 + $0x3b8] sm:$0xff]
  %v147 = vld [vmem:[%s0 + $0x3c0] sm:$0xff]
  %v148 = vld [vmem:[%s0 + $0x3c8] sm:$0xf]
  %v149 = vld [vmem:[%s0 + $0x3cc] sm:$0xff]
  %v150 = vld [vmem:[%s0 + $0x3d4] sm:$0xff]
  %v151 = vld [vmem:[%s0 + $0x3dc] sm:$0xff]
  %v152 = vld [vmem:[%s0 + $0x3e4] sm:$0xff]
  %v153 = vld [vmem:[%s0 + $0x3ec] sm:$0xf]
  %v154 = vld [vmem:[%s0 + $0x3f0] sm:$0xff]
  %v155 = vld [vmem:[%s0 + $0x3f8] sm:$0xff]
  %v156 = vld [vmem:[%s0 + $0x400] sm:$0xff]
  %v157 = vld [vmem:[%s0 + $0x408] sm:$0xff]
  %v158 = vld [vmem:[%s0 + $0x410] sm:$0xf]
  %v159 = vld [vmem:[%s0 + $0x414] sm:$0xff]
  %v160 = vld [vmem:[%s0 + $0x41c] sm:$0xff]
  %v161 = vld [vmem:[%s0 + $0x424] sm:$0xff]
  %v162 = vld [vmem:[%s0 + $0x42c] sm:$0xff]
  %v163 = vld [vmem:[%s0 + $0x434] sm:$0xf]
  %v164 = vld [vmem:[%s0 + $0x438] sm:$0xff]
  %v165 = vld [vmem:[%s0 + $0x440] sm:$0xff]
  %v166 = vld [vmem:[%s0 + $0x448] sm:$0xff]
  %v167 = vld [vmem:[%s0 + $0x450] sm:$0xff]
  %v168 = vld [vmem:[%s0 + $0x458] sm:$0xf]
  %v169 = vld [vmem:[%s0 + $0x45c] sm:$0xff]
  %v170 = vld [vmem:[%s0 + $0x464] sm:$0xff]
  %v171 = vld [vmem:[%s0 + $0x46c] sm:$0xff]
  %v172 = vld [vmem:[%s0 + $0x474] sm:$0xff]
  %v173 = vld [vmem:[%s0 + $0x47c] sm:$0xf]
  %v174 = vld [vmem:[%s0 + $0x480] sm:$0xff]
  %v175 = vld [vmem:[%s0 + $0x488] sm:$0xff]
  %v176 = vld [vmem:[%s0 + $0x490] sm:$0xff]
  %v177 = vld [vmem:[%s0 + $0x498] sm:$0xff]
  %v178 = vld [vmem:[%s0 + $0x4a0] sm:$0xf]
  %v179 = vld [vmem:[%s0 + $0x4a4] sm:$0xff]
  %v180 = vld [vmem:[%s0 + $0x4ac] sm:$0xff]
  %v181 = vld [vmem:[%s0 + $0x4b4] sm:$0xff]
  %v182 = vld [vmem:[%s0 + $0x4bc] sm:$0xff]
  %v183 = vld [vmem:[%s0 + $0x4c4] sm:$0xf]
  %v184 = vld [vmem:[%s0 + $0x4c8] sm:$0xff]
  %v185 = vld [vmem:[%s0 + $0x4d0] sm:$0xff]
  %v186 = vld [vmem:[%s0 + $0x4d8] sm:$0xff]
  %v187 = vld [vmem:[%s0 + $0x4e0] sm:$0xff]
  %v188 = vld [vmem:[%s0 + $0x4e8] sm:$0xf]
  %v189 = vld [vmem:[%s0 + $0x4ec] sm:$0xff]
  %v190 = vld [vmem:[%s0 + $0x4f4] sm:$0xff]
  %v191 = vld [vmem:[%s0 + $0x4fc] sm:$0xff]
  %v192 = vld [vmem:[%s0 + $0x504] sm:$0xff]
  %v193 = vld [vmem:[%s0 + $0x50c] sm:$0xf]
  %v194 = vld [vmem:[%s1] sm:$0xf]
  %v195 = vld [vmem:[%s1 + $0x4] sm:$0xf]
  %v196 = vld [vmem:[%s1 + $0x8] sm:$0xf]
  %v197 = vld [vmem:[%s1 + $0xc] sm:$0xf]
  %v198 = vld [vmem:[%s1 + $0x10] sm:$0xf]
  %v199 = vld [vmem:[%s1 + $0x14] sm:$0xf]
  %v200 = vld [vmem:[%s1 + $0x18] sm:$0xf]
  %v201 = vld [vmem:[%s1 + $0x1c] sm:$0xf]
  %v202 = vld [vmem:[%s1 + $0x20] sm:$0xf]
  %v203 = vld [vmem:[%s1 + $0x24] sm:$0xf]
  %v204 = vld [vmem:[%s1 + $0x28] sm:$0xf]
  %v205 = vld [vmem:[%s1 + $0x2c] sm:$0xf]
  %v206 = vld [vmem:[%s1 + $0x30] sm:$0xf]
  %v207 = vld [vmem:[%s1 + $0x34] sm:$0xf]
  %v208 = vld [vmem:[%s1 + $0x38] sm:$0xf]
  %v209 = vld [vmem:[%s1 + $0x3c] sm:$0xf]
  %v210 = vld [vmem:[%s1 + $0x40] sm:$0xf]
  %v211 = vld [vmem:[%s1 + $0x44] sm:$0xf]
  %v212 = vld [vmem:[%s1 + $0x48] sm:$0xf]
  %v213 = vld [vmem:[%s1 + $0x4c] sm:$0xf]
  %v214 = vld [vmem:[%s1 + $0x50] sm:$0xf]
  %v215 = vld [vmem:[%s1 + $0x54] sm:$0xf]
  %v216 = vld [vmem:[%s1 + $0x58] sm:$0xf]
  %v217 = vld [vmem:[%s1 + $0x5c] sm:$0xf]
  %v218 = vld [vmem:[%s1 + $0x60] sm:$0xf]
  %v219 = vld [vmem:[%s1 + $0x64] sm:$0xf]
  %v220 = vld [vmem:[%s1 + $0x68] sm:$0xf]
  %v221 = vld [vmem:[%s1 + $0x6c] sm:$0xf]
  %v222 = vld [vmem:[%s1 + $0x70] sm:$0xf]
  %v223 = vld [vmem:[%s1 + $0x74] sm:$0xf]
  %v224 = vld [vmem:[%s1 + $0x78] sm:$0xf]
  %v225 = vld [vmem:[%s1 + $0x7c] sm:$0xf]
  %v226 = vld [vmem:[%s1 + $0x80] sm:$0xf]
  %v227 = vld [vmem:[%s1 + $0x84] sm:$0xf]
  %v228 = vld [vmem:[%s1 + $0x88] sm:$0xf]
  %v229 = vld [vmem:[%s1 + $0x8c] sm:$0xf]
  %v230 = vld [vmem:[%s1 + $0x90] sm:$0xf]
  %v231 = vld [vmem:[%s1 + $0x94] sm:$0xf]
  %v232 = vld [vmem:[%s1 + $0x98] sm:$0xf]
  %v233 = vld [vmem:[%s1 + $0x9c] sm:$0xf]
  %v234 = vld [vmem:[%s1 + $0xa0] sm:$0xf]
  %v235 = vld [vmem:[%s1 + $0xa4] sm:$0xf]
  %v236 = vld [vmem:[%s1 + $0xa8] sm:$0xf]
  %v237 = vld [vmem:[%s1 + $0xac] sm:$0xf]
  %v238 = vld [vmem:[%s1 + $0xb0] sm:$0xf]
  %v239 = vld [vmem:[%s1 + $0xb4] sm:$0xf]
  %v240 = vld [vmem:[%s1 + $0xb8] sm:$0xf]
  %v241 = vld [vmem:[%s1 + $0xbc] sm:$0xf]
  %v242 = vld [vmem:[%s1 + $0xc0] sm:$0xf]
  %v243 = vld [vmem:[%s1 + $0xc4] sm:$0xf]
  %v244 = vld [vmem:[%s1 + $0xc8] sm:$0xf]
  %v245 = vld [vmem:[%s1 + $0xcc] sm:$0xf]
  %v246 = vld [vmem:[%s1 + $0xd0] sm:$0xf]
  %v247 = vld [vmem:[%s1 + $0xd4] sm:$0xf]
  %v248 = vld [vmem:[%s1 + $0xd8] sm:$0xf]
  %v249 = vld [vmem:[%s1 + $0xdc] sm:$0xf]
  %v250 = vld [vmem:[%s1 + $0xe0] sm:$0xf]
  %v251 = vld [vmem:[%s1 + $0xe4] sm:$0xf]
  %v252 = vld [vmem:[%s1 + $0xe8] sm:$0xf]
  %v253 = vld [vmem:[%s1 + $0xec] sm:$0xf]
  %v254 = vld [vmem:[%s1 + $0xf0] sm:$0xf]
  %v255 = vld [vmem:[%s1 + $0xf4] sm:$0xf]
  %v256 = vld [vmem:[%s1 + $0xf8] sm:$0xf]
  %v257 = vld [vmem:[%s1 + $0xfc] sm:$0xf]
  %v258 = vld [vmem:[%s1 + $0x100] sm:$0xf]
  %v259 = vld [vmem:[%s1 + $0x104] sm:$0xf]
  %v260 = vld [vmem:[%s1 + $0x108] sm:$0xf]
  %v261 = vld [vmem:[%s1 + $0x10c] sm:$0xf]
  %v262 = vld [vmem:[%s1 + $0x110] sm:$0xf]
  %v263 = vld [vmem:[%s1 + $0x114] sm:$0xf]
  %v264 = vld [vmem:[%s1 + $0x118] sm:$0xf]
  %v265 = vld [vmem:[%s1 + $0x11c] sm:$0xf]
  %v266 = vld [vmem:[%s1 + $0x120] sm:$0xf]
  %v267 = vld [vmem:[%s1 + $0x124] sm:$0xf]
  %v268 = vld [vmem:[%s1 + $0x128] sm:$0xf]
  %v269 = vld [vmem:[%s1 + $0x12c] sm:$0xf]
  %v270 = vld [vmem:[%s1 + $0x130] sm:$0xf]
  %v271 = vld [vmem:[%s1 + $0x134] sm:$0xf]
  %v272 = vld [vmem:[%s1 + $0x138] sm:$0xf]
  %v273 = vld [vmem:[%s1 + $0x13c] sm:$0xf]
  %v274 = vld [vmem:[%s1 + $0x140] sm:$0xf]
  %v275 = vld [vmem:[%s1 + $0x144] sm:$0xf]
  %v276 = vld [vmem:[%s1 + $0x148] sm:$0xf]
  %v277 = vld [vmem:[%s1 + $0x14c] sm:$0xf]
  %v278 = vld [vmem:[%s1 + $0x150] sm:$0xf]
  %v279 = vld [vmem:[%s1 + $0x154] sm:$0xf]
  %v280 = vld [vmem:[%s1 + $0x158] sm:$0xf]
  %v281 = vld [vmem:[%s1 + $0x15c] sm:$0xf]
  %v282 = vld [vmem:[%s1 + $0x160] sm:$0xf]
  %v283 = vld [vmem:[%s1 + $0x164] sm:$0xf]
  %v284 = vld [vmem:[%s1 + $0x168] sm:$0xf]
  %v285 = vld [vmem:[%s1 + $0x16c] sm:$0xf]
  %v286 = vld [vmem:[%s1 + $0x170] sm:$0xf]
  %v287 = vld [vmem:[%s1 + $0x174] sm:$0xf]
  %v288 = vld [vmem:[%s1 + $0x178] sm:$0xf]
  %v289 = vld [vmem:[%s1 + $0x17c] sm:$0xf]
  %v290 = vld [vmem:[%s1 + $0x180] sm:$0xf]
  %v291 = vld [vmem:[%s1 + $0x184] sm:$0xf]
  %v292 = vld [vmem:[%s1 + $0x188] sm:$0xf]
  %v293 = vld [vmem:[%s1 + $0x18c] sm:$0xf]
  %v294 = vld [vmem:[%s1 + $0x190] sm:$0xf]
  %v295 = vld [vmem:[%s1 + $0x194] sm:$0xf]
  %v296 = vld [vmem:[%s1 + $0x198] sm:$0xf]
  %v297 = vld [vmem:[%s1 + $0x19c] sm:$0xf]
  %v298 = vld [vmem:[%s1 + $0x1a0] sm:$0xf]
  %v299 = vld [vmem:[%s1 + $0x1a4] sm:$0xf]
  %v300 = vld [vmem:[%s1 + $0x1a8] sm:$0xf]
  %v301 = vld [vmem:[%s1 + $0x1ac] sm:$0xf]
  %v302 = vld [vmem:[%s1 + $0x1b0] sm:$0xf]
  %v303 = vld [vmem:[%s1 + $0x1b4] sm:$0xf]
  %v304 = vld [vmem:[%s1 + $0x1b8] sm:$0xf]
  %v305 = vld [vmem:[%s1 + $0x1bc] sm:$0xf]
  %v306 = vld [vmem:[%s1 + $0x1c0] sm:$0xf]
  %v307 = vld [vmem:[%s1 + $0x1c4] sm:$0xf]
  %v308 = vld [vmem:[%s1 + $0x1c8] sm:$0xf]
  %v309 = vld [vmem:[%s1 + $0x1cc] sm:$0xf]
  %v310 = vld [vmem:[%s1 + $0x1d0] sm:$0xf]
  %v311 = vld [vmem:[%s1 + $0x1d4] sm:$0xf]
  %v312 = vld [vmem:[%s1 + $0x1d8] sm:$0xf]
  %v313 = vld [vmem:[%s1 + $0x1dc] sm:$0xf]
  %v314 = vld [vmem:[%s1 + $0x1e0] sm:$0xf]
  %v315 = vld [vmem:[%s1 + $0x1e4] sm:$0xf]
  %v316 = vld [vmem:[%s1 + $0x1e8] sm:$0xf]
  %v317 = vld [vmem:[%s1 + $0x1ec] sm:$0xf]
  %v318 = vld [vmem:[%s1 + $0x1f0] sm:$0xf]
  %v319 = vld [vmem:[%s1 + $0x1f4] sm:$0xf]
  %v320 = vld [vmem:[%s1 + $0x1f8] sm:$0xf]
  %v321 = vld [vmem:[%s1 + $0x1fc] sm:$0xf]
  %v322 = vld [vmem:[%s1 + $0x200] sm:$0xf]
  %v323 = vld [vmem:[%s1 + $0x204] sm:$0xf]
  %v324 = vld [vmem:[%s1 + $0x208] sm:$0xf]
  %v325 = vld [vmem:[%s1 + $0x20c] sm:$0xf]
  %v326 = vld [vmem:[%s1 + $0x210] sm:$0xf]
  %v327 = vld [vmem:[%s1 + $0x214] sm:$0xf]
  %v328 = vld [vmem:[%s1 + $0x218] sm:$0xf]
  %v329 = vld [vmem:[%s1 + $0x21c] sm:$0xf]
  %v330 = vld [vmem:[%s1 + $0x220] sm:$0xf]
  %v331 = vld [vmem:[%s1 + $0x224] sm:$0xf]
  %v332 = vld [vmem:[%s1 + $0x228] sm:$0xf]
  %v333 = vld [vmem:[%s1 + $0x22c] sm:$0xf]
  %v334 = vld [vmem:[%s1 + $0x230] sm:$0xf]
  %v335 = vld [vmem:[%s1 + $0x234] sm:$0xf]
  %v336 = vld [vmem:[%s1 + $0x238] sm:$0xf]
  %v337 = vld [vmem:[%s1 + $0x23c] sm:$0xf]
  %v518 = vunpack.c.l.b16 %v14
  %v519 = vunpack.c.h.b16 %v14
  %v520 = vunpack.c.l.b16 %v15
  %v521 = vunpack.c.h.b16 %v15
  %v522 = vunpack.c.l.b16 %v16
  %v523 = vunpack.c.h.b16 %v16
  %v524 = vunpack.c.l.b16 %v17
  %v525 = vunpack.c.h.b16 %v17
  %v526 = vunpack.c.l.b16 %v18
  %v527 = vunpack.c.l.b16 %v19
  %v528 = vunpack.c.h.b16 %v19
  %v529 = vunpack.c.l.b16 %v20
  %v530 = vunpack.c.h.b16 %v20
  %v531 = vunpack.c.l.b16 %v21
  %v532 = vunpack.c.h.b16 %v21
  %v533 = vunpack.c.l.b16 %v22
  %v534 = vunpack.c.h.b16 %v22
  %v535 = vunpack.c.l.b16 %v23
  %v536 = vunpack.c.l.b16 %v24
  %v537 = vunpack.c.h.b16 %v24
  %v538 = vunpack.c.l.b16 %v25
  %v539 = vunpack.c.h.b16 %v25
  %v540 = vunpack.c.l.b16 %v26
  %v541 = vunpack.c.h.b16 %v26
  %v542 = vunpack.c.l.b16 %v27
  %v543 = vunpack.c.h.b16 %v27
  %v544 = vunpack.c.l.b16 %v28
  %v545 = vunpack.c.l.b16 %v29
  %v546 = vunpack.c.h.b16 %v29
  %v547 = vunpack.c.l.b16 %v30
  %v548 = vunpack.c.h.b16 %v30
  %v549 = vunpack.c.l.b16 %v31
  %v550 = vunpack.c.h.b16 %v31
  %v551 = vunpack.c.l.b16 %v32
  %v552 = vunpack.c.h.b16 %v32
  %v553 = vunpack.c.l.b16 %v33
  %v554 = vunpack.c.l.b16 %v34
  %v555 = vunpack.c.h.b16 %v34
  %v556 = vunpack.c.l.b16 %v35
  %v557 = vunpack.c.h.b16 %v35
  %v558 = vunpack.c.l.b16 %v36
  %v559 = vunpack.c.h.b16 %v36
  %v560 = vunpack.c.l.b16 %v37
  %v561 = vunpack.c.h.b16 %v37
  %v562 = vunpack.c.l.b16 %v38
  %v563 = vunpack.c.l.b16 %v39
  %v564 = vunpack.c.h.b16 %v39
  %v565 = vunpack.c.l.b16 %v40
  %v566 = vunpack.c.h.b16 %v40
  %v567 = vunpack.c.l.b16 %v41
  %v568 = vunpack.c.h.b16 %v41
  %v569 = vunpack.c.l.b16 %v42
  %v570 = vunpack.c.h.b16 %v42
  %v571 = vunpack.c.l.b16 %v43
  %v572 = vunpack.c.l.b16 %v44
  %v573 = vunpack.c.h.b16 %v44
  %v574 = vunpack.c.l.b16 %v45
  %v575 = vunpack.c.h.b16 %v45
  %v576 = vunpack.c.l.b16 %v46
  %v577 = vunpack.c.h.b16 %v46
  %v578 = vunpack.c.l.b16 %v47
  %v579 = vunpack.c.h.b16 %v47
  %v580 = vunpack.c.l.b16 %v48
  %v581 = vunpack.c.l.b16 %v49
  %v582 = vunpack.c.h.b16 %v49
  %v583 = vunpack.c.l.b16 %v50
  %v584 = vunpack.c.h.b16 %v50
  %v585 = vunpack.c.l.b16 %v51
  %v586 = vunpack.c.h.b16 %v51
  %v587 = vunpack.c.l.b16 %v52
  %v588 = vunpack.c.h.b16 %v52
  %v589 = vunpack.c.l.b16 %v53
  %v590 = vunpack.c.l.b16 %v54
  %v591 = vunpack.c.h.b16 %v54
  %v592 = vunpack.c.l.b16 %v55
  %v593 = vunpack.c.h.b16 %v55
  %v594 = vunpack.c.l.b16 %v56
  %v595 = vunpack.c.h.b16 %v56
  %v596 = vunpack.c.l.b16 %v57
  %v597 = vunpack.c.h.b16 %v57
  %v598 = vunpack.c.l.b16 %v58
  %v599 = vunpack.c.l.b16 %v59
  %v600 = vunpack.c.h.b16 %v59
  %v601 = vunpack.c.l.b16 %v60
  %v602 = vunpack.c.h.b16 %v60
  %v603 = vunpack.c.l.b16 %v61
  %v604 = vunpack.c.h.b16 %v61
  %v605 = vunpack.c.l.b16 %v62
  %v606 = vunpack.c.h.b16 %v62
  %v607 = vunpack.c.l.b16 %v63
  %v608 = vunpack.c.l.b16 %v64
  %v609 = vunpack.c.h.b16 %v64
  %v610 = vunpack.c.l.b16 %v65
  %v611 = vunpack.c.h.b16 %v65
  %v612 = vunpack.c.l.b16 %v66
  %v613 = vunpack.c.h.b16 %v66
  %v614 = vunpack.c.l.b16 %v67
  %v615 = vunpack.c.h.b16 %v67
  %v616 = vunpack.c.l.b16 %v68
  %v617 = vunpack.c.l.b16 %v69
  %v618 = vunpack.c.h.b16 %v69
  %v619 = vunpack.c.l.b16 %v70
  %v620 = vunpack.c.h.b16 %v70
  %v621 = vunpack.c.l.b16 %v71
  %v622 = vunpack.c.h.b16 %v71
  %v623 = vunpack.c.l.b16 %v72
  %v624 = vunpack.c.h.b16 %v72
  %v625 = vunpack.c.l.b16 %v73
  %v626 = vunpack.c.l.b16 %v74
  %v627 = vunpack.c.h.b16 %v74
  %v628 = vunpack.c.l.b16 %v75
  %v629 = vunpack.c.h.b16 %v75
  %v630 = vunpack.c.l.b16 %v76
  %v631 = vunpack.c.h.b16 %v76
  %v632 = vunpack.c.l.b16 %v77
  %v633 = vunpack.c.h.b16 %v77
  %v634 = vunpack.c.l.b16 %v78
  %v635 = vunpack.c.l.b16 %v79
  %v636 = vunpack.c.h.b16 %v79
  %v637 = vunpack.c.l.b16 %v80
  %v638 = vunpack.c.h.b16 %v80
  %v639 = vunpack.c.l.b16 %v81
  %v640 = vunpack.c.h.b16 %v81
  %v641 = vunpack.c.l.b16 %v82
  %v642 = vunpack.c.h.b16 %v82
  %v643 = vunpack.c.l.b16 %v83
  %v644 = vunpack.c.l.b16 %v84
  %v645 = vunpack.c.h.b16 %v84
  %v646 = vunpack.c.l.b16 %v85
  %v647 = vunpack.c.h.b16 %v85
  %v648 = vunpack.c.l.b16 %v86
  %v649 = vunpack.c.h.b16 %v86
  %v650 = vunpack.c.l.b16 %v87
  %v651 = vunpack.c.h.b16 %v87
  %v652 = vunpack.c.l.b16 %v88
  %v653 = vunpack.c.l.b16 %v89
  %v654 = vunpack.c.h.b16 %v89
  %v655 = vunpack.c.l.b16 %v90
  %v656 = vunpack.c.h.b16 %v90
  %v657 = vunpack.c.l.b16 %v91
  %v658 = vunpack.c.h.b16 %v91
  %v659 = vunpack.c.l.b16 %v92
  %v660 = vunpack.c.h.b16 %v92
  %v661 = vunpack.c.l.b16 %v93
  %v662 = vunpack.c.l.b16 %v94
  %v663 = vunpack.c.h.b16 %v94
  %v664 = vunpack.c.l.b16 %v95
  %v665 = vunpack.c.h.b16 %v95
  %v666 = vunpack.c.l.b16 %v96
  %v667 = vunpack.c.h.b16 %v96
  %v668 = vunpack.c.l.b16 %v97
  %v669 = vunpack.c.h.b16 %v97
  %v670 = vunpack.c.l.b16 %v98
  %v671 = vunpack.c.l.b16 %v99
  %v672 = vunpack.c.h.b16 %v99
  %v673 = vunpack.c.l.b16 %v100
  %v674 = vunpack.c.h.b16 %v100
  %v675 = vunpack.c.l.b16 %v101
  %v676 = vunpack.c.h.b16 %v101
  %v677 = vunpack.c.l.b16 %v102
  %v678 = vunpack.c.h.b16 %v102
  %v679 = vunpack.c.l.b16 %v103
  %v680 = vunpack.c.l.b16 %v104
  %v681 = vunpack.c.h.b16 %v104
  %v682 = vunpack.c.l.b16 %v105
  %v683 = vunpack.c.h.b16 %v105
  %v684 = vunpack.c.l.b16 %v106
  %v685 = vunpack.c.h.b16 %v106
  %v686 = vunpack.c.l.b16 %v107
  %v687 = vunpack.c.h.b16 %v107
  %v688 = vunpack.c.l.b16 %v108
  %v689 = vunpack.c.l.b16 %v109
  %v690 = vunpack.c.h.b16 %v109
  %v691 = vunpack.c.l.b16 %v110
  %v692 = vunpack.c.h.b16 %v110
  %v693 = vunpack.c.l.b16 %v111
  %v694 = vunpack.c.h.b16 %v111
  %v695 = vunpack.c.l.b16 %v112
  %v696 = vunpack.c.h.b16 %v112
  %v697 = vunpack.c.l.b16 %v113
  %v698 = vunpack.c.l.b16 %v114
  %v699 = vunpack.c.h.b16 %v114
  %v700 = vunpack.c.l.b16 %v115
  %v701 = vunpack.c.h.b16 %v115
  %v702 = vunpack.c.l.b16 %v116
  %v703 = vunpack.c.h.b16 %v116
  %v704 = vunpack.c.l.b16 %v117
  %v705 = vunpack.c.h.b16 %v117
  %v706 = vunpack.c.l.b16 %v118
  %v707 = vunpack.c.l.b16 %v119
  %v708 = vunpack.c.h.b16 %v119
  %v709 = vunpack.c.l.b16 %v120
  %v710 = vunpack.c.h.b16 %v120
  %v711 = vunpack.c.l.b16 %v121
  %v712 = vunpack.c.h.b16 %v121
  %v713 = vunpack.c.l.b16 %v122
  %v714 = vunpack.c.h.b16 %v122
  %v715 = vunpack.c.l.b16 %v123
  %v716 = vunpack.c.l.b16 %v124
  %v717 = vunpack.c.h.b16 %v124
  %v718 = vunpack.c.l.b16 %v125
  %v719 = vunpack.c.h.b16 %v125
  %v720 = vunpack.c.l.b16 %v126
  %v721 = vunpack.c.h.b16 %v126
  %v722 = vunpack.c.l.b16 %v127
  %v723 = vunpack.c.h.b16 %v127
  %v724 = vunpack.c.l.b16 %v128
  %v725 = vunpack.c.l.b16 %v129
  %v726 = vunpack.c.h.b16 %v129
  %v727 = vunpack.c.l.b16 %v130
  %v728 = vunpack.c.h.b16 %v130
  %v729 = vunpack.c.l.b16 %v131
  %v730 = vunpack.c.h.b16 %v131
  %v731 = vunpack.c.l.b16 %v132
  %v732 = vunpack.c.h.b16 %v132
  %v733 = vunpack.c.l.b16 %v133
  %v734 = vunpack.c.l.b16 %v134
  %v735 = vunpack.c.h.b16 %v134
  %v736 = vunpack.c.l.b16 %v135
  %v737 = vunpack.c.h.b16 %v135
  %v738 = vunpack.c.l.b16 %v136
  %v739 = vunpack.c.h.b16 %v136
  %v740 = vunpack.c.l.b16 %v137
  %v741 = vunpack.c.h.b16 %v137
  %v742 = vunpack.c.l.b16 %v138
  %v743 = vunpack.c.l.b16 %v139
  %v744 = vunpack.c.h.b16 %v139
  %v745 = vunpack.c.l.b16 %v140
  %v746 = vunpack.c.h.b16 %v140
  %v747 = vunpack.c.l.b16 %v141
  %v748 = vunpack.c.h.b16 %v141
  %v749 = vunpack.c.l.b16 %v142
  %v750 = vunpack.c.h.b16 %v142
  %v751 = vunpack.c.l.b16 %v143
  %v752 = vunpack.c.l.b16 %v144
  %v753 = vunpack.c.h.b16 %v144
  %v754 = vunpack.c.l.b16 %v145
  %v755 = vunpack.c.h.b16 %v145
  %v756 = vunpack.c.l.b16 %v146
  %v757 = vunpack.c.h.b16 %v146
  %v758 = vunpack.c.l.b16 %v147
  %v759 = vunpack.c.h.b16 %v147
  %v760 = vunpack.c.l.b16 %v148
  %v761 = vunpack.c.l.b16 %v149
  %v762 = vunpack.c.h.b16 %v149
  %v763 = vunpack.c.l.b16 %v150
  %v764 = vunpack.c.h.b16 %v150
  %v765 = vunpack.c.l.b16 %v151
  %v766 = vunpack.c.h.b16 %v151
  %v767 = vunpack.c.l.b16 %v152
  %v768 = vunpack.c.h.b16 %v152
  %v769 = vunpack.c.l.b16 %v153
  %v770 = vunpack.c.l.b16 %v154
  %v771 = vunpack.c.h.b16 %v154
  %v772 = vunpack.c.l.b16 %v155
  %v773 = vunpack.c.h.b16 %v155
  %v774 = vunpack.c.l.b16 %v156
  %v775 = vunpack.c.h.b16 %v156
  %v776 = vunpack.c.l.b16 %v157
  %v777 = vunpack.c.h.b16 %v157
  %v778 = vunpack.c.l.b16 %v158
  %v779 = vunpack.c.l.b16 %v159
  %v780 = vunpack.c.h.b16 %v159
  %v781 = vunpack.c.l.b16 %v160
  %v782 = vunpack.c.h.b16 %v160
  %v783 = vunpack.c.l.b16 %v161
  %v784 = vunpack.c.h.b16 %v161
  %v785 = vunpack.c.l.b16 %v162
  %v786 = vunpack.c.h.b16 %v162
  %v787 = vunpack.c.l.b16 %v163
  %v788 = vunpack.c.l.b16 %v164
  %v789 = vunpack.c.h.b16 %v164
  %v790 = vunpack.c.l.b16 %v165
  %v791 = vunpack.c.h.b16 %v165
  %v792 = vunpack.c.l.b16 %v166
  %v793 = vunpack.c.h.b16 %v166
  %v794 = vunpack.c.l.b16 %v167
  %v795 = vunpack.c.h.b16 %v167
  %v796 = vunpack.c.l.b16 %v168
  %v797 = vunpack.c.l.b16 %v169
  %v798 = vunpack.c.h.b16 %v169
  %v799 = vunpack.c.l.b16 %v170
  %v800 = vunpack.c.h.b16 %v170
  %v801 = vunpack.c.l.b16 %v171
  %v802 = vunpack.c.h.b16 %v171
  %v803 = vunpack.c.l.b16 %v172
  %v804 = vunpack.c.h.b16 %v172
  %v805 = vunpack.c.l.b16 %v173
  %v806 = vunpack.c.l.b16 %v174
  %v807 = vunpack.c.h.b16 %v174
  %v808 = vunpack.c.l.b16 %v175
  %v809 = vunpack.c.h.b16 %v175
  %v810 = vunpack.c.l.b16 %v176
  %v811 = vunpack.c.h.b16 %v176
  %v812 = vunpack.c.l.b16 %v177
  %v813 = vunpack.c.h.b16 %v177
  %v814 = vunpack.c.l.b16 %v178
  %v815 = vunpack.c.l.b16 %v179
  %v816 = vunpack.c.h.b16 %v179
  %v817 = vunpack.c.l.b16 %v180
  %v818 = vunpack.c.h.b16 %v180
  %v819 = vunpack.c.l.b16 %v181
  %v820 = vunpack.c.h.b16 %v181
  %v821 = vunpack.c.l.b16 %v182
  %v822 = vunpack.c.h.b16 %v182
  %v823 = vunpack.c.l.b16 %v183
  %v824 = vunpack.c.l.b16 %v184
  %v825 = vunpack.c.h.b16 %v184
  %v826 = vunpack.c.l.b16 %v185
  %v827 = vunpack.c.h.b16 %v185
  %v828 = vunpack.c.l.b16 %v186
  %v829 = vunpack.c.h.b16 %v186
  %v830 = vunpack.c.l.b16 %v187
  %v831 = vunpack.c.h.b16 %v187
  %v832 = vunpack.c.l.b16 %v188
  %v833 = vunpack.c.l.b16 %v189
  %v834 = vunpack.c.h.b16 %v189
  %v835 = vunpack.c.l.b16 %v190
  %v836 = vunpack.c.h.b16 %v190
  %v837 = vunpack.c.l.b16 %v191
  %v838 = vunpack.c.h.b16 %v191
  %v839 = vunpack.c.l.b16 %v192
  %v840 = vunpack.c.h.b16 %v192
  %v841 = vunpack.c.l.b16 %v193
  %v842 = vpack.c.b16 %v527, %v518
  %v843 = vpack.c.b16 %v528, %v519
  %v844 = vpack.c.b16 %v529, %v520
  %v845 = vpack.c.b16 %v530, %v521
  %v846 = vpack.c.b16 %v531, %v522
  %v847 = vpack.c.b16 %v532, %v523
  %v848 = vpack.c.b16 %v533, %v524
  %v849 = vpack.c.b16 %v534, %v525
  %v850 = vpack.c.b16 %v535, %v526
  %v851 = vpack.c.b16 %v545, %v536
  %v852 = vpack.c.b16 %v546, %v537
  %v853 = vpack.c.b16 %v547, %v538
  %v854 = vpack.c.b16 %v548, %v539
  %v855 = vpack.c.b16 %v549, %v540
  %v856 = vpack.c.b16 %v550, %v541
  %v857 = vpack.c.b16 %v551, %v542
  %v858 = vpack.c.b16 %v552, %v543
  %v859 = vpack.c.b16 %v553, %v544
  %v860 = vpack.c.b16 %v563, %v554
  %v861 = vpack.c.b16 %v564, %v555
  %v862 = vpack.c.b16 %v565, %v556
  %v863 = vpack.c.b16 %v566, %v557
  %v864 = vpack.c.b16 %v567, %v558
  %v865 = vpack.c.b16 %v568, %v559
  %v866 = vpack.c.b16 %v569, %v560
  %v867 = vpack.c.b16 %v570, %v561
  %v868 = vpack.c.b16 %v571, %v562
  %v869 = vpack.c.b16 %v581, %v572
  %v870 = vpack.c.b16 %v582, %v573
  %v871 = vpack.c.b16 %v583, %v574
  %v872 = vpack.c.b16 %v584, %v575
  %v873 = vpack.c.b16 %v585, %v576
  %v874 = vpack.c.b16 %v586, %v577
  %v875 = vpack.c.b16 %v587, %v578
  %v876 = vpack.c.b16 %v588, %v579
  %v877 = vpack.c.b16 %v589, %v580
  %v878 = vpack.c.b16 %v599, %v590
  %v879 = vpack.c.b16 %v600, %v591
  %v880 = vpack.c.b16 %v601, %v592
  %v881 = vpack.c.b16 %v602, %v593
  %v882 = vpack.c.b16 %v603, %v594
  %v883 = vpack.c.b16 %v604, %v595
  %v884 = vpack.c.b16 %v605, %v596
  %v885 = vpack.c.b16 %v606, %v597
  %v886 = vpack.c.b16 %v607, %v598
  %v887 = vpack.c.b16 %v617, %v608
  %v888 = vpack.c.b16 %v618, %v609
  %v889 = vpack.c.b16 %v619, %v610
  %v890 = vpack.c.b16 %v620, %v611
  %v891 = vpack.c.b16 %v621, %v612
  %v892 = vpack.c.b16 %v622, %v613
  %v893 = vpack.c.b16 %v623, %v614
  %v894 = vpack.c.b16 %v624, %v615
  %v895 = vpack.c.b16 %v625, %v616
  %v896 = vpack.c.b16 %v635, %v626
  %v897 = vpack.c.b16 %v636, %v627
  %v898 = vpack.c.b16 %v637, %v628
  %v899 = vpack.c.b16 %v638, %v629
  %v900 = vpack.c.b16 %v639, %v630
  %v901 = vpack.c.b16 %v640, %v631
  %v902 = vpack.c.b16 %v641, %v632
  %v903 = vpack.c.b16 %v642, %v633
  %v904 = vpack.c.b16 %v643, %v634
  %v905 = vpack.c.b16 %v653, %v644
  %v906 = vpack.c.b16 %v654, %v645
  %v907 = vpack.c.b16 %v655, %v646
  %v908 = vpack.c.b16 %v656, %v647
  %v909 = vpack.c.b16 %v657, %v648
  %v910 = vpack.c.b16 %v658, %v649
  %v911 = vpack.c.b16 %v659, %v650
  %v912 = vpack.c.b16 %v660, %v651
  %v913 = vpack.c.b16 %v661, %v652
  %v914 = vpack.c.b16 %v671, %v662
  %v915 = vpack.c.b16 %v672, %v663
  %v916 = vpack.c.b16 %v673, %v664
  %v917 = vpack.c.b16 %v674, %v665
  %v918 = vpack.c.b16 %v675, %v666
  %v919 = vpack.c.b16 %v676, %v667
  %v920 = vpack.c.b16 %v677, %v668
  %v921 = vpack.c.b16 %v678, %v669
  %v922 = vpack.c.b16 %v679, %v670
  %v923 = vpack.c.b16 %v689, %v680
  %v924 = vpack.c.b16 %v690, %v681
  %v925 = vpack.c.b16 %v691, %v682
  %v926 = vpack.c.b16 %v692, %v683
  %v927 = vpack.c.b16 %v693, %v684
  %v928 = vpack.c.b16 %v694, %v685
  %v929 = vpack.c.b16 %v695, %v686
  %v930 = vpack.c.b16 %v696, %v687
  %v931 = vpack.c.b16 %v697, %v688
  %v932 = vpack.c.b16 %v707, %v698
  %v933 = vpack.c.b16 %v708, %v699
  %v934 = vpack.c.b16 %v709, %v700
  %v935 = vpack.c.b16 %v710, %v701
  %v936 = vpack.c.b16 %v711, %v702
  %v937 = vpack.c.b16 %v712, %v703
  %v938 = vpack.c.b16 %v713, %v704
  %v939 = vpack.c.b16 %v714, %v705
  %v940 = vpack.c.b16 %v715, %v706
  %v941 = vpack.c.b16 %v725, %v716
  %v942 = vpack.c.b16 %v726, %v717
  %v943 = vpack.c.b16 %v727, %v718
  %v944 = vpack.c.b16 %v728, %v719
  %v945 = vpack.c.b16 %v729, %v720
  %v946 = vpack.c.b16 %v730, %v721
  %v947 = vpack.c.b16 %v731, %v722
  %v948 = vpack.c.b16 %v732, %v723
  %v949 = vpack.c.b16 %v733, %v724
  %v950 = vpack.c.b16 %v743, %v734
  %v951 = vpack.c.b16 %v744, %v735
  %v952 = vpack.c.b16 %v745, %v736
  %v953 = vpack.c.b16 %v746, %v737
  %v954 = vpack.c.b16 %v747, %v738
  %v955 = vpack.c.b16 %v748, %v739
  %v956 = vpack.c.b16 %v749, %v740
  %v957 = vpack.c.b16 %v750, %v741
  %v958 = vpack.c.b16 %v751, %v742
  %v959 = vpack.c.b16 %v761, %v752
  %v960 = vpack.c.b16 %v762, %v753
  %v961 = vpack.c.b16 %v763, %v754
  %v962 = vpack.c.b16 %v764, %v755
  %v963 = vpack.c.b16 %v765, %v756
  %v964 = vpack.c.b16 %v766, %v757
  %v965 = vpack.c.b16 %v767, %v758
  %v966 = vpack.c.b16 %v768, %v759
  %v967 = vpack.c.b16 %v769, %v760
  %v968 = vpack.c.b16 %v779, %v770
  %v969 = vpack.c.b16 %v780, %v771
  %v970 = vpack.c.b16 %v781, %v772
  %v971 = vpack.c.b16 %v782, %v773
  %v972 = vpack.c.b16 %v783, %v774
  %v973 = vpack.c.b16 %v784, %v775
  %v974 = vpack.c.b16 %v785, %v776
  %v975 = vpack.c.b16 %v786, %v777
  %v976 = vpack.c.b16 %v787, %v778
  %v977 = vpack.c.b16 %v797, %v788
  %v978 = vpack.c.b16 %v798, %v789
  %v979 = vpack.c.b16 %v799, %v790
  %v980 = vpack.c.b16 %v800, %v791
  %v981 = vpack.c.b16 %v801, %v792
  %v982 = vpack.c.b16 %v802, %v793
  %v983 = vpack.c.b16 %v803, %v794
  %v984 = vpack.c.b16 %v804, %v795
  %v985 = vpack.c.b16 %v805, %v796
  %v986 = vpack.c.b16 %v815, %v806
  %v987 = vpack.c.b16 %v816, %v807
  %v988 = vpack.c.b16 %v817, %v808
  %v989 = vpack.c.b16 %v818, %v809
  %v990 = vpack.c.b16 %v819, %v810
  %v991 = vpack.c.b16 %v820, %v811
  %v992 = vpack.c.b16 %v821, %v812
  %v993 = vpack.c.b16 %v822, %v813
  %v994 = vpack.c.b16 %v823, %v814
  %v995 = vpack.c.b16 %v833, %v824
  %v996 = vpack.c.b16 %v834, %v825
  %v997 = vpack.c.b16 %v835, %v826
  %v998 = vpack.c.b16 %v836, %v827
  %v999 = vpack.c.b16 %v837, %v828
  %v1000 = vpack.c.b16 %v838, %v829
  %v1001 = vpack.c.b16 %v839, %v830
  %v1002 = vpack.c.b16 %v840, %v831
  %v1003 = vpack.c.b16 %v841, %v832
  %v1310 = vunpack.c.l.b16 %v194
  %v1311 = vunpack.c.l.b16 %v195
  %v1312 = vunpack.c.l.b16 %v196
  %v1313 = vunpack.c.l.b16 %v197
  %v1314 = vunpack.c.l.b16 %v198
  %v1315 = vunpack.c.l.b16 %v199
  %v1316 = vunpack.c.l.b16 %v200
  %v1317 = vunpack.c.l.b16 %v201
  %v1318 = vunpack.c.l.b16 %v202
  %v1319 = vunpack.c.l.b16 %v203
  %v1320 = vunpack.c.l.b16 %v204
  %v1321 = vunpack.c.l.b16 %v205
  %v1322 = vunpack.c.l.b16 %v206
  %v1323 = vunpack.c.l.b16 %v207
  %v1324 = vunpack.c.l.b16 %v208
  %v1325 = vunpack.c.l.b16 %v209
  %v1326 = vunpack.c.l.b16 %v210
  %v1327 = vunpack.c.l.b16 %v211
  %v1328 = vunpack.c.l.b16 %v212
  %v1329 = vunpack.c.l.b16 %v213
  %v1330 = vunpack.c.l.b16 %v214
  %v1331 = vunpack.c.l.b16 %v215
  %v1332 = vunpack.c.l.b16 %v216
  %v1333 = vunpack.c.l.b16 %v217
  %v1334 = vunpack.c.l.b16 %v218
  %v1335 = vunpack.c.l.b16 %v219
  %v1336 = vunpack.c.l.b16 %v220
  %v1337 = vunpack.c.l.b16 %v221
  %v1338 = vunpack.c.l.b16 %v222
  %v1339 = vunpack.c.l.b16 %v223
  %v1340 = vunpack.c.l.b16 %v224
  %v1341 = vunpack.c.l.b16 %v225
  %v1342 = vunpack.c.l.b16 %v226
  %v1343 = vunpack.c.l.b16 %v227
  %v1344 = vunpack.c.l.b16 %v228
  %v1345 = vunpack.c.l.b16 %v229
  %v1346 = vunpack.c.l.b16 %v230
  %v1347 = vunpack.c.l.b16 %v231
  %v1348 = vunpack.c.l.b16 %v232
  %v1349 = vunpack.c.l.b16 %v233
  %v1350 = vunpack.c.l.b16 %v234
  %v1351 = vunpack.c.l.b16 %v235
  %v1352 = vunpack.c.l.b16 %v236
  %v1353 = vunpack.c.l.b16 %v237
  %v1354 = vunpack.c.l.b16 %v238
  %v1355 = vunpack.c.l.b16 %v239
  %v1356 = vunpack.c.l.b16 %v240
  %v1357 = vunpack.c.l.b16 %v241
  %v1358 = vunpack.c.l.b16 %v242
  %v1359 = vunpack.c.l.b16 %v243
  %v1360 = vunpack.c.l.b16 %v244
  %v1361 = vunpack.c.l.b16 %v245
  %v1362 = vunpack.c.l.b16 %v246
  %v1363 = vunpack.c.l.b16 %v247
  %v1364 = vunpack.c.l.b16 %v248
  %v1365 = vunpack.c.l.b16 %v249
  %v1366 = vunpack.c.l.b16 %v250
  %v1367 = vunpack.c.l.b16 %v251
  %v1368 = vunpack.c.l.b16 %v252
  %v1369 = vunpack.c.l.b16 %v253
  %v1370 = vunpack.c.l.b16 %v254
  %v1371 = vunpack.c.l.b16 %v255
  %v1372 = vunpack.c.l.b16 %v256
  %v1373 = vunpack.c.l.b16 %v257
  %v1374 = vunpack.c.l.b16 %v258
  %v1375 = vunpack.c.l.b16 %v259
  %v1376 = vunpack.c.l.b16 %v260
  %v1377 = vunpack.c.l.b16 %v261
  %v1378 = vunpack.c.l.b16 %v262
  %v1379 = vunpack.c.l.b16 %v263
  %v1380 = vunpack.c.l.b16 %v264
  %v1381 = vunpack.c.l.b16 %v265
  %v1382 = vunpack.c.l.b16 %v266
  %v1383 = vunpack.c.l.b16 %v267
  %v1384 = vunpack.c.l.b16 %v268
  %v1385 = vunpack.c.l.b16 %v269
  %v1386 = vunpack.c.l.b16 %v270
  %v1387 = vunpack.c.l.b16 %v271
  %v1388 = vunpack.c.l.b16 %v272
  %v1389 = vunpack.c.l.b16 %v273
  %v1390 = vunpack.c.l.b16 %v274
  %v1391 = vunpack.c.l.b16 %v275
  %v1392 = vunpack.c.l.b16 %v276
  %v1393 = vunpack.c.l.b16 %v277
  %v1394 = vunpack.c.l.b16 %v278
  %v1395 = vunpack.c.l.b16 %v279
  %v1396 = vunpack.c.l.b16 %v280
  %v1397 = vunpack.c.l.b16 %v281
  %v1398 = vunpack.c.l.b16 %v282
  %v1399 = vunpack.c.l.b16 %v283
  %v1400 = vunpack.c.l.b16 %v284
  %v1401 = vunpack.c.l.b16 %v285
  %v1402 = vunpack.c.l.b16 %v286
  %v1403 = vunpack.c.l.b16 %v287
  %v1404 = vunpack.c.l.b16 %v288
  %v1405 = vunpack.c.l.b16 %v289
  %v1406 = vunpack.c.l.b16 %v290
  %v1407 = vunpack.c.l.b16 %v291
  %v1408 = vunpack.c.l.b16 %v292
  %v1409 = vunpack.c.l.b16 %v293
  %v1410 = vunpack.c.l.b16 %v294
  %v1411 = vunpack.c.l.b16 %v295
  %v1412 = vunpack.c.l.b16 %v296
  %v1413 = vunpack.c.l.b16 %v297
  %v1414 = vunpack.c.l.b16 %v298
  %v1415 = vunpack.c.l.b16 %v299
  %v1416 = vunpack.c.l.b16 %v300
  %v1417 = vunpack.c.l.b16 %v301
  %v1418 = vunpack.c.l.b16 %v302
  %v1419 = vunpack.c.l.b16 %v303
  %v1420 = vunpack.c.l.b16 %v304
  %v1421 = vunpack.c.l.b16 %v305
  %v1422 = vunpack.c.l.b16 %v306
  %v1423 = vunpack.c.l.b16 %v307
  %v1424 = vunpack.c.l.b16 %v308
  %v1425 = vunpack.c.l.b16 %v309
  %v1426 = vunpack.c.l.b16 %v310
  %v1427 = vunpack.c.l.b16 %v311
  %v1428 = vunpack.c.l.b16 %v312
  %v1429 = vunpack.c.l.b16 %v313
  %v1430 = vunpack.c.l.b16 %v314
  %v1431 = vunpack.c.l.b16 %v315
  %v1432 = vunpack.c.l.b16 %v316
  %v1433 = vunpack.c.l.b16 %v317
  %v1434 = vunpack.c.l.b16 %v318
  %v1435 = vunpack.c.l.b16 %v319
  %v1436 = vunpack.c.l.b16 %v320
  %v1437 = vunpack.c.l.b16 %v321
  %v1438 = vunpack.c.l.b16 %v322
  %v1439 = vunpack.c.l.b16 %v323
  %v1440 = vunpack.c.l.b16 %v324
  %v1441 = vunpack.c.l.b16 %v325
  %v1442 = vunpack.c.l.b16 %v326
  %v1443 = vunpack.c.l.b16 %v327
  %v1444 = vunpack.c.l.b16 %v328
  %v1445 = vunpack.c.l.b16 %v329
  %v1446 = vunpack.c.l.b16 %v330
  %v1447 = vunpack.c.l.b16 %v331
  %v1448 = vunpack.c.l.b16 %v332
  %v1449 = vunpack.c.l.b16 %v333
  %v1450 = vunpack.c.l.b16 %v334
  %v1451 = vunpack.c.l.b16 %v335
  %v1452 = vunpack.c.l.b16 %v336
  %v1453 = vunpack.c.l.b16 %v337
  %v1454 = vpack.c.b16 %v1311, %v1310
  %v1455 = vpack.c.b16 %v1313, %v1312
  %v1456 = vpack.c.b16 %v1315, %v1314
  %v1457 = vpack.c.b16 %v1317, %v1316
  %v1458 = vpack.c.b16 %v1319, %v1318
  %v1459 = vpack.c.b16 %v1321, %v1320
  %v1460 = vpack.c.b16 %v1323, %v1322
  %v1461 = vpack.c.b16 %v1325, %v1324
  %v1462 = vpack.c.b16 %v1327, %v1326
  %v1463 = vpack.c.b16 %v1329, %v1328
  %v1464 = vpack.c.b16 %v1331, %v1330
  %v1465 = vpack.c.b16 %v1333, %v1332
  %v1466 = vpack.c.b16 %v1335, %v1334
  %v1467 = vpack.c.b16 %v1337, %v1336
  %v1468 = vpack.c.b16 %v1339, %v1338
  %v1469 = vpack.c.b16 %v1341, %v1340
  %v1470 = vpack.c.b16 %v1343, %v1342
  %v1471 = vpack.c.b16 %v1345, %v1344
  %v1472 = vpack.c.b16 %v1347, %v1346
  %v1473 = vpack.c.b16 %v1349, %v1348
  %v1474 = vpack.c.b16 %v1351, %v1350
  %v1475 = vpack.c.b16 %v1353, %v1352
  %v1476 = vpack.c.b16 %v1355, %v1354
  %v1477 = vpack.c.b16 %v1357, %v1356
  %v1478 = vpack.c.b16 %v1359, %v1358
  %v1479 = vpack.c.b16 %v1361, %v1360
  %v1480 = vpack.c.b16 %v1363, %v1362
  %v1481 = vpack.c.b16 %v1365, %v1364
  %v1482 = vpack.c.b16 %v1367, %v1366
  %v1483 = vpack.c.b16 %v1369, %v1368
  %v1484 = vpack.c.b16 %v1371, %v1370
  %v1485 = vpack.c.b16 %v1373, %v1372
  %v1486 = vpack.c.b16 %v1375, %v1374
  %v1487 = vpack.c.b16 %v1377, %v1376
  %v1488 = vpack.c.b16 %v1379, %v1378
  %v1489 = vpack.c.b16 %v1381, %v1380
  %v1490 = vpack.c.b16 %v1383, %v1382
  %v1491 = vpack.c.b16 %v1385, %v1384
  %v1492 = vpack.c.b16 %v1387, %v1386
  %v1493 = vpack.c.b16 %v1389, %v1388
  %v1494 = vpack.c.b16 %v1391, %v1390
  %v1495 = vpack.c.b16 %v1393, %v1392
  %v1496 = vpack.c.b16 %v1395, %v1394
  %v1497 = vpack.c.b16 %v1397, %v1396
  %v1498 = vpack.c.b16 %v1399, %v1398
  %v1499 = vpack.c.b16 %v1401, %v1400
  %v1500 = vpack.c.b16 %v1403, %v1402
  %v1501 = vpack.c.b16 %v1405, %v1404
  %v1502 = vpack.c.b16 %v1407, %v1406
  %v1503 = vpack.c.b16 %v1409, %v1408
  %v1504 = vpack.c.b16 %v1411, %v1410
  %v1505 = vpack.c.b16 %v1413, %v1412
  %v1506 = vpack.c.b16 %v1415, %v1414
  %v1507 = vpack.c.b16 %v1417, %v1416
  %v1508 = vpack.c.b16 %v1419, %v1418
  %v1509 = vpack.c.b16 %v1421, %v1420
  %v1510 = vpack.c.b16 %v1423, %v1422
  %v1511 = vpack.c.b16 %v1425, %v1424
  %v1512 = vpack.c.b16 %v1427, %v1426
  %v1513 = vpack.c.b16 %v1429, %v1428
  %v1514 = vpack.c.b16 %v1431, %v1430
  %v1515 = vpack.c.b16 %v1433, %v1432
  %v1516 = vpack.c.b16 %v1435, %v1434
  %v1517 = vpack.c.b16 %v1437, %v1436
  %v1518 = vpack.c.b16 %v1439, %v1438
  %v1519 = vpack.c.b16 %v1441, %v1440
  %v1520 = vpack.c.b16 %v1443, %v1442
  %v1521 = vpack.c.b16 %v1445, %v1444
  %v1522 = vpack.c.b16 %v1447, %v1446
  %v1523 = vpack.c.b16 %v1449, %v1448
  %v1524 = vpack.c.b16 %v1451, %v1450
  %v1525 = vpack.c.b16 %v1453, %v1452
  %1598 = vmatprep.subr.bf16.mxu0 0
  %1599 = vmatpush1.bf16.msra.mxu0 %v1454
  %1600 = vmatprep.subr.bf16.mxu0 0
  %1601 = vmatpush1.bf16.msra.mxu0 %v1455
  %1602 = vmatprep.subr.bf16.mxu0 0
  %1603 = vmatpush1.bf16.msra.mxu0 %v1456
  %1604 = vmatprep.subr.bf16.mxu0 0
  %1605 = vmatpush1.bf16.msra.mxu0 %v1457
  %1606 = vmatprep.subr.bf16.mxu0 0
  %1607 = vmatpush1.bf16.msra.mxu0 %v1458
  %1608 = vmatprep.subr.bf16.mxu0 0
  %1609 = vmatpush1.bf16.msra.mxu0 %v1459
  %1610 = vmatprep.subr.bf16.mxu0 0
  %1611 = vmatpush1.bf16.msra.mxu0 %v1460
  %1612 = vmatprep.subr.bf16.mxu0 0
  %1613 = vmatpush1.bf16.msra.mxu0 %v1461
  %1614 = vmatprep.subr.bf16.mxu0 0
  %1615 = vmatpush1.bf16.msra.mxu0 %v1462
  %1616 = vmatprep.subr.bf16.mxu0 0
  %1617 = vmatpush1.bf16.msra.mxu0 %v1463
  %1618 = vmatprep.subr.bf16.mxu0 0
  %1619 = vmatpush1.bf16.msra.mxu0 %v1464
  %1620 = vmatprep.subr.bf16.mxu0 0
  %1621 = vmatpush1.bf16.msra.mxu0 %v1465
  %1622 = vmatprep.subr.bf16.mxu0 0
  %1623 = vmatpush1.bf16.msra.mxu0 %v1466
  %1624 = vmatprep.subr.bf16.mxu0 0
  %1625 = vmatpush1.bf16.msra.mxu0 %v1467
  %1626 = vmatprep.subr.bf16.mxu0 0
  %1627 = vmatpush1.bf16.msra.mxu0 %v1468
  %1628 = vmatprep.subr.bf16.mxu0 0
  %1629 = vmatpush1.bf16.msra.mxu0 %v1469
  %1630 = vmatprep.mubr.bf16.mxu0 %v843
  %1631 = vmatmul.mubr.bf16.gmra.mrb[0].mxu0 %v842
  %v1632 = vpop.f32.mrb[0].mxu0
  %v1633 = vadd.f32 0.0, %v1632
  %v1634 = vpop.f32.mrb[0].mxu0
  %v1635 = vpop.f32.mrb[0].mxu0
  %v1636 = vadd.f32 0.0, %v1635
  %v1637 = vpop.f32.mrb[0].mxu0
  %1638 = vmatprep.mubr.bf16.mxu0 %v852
  %1639 = vmatmul.mubr.bf16.gmra.mrb[0].mxu0 %v851
  %v1640 = vpop.f32.mrb[0].mxu0
  %v1641 = vadd.f32 0.0, %v1640
  %v1642 = vpop.f32.mrb[0].mxu0
  %v1643 = vpop.f32.mrb[0].mxu0
  %v1644 = vadd.f32 0.0, %v1643
  %v1645 = vpop.f32.mrb[0].mxu0
  %1646 = vmatprep.mubr.bf16.mxu0 %v861
  %1647 = vmatmul.mubr.bf16.gmra.mrb[0].mxu0 %v860
  %v1648 = vpop.f32.mrb[0].mxu0
  %v1649 = vadd.f32 0.0, %v1648
  %v1650 = vpop.f32.mrb[0].mxu0
  %v1651 = vpop.f32.mrb[0].mxu0
  %v1652 = vadd.f32 0.0, %v1651
  %v1653 = vpop.f32.mrb[0].mxu0
  %1654 = vmatprep.mubr.bf16.mxu0 %v870
  %1655 = vmatmul.mubr.bf16.gmra.mrb[0].mxu0 %v869
  %v1656 = vpop.f32.mrb[0].mxu0
  %v1657 = vadd.f32 0.0, %v1656
  %v1658 = vpop.f32.mrb[0].mxu0
  %v1659 = vpop.f32.mrb[0].mxu0
  %v1660 = vadd.f32 0.0, %v1659
  %v1661 = vpop.f32.mrb[0].mxu0
  %1662 = vmatprep.mubr.bf16.mxu0 %v879
  %1663 = vmatmul.mubr.bf16.gmra.mrb[0].mxu0 %v878
  %v1664 = vpop.f32.mrb[0].mxu0
  %v1665 = vadd.f32 0.0, %v1664
  %v1666 = vpop.f32.mrb[0].mxu0
  %v1667 = vpop.f32.mrb[0].mxu0
  %v1668 = vadd.f32 0.0, %v1667
  %v1669 = vpop.f32.mrb[0].mxu0
  %1670 = vmatprep.mubr.bf16.mxu0 %v888
  %1671 = vmatmul.mubr.bf16.gmra.mrb[0].mxu0 %v887
  %v1672 = vpop.f32.mrb[0].mxu0
  %v1673 = vadd.f32 0.0, %v1672
  %v1674 = vpop.f32.mrb[0].mxu0
  %v1675 = vpop.f32.mrb[0].mxu0
  %v1676 = vadd.f32 0.0, %v1675
  %v1677 = vpop.f32.mrb[0].mxu0
  %1678 = vmatprep.mubr.bf16.mxu0 %v897
  %1679 = vmatmul.mubr.bf16.gmra.mrb[0].mxu0 %v896
  %v1680 = vpop.f32.mrb[0].mxu0
  %v1681 = vadd.f32 0.0, %v1680
  %v1682 = vpop.f32.mrb[0].mxu0
  %v1683 = vpop.f32.mrb[0].mxu0
  %v1684 = vadd.f32 0.0, %v1683
  %v1685 = vpop.f32.mrb[0].mxu0
  %1686 = vmatprep.mubr.bf16.mxu0 %v906
  %1687 = vmatmul.mubr.bf16.gmra.mrb[0].mxu0 %v905
  %v1688 = vpop.f32.mrb[0].mxu0
  %v1689 = vadd.f32 0.0, %v1688
  %v1690 = vpop.f32.mrb[0].mxu0
  %v1691 = vpop.f32.mrb[0].mxu0
  %v1692 = vadd.f32 0.0, %v1691
  %v1693 = vpop.f32.mrb[0].mxu0
  %1694 = vmatprep.mubr.bf16.mxu0 %v915
  %1695 = vmatmul.mubr.bf16.gmra.mrb[0].mxu0 %v914
  %v1696 = vpop.f32.mrb[0].mxu0
  %v1697 = vadd.f32 0.0, %v1696
  %v1698 = vpop.f32.mrb[0].mxu0
  %v1699 = vpop.f32.mrb[0].mxu0
  %v1700 = vadd.f32 0.0, %v1699
  %v1701 = vpop.f32.mrb[0].mxu0
  %1702 = vmatprep.mubr.bf16.mxu0 %v924
  %1703 = vmatmul.mubr.bf16.gmra.mrb[0].mxu0 %v923
  %v1704 = vpop.f32.mrb[0].mxu0
  %v1705 = vadd.f32 0.0, %v1704
  %v1706 = vpop.f32.mrb[0].mxu0
  %v1707 = vpop.f32.mrb[0].mxu0
  %v1708 = vadd.f32 0.0, %v1707
  %v1709 = vpop.f32.mrb[0].mxu0
  %1710 = vmatprep.mubr.bf16.mxu0 %v933
  %1711 = vmatmul.mubr.bf16.gmra.mrb[0].mxu0 %v932
  %v1712 = vpop.f32.mrb[0].mxu0
  %v1713 = vadd.f32 0.0, %v1712
  %v1714 = vpop.f32.mrb[0].mxu0
  %v1715 = vpop.f32.mrb[0].mxu0
  %v1716 = vadd.f32 0.0, %v1715
  %v1717 = vpop.f32.mrb[0].mxu0
  %1718 = vmatprep.mubr.bf16.mxu0 %v942
  %1719 = vmatmul.mubr.bf16.gmra.mrb[0].mxu0 %v941
  %v1720 = vpop.f32.mrb[0].mxu0
  %v1721 = vadd.f32 0.0, %v1720
  %v1722 = vpop.f32.mrb[0].mxu0
  %v1723 = vpop.f32.mrb[0].mxu0
  %v1724 = vadd.f32 0.0, %v1723
  %v1725 = vpop.f32.mrb[0].mxu0
  %1726 = vmatprep.mubr.bf16.mxu0 %v951
  %1727 = vmatmul.mubr.bf16.gmra.mrb[0].mxu0 %v950
  %v1728 = vpop.f32.mrb[0].mxu0
  %v1729 = vadd.f32 0.0, %v1728
  %v1730 = vpop.f32.mrb[0].mxu0
  %v1731 = vpop.f32.mrb[0].mxu0
  %v1732 = vadd.f32 0.0, %v1731
  %v1733 = vpop.f32.mrb[0].mxu0
  %1734 = vmatprep.mubr.bf16.mxu0 %v960
  %1735 = vmatmul.mubr.bf16.gmra.mrb[0].mxu0 %v959
  %v1736 = vpop.f32.mrb[0].mxu0
  %v1737 = vadd.f32 0.0, %v1736
  %v1738 = vpop.f32.mrb[0].mxu0
  %v1739 = vpop.f32.mrb[0].mxu0
  %v1740 = vadd.f32 0.0, %v1739
  %v1741 = vpop.f32.mrb[0].mxu0
  %1742 = vmatprep.mubr.bf16.mxu0 %v969
  %1743 = vmatmul.mubr.bf16.gmra.mrb[0].mxu0 %v968
  %v1744 = vpop.f32.mrb[0].mxu0
  %v1745 = vadd.f32 0.0, %v1744
  %v1746 = vpop.f32.mrb[0].mxu0
  %v1747 = vpop.f32.mrb[0].mxu0
  %v1748 = vadd.f32 0.0, %v1747
  %v1749 = vpop.f32.mrb[0].mxu0
  %1750 = vmatprep.mubr.bf16.mxu0 %v978
  %1751 = vmatmul.mubr.bf16.gmra.mrb[0].mxu0 %v977
  %v1752 = vpop.f32.mrb[0].mxu0
  %v1753 = vadd.f32 0.0, %v1752
  %v1754 = vpop.f32.mrb[0].mxu0
  %v1755 = vpop.f32.mrb[0].mxu0
  %v1756 = vadd.f32 0.0, %v1755
  %v1757 = vpop.f32.mrb[0].mxu0
  %1758 = vmatprep.mubr.bf16.mxu0 %v987
  %1759 = vmatmul.mubr.bf16.gmra.mrb[0].mxu0 %v986
  %v1760 = vpop.f32.mrb[0].mxu0
  %v1761 = vadd.f32 0.0, %v1760
  %v1762 = vpop.f32.mrb[0].mxu0
  %v1763 = vpop.f32.mrb[0].mxu0
  %v1764 = vadd.f32 0.0, %v1763
  %v1765 = vpop.f32.mrb[0].mxu0
  %1766 = vmatprep.mubr.bf16.mxu0 %v996
  %1767 = vmatmul.mubr.bf16.gmra.mrb[0].mxu0 %v995
  %v1768 = vpop.f32.mrb[0].mxu0
  %v1769 = vadd.f32 0.0, %v1768
  %v1770 = vpop.f32.mrb[0].mxu0
  %v1771 = vpop.f32.mrb[0].mxu0
  %v1772 = vadd.f32 0.0, %v1771
  %v1773 = vpop.f32.mrb[0].mxu0
  %1774 = vdwg.mxu0
  %1775 = vmatprep.subr.bf16.mxu0 0
  %1776 = vmatpush1.bf16.msra.mxu0 %v1470
  %1777 = vmatprep.subr.bf16.mxu0 0
  %1778 = vmatpush1.bf16.msra.mxu0 %v1471
  %1779 = vmatprep.subr.bf16.mxu0 0
  %1780 = vmatpush1.bf16.msra.mxu0 %v1472
  %1781 = vmatprep.subr.bf16.mxu0 0
  %1782 = vmatpush1.bf16.msra.mxu0 %v1473
  %1783 = vmatprep.subr.bf16.mxu0 0
  %1784 = vmatpush1.bf16.msra.mxu0 %v1474
  %1785 = vmatprep.subr.bf16.mxu0 0
  %1786 = vmatpush1.bf16.msra.mxu0 %v1475
  %1787 = vmatprep.subr.bf16.mxu0 0
  %1788 = vmatpush1.bf16.msra.mxu0 %v1476
  %1789 = vmatprep.subr.bf16.mxu0 0
  %1790 = vmatpush1.bf16.msra.mxu0 %v1477
  %1791 = vmatprep.subr.bf16.mxu0 0
  %1792 = vmatpush1.bf16.msra.mxu0 %v1478
  %1793 = vmatprep.subr.bf16.mxu0 0
  %1794 = vmatpush1.bf16.msra.mxu0 %v1479
  %1795 = vmatprep.subr.bf16.mxu0 0
  %1796 = vmatpush1.bf16.msra.mxu0 %v1480
  %1797 = vmatprep.subr.bf16.mxu0 0
  %1798 = vmatpush1.bf16.msra.mxu0 %v1481
  %1799 = vmatprep.subr.bf16.mxu0 0
  %1800 = vmatpush1.bf16.msra.mxu0 %v1482
  %1801 = vmatprep.subr.bf16.mxu0 0
  %1802 = vmatpush1.bf16.msra.mxu0 %v1483
  %1803 = vmatprep.subr.bf16.mxu0 0
  %1804 = vmatpush1.bf16.msra.mxu0 %v1484
  %1805 = vmatprep.subr.bf16.mxu0 0
  %1806 = vmatpush1.bf16.msra.mxu0 %v1485
  %1807 = vmatprep.mubr.bf16.mxu0 %v845
  %1808 = vmatmul.mubr.bf16.gmra.mrb[0].mxu0 %v844
  %v1809 = vpop.f32.mrb[0].mxu0
  %v1810 = vadd.f32 %v1633, %v1809
  %v1811 = vpop.f32.mrb[0].mxu0
  %v1812 = vpop.f32.mrb[0].mxu0
  %v1813 = vadd.f32 %v1636, %v1812
  %v1814 = vpop.f32.mrb[0].mxu0
  %1815 = vmatprep.mubr.bf16.mxu0 %v854
  %1816 = vmatmul.mubr.bf16.gmra.mrb[0].mxu0 %v853
  %v1817 = vpop.f32.mrb[0].mxu0
  %v1818 = vadd.f32 %v1641, %v1817
  %v1819 = vpop.f32.mrb[0].mxu0
  %v1820 = vpop.f32.mrb[0].mxu0
  %v1821 = vadd.f32 %v1644, %v1820
  %v1822 = vpop.f32.mrb[0].mxu0
  %1823 = vmatprep.mubr.bf16.mxu0 %v863
  %1824 = vmatmul.mubr.bf16.gmra.mrb[0].mxu0 %v862
  %v1825 = vpop.f32.mrb[0].mxu0
  %v1826 = vadd.f32 %v1649, %v1825
  %v1827 = vpop.f32.mrb[0].mxu0
  %v1828 = vpop.f32.mrb[0].mxu0
  %v1829 = vadd.f32 %v1652, %v1828
  %v1830 = vpop.f32.mrb[0].mxu0
  %1831 = vmatprep.mubr.bf16.mxu0 %v872
  %1832 = vmatmul.mubr.bf16.gmra.mrb[0].mxu0 %v871
  %v1833 = vpop.f32.mrb[0].mxu0
  %v1834 = vadd.f32 %v1657, %v1833
  %v1835 = vpop.f32.mrb[0].mxu0
  %v1836 = vpop.f32.mrb[0].mxu0
  %v1837 = vadd.f32 %v1660, %v1836
  %v1838 = vpop.f32.mrb[0].mxu0
  %1839 = vmatprep.mubr.bf16.mxu0 %v881
  %1840 = vmatmul.mubr.bf16.gmra.mrb[0].mxu0 %v880
  %v1841 = vpop.f32.mrb[0].mxu0
  %v1842 = vadd.f32 %v1665, %v1841
  %v1843 = vpop.f32.mrb[0].mxu0
  %v1844 = vpop.f32.mrb[0].mxu0
  %v1845 = vadd.f32 %v1668, %v1844
  %v1846 = vpop.f32.mrb[0].mxu0
  %1847 = vmatprep.mubr.bf16.mxu0 %v890
  %1848 = vmatmul.mubr.bf16.gmra.mrb[0].mxu0 %v889
  %v1849 = vpop.f32.mrb[0].mxu0
  %v1850 = vadd.f32 %v1673, %v1849
  %v1851 = vpop.f32.mrb[0].mxu0
  %v1852 = vpop.f32.mrb[0].mxu0
  %v1853 = vadd.f32 %v1676, %v1852
  %v1854 = vpop.f32.mrb[0].mxu0
  %1855 = vmatprep.mubr.bf16.mxu0 %v899
  %1856 = vmatmul.mubr.bf16.gmra.mrb[0].mxu0 %v898
  %v1857 = vpop.f32.mrb[0].mxu0
  %v1858 = vadd.f32 %v1681, %v1857
  %v1859 = vpop.f32.mrb[0].mxu0
  %v1860 = vpop.f32.mrb[0].mxu0
  %v1861 = vadd.f32 %v1684, %v1860
  %v1862 = vpop.f32.mrb[0].mxu0
  %1863 = vmatprep.mubr.bf16.mxu0 %v908
  %1864 = vmatmul.mubr.bf16.gmra.mrb[0].mxu0 %v907
  %v1865 = vpop.f32.mrb[0].mxu0
  %v1866 = vadd.f32 %v1689, %v1865
  %v1867 = vpop.f32.mrb[0].mxu0
  %v1868 = vpop.f32.mrb[0].mxu0
  %v1869 = vadd.f32 %v1692, %v1868
  %v1870 = vpop.f32.mrb[0].mxu0
  %1871 = vmatprep.mubr.bf16.mxu0 %v917
  %1872 = vmatmul.mubr.bf16.gmra.mrb[0].mxu0 %v916
  %v1873 = vpop.f32.mrb[0].mxu0
  %v1874 = vadd.f32 %v1697, %v1873
  %v1875 = vpop.f32.mrb[0].mxu0
  %v1876 = vpop.f32.mrb[0].mxu0
  %v1877 = vadd.f32 %v1700, %v1876
  %v1878 = vpop.f32.mrb[0].mxu0
  %1879 = vmatprep.mubr.bf16.mxu0 %v926
  %1880 = vmatmul.mubr.bf16.gmra.mrb[0].mxu0 %v925
  %v1881 = vpop.f32.mrb[0].mxu0
  %v1882 = vadd.f32 %v1705, %v1881
  %v1883 = vpop.f32.mrb[0].mxu0
  %v1884 = vpop.f32.mrb[0].mxu0
  %v1885 = vadd.f32 %v1708, %v1884
  %v1886 = vpop.f32.mrb[0].mxu0
  %1887 = vmatprep.mubr.bf16.mxu0 %v935
  %1888 = vmatmul.mubr.bf16.gmra.mrb[0].mxu0 %v934
  %v1889 = vpop.f32.mrb[0].mxu0
  %v1890 = vadd.f32 %v1713, %v1889
  %v1891 = vpop.f32.mrb[0].mxu0
  %v1892 = vpop.f32.mrb[0].mxu0
  %v1893 = vadd.f32 %v1716, %v1892
  %v1894 = vpop.f32.mrb[0].mxu0
  %1895 = vmatprep.mubr.bf16.mxu0 %v944
  %1896 = vmatmul.mubr.bf16.gmra.mrb[0].mxu0 %v943
  %v1897 = vpop.f32.mrb[0].mxu0
  %v1898 = vadd.f32 %v1721, %v1897
  %v1899 = vpop.f32.mrb[0].mxu0
  %v1900 = vpop.f32.mrb[0].mxu0
  %v1901 = vadd.f32 %v1724, %v1900
  %v1902 = vpop.f32.mrb[0].mxu0
  %1903 = vmatprep.mubr.bf16.mxu0 %v953
  %1904 = vmatmul.mubr.bf16.gmra.mrb[0].mxu0 %v952
  %v1905 = vpop.f32.mrb[0].mxu0
  %v1906 = vadd.f32 %v1729, %v1905
  %v1907 = vpop.f32.mrb[0].mxu0
  %v1908 = vpop.f32.mrb[0].mxu0
  %v1909 = vadd.f32 %v1732, %v1908
  %v1910 = vpop.f32.mrb[0].mxu0
  %1911 = vmatprep.mubr.bf16.mxu0 %v962
  %1912 = vmatmul.mubr.bf16.gmra.mrb[0].mxu0 %v961
  %v1913 = vpop.f32.mrb[0].mxu0
  %v1914 = vadd.f32 %v1737, %v1913
  %v1915 = vpop.f32.mrb[0].mxu0
  %v1916 = vpop.f32.mrb[0].mxu0
  %v1917 = vadd.f32 %v1740, %v1916
  %v1918 = vpop.f32.mrb[0].mxu0
  %1919 = vmatprep.mubr.bf16.mxu0 %v971
  %1920 = vmatmul.mubr.bf16.gmra.mrb[0].mxu0 %v970
  %v1921 = vpop.f32.mrb[0].mxu0
  %v1922 = vadd.f32 %v1745, %v1921
  %v1923 = vpop.f32.mrb[0].mxu0
  %v1924 = vpop.f32.mrb[0].mxu0
  %v1925 = vadd.f32 %v1748, %v1924
  %v1926 = vpop.f32.mrb[0].mxu0
  %1927 = vmatprep.mubr.bf16.mxu0 %v980
  %1928 = vmatmul.mubr.bf16.gmra.mrb[0].mxu0 %v979
  %v1929 = vpop.f32.mrb[0].mxu0
  %v1930 = vadd.f32 %v1753, %v1929
  %v1931 = vpop.f32.mrb[0].mxu0
  %v1932 = vpop.f32.mrb[0].mxu0
  %v1933 = vadd.f32 %v1756, %v1932
  %v1934 = vpop.f32.mrb[0].mxu0
  %1935 = vmatprep.mubr.bf16.mxu0 %v989
  %1936 = vmatmul.mubr.bf16.gmra.mrb[0].mxu0 %v988
  %v1937 = vpop.f32.mrb[0].mxu0
  %v1938 = vadd.f32 %v1761, %v1937
  %v1939 = vpop.f32.mrb[0].mxu0
  %v1940 = vpop.f32.mrb[0].mxu0
  %v1941 = vadd.f32 %v1764, %v1940
  %v1942 = vpop.f32.mrb[0].mxu0
  %1943 = vmatprep.mubr.bf16.mxu0 %v998
  %1944 = vmatmul.mubr.bf16.gmra.mrb[0].mxu0 %v997
  %v1945 = vpop.f32.mrb[0].mxu0
  %v1946 = vadd.f32 %v1769, %v1945
  %v1947 = vpop.f32.mrb[0].mxu0
  %v1948 = vpop.f32.mrb[0].mxu0
  %v1949 = vadd.f32 %v1772, %v1948
  %v1950 = vpop.f32.mrb[0].mxu0
  %1951 = vdwg.mxu0
  %1952 = vmatprep.subr.bf16.mxu0 0
  %1953 = vmatpush1.bf16.msra.mxu0 %v1486
  %1954 = vmatprep.subr.bf16.mxu0 0
  %1955 = vmatpush1.bf16.msra.mxu0 %v1487
  %1956 = vmatprep.subr.bf16.mxu0 0
  %1957 = vmatpush1.bf16.msra.mxu0 %v1488
  %1958 = vmatprep.subr.bf16.mxu0 0
  %1959 = vmatpush1.bf16.msra.mxu0 %v1489
  %1960 = vmatprep.subr.bf16.mxu0 0
  %1961 = vmatpush1.bf16.msra.mxu0 %v1490
  %1962 = vmatprep.subr.bf16.mxu0 0
  %1963 = vmatpush1.bf16.msra.mxu0 %v1491
  %1964 = vmatprep.subr.bf16.mxu0 0
  %1965 = vmatpush1.bf16.msra.mxu0 %v1492
  %1966 = vmatprep.subr.bf16.mxu0 0
  %1967 = vmatpush1.bf16.msra.mxu0 %v1493
  %1968 = vmatprep.subr.bf16.mxu0 0
  %1969 = vmatpush1.bf16.msra.mxu0 %v1494
  %1970 = vmatprep.subr.bf16.mxu0 0
  %1971 = vmatpush1.bf16.msra.mxu0 %v1495
  %1972 = vmatprep.subr.bf16.mxu0 0
  %1973 = vmatpush1.bf16.msra.mxu0 %v1496
  %1974 = vmatprep.subr.bf16.mxu0 0
  %1975 = vmatpush1.bf16.msra.mxu0 %v1497
  %1976 = vmatprep.subr.bf16.mxu0 0
  %1977 = vmatpush1.bf16.msra.mxu0 %v1498
  %1978 = vmatprep.subr.bf16.mxu0 0
  %1979 = vmatpush1.bf16.msra.mxu0 %v1499
  %1980 = vmatprep.subr.bf16.mxu0 0
  %1981 = vmatpush1.bf16.msra.mxu0 %v1500
  %1982 = vmatprep.subr.bf16.mxu0 0
  %1983 = vmatpush1.bf16.msra.mxu0 %v1501
  %1984 = vmatprep.mubr.bf16.mxu0 %v847
  %1985 = vmatmul.mubr.bf16.gmra.mrb[0].mxu0 %v846
  %v1986 = vpop.f32.mrb[0].mxu0
  %v1987 = vadd.f32 %v1810, %v1986
  %v1988 = vpop.f32.mrb[0].mxu0
  %v1989 = vpop.f32.mrb[0].mxu0
  %v1990 = vadd.f32 %v1813, %v1989
  %v1991 = vpop.f32.mrb[0].mxu0
  %1992 = vmatprep.mubr.bf16.mxu0 %v856
  %1993 = vmatmul.mubr.bf16.gmra.mrb[0].mxu0 %v855
  %v1994 = vpop.f32.mrb[0].mxu0
  %v1995 = vadd.f32 %v1818, %v1994
  %v1996 = vpop.f32.mrb[0].mxu0
  %v1997 = vpop.f32.mrb[0].mxu0
  %v1998 = vadd.f32 %v1821, %v1997
  %v1999 = vpop.f32.mrb[0].mxu0
  %2000 = vmatprep.mubr.bf16.mxu0 %v865
  %2001 = vmatmul.mubr.bf16.gmra.mrb[0].mxu0 %v864
  %v2002 = vpop.f32.mrb[0].mxu0
  %v2003 = vadd.f32 %v1826, %v2002
  %v2004 = vpop.f32.mrb[0].mxu0
  %v2005 = vpop.f32.mrb[0].mxu0
  %v2006 = vadd.f32 %v1829, %v2005
  %v2007 = vpop.f32.mrb[0].mxu0
  %2008 = vmatprep.mubr.bf16.mxu0 %v874
  %2009 = vmatmul.mubr.bf16.gmra.mrb[0].mxu0 %v873
  %v2010 = vpop.f32.mrb[0].mxu0
  %v2011 = vadd.f32 %v1834, %v2010
  %v2012 = vpop.f32.mrb[0].mxu0
  %v2013 = vpop.f32.mrb[0].mxu0
  %v2014 = vadd.f32 %v1837, %v2013
  %v2015 = vpop.f32.mrb[0].mxu0
  %2016 = vmatprep.mubr.bf16.mxu0 %v883
  %2017 = vmatmul.mubr.bf16.gmra.mrb[0].mxu0 %v882
  %v2018 = vpop.f32.mrb[0].mxu0
  %v2019 = vadd.f32 %v1842, %v2018
  %v2020 = vpop.f32.mrb[0].mxu0
  %v2021 = vpop.f32.mrb[0].mxu0
  %v2022 = vadd.f32 %v1845, %v2021
  %v2023 = vpop.f32.mrb[0].mxu0
  %2024 = vmatprep.mubr.bf16.mxu0 %v892
  %2025 = vmatmul.mubr.bf16.gmra.mrb[0].mxu0 %v891
  %v2026 = vpop.f32.mrb[0].mxu0
  %v2027 = vadd.f32 %v1850, %v2026
  %v2028 = vpop.f32.mrb[0].mxu0
  %v2029 = vpop.f32.mrb[0].mxu0
  %v2030 = vadd.f32 %v1853, %v2029
  %v2031 = vpop.f32.mrb[0].mxu0
  %2032 = vmatprep.mubr.bf16.mxu0 %v901
  %2033 = vmatmul.mubr.bf16.gmra.mrb[0].mxu0 %v900
  %v2034 = vpop.f32.mrb[0].mxu0
  %v2035 = vadd.f32 %v1858, %v2034
  %v2036 = vpop.f32.mrb[0].mxu0
  %v2037 = vpop.f32.mrb[0].mxu0
  %v2038 = vadd.f32 %v1861, %v2037
  %v2039 = vpop.f32.mrb[0].mxu0
  %2040 = vmatprep.mubr.bf16.mxu0 %v910
  %2041 = vmatmul.mubr.bf16.gmra.mrb[0].mxu0 %v909
  %v2042 = vpop.f32.mrb[0].mxu0
  %v2043 = vadd.f32 %v1866, %v2042
  %v2044 = vpop.f32.mrb[0].mxu0
  %v2045 = vpop.f32.mrb[0].mxu0
  %v2046 = vadd.f32 %v1869, %v2045
  %v2047 = vpop.f32.mrb[0].mxu0
  %2048 = vmatprep.mubr.bf16.mxu0 %v919
  %2049 = vmatmul.mubr.bf16.gmra.mrb[0].mxu0 %v918
  %v2050 = vpop.f32.mrb[0].mxu0
  %v2051 = vadd.f32 %v1874, %v2050
  %v2052 = vpop.f32.mrb[0].mxu0
  %v2053 = vpop.f32.mrb[0].mxu0
  %v2054 = vadd.f32 %v1877, %v2053
  %v2055 = vpop.f32.mrb[0].mxu0
  %2056 = vmatprep.mubr.bf16.mxu0 %v928
  %2057 = vmatmul.mubr.bf16.gmra.mrb[0].mxu0 %v927
  %v2058 = vpop.f32.mrb[0].mxu0
  %v2059 = vadd.f32 %v1882, %v2058
  %v2060 = vpop.f32.mrb[0].mxu0
  %v2061 = vpop.f32.mrb[0].mxu0
  %v2062 = vadd.f32 %v1885, %v2061
  %v2063 = vpop.f32.mrb[0].mxu0
  %2064 = vmatprep.mubr.bf16.mxu0 %v937
  %2065 = vmatmul.mubr.bf16.gmra.mrb[0].mxu0 %v936
  %v2066 = vpop.f32.mrb[0].mxu0
  %v2067 = vadd.f32 %v1890, %v2066
  %v2068 = vpop.f32.mrb[0].mxu0
  %v2069 = vpop.f32.mrb[0].mxu0
  %v2070 = vadd.f32 %v1893, %v2069
  %v2071 = vpop.f32.mrb[0].mxu0
  %2072 = vmatprep.mubr.bf16.mxu0 %v946
  %2073 = vmatmul.mubr.bf16.gmra.mrb[0].mxu0 %v945
  %v2074 = vpop.f32.mrb[0].mxu0
  %v2075 = vadd.f32 %v1898, %v2074
  %v2076 = vpop.f32.mrb[0].mxu0
  %v2077 = vpop.f32.mrb[0].mxu0
  %v2078 = vadd.f32 %v1901, %v2077
  %v2079 = vpop.f32.mrb[0].mxu0
  %2080 = vmatprep.mubr.bf16.mxu0 %v955
  %2081 = vmatmul.mubr.bf16.gmra.mrb[0].mxu0 %v954
  %v2082 = vpop.f32.mrb[0].mxu0
  %v2083 = vadd.f32 %v1906, %v2082
  %v2084 = vpop.f32.mrb[0].mxu0
  %v2085 = vpop.f32.mrb[0].mxu0
  %v2086 = vadd.f32 %v1909, %v2085
  %v2087 = vpop.f32.mrb[0].mxu0
  %2088 = vmatprep.mubr.bf16.mxu0 %v964
  %2089 = vmatmul.mubr.bf16.gmra.mrb[0].mxu0 %v963
  %v2090 = vpop.f32.mrb[0].mxu0
  %v2091 = vadd.f32 %v1914, %v2090
  %v2092 = vpop.f32.mrb[0].mxu0
  %v2093 = vpop.f32.mrb[0].mxu0
  %v2094 = vadd.f32 %v1917, %v2093
  %v2095 = vpop.f32.mrb[0].mxu0
  %2096 = vmatprep.mubr.bf16.mxu0 %v973
  %2097 = vmatmul.mubr.bf16.gmra.mrb[0].mxu0 %v972
  %v2098 = vpop.f32.mrb[0].mxu0
  %v2099 = vadd.f32 %v1922, %v2098
  %v2100 = vpop.f32.mrb[0].mxu0
  %v2101 = vpop.f32.mrb[0].mxu0
  %v2102 = vadd.f32 %v1925, %v2101
  %v2103 = vpop.f32.mrb[0].mxu0
  %2104 = vmatprep.mubr.bf16.mxu0 %v982
  %2105 = vmatmul.mubr.bf16.gmra.mrb[0].mxu0 %v981
  %v2106 = vpop.f32.mrb[0].mxu0
  %v2107 = vadd.f32 %v1930, %v2106
  %v2108 = vpop.f32.mrb[0].mxu0
  %v2109 = vpop.f32.mrb[0].mxu0
  %v2110 = vadd.f32 %v1933, %v2109
  %v2111 = vpop.f32.mrb[0].mxu0
  %2112 = vmatprep.mubr.bf16.mxu0 %v991
  %2113 = vmatmul.mubr.bf16.gmra.mrb[0].mxu0 %v990
  %v2114 = vpop.f32.mrb[0].mxu0
  %v2115 = vadd.f32 %v1938, %v2114
  %v2116 = vpop.f32.mrb[0].mxu0
  %v2117 = vpop.f32.mrb[0].mxu0
  %v2118 = vadd.f32 %v1941, %v2117
  %v2119 = vpop.f32.mrb[0].mxu0
  %2120 = vmatprep.mubr.bf16.mxu0 %v1000
  %2121 = vmatmul.mubr.bf16.gmra.mrb[0].mxu0 %v999
  %v2122 = vpop.f32.mrb[0].mxu0
  %v2123 = vadd.f32 %v1946, %v2122
  %v2124 = vpop.f32.mrb[0].mxu0
  %v2125 = vpop.f32.mrb[0].mxu0
  %v2126 = vadd.f32 %v1949, %v2125
  %v2127 = vpop.f32.mrb[0].mxu0
  %2128 = vdwg.mxu0
  %2129 = vmatprep.subr.bf16.mxu0 0
  %2130 = vmatpush1.bf16.msra.mxu0 %v1502
  %2131 = vmatprep.subr.bf16.mxu0 0
  %2132 = vmatpush1.bf16.msra.mxu0 %v1503
  %2133 = vmatprep.subr.bf16.mxu0 0
  %2134 = vmatpush1.bf16.msra.mxu0 %v1504
  %2135 = vmatprep.subr.bf16.mxu0 0
  %2136 = vmatpush1.bf16.msra.mxu0 %v1505
  %2137 = vmatprep.subr.bf16.mxu0 0
  %2138 = vmatpush1.bf16.msra.mxu0 %v1506
  %2139 = vmatprep.subr.bf16.mxu0 0
  %2140 = vmatpush1.bf16.msra.mxu0 %v1507
  %2141 = vmatprep.subr.bf16.mxu0 0
  %2142 = vmatpush1.bf16.msra.mxu0 %v1508
  %2143 = vmatprep.subr.bf16.mxu0 0
  %2144 = vmatpush1.bf16.msra.mxu0 %v1509
  %2145 = vmatprep.subr.bf16.mxu0 0
  %2146 = vmatpush1.bf16.msra.mxu0 %v1510
  %2147 = vmatprep.subr.bf16.mxu0 0
  %2148 = vmatpush1.bf16.msra.mxu0 %v1511
  %2149 = vmatprep.subr.bf16.mxu0 0
  %2150 = vmatpush1.bf16.msra.mxu0 %v1512
  %2151 = vmatprep.subr.bf16.mxu0 0
  %2152 = vmatpush1.bf16.msra.mxu0 %v1513
  %2153 = vmatprep.subr.bf16.mxu0 0
  %2154 = vmatpush1.bf16.msra.mxu0 %v1514
  %2155 = vmatprep.subr.bf16.mxu0 0
  %2156 = vmatpush1.bf16.msra.mxu0 %v1515
  %2157 = vmatprep.subr.bf16.mxu0 0
  %2158 = vmatpush1.bf16.msra.mxu0 %v1516
  %2159 = vmatprep.subr.bf16.mxu0 0
  %2160 = vmatpush1.bf16.msra.mxu0 %v1517
  %2161 = vmatprep.mubr.bf16.mxu0 %v849
  %2162 = vmatmul.mubr.bf16.gmra.mrb[0].mxu0 %v848
  %v2163 = vpop.f32.mrb[0].mxu0
  %v2164 = vadd.f32 %v1987, %v2163
  %v2165 = vpop.f32.mrb[0].mxu0
  %v2166 = vpop.f32.mrb[0].mxu0
  %v2167 = vadd.f32 %v1990, %v2166
  %v2168 = vpop.f32.mrb[0].mxu0
  %2169 = vmatprep.mubr.bf16.mxu0 %v858
  %2170 = vmatmul.mubr.bf16.gmra.mrb[0].mxu0 %v857
  %v2171 = vpop.f32.mrb[0].mxu0
  %v2172 = vadd.f32 %v1995, %v2171
  %v2173 = vpop.f32.mrb[0].mxu0
  %v2174 = vpop.f32.mrb[0].mxu0
  %v2175 = vadd.f32 %v1998, %v2174
  %v2176 = vpop.f32.mrb[0].mxu0
  %2177 = vmatprep.mubr.bf16.mxu0 %v867
  %2178 = vmatmul.mubr.bf16.gmra.mrb[0].mxu0 %v866
  %v2179 = vpop.f32.mrb[0].mxu0
  %v2180 = vadd.f32 %v2003, %v2179
  %v2181 = vpop.f32.mrb[0].mxu0
  %v2182 = vpop.f32.mrb[0].mxu0
  %v2183 = vadd.f32 %v2006, %v2182
  %v2184 = vpop.f32.mrb[0].mxu0
  %2185 = vmatprep.mubr.bf16.mxu0 %v876
  %2186 = vmatmul.mubr.bf16.gmra.mrb[0].mxu0 %v875
  %v2187 = vpop.f32.mrb[0].mxu0
  %v2188 = vadd.f32 %v2011, %v2187
  %v2189 = vpop.f32.mrb[0].mxu0
  %v2190 = vpop.f32.mrb[0].mxu0
  %v2191 = vadd.f32 %v2014, %v2190
  %v2192 = vpop.f32.mrb[0].mxu0
  %2193 = vmatprep.mubr.bf16.mxu0 %v885
  %2194 = vmatmul.mubr.bf16.gmra.mrb[0].mxu0 %v884
  %v2195 = vpop.f32.mrb[0].mxu0
  %v2196 = vadd.f32 %v2019, %v2195
  %v2197 = vpop.f32.mrb[0].mxu0
  %v2198 = vpop.f32.mrb[0].mxu0
  %v2199 = vadd.f32 %v2022, %v2198
  %v2200 = vpop.f32.mrb[0].mxu0
  %2201 = vmatprep.mubr.bf16.mxu0 %v894
  %2202 = vmatmul.mubr.bf16.gmra.mrb[0].mxu0 %v893
  %v2203 = vpop.f32.mrb[0].mxu0
  %v2204 = vadd.f32 %v2027, %v2203
  %v2205 = vpop.f32.mrb[0].mxu0
  %v2206 = vpop.f32.mrb[0].mxu0
  %v2207 = vadd.f32 %v2030, %v2206
  %v2208 = vpop.f32.mrb[0].mxu0
  %2209 = vmatprep.mubr.bf16.mxu0 %v903
  %2210 = vmatmul.mubr.bf16.gmra.mrb[0].mxu0 %v902
  %v2211 = vpop.f32.mrb[0].mxu0
  %v2212 = vadd.f32 %v2035, %v2211
  %v2213 = vpop.f32.mrb[0].mxu0
  %v2214 = vpop.f32.mrb[0].mxu0
  %v2215 = vadd.f32 %v2038, %v2214
  %v2216 = vpop.f32.mrb[0].mxu0
  %2217 = vmatprep.mubr.bf16.mxu0 %v912
  %2218 = vmatmul.mubr.bf16.gmra.mrb[0].mxu0 %v911
  %v2219 = vpop.f32.mrb[0].mxu0
  %v2220 = vadd.f32 %v2043, %v2219
  %v2221 = vpop.f32.mrb[0].mxu0
  %v2222 = vpop.f32.mrb[0].mxu0
  %v2223 = vadd.f32 %v2046, %v2222
  %v2224 = vpop.f32.mrb[0].mxu0
  %2225 = vmatprep.mubr.bf16.mxu0 %v921
  %2226 = vmatmul.mubr.bf16.gmra.mrb[0].mxu0 %v920
  %v2227 = vpop.f32.mrb[0].mxu0
  %v2228 = vadd.f32 %v2051, %v2227
  %v2229 = vpop.f32.mrb[0].mxu0
  %v2230 = vpop.f32.mrb[0].mxu0
  %v2231 = vadd.f32 %v2054, %v2230
  %v2232 = vpop.f32.mrb[0].mxu0
  %2233 = vmatprep.mubr.bf16.mxu0 %v930
  %2234 = vmatmul.mubr.bf16.gmra.mrb[0].mxu0 %v929
  %v2235 = vpop.f32.mrb[0].mxu0
  %v2236 = vadd.f32 %v2059, %v2235
  %v2237 = vpop.f32.mrb[0].mxu0
  %v2238 = vpop.f32.mrb[0].mxu0
  %v2239 = vadd.f32 %v2062, %v2238
  %v2240 = vpop.f32.mrb[0].mxu0
  %2241 = vmatprep.mubr.bf16.mxu0 %v939
  %2242 = vmatmul.mubr.bf16.gmra.mrb[0].mxu0 %v938
  %v2243 = vpop.f32.mrb[0].mxu0
  %v2244 = vadd.f32 %v2067, %v2243
  %v2245 = vpop.f32.mrb[0].mxu0
  %v2246 = vpop.f32.mrb[0].mxu0
  %v2247 = vadd.f32 %v2070, %v2246
  %v2248 = vpop.f32.mrb[0].mxu0
  %2249 = vmatprep.mubr.bf16.mxu0 %v948
  %2250 = vmatmul.mubr.bf16.gmra.mrb[0].mxu0 %v947
  %v2251 = vpop.f32.mrb[0].mxu0
  %v2252 = vadd.f32 %v2075, %v2251
  %v2253 = vpop.f32.mrb[0].mxu0
  %v2254 = vpop.f32.mrb[0].mxu0
  %v2255 = vadd.f32 %v2078, %v2254
  %v2256 = vpop.f32.mrb[0].mxu0
  %2257 = vmatprep.mubr.bf16.mxu0 %v957
  %2258 = vmatmul.mubr.bf16.gmra.mrb[0].mxu0 %v956
  %v2259 = vpop.f32.mrb[0].mxu0
  %v2260 = vadd.f32 %v2083, %v2259
  %v2261 = vpop.f32.mrb[0].mxu0
  %v2262 = vpop.f32.mrb[0].mxu0
  %v2263 = vadd.f32 %v2086, %v2262
  %v2264 = vpop.f32.mrb[0].mxu0
  %2265 = vmatprep.mubr.bf16.mxu0 %v966
  %2266 = vmatmul.mubr.bf16.gmra.mrb[0].mxu0 %v965
  %v2267 = vpop.f32.mrb[0].mxu0
  %v2268 = vadd.f32 %v2091, %v2267
  %v2269 = vpop.f32.mrb[0].mxu0
  %v2270 = vpop.f32.mrb[0].mxu0
  %v2271 = vadd.f32 %v2094, %v2270
  %v2272 = vpop.f32.mrb[0].mxu0
  %2273 = vmatprep.mubr.bf16.mxu0 %v975
  %2274 = vmatmul.mubr.bf16.gmra.mrb[0].mxu0 %v974
  %v2275 = vpop.f32.mrb[0].mxu0
  %v2276 = vadd.f32 %v2099, %v2275
  %v2277 = vpop.f32.mrb[0].mxu0
  %v2278 = vpop.f32.mrb[0].mxu0
  %v2279 = vadd.f32 %v2102, %v2278
  %v2280 = vpop.f32.mrb[0].mxu0
  %2281 = vmatprep.mubr.bf16.mxu0 %v984
  %2282 = vmatmul.mubr.bf16.gmra.mrb[0].mxu0 %v983
  %v2283 = vpop.f32.mrb[0].mxu0
  %v2284 = vadd.f32 %v2107, %v2283
  %v2285 = vpop.f32.mrb[0].mxu0
  %v2286 = vpop.f32.mrb[0].mxu0
  %v2287 = vadd.f32 %v2110, %v2286
  %v2288 = vpop.f32.mrb[0].mxu0
  %2289 = vmatprep.mubr.bf16.mxu0 %v993
  %2290 = vmatmul.mubr.bf16.gmra.mrb[0].mxu0 %v992
  %v2291 = vpop.f32.mrb[0].mxu0
  %v2292 = vadd.f32 %v2115, %v2291
  %v2293 = vpop.f32.mrb[0].mxu0
  %v2294 = vpop.f32.mrb[0].mxu0
  %v2295 = vadd.f32 %v2118, %v2294
  %v2296 = vpop.f32.mrb[0].mxu0
  %2297 = vmatprep.mubr.bf16.mxu0 %v1002
  %2298 = vmatmul.mubr.bf16.gmra.mrb[0].mxu0 %v1001
  %v2299 = vpop.f32.mrb[0].mxu0
  %v2300 = vadd.f32 %v2123, %v2299
  %v2301 = vpop.f32.mrb[0].mxu0
  %v2302 = vpop.f32.mrb[0].mxu0
  %v2303 = vadd.f32 %v2126, %v2302
  %v2304 = vpop.f32.mrb[0].mxu0
  %2305 = vdwg.mxu0
  %2306 = vmatprep.subr.bf16.mxu0 0
  %2307 = vmatpush1.bf16.msra.mxu0 %v1518
  %2308 = vmatprep.subr.bf16.mxu0 0
  %2309 = vmatpush1.bf16.msra.mxu0 %v1519
  %2310 = vmatprep.subr.bf16.mxu0 0
  %2311 = vmatpush1.bf16.msra.mxu0 %v1520
  %2312 = vmatprep.subr.bf16.mxu0 0
  %2313 = vmatpush1.bf16.msra.mxu0 %v1521
  %2314 = vmatprep.subr.bf16.mxu0 0
  %2315 = vmatpush1.bf16.msra.mxu0 %v1522
  %2316 = vmatprep.subr.bf16.mxu0 0
  %2317 = vmatpush1.bf16.msra.mxu0 %v1523
  %2318 = vmatprep.subr.bf16.mxu0 0
  %2319 = vmatpush1.bf16.msra.mxu0 %v1524
  %2320 = vmatprep.subr.bf16.mxu0 0
  %2321 = vmatpush1.bf16.msra.mxu0 %v1525
  %2322 = vmatprep.subr.bf16.mxu0 0
  %2323 = vmatpush1.bf16.msra.mxu0 0
  %2324 = vmatprep.subr.bf16.mxu0 0
  %2325 = vmatpush1.bf16.msra.mxu0 0
  %2326 = vmatprep.subr.bf16.mxu0 0
  %2327 = vmatpush1.bf16.msra.mxu0 0
  %2328 = vmatprep.subr.bf16.mxu0 0
  %2329 = vmatpush1.bf16.msra.mxu0 0
  %2330 = vmatprep.subr.bf16.mxu0 0
  %2331 = vmatpush1.bf16.msra.mxu0 0
  %2332 = vmatprep.subr.bf16.mxu0 0
  %2333 = vmatpush1.bf16.msra.mxu0 0
  %2334 = vmatprep.subr.bf16.mxu0 0
  %2335 = vmatpush1.bf16.msra.mxu0 0
  %2336 = vmatprep.subr.bf16.mxu0 0
  %2337 = vmatpush1.bf16.msra.mxu0 0
  %2338 = vmatprep.mubr.bf16.mxu0 0
  %2339 = vmatmul.mubr.bf16.gmra.mrb[0].mxu0 %v850
  %v2340 = vpop.f32.mrb[0].mxu0
  %v2341 = vadd.f32 %v2164, %v2340
  %v2342 = vpop.f32.mrb[0].mxu0
  %v2343 = vpop.f32.mrb[0].mxu0
  %v2344 = vadd.f32 %v2167, %v2343
  %v2345 = vpop.f32.mrb[0].mxu0
  %2346 = vmatprep.mubr.bf16.mxu0 0
  %2347 = vmatmul.mubr.bf16.gmra.mrb[0].mxu0 %v859
  %v2348 = vpop.f32.mrb[0].mxu0
  %v2349 = vadd.f32 %v2172, %v2348
  %v2350 = vpop.f32.mrb[0].mxu0
  %v2351 = vpop.f32.mrb[0].mxu0
  %v2352 = vadd.f32 %v2175, %v2351
  %v2353 = vpop.f32.mrb[0].mxu0
  %2354 = vmatprep.mubr.bf16.mxu0 0
  %2355 = vmatmul.mubr.bf16.gmra.mrb[0].mxu0 %v868
  %v2356 = vpop.f32.mrb[0].mxu0
  %v2357 = vadd.f32 %v2180, %v2356
  %v2358 = vpop.f32.mrb[0].mxu0
  %v2359 = vpop.f32.mrb[0].mxu0
  %v2360 = vadd.f32 %v2183, %v2359
  %v2361 = vpop.f32.mrb[0].mxu0
  %2362 = vmatprep.mubr.bf16.mxu0 0
  %2363 = vmatmul.mubr.bf16.gmra.mrb[0].mxu0 %v877
  %v2364 = vpop.f32.mrb[0].mxu0
  %v2365 = vadd.f32 %v2188, %v2364
  %v2366 = vpop.f32.mrb[0].mxu0
  %v2367 = vpop.f32.mrb[0].mxu0
  %v2368 = vadd.f32 %v2191, %v2367
  %v2369 = vpop.f32.mrb[0].mxu0
  %2370 = vmatprep.mubr.bf16.mxu0 0
  %2371 = vmatmul.mubr.bf16.gmra.mrb[0].mxu0 %v886
  %v2372 = vpop.f32.mrb[0].mxu0
  %v2373 = vadd.f32 %v2196, %v2372
  %v2374 = vpop.f32.mrb[0].mxu0
  %v2375 = vpop.f32.mrb[0].mxu0
  %v2376 = vadd.f32 %v2199, %v2375
  %v2377 = vpop.f32.mrb[0].mxu0
  %2378 = vmatprep.mubr.bf16.mxu0 0
  %2379 = vmatmul.mubr.bf16.gmra.mrb[0].mxu0 %v895
  %v2380 = vpop.f32.mrb[0].mxu0
  %v2381 = vadd.f32 %v2204, %v2380
  %v2382 = vpop.f32.mrb[0].mxu0
  %v2383 = vpop.f32.mrb[0].mxu0
  %v2384 = vadd.f32 %v2207, %v2383
  %v2385 = vpop.f32.mrb[0].mxu0
  %2386 = vmatprep.mubr.bf16.mxu0 0
  %2387 = vmatmul.mubr.bf16.gmra.mrb[0].mxu0 %v904
  %v2388 = vpop.f32.mrb[0].mxu0
  %v2389 = vadd.f32 %v2212, %v2388
  %v2390 = vpop.f32.mrb[0].mxu0
  %v2391 = vpop.f32.mrb[0].mxu0
  %v2392 = vadd.f32 %v2215, %v2391
  %v2393 = vpop.f32.mrb[0].mxu0
  %2394 = vmatprep.mubr.bf16.mxu0 0
  %2395 = vmatmul.mubr.bf16.gmra.mrb[0].mxu0 %v913
  %v2396 = vpop.f32.mrb[0].mxu0
  %v2397 = vadd.f32 %v2220, %v2396
  %v2398 = vpop.f32.mrb[0].mxu0
  %v2399 = vpop.f32.mrb[0].mxu0
  %v2400 = vadd.f32 %v2223, %v2399
  %v2401 = vpop.f32.mrb[0].mxu0
  %2402 = vmatprep.mubr.bf16.mxu0 0
  %2403 = vmatmul.mubr.bf16.gmra.mrb[0].mxu0 %v922
  %v2404 = vpop.f32.mrb[0].mxu0
  %v2405 = vadd.f32 %v2228, %v2404
  %v2406 = vpop.f32.mrb[0].mxu0
  %v2407 = vpop.f32.mrb[0].mxu0
  %v2408 = vadd.f32 %v2231, %v2407
  %v2409 = vpop.f32.mrb[0].mxu0
  %2410 = vmatprep.mubr.bf16.mxu0 0
  %2411 = vmatmul.mubr.bf16.gmra.mrb[0].mxu0 %v931
  %v2412 = vpop.f32.mrb[0].mxu0
  %v2413 = vadd.f32 %v2236, %v2412
  %v2414 = vpop.f32.mrb[0].mxu0
  %v2415 = vpop.f32.mrb[0].mxu0
  %v2416 = vadd.f32 %v2239, %v2415
  %v2417 = vpop.f32.mrb[0].mxu0
  %2418 = vmatprep.mubr.bf16.mxu0 0
  %2419 = vmatmul.mubr.bf16.gmra.mrb[0].mxu0 %v940
  %v2420 = vpop.f32.mrb[0].mxu0
  %v2421 = vadd.f32 %v2244, %v2420
  %v2422 = vpop.f32.mrb[0].mxu0
  %v2423 = vpop.f32.mrb[0].mxu0
  %v2424 = vadd.f32 %v2247, %v2423
  %v2425 = vpop.f32.mrb[0].mxu0
  %2426 = vmatprep.mubr.bf16.mxu0 0
  %2427 = vmatmul.mubr.bf16.gmra.mrb[0].mxu0 %v949
  %v2428 = vpop.f32.mrb[0].mxu0
  %v2429 = vadd.f32 %v2252, %v2428
  %v2430 = vpop.f32.mrb[0].mxu0
  %v2431 = vpop.f32.mrb[0].mxu0
  %v2432 = vadd.f32 %v2255, %v2431
  %v2433 = vpop.f32.mrb[0].mxu0
  %2434 = vmatprep.mubr.bf16.mxu0 0
  %2435 = vmatmul.mubr.bf16.gmra.mrb[0].mxu0 %v958
  %v2436 = vpop.f32.mrb[0].mxu0
  %v2437 = vadd.f32 %v2260, %v2436
  %v2438 = vpop.f32.mrb[0].mxu0
  %v2439 = vpop.f32.mrb[0].mxu0
  %v2440 = vadd.f32 %v2263, %v2439
  %v2441 = vpop.f32.mrb[0].mxu0
  %2442 = vmatprep.mubr.bf16.mxu0 0
  %2443 = vmatmul.mubr.bf16.gmra.mrb[0].mxu0 %v967
  %v2444 = vpop.f32.mrb[0].mxu0
  %v2445 = vadd.f32 %v2268, %v2444
  %v2446 = vpop.f32.mrb[0].mxu0
  %v2447 = vpop.f32.mrb[0].mxu0
  %v2448 = vadd.f32 %v2271, %v2447
  %v2449 = vpop.f32.mrb[0].mxu0
  %2450 = vmatprep.mubr.bf16.mxu0 0
  %2451 = vmatmul.mubr.bf16.gmra.mrb[0].mxu0 %v976
  %v2452 = vpop.f32.mrb[0].mxu0
  %v2453 = vadd.f32 %v2276, %v2452
  %v2454 = vpop.f32.mrb[0].mxu0
  %v2455 = vpop.f32.mrb[0].mxu0
  %v2456 = vadd.f32 %v2279, %v2455
  %v2457 = vpop.f32.mrb[0].mxu0
  %2458 = vmatprep.mubr.bf16.mxu0 0
  %2459 = vmatmul.mubr.bf16.gmra.mrb[0].mxu0 %v985
  %v2460 = vpop.f32.mrb[0].mxu0
  %v2461 = vadd.f32 %v2284, %v2460
  %v2462 = vpop.f32.mrb[0].mxu0
  %v2463 = vpop.f32.mrb[0].mxu0
  %v2464 = vadd.f32 %v2287, %v2463
  %v2465 = vpop.f32.mrb[0].mxu0
  %2466 = vmatprep.mubr.bf16.mxu0 0
  %2467 = vmatmul.mubr.bf16.gmra.mrb[0].mxu0 %v994
  %v2468 = vpop.f32.mrb[0].mxu0
  %v2469 = vadd.f32 %v2292, %v2468
  %v2470 = vpop.f32.mrb[0].mxu0
  %v2471 = vpop.f32.mrb[0].mxu0
  %v2472 = vadd.f32 %v2295, %v2471
  %v2473 = vpop.f32.mrb[0].mxu0
  %2474 = vmatprep.mubr.bf16.mxu0 0
  %2475 = vmatmul.mubr.bf16.gmra.mrb[0].mxu0 %v1003
  %v2476 = vpop.f32.mrb[0].mxu0
  %v2477 = vadd.f32 %v2300, %v2476
  %v2478 = vpop.f32.mrb[0].mxu0
  %v2479 = vpop.f32.mrb[0].mxu0
  %v2480 = vadd.f32 %v2303, %v2479
  %v2481 = vpop.f32.mrb[0].mxu0
  %2482 = vdwg.mxu0
  %v2483 = vpack.c.bf16 %v2344, %v2341
  %v2484 = vpack.c.bf16 %v2352, %v2349
  %v2485 = vpack.c.bf16 %v2360, %v2357
  %v2486 = vpack.c.bf16 %v2368, %v2365
  %v2487 = vpack.c.bf16 %v2376, %v2373
  %v2488 = vpack.c.bf16 %v2384, %v2381
  %v2489 = vpack.c.bf16 %v2392, %v2389
  %v2490 = vpack.c.bf16 %v2400, %v2397
  %v2491 = vpack.c.bf16 %v2408, %v2405
  %v2492 = vpack.c.bf16 %v2416, %v2413
  %v2493 = vpack.c.bf16 %v2424, %v2421
  %v2494 = vpack.c.bf16 %v2432, %v2429
  %v2495 = vpack.c.bf16 %v2440, %v2437
  %v2496 = vpack.c.bf16 %v2448, %v2445
  %v2497 = vpack.c.bf16 %v2456, %v2453
  %v2498 = vpack.c.bf16 %v2464, %v2461
  %v2499 = vpack.c.bf16 %v2472, %v2469
  %v2500 = vpack.c.bf16 %v2480, %v2477
  %v2519 = vunpack.c.l.b16 %v2483
  %v2520 = vunpack.c.h.b16 %v2483
  %v2521 = vunpack.c.l.b16 %v2484
  %v2522 = vunpack.c.h.b16 %v2484
  %v2523 = vunpack.c.l.b16 %v2485
  %v2524 = vunpack.c.h.b16 %v2485
  %v2525 = vunpack.c.l.b16 %v2486
  %v2526 = vunpack.c.h.b16 %v2486
  %v2527 = vunpack.c.l.b16 %v2487
  %v2528 = vunpack.c.h.b16 %v2487
  %v2529 = vunpack.c.l.b16 %v2488
  %v2530 = vunpack.c.h.b16 %v2488
  %v2531 = vunpack.c.l.b16 %v2489
  %v2532 = vunpack.c.h.b16 %v2489
  %v2533 = vunpack.c.l.b16 %v2490
  %v2534 = vunpack.c.h.b16 %v2490
  %v2535 = vunpack.c.l.b16 %v2491
  %v2536 = vunpack.c.h.b16 %v2491
  %v2537 = vunpack.c.l.b16 %v2492
  %v2538 = vunpack.c.h.b16 %v2492
  %v2539 = vunpack.c.l.b16 %v2493
  %v2540 = vunpack.c.h.b16 %v2493
  %v2541 = vunpack.c.l.b16 %v2494
  %v2542 = vunpack.c.h.b16 %v2494
  %v2543 = vunpack.c.l.b16 %v2495
  %v2544 = vunpack.c.h.b16 %v2495
  %v2545 = vunpack.c.l.b16 %v2496
  %v2546 = vunpack.c.h.b16 %v2496
  %v2547 = vunpack.c.l.b16 %v2497
  %v2548 = vunpack.c.h.b16 %v2497
  %v2549 = vunpack.c.l.b16 %v2498
  %v2550 = vunpack.c.h.b16 %v2498
  %v2551 = vunpack.c.l.b16 %v2499
  %v2552 = vunpack.c.h.b16 %v2499
  %v2553 = vunpack.c.l.b16 %v2500
  %v2554 = vunpack.c.h.b16 %v2500
  %v2555 = vpack.c.b16 %v2519, %v2519
  %v2556 = vpack.c.b16 %v2520, %v2520
  %v2557 = vpack.c.b16 %v2521, %v2521
  %v2558 = vpack.c.b16 %v2522, %v2522
  %v2559 = vpack.c.b16 %v2523, %v2523
  %v2560 = vpack.c.b16 %v2524, %v2524
  %v2561 = vpack.c.b16 %v2525, %v2525
  %v2562 = vpack.c.b16 %v2526, %v2526
  %v2563 = vpack.c.b16 %v2527, %v2527
  %v2564 = vpack.c.b16 %v2528, %v2528
  %v2565 = vpack.c.b16 %v2529, %v2529
  %v2566 = vpack.c.b16 %v2530, %v2530
  %v2567 = vpack.c.b16 %v2531, %v2531
  %v2568 = vpack.c.b16 %v2532, %v2532
  %v2569 = vpack.c.b16 %v2533, %v2533
  %v2570 = vpack.c.b16 %v2534, %v2534
  %v2571 = vpack.c.b16 %v2535, %v2535
  %v2572 = vpack.c.b16 %v2536, %v2536
  %v2573 = vpack.c.b16 %v2537, %v2537
  %v2574 = vpack.c.b16 %v2538, %v2538
  %v2575 = vpack.c.b16 %v2539, %v2539
  %v2576 = vpack.c.b16 %v2540, %v2540
  %v2577 = vpack.c.b16 %v2541, %v2541
  %v2578 = vpack.c.b16 %v2542, %v2542
  %v2579 = vpack.c.b16 %v2543, %v2543
  %v2580 = vpack.c.b16 %v2544, %v2544
  %v2581 = vpack.c.b16 %v2545, %v2545
  %v2582 = vpack.c.b16 %v2546, %v2546
  %v2583 = vpack.c.b16 %v2547, %v2547
  %v2584 = vpack.c.b16 %v2548, %v2548
  %v2585 = vpack.c.b16 %v2549, %v2549
  %v2586 = vpack.c.b16 %v2550, %v2550
  %v2587 = vpack.c.b16 %v2551, %v2551
  %v2588 = vpack.c.b16 %v2552, %v2552
  %v2589 = vpack.c.b16 %v2553, %v2553
  %v2590 = vpack.c.b16 %v2554, %v2554
  %2627 = vst [vmem:[%s2] sm:$0xf] %v2555
  %2628 = vst [vmem:[%s2 + $0x4] sm:$0xf] %v2556
  %2629 = vst [vmem:[%s2 + $0x8] sm:$0xf] %v2557
  %2630 = vst [vmem:[%s2 + $0xc] sm:$0xf] %v2558
  %2631 = vst [vmem:[%s2 + $0x10] sm:$0xf] %v2559
  %2632 = vst [vmem:[%s2 + $0x14] sm:$0xf] %v2560
  %2633 = vst [vmem:[%s2 + $0x18] sm:$0xf] %v2561
  %2634 = vst [vmem:[%s2 + $0x1c] sm:$0xf] %v2562
  %2635 = vst [vmem:[%s2 + $0x20] sm:$0xf] %v2563
  %2636 = vst [vmem:[%s2 + $0x24] sm:$0xf] %v2564
  %2637 = vst [vmem:[%s2 + $0x28] sm:$0xf] %v2565
  %2638 = vst [vmem:[%s2 + $0x2c] sm:$0xf] %v2566
  %2639 = vst [vmem:[%s2 + $0x30] sm:$0xf] %v2567
  %2640 = vst [vmem:[%s2 + $0x34] sm:$0xf] %v2568
  %2641 = vst [vmem:[%s2 + $0x38] sm:$0xf] %v2569
  %2642 = vst [vmem:[%s2 + $0x3c] sm:$0xf] %v2570
  %2643 = vst [vmem:[%s2 + $0x40] sm:$0xf] %v2571
  %2644 = vst [vmem:[%s2 + $0x44] sm:$0xf] %v2572
  %2645 = vst [vmem:[%s2 + $0x48] sm:$0xf] %v2573
  %2646 = vst [vmem:[%s2 + $0x4c] sm:$0xf] %v2574
  %2647 = vst [vmem:[%s2 + $0x50] sm:$0xf] %v2575
  %2648 = vst [vmem:[%s2 + $0x54] sm:$0xf] %v2576
  %2649 = vst [vmem:[%s2 + $0x58] sm:$0xf] %v2577
  %2650 = vst [vmem:[%s2 + $0x5c] sm:$0xf] %v2578
  %2651 = vst [vmem:[%s2 + $0x60] sm:$0xf] %v2579
  %2652 = vst [vmem:[%s2 + $0x64] sm:$0xf] %v2580
  %2653 = vst [vmem:[%s2 + $0x68] sm:$0xf] %v2581
  %2654 = vst [vmem:[%s2 + $0x6c] sm:$0xf] %v2582
  %2655 = vst [vmem:[%s2 + $0x70] sm:$0xf] %v2583
  %2656 = vst [vmem:[%s2 + $0x74] sm:$0xf] %v2584
  %2657 = vst [vmem:[%s2 + $0x78] sm:$0xf] %v2585
  %2658 = vst [vmem:[%s2 + $0x7c] sm:$0xf] %v2586
  %2659 = vst [vmem:[%s2 + $0x80] sm:$0xf] %v2587
  %2660 = vst [vmem:[%s2 + $0x84] sm:$0xf] %v2588
  %2661 = vst [vmem:[%s2 + $0x88] sm:$0xf] %v2589
  %2662 = vst [vmem:[%s2 + $0x8c] sm:$0xf] %v2590
  %v2663 = vadd.f32 %v2341, %v2344
  %v2664 = vadd.f32 %v2663, %v2349
  %v2665 = vadd.f32 %v2664, %v2352
  %v2666 = vadd.f32 %v2665, %v2357
  %v2667 = vadd.f32 %v2666, %v2360
  %v2668 = vadd.f32 %v2667, %v2365
  %v2669 = vadd.f32 %v2668, %v2368
  %v2670 = vadd.f32 %v2669, %v2373
  %v2671 = vadd.f32 %v2670, %v2376
  %v2672 = vadd.f32 %v2671, %v2381
  %v2673 = vadd.f32 %v2672, %v2384
  %v2674 = vadd.f32 %v2673, %v2389
  %v2675 = vadd.f32 %v2674, %v2392
  %v2676 = vadd.f32 %v2675, %v2397
  %v2677 = vadd.f32 %v2676, %v2400
  %v2678 = vadd.f32 %v2677, %v2405
  %v2679 = vadd.f32 %v2678, %v2408
  %v2680 = vadd.f32 %v2679, %v2413
  %v2681 = vadd.f32 %v2680, %v2416
  %v2682 = vadd.f32 %v2681, %v2421
  %v2683 = vadd.f32 %v2682, %v2424
  %v2684 = vadd.f32 %v2683, %v2429
  %v2685 = vadd.f32 %v2684, %v2432
  %v2686 = vadd.f32 %v2685, %v2437
  %v2687 = vadd.f32 %v2686, %v2440
  %v2688 = vadd.f32 %v2687, %v2445
  %v2689 = vadd.f32 %v2688, %v2448
  %v2690 = vadd.f32 %v2689, %v2453
  %v2691 = vadd.f32 %v2690, %v2456
  %v2692 = vadd.f32 %v2691, %v2461
  %v2693 = vadd.f32 %v2692, %v2464
  %v2694 = vadd.f32 %v2693, %v2469
  %v2695 = vadd.f32 %v2694, %v2472
  %v2696 = vadd.f32 %v2695, %v2477
  %v2697 = vadd.f32 %v2696, %v2480
  %v2698 = vrot.slane %v2697, 4
  %v2699 = vadd.f32 %v2697, %v2698
  %v2700 = vrot.slane %v2699, 2
  %v2701 = vadd.f32 %v2699, %v2700
  %v2702 = vrot.slane %v2701, 1
  %v2703 = vadd.f32 %v2701, %v2702
  %v2704 = vmul.f32 %v2341, %v2341
  %v2705 = vmul.f32 %v2344, %v2344
  %v2706 = vmul.f32 %v2349, %v2349
  %v2707 = vmul.f32 %v2352, %v2352
  %v2708 = vmul.f32 %v2357, %v2357
  %v2709 = vmul.f32 %v2360, %v2360
  %v2710 = vmul.f32 %v2365, %v2365
  %v2711 = vmul.f32 %v2368, %v2368
  %v2712 = vmul.f32 %v2373, %v2373
  %v2713 = vmul.f32 %v2376, %v2376
  %v2714 = vmul.f32 %v2381, %v2381
  %v2715 = vmul.f32 %v2384, %v2384
  %v2716 = vmul.f32 %v2389, %v2389
  %v2717 = vmul.f32 %v2392, %v2392
  %v2718 = vmul.f32 %v2397, %v2397
  %v2719 = vmul.f32 %v2400, %v2400
  %v2720 = vmul.f32 %v2405, %v2405
  %v2721 = vmul.f32 %v2408, %v2408
  %v2722 = vmul.f32 %v2413, %v2413
  %v2723 = vmul.f32 %v2416, %v2416
  %v2724 = vmul.f32 %v2421, %v2421
  %v2725 = vmul.f32 %v2424, %v2424
  %v2726 = vmul.f32 %v2429, %v2429
  %v2727 = vmul.f32 %v2432, %v2432
  %v2728 = vmul.f32 %v2437, %v2437
  %v2729 = vmul.f32 %v2440, %v2440
  %v2730 = vmul.f32 %v2445, %v2445
  %v2731 = vmul.f32 %v2448, %v2448
  %v2732 = vmul.f32 %v2453, %v2453
  %v2733 = vmul.f32 %v2456, %v2456
  %v2734 = vmul.f32 %v2461, %v2461
  %v2735 = vmul.f32 %v2464, %v2464
  %v2736 = vmul.f32 %v2469, %v2469
  %v2737 = vmul.f32 %v2472, %v2472
  %v2738 = vmul.f32 %v2477, %v2477
  %v2739 = vmul.f32 %v2480, %v2480
  %v2740 = vadd.f32 %v2704, %v2705
  %v2741 = vadd.f32 %v2740, %v2706
  %v2742 = vadd.f32 %v2741, %v2707
  %v2743 = vadd.f32 %v2742, %v2708
  %v2744 = vadd.f32 %v2743, %v2709
  %v2745 = vadd.f32 %v2744, %v2710
  %v2746 = vadd.f32 %v2745, %v2711
  %v2747 = vadd.f32 %v2746, %v2712
  %v2748 = vadd.f32 %v2747, %v2713
  %v2749 = vadd.f32 %v2748, %v2714
  %v2750 = vadd.f32 %v2749, %v2715
  %v2751 = vadd.f32 %v2750, %v2716
  %v2752 = vadd.f32 %v2751, %v2717
  %v2753 = vadd.f32 %v2752, %v2718
  %v2754 = vadd.f32 %v2753, %v2719
  %v2755 = vadd.f32 %v2754, %v2720
  %v2756 = vadd.f32 %v2755, %v2721
  %v2757 = vadd.f32 %v2756, %v2722
  %v2758 = vadd.f32 %v2757, %v2723
  %v2759 = vadd.f32 %v2758, %v2724
  %v2760 = vadd.f32 %v2759, %v2725
  %v2761 = vadd.f32 %v2760, %v2726
  %v2762 = vadd.f32 %v2761, %v2727
  %v2763 = vadd.f32 %v2762, %v2728
  %v2764 = vadd.f32 %v2763, %v2729
  %v2765 = vadd.f32 %v2764, %v2730
  %v2766 = vadd.f32 %v2765, %v2731
  %v2767 = vadd.f32 %v2766, %v2732
  %v2768 = vadd.f32 %v2767, %v2733
  %v2769 = vadd.f32 %v2768, %v2734
  %v2770 = vadd.f32 %v2769, %v2735
  %v2771 = vadd.f32 %v2770, %v2736
  %v2772 = vadd.f32 %v2771, %v2737
  %v2773 = vadd.f32 %v2772, %v2738
  %v2774 = vadd.f32 %v2773, %v2739
  %v2775 = vrot.slane %v2774, 4
  %v2776 = vadd.f32 %v2774, %v2775
  %v2777 = vrot.slane %v2776, 2
  %v2778 = vadd.f32 %v2776, %v2777
  %v2779 = vrot.slane %v2778, 1
  %v2780 = vadd.f32 %v2778, %v2779
  %vm2781 = vcmask 1040384
  %v2782 = vsel %vm2781, %v2703, %v2780
  %2783 = vst [vmem:[%s3] sm:$0x3] %v2782
  // Predicated region
  $region10: #{cvae2_pool_forward.25} parent=0 // pred_check
    _
  $region11: #{cvae2_pool_forward.25} parent=0 // pred_check_branch
    %2785 = sbr.rel (0) target = $region13
  $region12: #{cvae2_pool_forward.25} parent=0 // pred_region
    _
  $region13: #{cvae2_pool_forward.25} parent=0 // pred_fallthru
    _
  // Predicated region
  $region14: #{cvae2_pool_forward.25} parent=0 // pred_check
    _
  $region15: #{cvae2_pool_forward.25} parent=0 // pred_check_branch
    %2787 = sbr.rel (0) target = $region17
  $region16: #{cvae2_pool_forward.25} parent=0 // pred_region
    _
  $region17: #{cvae2_pool_forward.25} parent=0 // pred_fallthru
    _
  // Predicated region
  $region18: #{cvae2_pool_forward.25} parent=0 // pred_check
    _
  $region19: #{cvae2_pool_forward.25} parent=0 // pred_check_branch
    %2789 = sbr.rel (0) target = $region21
  $region20: #{cvae2_pool_forward.25} parent=0 // pred_region
    _
  $region21: #{cvae2_pool_forward.25} parent=0 // pred_fallthru
    _
  // Predicated region
  $region22: #{cvae2_pool_forward.25} parent=0 // pred_check
    _
  $region23: #{cvae2_pool_forward.25} parent=0 // pred_check_branch
    %2791 = sbr.rel (0) target = $region25
  $region24: #{cvae2_pool_forward.25} parent=0 // pred_region
    _
  $region25: #{cvae2_pool_forward.25} parent=0 // pred_fallthru
    _

// kernel: cvae2_pool_forward.27
$region0: #{cvae2_pool_forward.27}
  #allocation0 [shape = 'u32[]', space=smem, size = 0x4, offset = 0x4, fixed_abs, tag = 'smem constant byte address 0x4 - core index']
  #allocation1 [shape = 'u32[144,128]{1,0:T(1,128)}', space=vmem, size = 0x12000, scoped, tag = 'internal scratch']
  %s0 = inlined_call_operand.vmem [shape: bf16[1568,1600], index: 0, kind: input, shape index: {}]
  %s1 = inlined_call_operand.vmem [shape: bf16[1600,128], index: 1, kind: input, shape index: {}]
  %s2 = inlined_call_operand.vmem [shape: f32[1,128], index: 2, kind: input, shape index: {}]
  %s3 = inlined_call_operand.vmem [shape: f32[1568,1], index: 3, kind: output, shape index: {}]
  %s4 = sld [smem:[#allocation0]]
  $region45: #{cvae2_pool_forward.27} parent=0
    _
  %s6 = ssub.s32 1, %s4
  %s7 = scalar_select 0, %s6, %s4
  loop: start=0, step=1, limit=9
  $region2: #{cvae2_pool_forward.27} parent=0 // loop_pre_header
    _
  $region3: #{cvae2_pool_forward.27} parent=0 // loop_header
    %s9 = sphi 0, %s13
    %p10 = scmp.ge.s32.totalorder %s9, 9
    %s19 = sphi 0, %s21
    %s22 = sphi 0, %s19
    %s23 = sphi 0, %s22
    %s39 = sphi 0, %s23
    %s43 = sphi 0, %s43
    %s45 = sphi 0, %s43
    %s46 = sphi 0, %s45
    %s60 = sphi 0, %s46
    %s64 = sphi 0, %s64
    %s66 = sphi 0, %s64
    %s67 = sphi 0, %s66
    %s81 = sphi 0, %s67
    %s87 = sphi 0, %s89
    %s90 = sphi 0, %s87
    %s91 = sphi 0, %s90
    %s107 = sphi 0, %s91
  $region4: #{cvae2_pool_forward.27} parent=0 // loop_header_branch
    %12 = sbr.rel (%p10) target = $region8
  $region5: #{cvae2_pool_forward.27} parent=0 // loop_body
    %s14 = ssub.s32 %s9, 1
    %s15 = ssub.s32 %s9, 2
    %s16 = sadd.s32 %s9, 1
    %s17 = ssub.s32 %s9, %s16
    %p18 = scmp.eq.s32.totalorder %s17, 0
    %s20 = sadd.s32 %s19, 1
    %s21 = scalar_select %p18, %s19, %s20
    %p24 = pneg %p18
    %p25 = scmp.eq.s32.totalorder %s9, 6
    %p26 = por %p24, %p25
    %p27 = scmp.ne.s32.totalorder %s19, %s22
    %p28 = scmp.eq.s32.totalorder %s9, 0
    %p29 = por %p27, %p28
    %p30 = scmp.ne.s32.totalorder %s19, %s22
    %p31 = scmp.eq.s32.totalorder %s14, 6
    %p32 = por %p30, %p31
    %p33 = scmp.ne.s32.totalorder %s22, %s23
    %p34 = scmp.eq.s32.totalorder %s14, 0
    %p35 = por %p33, %p34
    %p36 = scmp.ne.s32.totalorder %s22, %s23
    %p37 = scmp.eq.s32.totalorder %s15, 6
    %p38 = por %p36, %p37
    %p40 = scmp.ne.s32.totalorder %s23, %s39
    %p41 = scmp.eq.s32.totalorder %s15, 0
    %p42 = por %p40, %p41
    %s44 = sadd.s32 %s43, 1
    %p47 = scmp.eq.s32.totalorder %s9, 6
    %p48 = scmp.ne.s32.totalorder %s43, %s45
    %p49 = scmp.eq.s32.totalorder %s9, 0
    %p50 = por %p48, %p49
    %p51 = scmp.ne.s32.totalorder %s43, %s45
    %p52 = scmp.eq.s32.totalorder %s14, 6
    %p53 = por %p51, %p52
    %p54 = scmp.ne.s32.totalorder %s45, %s46
    %p55 = scmp.eq.s32.totalorder %s14, 0
    %p56 = por %p54, %p55
    %p57 = scmp.ne.s32.totalorder %s45, %s46
    %p58 = scmp.eq.s32.totalorder %s15, 6
    %p59 = por %p57, %p58
    %p61 = scmp.ne.s32.totalorder %s46, %s60
    %p62 = scmp.eq.s32.totalorder %s15, 0
    %p63 = por %p61, %p62
    %s65 = sadd.s32 %s64, 1
    %p68 = scmp.eq.s32.totalorder %s9, 6
    %p69 = scmp.ne.s32.totalorder %s64, %s66
    %p70 = scmp.eq.s32.totalorder %s9, 0
    %p71 = por %p69, %p70
    %p72 = scmp.ne.s32.totalorder %s64, %s66
    %p73 = scmp.eq.s32.totalorder %s14, 6
    %p74 = por %p72, %p73
    %p75 = scmp.ne.s32.totalorder %s66, %s67
    %p76 = scmp.eq.s32.totalorder %s14, 0
    %p77 = por %p75, %p76
    %p78 = scmp.ne.s32.totalorder %s66, %s67
    %p79 = scmp.eq.s32.totalorder %s15, 6
    %p80 = por %p78, %p79
    %p82 = scmp.ne.s32.totalorder %s67, %s81
    %p83 = scmp.eq.s32.totalorder %s15, 0
    %p84 = por %p82, %p83
    %s85 = ssub.s32 %s9, %s16
    %p86 = scmp.eq.s32.totalorder %s85, 0
    %s88 = sadd.s32 %s87, 1
    %s89 = scalar_select %p86, %s87, %s88
    %p92 = pneg %p86
    %p93 = scmp.eq.s32.totalorder %s9, 6
    %p94 = por %p92, %p93
    %p95 = scmp.ne.s32.totalorder %s87, %s90
    %p96 = scmp.eq.s32.totalorder %s9, 0
    %p97 = por %p95, %p96
    %p98 = scmp.ne.s32.totalorder %s87, %s90
    %p99 = scmp.eq.s32.totalorder %s14, 6
    %p100 = por %p98, %p99
    %p101 = scmp.ne.s32.totalorder %s90, %s91
    %p102 = scmp.eq.s32.totalorder %s14, 0
    %p103 = por %p101, %p102
    %p104 = scmp.ne.s32.totalorder %s90, %s91
    %p105 = scmp.eq.s32.totalorder %s15, 6
    %p106 = por %p104, %p105
    %p108 = scmp.ne.s32.totalorder %s91, %s107
    %p109 = scmp.eq.s32.totalorder %s15, 0
    %p110 = por %p108, %p109
    %p111 = scmp.le.s32.totalorder 1, %s9
    %p112 = scmp.lt.s32.totalorder %s9, 8
    %p113 = pnand %p111, %p112
    %p114 = pneg %p113
    // Predicated region
    $region9: #{cvae2_pool_forward.27} parent=5 // pred_check
      _
    $region10: #{cvae2_pool_forward.27} parent=5 // pred_check_branch
      %116 = sbr.rel (%p113) target = $region12
    $region11: #{cvae2_pool_forward.27} parent=5 // pred_region
      %s117 = ssub.s32 %s9, 1
      // Predicated region
      $region13: #{cvae2_pool_forward.27} parent=11 // pred_check
        %p118 = pneg %p56
      $region14: #{cvae2_pool_forward.27} parent=11 // pred_check_branch
        %120 = sbr.rel (%p118) target = $region16
      $region15: #{cvae2_pool_forward.27} parent=11 // pred_region
        _
      $region16: #{cvae2_pool_forward.27} parent=11 // pred_fallthru
        _
      // Predicated region
      $region17: #{cvae2_pool_forward.27} parent=11 // pred_check
        %p121 = pneg %p77
      $region18: #{cvae2_pool_forward.27} parent=11 // pred_check_branch
        %123 = sbr.rel (%p121) target = $region20
      $region19: #{cvae2_pool_forward.27} parent=11 // pred_region
        _
      $region20: #{cvae2_pool_forward.27} parent=11 // pred_fallthru
        _
    $region12: #{cvae2_pool_forward.27} parent=5 // pred_fallthru
      _
    %p124 = scmp.lt.s32.totalorder %s9, 7
    // Predicated region
    $region21: #{cvae2_pool_forward.27} parent=5 // pred_check
      %p125 = pneg %p124
    $region22: #{cvae2_pool_forward.27} parent=5 // pred_check_branch
      %127 = sbr.rel (%p125) target = $region24
    $region23: #{cvae2_pool_forward.27} parent=5 // pred_region
      // Predicated region
      $region25: #{cvae2_pool_forward.27} parent=23 // pred_check
        %p128 = pneg %p29
      $region26: #{cvae2_pool_forward.27} parent=23 // pred_check_branch
        %130 = sbr.rel (%p128) target = $region28
      $region27: #{cvae2_pool_forward.27} parent=23 // pred_region
        %s131 = smul.u32 28, %s9
        %p132 = scmp.lt.s32.totalorder %s131, 195
        %s133 = scalar_select %p132, %s131, 195
        %s134 = smul.addr %s133, 13
        %s135 = smul.addr %s134, 4
        %s136 = scalar_lea.vmem %s0, %s135
        %s137 = smul.u32 28, %s9
      $region28: #{cvae2_pool_forward.27} parent=23 // pred_fallthru
        _
    $region24: #{cvae2_pool_forward.27} parent=5 // pred_fallthru
      _
    %p138 = scmp.le.s32.totalorder 1, %s9
    %p139 = scmp.lt.s32.totalorder %s9, 8
    %p140 = pnand %p138, %p139
    %p141 = pneg %p140
    // Predicated region
    $region29: #{cvae2_pool_forward.27} parent=5 // pred_check
      _
    $region30: #{cvae2_pool_forward.27} parent=5 // pred_check_branch
      %143 = sbr.rel (%p140) target = $region32
    $region31: #{cvae2_pool_forward.27} parent=5 // pred_region
      %s144 = ssub.s32 %s9, 1
      %s145 = smul.u32 28, %s14
      %p146 = scmp.lt.s32.totalorder %s145, 195
      %s147 = scalar_select %p146, %s145, 195
      %s148 = smul.addr %s147, 13
      %s149 = smul.addr %s148, 4
      %s150 = scalar_lea.vmem %s0, %s149
      %p151 = pneg %p35
      %p152 = pneg %p32
      %p153 = pneg %p56
      %p154 = pneg %p53
      %p155 = pneg %p77
      %p156 = pneg %p74
      %p157 = pneg %p103
      %p158 = pneg %p100
      %s159 = smul.u32 28, %s14
      %p160 = scmp.lt.s32.totalorder %s159, 195
      %s161 = scalar_select %p160, %s159, 195
      %s162 = smul.addr %s161, 8
      %s163 = scalar_lea.vmem %s3, %s162
      %s164 = smul.u32 28, %s14
      %p165 = scmp.lt.s32.totalorder %s164, 195
      %s166 = scalar_select %p165, %s164, 195
      %s167 = smul.addr %s166, 13
      %s168 = smul.addr %s167, 4
      %s169 = scalar_lea.vmem %s0, %s168
      %s170 = smul.u32 28, %s14
      %s171 = smul.u32 28, %s14
      %p172 = scmp.lt.s32.totalorder %s171, 195
      %s173 = scalar_select %p172, %s171, 195
      %s174 = smul.addr %s173, 8
      %s175 = scalar_lea.vmem %s3, %s174
      %s176 = smul.u32 28, %s14
      %v178 = vld [vmem:[%s169] sm:$0xff]
      %v179 = vld [vmem:[%s169 + $0x8] sm:$0xff]
      %v180 = vld [vmem:[%s169 + $0x10] sm:$0xff]
      %v181 = vld [vmem:[%s169 + $0x18] sm:$0xff]
      %v182 = vld [vmem:[%s169 + $0x20] sm:$0xff]
      %v183 = vld [vmem:[%s169 + $0x28] sm:$0xff]
      %v184 = vld [vmem:[%s169 + $0x30] sm:$0xf]
      %v185 = vld [vmem:[%s169 + $0x34] sm:$0xff]
      %v186 = vld [vmem:[%s169 + $0x3c] sm:$0xff]
      %v187 = vld [vmem:[%s169 + $0x44] sm:$0xff]
      %v188 = vld [vmem:[%s169 + $0x4c] sm:$0xff]
      %v189 = vld [vmem:[%s169 + $0x54] sm:$0xff]
      %v190 = vld [vmem:[%s169 + $0x5c] sm:$0xff]
      %v191 = vld [vmem:[%s169 + $0x64] sm:$0xf]
      %v192 = vld [vmem:[%s169 + $0x68] sm:$0xff]
      %v193 = vld [vmem:[%s169 + $0x70] sm:$0xff]
      %v194 = vld [vmem:[%s169 + $0x78] sm:$0xff]
      %v195 = vld [vmem:[%s169 + $0x80] sm:$0xff]
      %v196 = vld [vmem:[%s169 + $0x88] sm:$0xff]
      %v197 = vld [vmem:[%s169 + $0x90] sm:$0xff]
      %v198 = vld [vmem:[%s169 + $0x98] sm:$0xf]
      %v199 = vld [vmem:[%s169 + $0x9c] sm:$0xff]
      %v200 = vld [vmem:[%s169 + $0xa4] sm:$0xff]
      %v201 = vld [vmem:[%s169 + $0xac] sm:$0xff]
      %v202 = vld [vmem:[%s169 + $0xb4] sm:$0xff]
      %v203 = vld [vmem:[%s169 + $0xbc] sm:$0xff]
      %v204 = vld [vmem:[%s169 + $0xc4] sm:$0xff]
      %v205 = vld [vmem:[%s169 + $0xcc] sm:$0xf]
      %v206 = vld [vmem:[%s169 + $0xd0] sm:$0xff]
      %v207 = vld [vmem:[%s169 + $0xd8] sm:$0xff]
      %v208 = vld [vmem:[%s169 + $0xe0] sm:$0xff]
      %v209 = vld [vmem:[%s169 + $0xe8] sm:$0xff]
      %v210 = vld [vmem:[%s169 + $0xf0] sm:$0xff]
      %v211 = vld [vmem:[%s169 + $0xf8] sm:$0xff]
      %v212 = vld [vmem:[%s169 + $0x100] sm:$0xf]
      %v213 = vld [vmem:[%s169 + $0x104] sm:$0xff]
      %v214 = vld [vmem:[%s169 + $0x10c] sm:$0xff]
      %v215 = vld [vmem:[%s169 + $0x114] sm:$0xff]
      %v216 = vld [vmem:[%s169 + $0x11c] sm:$0xff]
      %v217 = vld [vmem:[%s169 + $0x124] sm:$0xff]
      %v218 = vld [vmem:[%s169 + $0x12c] sm:$0xff]
      %v219 = vld [vmem:[%s169 + $0x134] sm:$0xf]
      %v220 = vld [vmem:[%s169 + $0x138] sm:$0xff]
      %v221 = vld [vmem:[%s169 + $0x140] sm:$0xff]
      %v222 = vld [vmem:[%s169 + $0x148] sm:$0xff]
      %v223 = vld [vmem:[%s169 + $0x150] sm:$0xff]
      %v224 = vld [vmem:[%s169 + $0x158] sm:$0xff]
      %v225 = vld [vmem:[%s169 + $0x160] sm:$0xff]
      %v226 = vld [vmem:[%s169 + $0x168] sm:$0xf]
      %v227 = vld [vmem:[%s169 + $0x16c] sm:$0xff]
      %v228 = vld [vmem:[%s169 + $0x174] sm:$0xff]
      %v229 = vld [vmem:[%s169 + $0x17c] sm:$0xff]
      %v230 = vld [vmem:[%s169 + $0x184] sm:$0xff]
      %v231 = vld [vmem:[%s169 + $0x18c] sm:$0xff]
      %v232 = vld [vmem:[%s169 + $0x194] sm:$0xff]
      %v233 = vld [vmem:[%s169 + $0x19c] sm:$0xf]
      %v234 = vld [vmem:[%s169 + $0x1a0] sm:$0xff]
      %v235 = vld [vmem:[%s169 + $0x1a8] sm:$0xff]
      %v236 = vld [vmem:[%s169 + $0x1b0] sm:$0xff]
      %v237 = vld [vmem:[%s169 + $0x1b8] sm:$0xff]
      %v238 = vld [vmem:[%s169 + $0x1c0] sm:$0xff]
      %v239 = vld [vmem:[%s169 + $0x1c8] sm:$0xff]
      %v240 = vld [vmem:[%s169 + $0x1d0] sm:$0xf]
      %v241 = vld [vmem:[%s169 + $0x1d4] sm:$0xff]
      %v242 = vld [vmem:[%s169 + $0x1dc] sm:$0xff]
      %v243 = vld [vmem:[%s169 + $0x1e4] sm:$0xff]
      %v244 = vld [vmem:[%s169 + $0x1ec] sm:$0xff]
      %v245 = vld [vmem:[%s169 + $0x1f4] sm:$0xff]
      %v246 = vld [vmem:[%s169 + $0x1fc] sm:$0xff]
      %v247 = vld [vmem:[%s169 + $0x204] sm:$0xf]
      %v248 = vld [vmem:[%s169 + $0x208] sm:$0xff]
      %v249 = vld [vmem:[%s169 + $0x210] sm:$0xff]
      %v250 = vld [vmem:[%s169 + $0x218] sm:$0xff]
      %v251 = vld [vmem:[%s169 + $0x220] sm:$0xff]
      %v252 = vld [vmem:[%s169 + $0x228] sm:$0xff]
      %v253 = vld [vmem:[%s169 + $0x230] sm:$0xff]
      %v254 = vld [vmem:[%s169 + $0x238] sm:$0xf]
      %v255 = vld [vmem:[%s169 + $0x23c] sm:$0xff]
      %v256 = vld [vmem:[%s169 + $0x244] sm:$0xff]
      %v257 = vld [vmem:[%s169 + $0x24c] sm:$0xff]
      %v258 = vld [vmem:[%s169 + $0x254] sm:$0xff]
      %v259 = vld [vmem:[%s169 + $0x25c] sm:$0xff]
      %v260 = vld [vmem:[%s169 + $0x264] sm:$0xff]
      %v261 = vld [vmem:[%s169 + $0x26c] sm:$0xf]
      %v262 = vld [vmem:[%s169 + $0x270] sm:$0xff]
      %v263 = vld [vmem:[%s169 + $0x278] sm:$0xff]
      %v264 = vld [vmem:[%s169 + $0x280] sm:$0xff]
      %v265 = vld [vmem:[%s169 + $0x288] sm:$0xff]
      %v266 = vld [vmem:[%s169 + $0x290] sm:$0xff]
      %v267 = vld [vmem:[%s169 + $0x298] sm:$0xff]
      %v268 = vld [vmem:[%s169 + $0x2a0] sm:$0xf]
      %v269 = vld [vmem:[%s169 + $0x2a4] sm:$0xff]
      %v270 = vld [vmem:[%s169 + $0x2ac] sm:$0xff]
      %v271 = vld [vmem:[%s169 + $0x2b4] sm:$0xff]
      %v272 = vld [vmem:[%s169 + $0x2bc] sm:$0xff]
      %v273 = vld [vmem:[%s169 + $0x2c4] sm:$0xff]
      %v274 = vld [vmem:[%s169 + $0x2cc] sm:$0xff]
      %v275 = vld [vmem:[%s169 + $0x2d4] sm:$0xf]
      %v276 = vld [vmem:[%s169 + $0x2d8] sm:$0xff]
      %v277 = vld [vmem:[%s169 + $0x2e0] sm:$0xff]
      %v278 = vld [vmem:[%s169 + $0x2e8] sm:$0xff]
      %v279 = vld [vmem:[%s169 + $0x2f0] sm:$0xff]
      %v280 = vld [vmem:[%s169 + $0x2f8] sm:$0xff]
      %v281 = vld [vmem:[%s169 + $0x300] sm:$0xff]
      %v282 = vld [vmem:[%s169 + $0x308] sm:$0xf]
      %v283 = vld [vmem:[%s169 + $0x30c] sm:$0xff]
      %v284 = vld [vmem:[%s169 + $0x314] sm:$0xff]
      %v285 = vld [vmem:[%s169 + $0x31c] sm:$0xff]
      %v286 = vld [vmem:[%s169 + $0x324] sm:$0xff]
      %v287 = vld [vmem:[%s169 + $0x32c] sm:$0xff]
      %v288 = vld [vmem:[%s169 + $0x334] sm:$0xff]
      %v289 = vld [vmem:[%s169 + $0x33c] sm:$0xf]
      %v290 = vld [vmem:[%s169 + $0x340] sm:$0xff]
      %v291 = vld [vmem:[%s169 + $0x348] sm:$0xff]
      %v292 = vld [vmem:[%s169 + $0x350] sm:$0xff]
      %v293 = vld [vmem:[%s169 + $0x358] sm:$0xff]
      %v294 = vld [vmem:[%s169 + $0x360] sm:$0xff]
      %v295 = vld [vmem:[%s169 + $0x368] sm:$0xff]
      %v296 = vld [vmem:[%s169 + $0x370] sm:$0xf]
      %v297 = vld [vmem:[%s169 + $0x374] sm:$0xff]
      %v298 = vld [vmem:[%s169 + $0x37c] sm:$0xff]
      %v299 = vld [vmem:[%s169 + $0x384] sm:$0xff]
      %v300 = vld [vmem:[%s169 + $0x38c] sm:$0xff]
      %v301 = vld [vmem:[%s169 + $0x394] sm:$0xff]
      %v302 = vld [vmem:[%s169 + $0x39c] sm:$0xff]
      %v303 = vld [vmem:[%s169 + $0x3a4] sm:$0xf]
      %v304 = vld [vmem:[%s169 + $0x3a8] sm:$0xff]
      %v305 = vld [vmem:[%s169 + $0x3b0] sm:$0xff]
      %v306 = vld [vmem:[%s169 + $0x3b8] sm:$0xff]
      %v307 = vld [vmem:[%s169 + $0x3c0] sm:$0xff]
      %v308 = vld [vmem:[%s169 + $0x3c8] sm:$0xff]
      %v309 = vld [vmem:[%s169 + $0x3d0] sm:$0xff]
      %v310 = vld [vmem:[%s169 + $0x3d8] sm:$0xf]
      %v311 = vld [vmem:[%s169 + $0x3dc] sm:$0xff]
      %v312 = vld [vmem:[%s169 + $0x3e4] sm:$0xff]
      %v313 = vld [vmem:[%s169 + $0x3ec] sm:$0xff]
      %v314 = vld [vmem:[%s169 + $0x3f4] sm:$0xff]
      %v315 = vld [vmem:[%s169 + $0x3fc] sm:$0xff]
      %v316 = vld [vmem:[%s169 + $0x404] sm:$0xff]
      %v317 = vld [vmem:[%s169 + $0x40c] sm:$0xf]
      %v318 = vld [vmem:[%s169 + $0x410] sm:$0xff]
      %v319 = vld [vmem:[%s169 + $0x418] sm:$0xff]
      %v320 = vld [vmem:[%s169 + $0x420] sm:$0xff]
      %v321 = vld [vmem:[%s169 + $0x428] sm:$0xff]
      %v322 = vld [vmem:[%s169 + $0x430] sm:$0xff]
      %v323 = vld [vmem:[%s169 + $0x438] sm:$0xff]
      %v324 = vld [vmem:[%s169 + $0x440] sm:$0xf]
      %v325 = vld [vmem:[%s169 + $0x444] sm:$0xff]
      %v326 = vld [vmem:[%s169 + $0x44c] sm:$0xff]
      %v327 = vld [vmem:[%s169 + $0x454] sm:$0xff]
      %v328 = vld [vmem:[%s169 + $0x45c] sm:$0xff]
      %v329 = vld [vmem:[%s169 + $0x464] sm:$0xff]
      %v330 = vld [vmem:[%s169 + $0x46c] sm:$0xff]
      %v331 = vld [vmem:[%s169 + $0x474] sm:$0xf]
      %v332 = vld [vmem:[%s169 + $0x478] sm:$0xff]
      %v333 = vld [vmem:[%s169 + $0x480] sm:$0xff]
      %v334 = vld [vmem:[%s169 + $0x488] sm:$0xff]
      %v335 = vld [vmem:[%s169 + $0x490] sm:$0xff]
      %v336 = vld [vmem:[%s169 + $0x498] sm:$0xff]
      %v337 = vld [vmem:[%s169 + $0x4a0] sm:$0xff]
      %v338 = vld [vmem:[%s169 + $0x4a8] sm:$0xf]
      %v339 = vld [vmem:[%s169 + $0x4ac] sm:$0xff]
      %v340 = vld [vmem:[%s169 + $0x4b4] sm:$0xff]
      %v341 = vld [vmem:[%s169 + $0x4bc] sm:$0xff]
      %v342 = vld [vmem:[%s169 + $0x4c4] sm:$0xff]
      %v343 = vld [vmem:[%s169 + $0x4cc] sm:$0xff]
      %v344 = vld [vmem:[%s169 + $0x4d4] sm:$0xff]
      %v345 = vld [vmem:[%s169 + $0x4dc] sm:$0xf]
      %v346 = vld [vmem:[%s169 + $0x4e0] sm:$0xff]
      %v347 = vld [vmem:[%s169 + $0x4e8] sm:$0xff]
      %v348 = vld [vmem:[%s169 + $0x4f0] sm:$0xff]
      %v349 = vld [vmem:[%s169 + $0x4f8] sm:$0xff]
      %v350 = vld [vmem:[%s169 + $0x500] sm:$0xff]
      %v351 = vld [vmem:[%s169 + $0x508] sm:$0xff]
      %v352 = vld [vmem:[%s169 + $0x510] sm:$0xf]
      %v353 = vld [vmem:[%s169 + $0x514] sm:$0xff]
      %v354 = vld [vmem:[%s169 + $0x51c] sm:$0xff]
      %v355 = vld [vmem:[%s169 + $0x524] sm:$0xff]
      %v356 = vld [vmem:[%s169 + $0x52c] sm:$0xff]
      %v357 = vld [vmem:[%s169 + $0x534] sm:$0xff]
      %v358 = vld [vmem:[%s169 + $0x53c] sm:$0xff]
      %v359 = vld [vmem:[%s169 + $0x544] sm:$0xf]
      %v360 = vld [vmem:[%s169 + $0x548] sm:$0xff]
      %v361 = vld [vmem:[%s169 + $0x550] sm:$0xff]
      %v362 = vld [vmem:[%s169 + $0x558] sm:$0xff]
      %v363 = vld [vmem:[%s169 + $0x560] sm:$0xff]
      %v364 = vld [vmem:[%s169 + $0x568] sm:$0xff]
      %v365 = vld [vmem:[%s169 + $0x570] sm:$0xff]
      %v366 = vld [vmem:[%s169 + $0x578] sm:$0xf]
      %v367 = vld [vmem:[%s169 + $0x57c] sm:$0xff]
      %v368 = vld [vmem:[%s169 + $0x584] sm:$0xff]
      %v369 = vld [vmem:[%s169 + $0x58c] sm:$0xff]
      %v370 = vld [vmem:[%s169 + $0x594] sm:$0xff]
      %v371 = vld [vmem:[%s169 + $0x59c] sm:$0xff]
      %v372 = vld [vmem:[%s169 + $0x5a4] sm:$0xff]
      %v373 = vld [vmem:[%s169 + $0x5ac] sm:$0xf]
      %v374 = vld [vmem:[%s1] sm:$0xf]
      %v375 = vld [vmem:[%s1 + $0x4] sm:$0xf]
      %v376 = vld [vmem:[%s1 + $0x8] sm:$0xf]
      %v377 = vld [vmem:[%s1 + $0xc] sm:$0xf]
      %v378 = vld [vmem:[%s1 + $0x10] sm:$0xf]
      %v379 = vld [vmem:[%s1 + $0x14] sm:$0xf]
      %v380 = vld [vmem:[%s1 + $0x18] sm:$0xf]
      %v381 = vld [vmem:[%s1 + $0x1c] sm:$0xf]
      %v382 = vld [vmem:[%s1 + $0x20] sm:$0xf]
      %v383 = vld [vmem:[%s1 + $0x24] sm:$0xf]
      %v384 = vld [vmem:[%s1 + $0x28] sm:$0xf]
      %v385 = vld [vmem:[%s1 + $0x2c] sm:$0xf]
      %v386 = vld [vmem:[%s1 + $0x30] sm:$0xf]
      %v387 = vld [vmem:[%s1 + $0x34] sm:$0xf]
      %v388 = vld [vmem:[%s1 + $0x38] sm:$0xf]
      %v389 = vld [vmem:[%s1 + $0x3c] sm:$0xf]
      %v390 = vld [vmem:[%s1 + $0x40] sm:$0xf]
      %v391 = vld [vmem:[%s1 + $0x44] sm:$0xf]
      %v392 = vld [vmem:[%s1 + $0x48] sm:$0xf]
      %v393 = vld [vmem:[%s1 + $0x4c] sm:$0xf]
      %v394 = vld [vmem:[%s1 + $0x50] sm:$0xf]
      %v395 = vld [vmem:[%s1 + $0x54] sm:$0xf]
      %v396 = vld [vmem:[%s1 + $0x58] sm:$0xf]
      %v397 = vld [vmem:[%s1 + $0x5c] sm:$0xf]
      %v398 = vld [vmem:[%s1 + $0x60] sm:$0xf]
      %v399 = vld [vmem:[%s1 + $0x64] sm:$0xf]
      %v400 = vld [vmem:[%s1 + $0x68] sm:$0xf]
      %v401 = vld [vmem:[%s1 + $0x6c] sm:$0xf]
      %v402 = vld [vmem:[%s1 + $0x70] sm:$0xf]
      %v403 = vld [vmem:[%s1 + $0x74] sm:$0xf]
      %v404 = vld [vmem:[%s1 + $0x78] sm:$0xf]
      %v405 = vld [vmem:[%s1 + $0x7c] sm:$0xf]
      %v406 = vld [vmem:[%s1 + $0x80] sm:$0xf]
      %v407 = vld [vmem:[%s1 + $0x84] sm:$0xf]
      %v408 = vld [vmem:[%s1 + $0x88] sm:$0xf]
      %v409 = vld [vmem:[%s1 + $0x8c] sm:$0xf]
      %v410 = vld [vmem:[%s1 + $0x90] sm:$0xf]
      %v411 = vld [vmem:[%s1 + $0x94] sm:$0xf]
      %v412 = vld [vmem:[%s1 + $0x98] sm:$0xf]
      %v413 = vld [vmem:[%s1 + $0x9c] sm:$0xf]
      %v414 = vld [vmem:[%s1 + $0xa0] sm:$0xf]
      %v415 = vld [vmem:[%s1 + $0xa4] sm:$0xf]
      %v416 = vld [vmem:[%s1 + $0xa8] sm:$0xf]
      %v417 = vld [vmem:[%s1 + $0xac] sm:$0xf]
      %v418 = vld [vmem:[%s1 + $0xb0] sm:$0xf]
      %v419 = vld [vmem:[%s1 + $0xb4] sm:$0xf]
      %v420 = vld [vmem:[%s1 + $0xb8] sm:$0xf]
      %v421 = vld [vmem:[%s1 + $0xbc] sm:$0xf]
      %v422 = vld [vmem:[%s1 + $0xc0] sm:$0xf]
      %v423 = vld [vmem:[%s1 + $0xc4] sm:$0xf]
      %v424 = vld [vmem:[%s1 + $0xc8] sm:$0xf]
      %v425 = vld [vmem:[%s1 + $0xcc] sm:$0xf]
      %v426 = vld [vmem:[%s1 + $0xd0] sm:$0xf]
      %v427 = vld [vmem:[%s1 + $0xd4] sm:$0xf]
      %v428 = vld [vmem:[%s1 + $0xd8] sm:$0xf]
      %v429 = vld [vmem:[%s1 + $0xdc] sm:$0xf]
      %v430 = vld [vmem:[%s1 + $0xe0] sm:$0xf]
      %v431 = vld [vmem:[%s1 + $0xe4] sm:$0xf]
      %v432 = vld [vmem:[%s1 + $0xe8] sm:$0xf]
      %v433 = vld [vmem:[%s1 + $0xec] sm:$0xf]
      %v434 = vld [vmem:[%s1 + $0xf0] sm:$0xf]
      %v435 = vld [vmem:[%s1 + $0xf4] sm:$0xf]
      %v436 = vld [vmem:[%s1 + $0xf8] sm:$0xf]
      %v437 = vld [vmem:[%s1 + $0xfc] sm:$0xf]
      %v438 = vld [vmem:[%s1 + $0x100] sm:$0xf]
      %v439 = vld [vmem:[%s1 + $0x104] sm:$0xf]
      %v440 = vld [vmem:[%s1 + $0x108] sm:$0xf]
      %v441 = vld [vmem:[%s1 + $0x10c] sm:$0xf]
      %v442 = vld [vmem:[%s1 + $0x110] sm:$0xf]
      %v443 = vld [vmem:[%s1 + $0x114] sm:$0xf]
      %v444 = vld [vmem:[%s1 + $0x118] sm:$0xf]
      %v445 = vld [vmem:[%s1 + $0x11c] sm:$0xf]
      %v446 = vld [vmem:[%s1 + $0x120] sm:$0xf]
      %v447 = vld [vmem:[%s1 + $0x124] sm:$0xf]
      %v448 = vld [vmem:[%s1 + $0x128] sm:$0xf]
      %v449 = vld [vmem:[%s1 + $0x12c] sm:$0xf]
      %v450 = vld [vmem:[%s1 + $0x130] sm:$0xf]
      %v451 = vld [vmem:[%s1 + $0x134] sm:$0xf]
      %v452 = vld [vmem:[%s1 + $0x138] sm:$0xf]
      %v453 = vld [vmem:[%s1 + $0x13c] sm:$0xf]
      %v454 = vld [vmem:[%s1 + $0x140] sm:$0xf]
      %v455 = vld [vmem:[%s1 + $0x144] sm:$0xf]
      %v456 = vld [vmem:[%s1 + $0x148] sm:$0xf]
      %v457 = vld [vmem:[%s1 + $0x14c] sm:$0xf]
      %v458 = vld [vmem:[%s1 + $0x150] sm:$0xf]
      %v459 = vld [vmem:[%s1 + $0x154] sm:$0xf]
      %v460 = vld [vmem:[%s1 + $0x158] sm:$0xf]
      %v461 = vld [vmem:[%s1 + $0x15c] sm:$0xf]
      %v462 = vld [vmem:[%s1 + $0x160] sm:$0xf]
      %v463 = vld [vmem:[%s1 + $0x164] sm:$0xf]
      %v464 = vld [vmem:[%s1 + $0x168] sm:$0xf]
      %v465 = vld [vmem:[%s1 + $0x16c] sm:$0xf]
      %v466 = vld [vmem:[%s1 + $0x170] sm:$0xf]
      %v467 = vld [vmem:[%s1 + $0x174] sm:$0xf]
      %v468 = vld [vmem:[%s1 + $0x178] sm:$0xf]
      %v469 = vld [vmem:[%s1 + $0x17c] sm:$0xf]
      %v470 = vld [vmem:[%s1 + $0x180] sm:$0xf]
      %v471 = vld [vmem:[%s1 + $0x184] sm:$0xf]
      %v472 = vld [vmem:[%s1 + $0x188] sm:$0xf]
      %v473 = vld [vmem:[%s1 + $0x18c] sm:$0xf]
      %v474 = vld [vmem:[%s1 + $0x190] sm:$0xf]
      %v475 = vld [vmem:[%s1 + $0x194] sm:$0xf]
      %v476 = vld [vmem:[%s1 + $0x198] sm:$0xf]
      %v477 = vld [vmem:[%s1 + $0x19c] sm:$0xf]
      %v478 = vld [vmem:[%s1 + $0x1a0] sm:$0xf]
      %v479 = vld [vmem:[%s1 + $0x1a4] sm:$0xf]
      %v480 = vld [vmem:[%s1 + $0x1a8] sm:$0xf]
      %v481 = vld [vmem:[%s1 + $0x1ac] sm:$0xf]
      %v482 = vld [vmem:[%s1 + $0x1b0] sm:$0xf]
      %v483 = vld [vmem:[%s1 + $0x1b4] sm:$0xf]
      %v484 = vld [vmem:[%s1 + $0x1b8] sm:$0xf]
      %v485 = vld [vmem:[%s1 + $0x1bc] sm:$0xf]
      %v486 = vld [vmem:[%s1 + $0x1c0] sm:$0xf]
      %v487 = vld [vmem:[%s1 + $0x1c4] sm:$0xf]
      %v488 = vld [vmem:[%s1 + $0x1c8] sm:$0xf]
      %v489 = vld [vmem:[%s1 + $0x1cc] sm:$0xf]
      %v490 = vld [vmem:[%s1 + $0x1d0] sm:$0xf]
      %v491 = vld [vmem:[%s1 + $0x1d4] sm:$0xf]
      %v492 = vld [vmem:[%s1 + $0x1d8] sm:$0xf]
      %v493 = vld [vmem:[%s1 + $0x1dc] sm:$0xf]
      %v494 = vld [vmem:[%s1 + $0x1e0] sm:$0xf]
      %v495 = vld [vmem:[%s1 + $0x1e4] sm:$0xf]
      %v496 = vld [vmem:[%s1 + $0x1e8] sm:$0xf]
      %v497 = vld [vmem:[%s1 + $0x1ec] sm:$0xf]
      %v498 = vld [vmem:[%s1 + $0x1f0] sm:$0xf]
      %v499 = vld [vmem:[%s1 + $0x1f4] sm:$0xf]
      %v500 = vld [vmem:[%s1 + $0x1f8] sm:$0xf]
      %v501 = vld [vmem:[%s1 + $0x1fc] sm:$0xf]
      %v502 = vld [vmem:[%s1 + $0x200] sm:$0xf]
      %v503 = vld [vmem:[%s1 + $0x204] sm:$0xf]
      %v504 = vld [vmem:[%s1 + $0x208] sm:$0xf]
      %v505 = vld [vmem:[%s1 + $0x20c] sm:$0xf]
      %v506 = vld [vmem:[%s1 + $0x210] sm:$0xf]
      %v507 = vld [vmem:[%s1 + $0x214] sm:$0xf]
      %v508 = vld [vmem:[%s1 + $0x218] sm:$0xf]
      %v509 = vld [vmem:[%s1 + $0x21c] sm:$0xf]
      %v510 = vld [vmem:[%s1 + $0x220] sm:$0xf]
      %v511 = vld [vmem:[%s1 + $0x224] sm:$0xf]
      %v512 = vld [vmem:[%s1 + $0x228] sm:$0xf]
      %v513 = vld [vmem:[%s1 + $0x22c] sm:$0xf]
      %v514 = vld [vmem:[%s1 + $0x230] sm:$0xf]
      %v515 = vld [vmem:[%s1 + $0x234] sm:$0xf]
      %v516 = vld [vmem:[%s1 + $0x238] sm:$0xf]
      %v517 = vld [vmem:[%s1 + $0x23c] sm:$0xf]
      %v518 = vld [vmem:[%s1 + $0x240] sm:$0xf]
      %v519 = vld [vmem:[%s1 + $0x244] sm:$0xf]
      %v520 = vld [vmem:[%s1 + $0x248] sm:$0xf]
      %v521 = vld [vmem:[%s1 + $0x24c] sm:$0xf]
      %v522 = vld [vmem:[%s1 + $0x250] sm:$0xf]
      %v523 = vld [vmem:[%s1 + $0x254] sm:$0xf]
      %v524 = vld [vmem:[%s1 + $0x258] sm:$0xf]
      %v525 = vld [vmem:[%s1 + $0x25c] sm:$0xf]
      %v526 = vld [vmem:[%s1 + $0x260] sm:$0xf]
      %v527 = vld [vmem:[%s1 + $0x264] sm:$0xf]
      %v528 = vld [vmem:[%s1 + $0x268] sm:$0xf]
      %v529 = vld [vmem:[%s1 + $0x26c] sm:$0xf]
      %v530 = vld [vmem:[%s1 + $0x270] sm:$0xf]
      %v531 = vld [vmem:[%s1 + $0x274] sm:$0xf]
      %v532 = vld [vmem:[%s1 + $0x278] sm:$0xf]
      %v533 = vld [vmem:[%s1 + $0x27c] sm:$0xf]
      %v534 = vld [vmem:[%s1 + $0x280] sm:$0xf]
      %v535 = vld [vmem:[%s1 + $0x284] sm:$0xf]
      %v536 = vld [vmem:[%s1 + $0x288] sm:$0xf]
      %v537 = vld [vmem:[%s1 + $0x28c] sm:$0xf]
      %v538 = vld [vmem:[%s1 + $0x290] sm:$0xf]
      %v539 = vld [vmem:[%s1 + $0x294] sm:$0xf]
      %v540 = vld [vmem:[%s1 + $0x298] sm:$0xf]
      %v541 = vld [vmem:[%s1 + $0x29c] sm:$0xf]
      %v542 = vld [vmem:[%s1 + $0x2a0] sm:$0xf]
      %v543 = vld [vmem:[%s1 + $0x2a4] sm:$0xf]
      %v544 = vld [vmem:[%s1 + $0x2a8] sm:$0xf]
      %v545 = vld [vmem:[%s1 + $0x2ac] sm:$0xf]
      %v546 = vld [vmem:[%s1 + $0x2b0] sm:$0xf]
      %v547 = vld [vmem:[%s1 + $0x2b4] sm:$0xf]
      %v548 = vld [vmem:[%s1 + $0x2b8] sm:$0xf]
      %v549 = vld [vmem:[%s1 + $0x2bc] sm:$0xf]
      %v550 = vld [vmem:[%s1 + $0x2c0] sm:$0xf]
      %v551 = vld [vmem:[%s1 + $0x2c4] sm:$0xf]
      %v552 = vld [vmem:[%s1 + $0x2c8] sm:$0xf]
      %v553 = vld [vmem:[%s1 + $0x2cc] sm:$0xf]
      %v554 = vld [vmem:[%s1 + $0x2d0] sm:$0xf]
      %v555 = vld [vmem:[%s1 + $0x2d4] sm:$0xf]
      %v556 = vld [vmem:[%s1 + $0x2d8] sm:$0xf]
      %v557 = vld [vmem:[%s1 + $0x2dc] sm:$0xf]
      %v558 = vld [vmem:[%s1 + $0x2e0] sm:$0xf]
      %v559 = vld [vmem:[%s1 + $0x2e4] sm:$0xf]
      %v560 = vld [vmem:[%s1 + $0x2e8] sm:$0xf]
      %v561 = vld [vmem:[%s1 + $0x2ec] sm:$0xf]
      %v562 = vld [vmem:[%s1 + $0x2f0] sm:$0xf]
      %v563 = vld [vmem:[%s1 + $0x2f4] sm:$0xf]
      %v564 = vld [vmem:[%s1 + $0x2f8] sm:$0xf]
      %v565 = vld [vmem:[%s1 + $0x2fc] sm:$0xf]
      %v566 = vld [vmem:[%s1 + $0x300] sm:$0xf]
      %v567 = vld [vmem:[%s1 + $0x304] sm:$0xf]
      %v568 = vld [vmem:[%s1 + $0x308] sm:$0xf]
      %v569 = vld [vmem:[%s1 + $0x30c] sm:$0xf]
      %v570 = vld [vmem:[%s1 + $0x310] sm:$0xf]
      %v571 = vld [vmem:[%s1 + $0x314] sm:$0xf]
      %v572 = vld [vmem:[%s1 + $0x318] sm:$0xf]
      %v573 = vld [vmem:[%s1 + $0x31c] sm:$0xf]
      %v574 = vld [vmem:[%s2] sm:$0x1]
      %v576 = vlaneseq
      %v577 = vshrl.u32 %v576, 7
      %v578 = vsub.s32 0, %v577
      %v579 = vrot.slane %v574, %v578
      %v777 = vunpack.c.l.b16 %v178
      %v778 = vunpack.c.h.b16 %v178
      %v779 = vunpack.c.l.b16 %v179
      %v780 = vunpack.c.h.b16 %v179
      %v781 = vunpack.c.l.b16 %v180
      %v782 = vunpack.c.h.b16 %v180
      %v783 = vunpack.c.l.b16 %v181
      %v784 = vunpack.c.h.b16 %v181
      %v785 = vunpack.c.l.b16 %v182
      %v786 = vunpack.c.h.b16 %v182
      %v787 = vunpack.c.l.b16 %v183
      %v788 = vunpack.c.h.b16 %v183
      %v789 = vunpack.c.l.b16 %v184
      %v790 = vunpack.c.l.b16 %v185
      %v791 = vunpack.c.h.b16 %v185
      %v792 = vunpack.c.l.b16 %v186
      %v793 = vunpack.c.h.b16 %v186
      %v794 = vunpack.c.l.b16 %v187
      %v795 = vunpack.c.h.b16 %v187
      %v796 = vunpack.c.l.b16 %v188
      %v797 = vunpack.c.h.b16 %v188
      %v798 = vunpack.c.l.b16 %v189
      %v799 = vunpack.c.h.b16 %v189
      %v800 = vunpack.c.l.b16 %v190
      %v801 = vunpack.c.h.b16 %v190
      %v802 = vunpack.c.l.b16 %v191
      %v803 = vunpack.c.l.b16 %v192
      %v804 = vunpack.c.h.b16 %v192
      %v805 = vunpack.c.l.b16 %v193
      %v806 = vunpack.c.h.b16 %v193
      %v807 = vunpack.c.l.b16 %v194
      %v808 = vunpack.c.h.b16 %v194
      %v809 = vunpack.c.l.b16 %v195
      %v810 = vunpack.c.h.b16 %v195
      %v811 = vunpack.c.l.b16 %v196
      %v812 = vunpack.c.h.b16 %v196
      %v813 = vunpack.c.l.b16 %v197
      %v814 = vunpack.c.h.b16 %v197
      %v815 = vunpack.c.l.b16 %v198
      %v816 = vunpack.c.l.b16 %v199
      %v817 = vunpack.c.h.b16 %v199
      %v818 = vunpack.c.l.b16 %v200
      %v819 = vunpack.c.h.b16 %v200
      %v820 = vunpack.c.l.b16 %v201
      %v821 = vunpack.c.h.b16 %v201
      %v822 = vunpack.c.l.b16 %v202
      %v823 = vunpack.c.h.b16 %v202
      %v824 = vunpack.c.l.b16 %v203
      %v825 = vunpack.c.h.b16 %v203
      %v826 = vunpack.c.l.b16 %v204
      %v827 = vunpack.c.h.b16 %v204
      %v828 = vunpack.c.l.b16 %v205
      %v829 = vunpack.c.l.b16 %v206
      %v830 = vunpack.c.h.b16 %v206
      %v831 = vunpack.c.l.b16 %v207
      %v832 = vunpack.c.h.b16 %v207
      %v833 = vunpack.c.l.b16 %v208
      %v834 = vunpack.c.h.b16 %v208
      %v835 = vunpack.c.l.b16 %v209
      %v836 = vunpack.c.h.b16 %v209
      %v837 = vunpack.c.l.b16 %v210
      %v838 = vunpack.c.h.b16 %v210
      %v839 = vunpack.c.l.b16 %v211
      %v840 = vunpack.c.h.b16 %v211
      %v841 = vunpack.c.l.b16 %v212
      %v842 = vunpack.c.l.b16 %v213
      %v843 = vunpack.c.h.b16 %v213
      %v844 = vunpack.c.l.b16 %v214
      %v845 = vunpack.c.h.b16 %v214
      %v846 = vunpack.c.l.b16 %v215
      %v847 = vunpack.c.h.b16 %v215
      %v848 = vunpack.c.l.b16 %v216
      %v849 = vunpack.c.h.b16 %v216
      %v850 = vunpack.c.l.b16 %v217
      %v851 = vunpack.c.h.b16 %v217
      %v852 = vunpack.c.l.b16 %v218
      %v853 = vunpack.c.h.b16 %v218
      %v854 = vunpack.c.l.b16 %v219
      %v855 = vunpack.c.l.b16 %v220
      %v856 = vunpack.c.h.b16 %v220
      %v857 = vunpack.c.l.b16 %v221
      %v858 = vunpack.c.h.b16 %v221
      %v859 = vunpack.c.l.b16 %v222
      %v860 = vunpack.c.h.b16 %v222
      %v861 = vunpack.c.l.b16 %v223
      %v862 = vunpack.c.h.b16 %v223
      %v863 = vunpack.c.l.b16 %v224
      %v864 = vunpack.c.h.b16 %v224
      %v865 = vunpack.c.l.b16 %v225
      %v866 = vunpack.c.h.b16 %v225
      %v867 = vunpack.c.l.b16 %v226
      %v868 = vunpack.c.l.b16 %v227
      %v869 = vunpack.c.h.b16 %v227
      %v870 = vunpack.c.l.b16 %v228
      %v871 = vunpack.c.h.b16 %v228
      %v872 = vunpack.c.l.b16 %v229
      %v873 = vunpack.c.h.b16 %v229
      %v874 = vunpack.c.l.b16 %v230
      %v875 = vunpack.c.h.b16 %v230
      %v876 = vunpack.c.l.b16 %v231
      %v877 = vunpack.c.h.b16 %v231
      %v878 = vunpack.c.l.b16 %v232
      %v879 = vunpack.c.h.b16 %v232
      %v880 = vunpack.c.l.b16 %v233
      %v881 = vunpack.c.l.b16 %v234
      %v882 = vunpack.c.h.b16 %v234
      %v883 = vunpack.c.l.b16 %v235
      %v884 = vunpack.c.h.b16 %v235
      %v885 = vunpack.c.l.b16 %v236
      %v886 = vunpack.c.h.b16 %v236
      %v887 = vunpack.c.l.b16 %v237
      %v888 = vunpack.c.h.b16 %v237
      %v889 = vunpack.c.l.b16 %v238
      %v890 = vunpack.c.h.b16 %v238
      %v891 = vunpack.c.l.b16 %v239
      %v892 = vunpack.c.h.b16 %v239
      %v893 = vunpack.c.l.b16 %v240
      %v894 = vunpack.c.l.b16 %v241
      %v895 = vunpack.c.h.b16 %v241
      %v896 = vunpack.c.l.b16 %v242
      %v897 = vunpack.c.h.b16 %v242
      %v898 = vunpack.c.l.b16 %v243
      %v899 = vunpack.c.h.b16 %v243
      %v900 = vunpack.c.l.b16 %v244
      %v901 = vunpack.c.h.b16 %v244
      %v902 = vunpack.c.l.b16 %v245
      %v903 = vunpack.c.h.b16 %v245
      %v904 = vunpack.c.l.b16 %v246
      %v905 = vunpack.c.h.b16 %v246
      %v906 = vunpack.c.l.b16 %v247
      %v907 = vunpack.c.l.b16 %v248
      %v908 = vunpack.c.h.b16 %v248
      %v909 = vunpack.c.l.b16 %v249
      %v910 = vunpack.c.h.b16 %v249
      %v911 = vunpack.c.l.b16 %v250
      %v912 = vunpack.c.h.b16 %v250
      %v913 = vunpack.c.l.b16 %v251
      %v914 = vunpack.c.h.b16 %v251
      %v915 = vunpack.c.l.b16 %v252
      %v916 = vunpack.c.h.b16 %v252
      %v917 = vunpack.c.l.b16 %v253
      %v918 = vunpack.c.h.b16 %v253
      %v919 = vunpack.c.l.b16 %v254
      %v920 = vunpack.c.l.b16 %v255
      %v921 = vunpack.c.h.b16 %v255
      %v922 = vunpack.c.l.b16 %v256
      %v923 = vunpack.c.h.b16 %v256
      %v924 = vunpack.c.l.b16 %v257
      %v925 = vunpack.c.h.b16 %v257
      %v926 = vunpack.c.l.b16 %v258
      %v927 = vunpack.c.h.b16 %v258
      %v928 = vunpack.c.l.b16 %v259
      %v929 = vunpack.c.h.b16 %v259
      %v930 = vunpack.c.l.b16 %v260
      %v931 = vunpack.c.h.b16 %v260
      %v932 = vunpack.c.l.b16 %v261
      %v933 = vunpack.c.l.b16 %v262
      %v934 = vunpack.c.h.b16 %v262
      %v935 = vunpack.c.l.b16 %v263
      %v936 = vunpack.c.h.b16 %v263
      %v937 = vunpack.c.l.b16 %v264
      %v938 = vunpack.c.h.b16 %v264
      %v939 = vunpack.c.l.b16 %v265
      %v940 = vunpack.c.h.b16 %v265
      %v941 = vunpack.c.l.b16 %v266
      %v942 = vunpack.c.h.b16 %v266
      %v943 = vunpack.c.l.b16 %v267
      %v944 = vunpack.c.h.b16 %v267
      %v945 = vunpack.c.l.b16 %v268
      %v946 = vunpack.c.l.b16 %v269
      %v947 = vunpack.c.h.b16 %v269
      %v948 = vunpack.c.l.b16 %v270
      %v949 = vunpack.c.h.b16 %v270
      %v950 = vunpack.c.l.b16 %v271
      %v951 = vunpack.c.h.b16 %v271
      %v952 = vunpack.c.l.b16 %v272
      %v953 = vunpack.c.h.b16 %v272
      %v954 = vunpack.c.l.b16 %v273
      %v955 = vunpack.c.h.b16 %v273
      %v956 = vunpack.c.l.b16 %v274
      %v957 = vunpack.c.h.b16 %v274
      %v958 = vunpack.c.l.b16 %v275
      %v959 = vunpack.c.l.b16 %v276
      %v960 = vunpack.c.h.b16 %v276
      %v961 = vunpack.c.l.b16 %v277
      %v962 = vunpack.c.h.b16 %v277
      %v963 = vunpack.c.l.b16 %v278
      %v964 = vunpack.c.h.b16 %v278
      %v965 = vunpack.c.l.b16 %v279
      %v966 = vunpack.c.h.b16 %v279
      %v967 = vunpack.c.l.b16 %v280
      %v968 = vunpack.c.h.b16 %v280
      %v969 = vunpack.c.l.b16 %v281
      %v970 = vunpack.c.h.b16 %v281
      %v971 = vunpack.c.l.b16 %v282
      %v972 = vunpack.c.l.b16 %v283
      %v973 = vunpack.c.h.b16 %v283
      %v974 = vunpack.c.l.b16 %v284
      %v975 = vunpack.c.h.b16 %v284
      %v976 = vunpack.c.l.b16 %v285
      %v977 = vunpack.c.h.b16 %v285
      %v978 = vunpack.c.l.b16 %v286
      %v979 = vunpack.c.h.b16 %v286
      %v980 = vunpack.c.l.b16 %v287
      %v981 = vunpack.c.h.b16 %v287
      %v982 = vunpack.c.l.b16 %v288
      %v983 = vunpack.c.h.b16 %v288
      %v984 = vunpack.c.l.b16 %v289
      %v985 = vunpack.c.l.b16 %v290
      %v986 = vunpack.c.h.b16 %v290
      %v987 = vunpack.c.l.b16 %v291
      %v988 = vunpack.c.h.b16 %v291
      %v989 = vunpack.c.l.b16 %v292
      %v990 = vunpack.c.h.b16 %v292
      %v991 = vunpack.c.l.b16 %v293
      %v992 = vunpack.c.h.b16 %v293
      %v993 = vunpack.c.l.b16 %v294
      %v994 = vunpack.c.h.b16 %v294
      %v995 = vunpack.c.l.b16 %v295
      %v996 = vunpack.c.h.b16 %v295
      %v997 = vunpack.c.l.b16 %v296
      %v998 = vunpack.c.l.b16 %v297
      %v999 = vunpack.c.h.b16 %v297
      %v1000 = vunpack.c.l.b16 %v298
      %v1001 = vunpack.c.h.b16 %v298
      %v1002 = vunpack.c.l.b16 %v299
      %v1003 = vunpack.c.h.b16 %v299
      %v1004 = vunpack.c.l.b16 %v300
      %v1005 = vunpack.c.h.b16 %v300
      %v1006 = vunpack.c.l.b16 %v301
      %v1007 = vunpack.c.h.b16 %v301
      %v1008 = vunpack.c.l.b16 %v302
      %v1009 = vunpack.c.h.b16 %v302
      %v1010 = vunpack.c.l.b16 %v303
      %v1011 = vunpack.c.l.b16 %v304
      %v1012 = vunpack.c.h.b16 %v304
      %v1013 = vunpack.c.l.b16 %v305
      %v1014 = vunpack.c.h.b16 %v305
      %v1015 = vunpack.c.l.b16 %v306
      %v1016 = vunpack.c.h.b16 %v306
      %v1017 = vunpack.c.l.b16 %v307
      %v1018 = vunpack.c.h.b16 %v307
      %v1019 = vunpack.c.l.b16 %v308
      %v1020 = vunpack.c.h.b16 %v308
      %v1021 = vunpack.c.l.b16 %v309
      %v1022 = vunpack.c.h.b16 %v309
      %v1023 = vunpack.c.l.b16 %v310
      %v1024 = vunpack.c.l.b16 %v311
      %v1025 = vunpack.c.h.b16 %v311
      %v1026 = vunpack.c.l.b16 %v312
      %v1027 = vunpack.c.h.b16 %v312
      %v1028 = vunpack.c.l.b16 %v313
      %v1029 = vunpack.c.h.b16 %v313
      %v1030 = vunpack.c.l.b16 %v314
      %v1031 = vunpack.c.h.b16 %v314
      %v1032 = vunpack.c.l.b16 %v315
      %v1033 = vunpack.c.h.b16 %v315
      %v1034 = vunpack.c.l.b16 %v316
      %v1035 = vunpack.c.h.b16 %v316
      %v1036 = vunpack.c.l.b16 %v317
      %v1037 = vunpack.c.l.b16 %v318
      %v1038 = vunpack.c.h.b16 %v318
      %v1039 = vunpack.c.l.b16 %v319
      %v1040 = vunpack.c.h.b16 %v319
      %v1041 = vunpack.c.l.b16 %v320
      %v1042 = vunpack.c.h.b16 %v320
      %v1043 = vunpack.c.l.b16 %v321
      %v1044 = vunpack.c.h.b16 %v321
      %v1045 = vunpack.c.l.b16 %v322
      %v1046 = vunpack.c.h.b16 %v322
      %v1047 = vunpack.c.l.b16 %v323
      %v1048 = vunpack.c.h.b16 %v323
      %v1049 = vunpack.c.l.b16 %v324
      %v1050 = vunpack.c.l.b16 %v325
      %v1051 = vunpack.c.h.b16 %v325
      %v1052 = vunpack.c.l.b16 %v326
      %v1053 = vunpack.c.h.b16 %v326
      %v1054 = vunpack.c.l.b16 %v327
      %v1055 = vunpack.c.h.b16 %v327
      %v1056 = vunpack.c.l.b16 %v328
      %v1057 = vunpack.c.h.b16 %v328
      %v1058 = vunpack.c.l.b16 %v329
      %v1059 = vunpack.c.h.b16 %v329
      %v1060 = vunpack.c.l.b16 %v330
      %v1061 = vunpack.c.h.b16 %v330
      %v1062 = vunpack.c.l.b16 %v331
      %v1063 = vunpack.c.l.b16 %v332
      %v1064 = vunpack.c.h.b16 %v332
      %v1065 = vunpack.c.l.b16 %v333
      %v1066 = vunpack.c.h.b16 %v333
      %v1067 = vunpack.c.l.b16 %v334
      %v1068 = vunpack.c.h.b16 %v334
      %v1069 = vunpack.c.l.b16 %v335
      %v1070 = vunpack.c.h.b16 %v335
      %v1071 = vunpack.c.l.b16 %v336
      %v1072 = vunpack.c.h.b16 %v336
      %v1073 = vunpack.c.l.b16 %v337
      %v1074 = vunpack.c.h.b16 %v337
      %v1075 = vunpack.c.l.b16 %v338
      %v1076 = vunpack.c.l.b16 %v339
      %v1077 = vunpack.c.h.b16 %v339
      %v1078 = vunpack.c.l.b16 %v340
      %v1079 = vunpack.c.h.b16 %v340
      %v1080 = vunpack.c.l.b16 %v341
      %v1081 = vunpack.c.h.b16 %v341
      %v1082 = vunpack.c.l.b16 %v342
      %v1083 = vunpack.c.h.b16 %v342
      %v1084 = vunpack.c.l.b16 %v343
      %v1085 = vunpack.c.h.b16 %v343
      %v1086 = vunpack.c.l.b16 %v344
      %v1087 = vunpack.c.h.b16 %v344
      %v1088 = vunpack.c.l.b16 %v345
      %v1089 = vunpack.c.l.b16 %v346
      %v1090 = vunpack.c.h.b16 %v346
      %v1091 = vunpack.c.l.b16 %v347
      %v1092 = vunpack.c.h.b16 %v347
      %v1093 = vunpack.c.l.b16 %v348
      %v1094 = vunpack.c.h.b16 %v348
      %v1095 = vunpack.c.l.b16 %v349
      %v1096 = vunpack.c.h.b16 %v349
      %v1097 = vunpack.c.l.b16 %v350
      %v1098 = vunpack.c.h.b16 %v350
      %v1099 = vunpack.c.l.b16 %v351
      %v1100 = vunpack.c.h.b16 %v351
      %v1101 = vunpack.c.l.b16 %v352
      %v1102 = vunpack.c.l.b16 %v353
      %v1103 = vunpack.c.h.b16 %v353
      %v1104 = vunpack.c.l.b16 %v354
      %v1105 = vunpack.c.h.b16 %v354
      %v1106 = vunpack.c.l.b16 %v355
      %v1107 = vunpack.c.h.b16 %v355
      %v1108 = vunpack.c.l.b16 %v356
      %v1109 = vunpack.c.h.b16 %v356
      %v1110 = vunpack.c.l.b16 %v357
      %v1111 = vunpack.c.h.b16 %v357
      %v1112 = vunpack.c.l.b16 %v358
      %v1113 = vunpack.c.h.b16 %v358
      %v1114 = vunpack.c.l.b16 %v359
      %v1115 = vunpack.c.l.b16 %v360
      %v1116 = vunpack.c.h.b16 %v360
      %v1117 = vunpack.c.l.b16 %v361
      %v1118 = vunpack.c.h.b16 %v361
      %v1119 = vunpack.c.l.b16 %v362
      %v1120 = vunpack.c.h.b16 %v362
      %v1121 = vunpack.c.l.b16 %v363
      %v1122 = vunpack.c.h.b16 %v363
      %v1123 = vunpack.c.l.b16 %v364
      %v1124 = vunpack.c.h.b16 %v364
      %v1125 = vunpack.c.l.b16 %v365
      %v1126 = vunpack.c.h.b16 %v365
      %v1127 = vunpack.c.l.b16 %v366
      %v1128 = vunpack.c.l.b16 %v367
      %v1129 = vunpack.c.h.b16 %v367
      %v1130 = vunpack.c.l.b16 %v368
      %v1131 = vunpack.c.h.b16 %v368
      %v1132 = vunpack.c.l.b16 %v369
      %v1133 = vunpack.c.h.b16 %v369
      %v1134 = vunpack.c.l.b16 %v370
      %v1135 = vunpack.c.h.b16 %v370
      %v1136 = vunpack.c.l.b16 %v371
      %v1137 = vunpack.c.h.b16 %v371
      %v1138 = vunpack.c.l.b16 %v372
      %v1139 = vunpack.c.h.b16 %v372
      %v1140 = vunpack.c.l.b16 %v373
      %v1141 = vpack.c.b16 %v790, %v777
      %v1142 = vpack.c.b16 %v791, %v778
      %v1143 = vpack.c.b16 %v792, %v779
      %v1144 = vpack.c.b16 %v793, %v780
      %v1145 = vpack.c.b16 %v794, %v781
      %v1146 = vpack.c.b16 %v795, %v782
      %v1147 = vpack.c.b16 %v796, %v783
      %v1148 = vpack.c.b16 %v797, %v784
      %v1149 = vpack.c.b16 %v798, %v785
      %v1150 = vpack.c.b16 %v799, %v786
      %v1151 = vpack.c.b16 %v800, %v787
      %v1152 = vpack.c.b16 %v801, %v788
      %v1153 = vpack.c.b16 %v802, %v789
      %v1154 = vpack.c.b16 %v816, %v803
      %v1155 = vpack.c.b16 %v817, %v804
      %v1156 = vpack.c.b16 %v818, %v805
      %v1157 = vpack.c.b16 %v819, %v806
      %v1158 = vpack.c.b16 %v820, %v807
      %v1159 = vpack.c.b16 %v821, %v808
      %v1160 = vpack.c.b16 %v822, %v809
      %v1161 = vpack.c.b16 %v823, %v810
      %v1162 = vpack.c.b16 %v824, %v811
      %v1163 = vpack.c.b16 %v825, %v812
      %v1164 = vpack.c.b16 %v826, %v813
      %v1165 = vpack.c.b16 %v827, %v814
      %v1166 = vpack.c.b16 %v828, %v815
      %v1167 = vpack.c.b16 %v842, %v829
      %v1168 = vpack.c.b16 %v843, %v830
      %v1169 = vpack.c.b16 %v844, %v831
      %v1170 = vpack.c.b16 %v845, %v832
      %v1171 = vpack.c.b16 %v846, %v833
      %v1172 = vpack.c.b16 %v847, %v834
      %v1173 = vpack.c.b16 %v848, %v835
      %v1174 = vpack.c.b16 %v849, %v836
      %v1175 = vpack.c.b16 %v850, %v837
      %v1176 = vpack.c.b16 %v851, %v838
      %v1177 = vpack.c.b16 %v852, %v839
      %v1178 = vpack.c.b16 %v853, %v840
      %v1179 = vpack.c.b16 %v854, %v841
      %v1180 = vpack.c.b16 %v868, %v855
      %v1181 = vpack.c.b16 %v869, %v856
      %v1182 = vpack.c.b16 %v870, %v857
      %v1183 = vpack.c.b16 %v871, %v858
      %v1184 = vpack.c.b16 %v872, %v859
      %v1185 = vpack.c.b16 %v873, %v860
      %v1186 = vpack.c.b16 %v874, %v861
      %v1187 = vpack.c.b16 %v875, %v862
      %v1188 = vpack.c.b16 %v876, %v863
      %v1189 = vpack.c.b16 %v877, %v864
      %v1190 = vpack.c.b16 %v878, %v865
      %v1191 = vpack.c.b16 %v879, %v866
      %v1192 = vpack.c.b16 %v880, %v867
      %v1193 = vpack.c.b16 %v894, %v881
      %v1194 = vpack.c.b16 %v895, %v882
      %v1195 = vpack.c.b16 %v896, %v883
      %v1196 = vpack.c.b16 %v897, %v884
      %v1197 = vpack.c.b16 %v898, %v885
      %v1198 = vpack.c.b16 %v899, %v886
      %v1199 = vpack.c.b16 %v900, %v887
      %v1200 = vpack.c.b16 %v901, %v888
      %v1201 = vpack.c.b16 %v902, %v889
      %v1202 = vpack.c.b16 %v903, %v890
      %v1203 = vpack.c.b16 %v904, %v891
      %v1204 = vpack.c.b16 %v905, %v892
      %v1205 = vpack.c.b16 %v906, %v893
      %v1206 = vpack.c.b16 %v920, %v907
      %v1207 = vpack.c.b16 %v921, %v908
      %v1208 = vpack.c.b16 %v922, %v909
      %v1209 = vpack.c.b16 %v923, %v910
      %v1210 = vpack.c.b16 %v924, %v911
      %v1211 = vpack.c.b16 %v925, %v912
      %v1212 = vpack.c.b16 %v926, %v913
      %v1213 = vpack.c.b16 %v927, %v914
      %v1214 = vpack.c.b16 %v928, %v915
      %v1215 = vpack.c.b16 %v929, %v916
      %v1216 = vpack.c.b16 %v930, %v917
      %v1217 = vpack.c.b16 %v931, %v918
      %v1218 = vpack.c.b16 %v932, %v919
      %v1219 = vpack.c.b16 %v946, %v933
      %v1220 = vpack.c.b16 %v947, %v934
      %v1221 = vpack.c.b16 %v948, %v935
      %v1222 = vpack.c.b16 %v949, %v936
      %v1223 = vpack.c.b16 %v950, %v937
      %v1224 = vpack.c.b16 %v951, %v938
      %v1225 = vpack.c.b16 %v952, %v939
      %v1226 = vpack.c.b16 %v953, %v940
      %v1227 = vpack.c.b16 %v954, %v941
      %v1228 = vpack.c.b16 %v955, %v942
      %v1229 = vpack.c.b16 %v956, %v943
      %v1230 = vpack.c.b16 %v957, %v944
      %v1231 = vpack.c.b16 %v958, %v945
      %v1232 = vpack.c.b16 %v972, %v959
      %v1233 = vpack.c.b16 %v973, %v960
      %v1234 = vpack.c.b16 %v974, %v961
      %v1235 = vpack.c.b16 %v975, %v962
      %v1236 = vpack.c.b16 %v976, %v963
      %v1237 = vpack.c.b16 %v977, %v964
      %v1238 = vpack.c.b16 %v978, %v965
      %v1239 = vpack.c.b16 %v979, %v966
      %v1240 = vpack.c.b16 %v980, %v967
      %v1241 = vpack.c.b16 %v981, %v968
      %v1242 = vpack.c.b16 %v982, %v969
      %v1243 = vpack.c.b16 %v983, %v970
      %v1244 = vpack.c.b16 %v984, %v971
      %v1245 = vpack.c.b16 %v998, %v985
      %v1246 = vpack.c.b16 %v999, %v986
      %v1247 = vpack.c.b16 %v1000, %v987
      %v1248 = vpack.c.b16 %v1001, %v988
      %v1249 = vpack.c.b16 %v1002, %v989
      %v1250 = vpack.c.b16 %v1003, %v990
      %v1251 = vpack.c.b16 %v1004, %v991
      %v1252 = vpack.c.b16 %v1005, %v992
      %v1253 = vpack.c.b16 %v1006, %v993
      %v1254 = vpack.c.b16 %v1007, %v994
      %v1255 = vpack.c.b16 %v1008, %v995
      %v1256 = vpack.c.b16 %v1009, %v996
      %v1257 = vpack.c.b16 %v1010, %v997
      %v1258 = vpack.c.b16 %v1024, %v1011
      %v1259 = vpack.c.b16 %v1025, %v1012
      %v1260 = vpack.c.b16 %v1026, %v1013
      %v1261 = vpack.c.b16 %v1027, %v1014
      %v1262 = vpack.c.b16 %v1028, %v1015
      %v1263 = vpack.c.b16 %v1029, %v1016
      %v1264 = vpack.c.b16 %v1030, %v1017
      %v1265 = vpack.c.b16 %v1031, %v1018
      %v1266 = vpack.c.b16 %v1032, %v1019
      %v1267 = vpack.c.b16 %v1033, %v1020
      %v1268 = vpack.c.b16 %v1034, %v1021
      %v1269 = vpack.c.b16 %v1035, %v1022
      %v1270 = vpack.c.b16 %v1036, %v1023
      %v1271 = vpack.c.b16 %v1050, %v1037
      %v1272 = vpack.c.b16 %v1051, %v1038
      %v1273 = vpack.c.b16 %v1052, %v1039
      %v1274 = vpack.c.b16 %v1053, %v1040
      %v1275 = vpack.c.b16 %v1054, %v1041
      %v1276 = vpack.c.b16 %v1055, %v1042
      %v1277 = vpack.c.b16 %v1056, %v1043
      %v1278 = vpack.c.b16 %v1057, %v1044
      %v1279 = vpack.c.b16 %v1058, %v1045
      %v1280 = vpack.c.b16 %v1059, %v1046
      %v1281 = vpack.c.b16 %v1060, %v1047
      %v1282 = vpack.c.b16 %v1061, %v1048
      %v1283 = vpack.c.b16 %v1062, %v1049
      %v1284 = vpack.c.b16 %v1076, %v1063
      %v1285 = vpack.c.b16 %v1077, %v1064
      %v1286 = vpack.c.b16 %v1078, %v1065
      %v1287 = vpack.c.b16 %v1079, %v1066
      %v1288 = vpack.c.b16 %v1080, %v1067
      %v1289 = vpack.c.b16 %v1081, %v1068
      %v1290 = vpack.c.b16 %v1082, %v1069
      %v1291 = vpack.c.b16 %v1083, %v1070
      %v1292 = vpack.c.b16 %v1084, %v1071
      %v1293 = vpack.c.b16 %v1085, %v1072
      %v1294 = vpack.c.b16 %v1086, %v1073
      %v1295 = vpack.c.b16 %v1087, %v1074
      %v1296 = vpack.c.b16 %v1088, %v1075
      %v1297 = vpack.c.b16 %v1102, %v1089
      %v1298 = vpack.c.b16 %v1103, %v1090
      %v1299 = vpack.c.b16 %v1104, %v1091
      %v1300 = vpack.c.b16 %v1105, %v1092
      %v1301 = vpack.c.b16 %v1106, %v1093
      %v1302 = vpack.c.b16 %v1107, %v1094
      %v1303 = vpack.c.b16 %v1108, %v1095
      %v1304 = vpack.c.b16 %v1109, %v1096
      %v1305 = vpack.c.b16 %v1110, %v1097
      %v1306 = vpack.c.b16 %v1111, %v1098
      %v1307 = vpack.c.b16 %v1112, %v1099
      %v1308 = vpack.c.b16 %v1113, %v1100
      %v1309 = vpack.c.b16 %v1114, %v1101
      %v1310 = vpack.c.b16 %v1128, %v1115
      %v1311 = vpack.c.b16 %v1129, %v1116
      %v1312 = vpack.c.b16 %v1130, %v1117
      %v1313 = vpack.c.b16 %v1131, %v1118
      %v1314 = vpack.c.b16 %v1132, %v1119
      %v1315 = vpack.c.b16 %v1133, %v1120
      %v1316 = vpack.c.b16 %v1134, %v1121
      %v1317 = vpack.c.b16 %v1135, %v1122
      %v1318 = vpack.c.b16 %v1136, %v1123
      %v1319 = vpack.c.b16 %v1137, %v1124
      %v1320 = vpack.c.b16 %v1138, %v1125
      %v1321 = vpack.c.b16 %v1139, %v1126
      %v1322 = vpack.c.b16 %v1140, %v1127
      %v1691 = vunpack.c.l.b16 %v374
      %v1692 = vunpack.c.l.b16 %v375
      %v1693 = vunpack.c.l.b16 %v376
      %v1694 = vunpack.c.l.b16 %v377
      %v1695 = vunpack.c.l.b16 %v378
      %v1696 = vunpack.c.l.b16 %v379
      %v1697 = vunpack.c.l.b16 %v380
      %v1698 = vunpack.c.l.b16 %v381
      %v1699 = vunpack.c.l.b16 %v382
      %v1700 = vunpack.c.l.b16 %v383
      %v1701 = vunpack.c.l.b16 %v384
      %v1702 = vunpack.c.l.b16 %v385
      %v1703 = vunpack.c.l.b16 %v386
      %v1704 = vunpack.c.l.b16 %v387
      %v1705 = vunpack.c.l.b16 %v388
      %v1706 = vunpack.c.l.b16 %v389
      %v1707 = vunpack.c.l.b16 %v390
      %v1708 = vunpack.c.l.b16 %v391
      %v1709 = vunpack.c.l.b16 %v392
      %v1710 = vunpack.c.l.b16 %v393
      %v1711 = vunpack.c.l.b16 %v394
      %v1712 = vunpack.c.l.b16 %v395
      %v1713 = vunpack.c.l.b16 %v396
      %v1714 = vunpack.c.l.b16 %v397
      %v1715 = vunpack.c.l.b16 %v398
      %v1716 = vunpack.c.l.b16 %v399
      %v1717 = vunpack.c.l.b16 %v400
      %v1718 = vunpack.c.l.b16 %v401
      %v1719 = vunpack.c.l.b16 %v402
      %v1720 = vunpack.c.l.b16 %v403
      %v1721 = vunpack.c.l.b16 %v404
      %v1722 = vunpack.c.l.b16 %v405
      %v1723 = vunpack.c.l.b16 %v406
      %v1724 = vunpack.c.l.b16 %v407
      %v1725 = vunpack.c.l.b16 %v408
      %v1726 = vunpack.c.l.b16 %v409
      %v1727 = vunpack.c.l.b16 %v410
      %v1728 = vunpack.c.l.b16 %v411
      %v1729 = vunpack.c.l.b16 %v412
      %v1730 = vunpack.c.l.b16 %v413
      %v1731 = vunpack.c.l.b16 %v414
      %v1732 = vunpack.c.l.b16 %v415
      %v1733 = vunpack.c.l.b16 %v416
      %v1734 = vunpack.c.l.b16 %v417
      %v1735 = vunpack.c.l.b16 %v418
      %v1736 = vunpack.c.l.b16 %v419
      %v1737 = vunpack.c.l.b16 %v420
      %v1738 = vunpack.c.l.b16 %v421
      %v1739 = vunpack.c.l.b16 %v422
      %v1740 = vunpack.c.l.b16 %v423
      %v1741 = vunpack.c.l.b16 %v424
      %v1742 = vunpack.c.l.b16 %v425
      %v1743 = vunpack.c.l.b16 %v426
      %v1744 = vunpack.c.l.b16 %v427
      %v1745 = vunpack.c.l.b16 %v428
      %v1746 = vunpack.c.l.b16 %v429
      %v1747 = vunpack.c.l.b16 %v430
      %v1748 = vunpack.c.l.b16 %v431
      %v1749 = vunpack.c.l.b16 %v432
      %v1750 = vunpack.c.l.b16 %v433
      %v1751 = vunpack.c.l.b16 %v434
      %v1752 = vunpack.c.l.b16 %v435
      %v1753 = vunpack.c.l.b16 %v436
      %v1754 = vunpack.c.l.b16 %v437
      %v1755 = vunpack.c.l.b16 %v438
      %v1756 = vunpack.c.l.b16 %v439
      %v1757 = vunpack.c.l.b16 %v440
      %v1758 = vunpack.c.l.b16 %v441
      %v1759 = vunpack.c.l.b16 %v442
      %v1760 = vunpack.c.l.b16 %v443
      %v1761 = vunpack.c.l.b16 %v444
      %v1762 = vunpack.c.l.b16 %v445
      %v1763 = vunpack.c.l.b16 %v446
      %v1764 = vunpack.c.l.b16 %v447
      %v1765 = vunpack.c.l.b16 %v448
      %v1766 = vunpack.c.l.b16 %v449
      %v1767 = vunpack.c.l.b16 %v450
      %v1768 = vunpack.c.l.b16 %v451
      %v1769 = vunpack.c.l.b16 %v452
      %v1770 = vunpack.c.l.b16 %v453
      %v1771 = vunpack.c.l.b16 %v454
      %v1772 = vunpack.c.l.b16 %v455
      %v1773 = vunpack.c.l.b16 %v456
      %v1774 = vunpack.c.l.b16 %v457
      %v1775 = vunpack.c.l.b16 %v458
      %v1776 = vunpack.c.l.b16 %v459
      %v1777 = vunpack.c.l.b16 %v460
      %v1778 = vunpack.c.l.b16 %v461
      %v1779 = vunpack.c.l.b16 %v462
      %v1780 = vunpack.c.l.b16 %v463
      %v1781 = vunpack.c.l.b16 %v464
      %v1782 = vunpack.c.l.b16 %v465
      %v1783 = vunpack.c.l.b16 %v466
      %v1784 = vunpack.c.l.b16 %v467
      %v1785 = vunpack.c.l.b16 %v468
      %v1786 = vunpack.c.l.b16 %v469
      %v1787 = vunpack.c.l.b16 %v470
      %v1788 = vunpack.c.l.b16 %v471
      %v1789 = vunpack.c.l.b16 %v472
      %v1790 = vunpack.c.l.b16 %v473
      %v1791 = vunpack.c.l.b16 %v474
      %v1792 = vunpack.c.l.b16 %v475
      %v1793 = vunpack.c.l.b16 %v476
      %v1794 = vunpack.c.l.b16 %v477
      %v1795 = vunpack.c.l.b16 %v478
      %v1796 = vunpack.c.l.b16 %v479
      %v1797 = vunpack.c.l.b16 %v480
      %v1798 = vunpack.c.l.b16 %v481
      %v1799 = vunpack.c.l.b16 %v482
      %v1800 = vunpack.c.l.b16 %v483
      %v1801 = vunpack.c.l.b16 %v484
      %v1802 = vunpack.c.l.b16 %v485
      %v1803 = vunpack.c.l.b16 %v486
      %v1804 = vunpack.c.l.b16 %v487
      %v1805 = vunpack.c.l.b16 %v488
      %v1806 = vunpack.c.l.b16 %v489
      %v1807 = vunpack.c.l.b16 %v490
      %v1808 = vunpack.c.l.b16 %v491
      %v1809 = vunpack.c.l.b16 %v492
      %v1810 = vunpack.c.l.b16 %v493
      %v1811 = vunpack.c.l.b16 %v494
      %v1812 = vunpack.c.l.b16 %v495
      %v1813 = vunpack.c.l.b16 %v496
      %v1814 = vunpack.c.l.b16 %v497
      %v1815 = vunpack.c.l.b16 %v498
      %v1816 = vunpack.c.l.b16 %v499
      %v1817 = vunpack.c.l.b16 %v500
      %v1818 = vunpack.c.l.b16 %v501
      %v1819 = vunpack.c.l.b16 %v502
      %v1820 = vunpack.c.l.b16 %v503
      %v1821 = vunpack.c.l.b16 %v504
      %v1822 = vunpack.c.l.b16 %v505
      %v1823 = vunpack.c.l.b16 %v506
      %v1824 = vunpack.c.l.b16 %v507
      %v1825 = vunpack.c.l.b16 %v508
      %v1826 = vunpack.c.l.b16 %v509
      %v1827 = vunpack.c.l.b16 %v510
      %v1828 = vunpack.c.l.b16 %v511
      %v1829 = vunpack.c.l.b16 %v512
      %v1830 = vunpack.c.l.b16 %v513
      %v1831 = vunpack.c.l.b16 %v514
      %v1832 = vunpack.c.l.b16 %v515
      %v1833 = vunpack.c.l.b16 %v516
      %v1834 = vunpack.c.l.b16 %v517
      %v1835 = vunpack.c.l.b16 %v518
      %v1836 = vunpack.c.l.b16 %v519
      %v1837 = vunpack.c.l.b16 %v520
      %v1838 = vunpack.c.l.b16 %v521
      %v1839 = vunpack.c.l.b16 %v522
      %v1840 = vunpack.c.l.b16 %v523
      %v1841 = vunpack.c.l.b16 %v524
      %v1842 = vunpack.c.l.b16 %v525
      %v1843 = vunpack.c.l.b16 %v526
      %v1844 = vunpack.c.l.b16 %v527
      %v1845 = vunpack.c.l.b16 %v528
      %v1846 = vunpack.c.l.b16 %v529
      %v1847 = vunpack.c.l.b16 %v530
      %v1848 = vunpack.c.l.b16 %v531
      %v1849 = vunpack.c.l.b16 %v532
      %v1850 = vunpack.c.l.b16 %v533
      %v1851 = vunpack.c.l.b16 %v534
      %v1852 = vunpack.c.l.b16 %v535
      %v1853 = vunpack.c.l.b16 %v536
      %v1854 = vunpack.c.l.b16 %v537
      %v1855 = vunpack.c.l.b16 %v538
      %v1856 = vunpack.c.l.b16 %v539
      %v1857 = vunpack.c.l.b16 %v540
      %v1858 = vunpack.c.l.b16 %v541
      %v1859 = vunpack.c.l.b16 %v542
      %v1860 = vunpack.c.l.b16 %v543
      %v1861 = vunpack.c.l.b16 %v544
      %v1862 = vunpack.c.l.b16 %v545
      %v1863 = vunpack.c.l.b16 %v546
      %v1864 = vunpack.c.l.b16 %v547
      %v1865 = vunpack.c.l.b16 %v548
      %v1866 = vunpack.c.l.b16 %v549
      %v1867 = vunpack.c.l.b16 %v550
      %v1868 = vunpack.c.l.b16 %v551
      %v1869 = vunpack.c.l.b16 %v552
      %v1870 = vunpack.c.l.b16 %v553
      %v1871 = vunpack.c.l.b16 %v554
      %v1872 = vunpack.c.l.b16 %v555
      %v1873 = vunpack.c.l.b16 %v556
      %v1874 = vunpack.c.l.b16 %v557
      %v1875 = vunpack.c.l.b16 %v558
      %v1876 = vunpack.c.l.b16 %v559
      %v1877 = vunpack.c.l.b16 %v560
      %v1878 = vunpack.c.l.b16 %v561
      %v1879 = vunpack.c.l.b16 %v562
      %v1880 = vunpack.c.l.b16 %v563
      %v1881 = vunpack.c.l.b16 %v564
      %v1882 = vunpack.c.l.b16 %v565
      %v1883 = vunpack.c.l.b16 %v566
      %v1884 = vunpack.c.l.b16 %v567
      %v1885 = vunpack.c.l.b16 %v568
      %v1886 = vunpack.c.l.b16 %v569
      %v1887 = vunpack.c.l.b16 %v570
      %v1888 = vunpack.c.l.b16 %v571
      %v1889 = vunpack.c.l.b16 %v572
      %v1890 = vunpack.c.l.b16 %v573
      %v1891 = vpack.c.b16 %v1692, %v1691
      %v1892 = vpack.c.b16 %v1694, %v1693
      %v1893 = vpack.c.b16 %v1696, %v1695
      %v1894 = vpack.c.b16 %v1698, %v1697
      %v1895 = vpack.c.b16 %v1700, %v1699
      %v1896 = vpack.c.b16 %v1702, %v1701
      %v1897 = vpack.c.b16 %v1704, %v1703
      %v1898 = vpack.c.b16 %v1706, %v1705
      %v1899 = vpack.c.b16 %v1708, %v1707
      %v1900 = vpack.c.b16 %v1710, %v1709
      %v1901 = vpack.c.b16 %v1712, %v1711
      %v1902 = vpack.c.b16 %v1714, %v1713
      %v1903 = vpack.c.b16 %v1716, %v1715
      %v1904 = vpack.c.b16 %v1718, %v1717
      %v1905 = vpack.c.b16 %v1720, %v1719
      %v1906 = vpack.c.b16 %v1722, %v1721
      %v1907 = vpack.c.b16 %v1724, %v1723
      %v1908 = vpack.c.b16 %v1726, %v1725
      %v1909 = vpack.c.b16 %v1728, %v1727
      %v1910 = vpack.c.b16 %v1730, %v1729
      %v1911 = vpack.c.b16 %v1732, %v1731
      %v1912 = vpack.c.b16 %v1734, %v1733
      %v1913 = vpack.c.b16 %v1736, %v1735
      %v1914 = vpack.c.b16 %v1738, %v1737
      %v1915 = vpack.c.b16 %v1740, %v1739
      %v1916 = vpack.c.b16 %v1742, %v1741
      %v1917 = vpack.c.b16 %v1744, %v1743
      %v1918 = vpack.c.b16 %v1746, %v1745
      %v1919 = vpack.c.b16 %v1748, %v1747
      %v1920 = vpack.c.b16 %v1750, %v1749
      %v1921 = vpack.c.b16 %v1752, %v1751
      %v1922 = vpack.c.b16 %v1754, %v1753
      %v1923 = vpack.c.b16 %v1756, %v1755
      %v1924 = vpack.c.b16 %v1758, %v1757
      %v1925 = vpack.c.b16 %v1760, %v1759
      %v1926 = vpack.c.b16 %v1762, %v1761
      %v1927 = vpack.c.b16 %v1764, %v1763
      %v1928 = vpack.c.b16 %v1766, %v1765
      %v1929 = vpack.c.b16 %v1768, %v1767
      %v1930 = vpack.c.b16 %v1770, %v1769
      %v1931 = vpack.c.b16 %v1772, %v1771
      %v1932 = vpack.c.b16 %v1774, %v1773
      %v1933 = vpack.c.b16 %v1776, %v1775
      %v1934 = vpack.c.b16 %v1778, %v1777
      %v1935 = vpack.c.b16 %v1780, %v1779
      %v1936 = vpack.c.b16 %v1782, %v1781
      %v1937 = vpack.c.b16 %v1784, %v1783
      %v1938 = vpack.c.b16 %v1786, %v1785
      %v1939 = vpack.c.b16 %v1788, %v1787
      %v1940 = vpack.c.b16 %v1790, %v1789
      %v1941 = vpack.c.b16 %v1792, %v1791
      %v1942 = vpack.c.b16 %v1794, %v1793
      %v1943 = vpack.c.b16 %v1796, %v1795
      %v1944 = vpack.c.b16 %v1798, %v1797
      %v1945 = vpack.c.b16 %v1800, %v1799
      %v1946 = vpack.c.b16 %v1802, %v1801
      %v1947 = vpack.c.b16 %v1804, %v1803
      %v1948 = vpack.c.b16 %v1806, %v1805
      %v1949 = vpack.c.b16 %v1808, %v1807
      %v1950 = vpack.c.b16 %v1810, %v1809
      %v1951 = vpack.c.b16 %v1812, %v1811
      %v1952 = vpack.c.b16 %v1814, %v1813
      %v1953 = vpack.c.b16 %v1816, %v1815
      %v1954 = vpack.c.b16 %v1818, %v1817
      %v1955 = vpack.c.b16 %v1820, %v1819
      %v1956 = vpack.c.b16 %v1822, %v1821
      %v1957 = vpack.c.b16 %v1824, %v1823
      %v1958 = vpack.c.b16 %v1826, %v1825
      %v1959 = vpack.c.b16 %v1828, %v1827
      %v1960 = vpack.c.b16 %v1830, %v1829
      %v1961 = vpack.c.b16 %v1832, %v1831
      %v1962 = vpack.c.b16 %v1834, %v1833
      %v1963 = vpack.c.b16 %v1836, %v1835
      %v1964 = vpack.c.b16 %v1838, %v1837
      %v1965 = vpack.c.b16 %v1840, %v1839
      %v1966 = vpack.c.b16 %v1842, %v1841
      %v1967 = vpack.c.b16 %v1844, %v1843
      %v1968 = vpack.c.b16 %v1846, %v1845
      %v1969 = vpack.c.b16 %v1848, %v1847
      %v1970 = vpack.c.b16 %v1850, %v1849
      %v1971 = vpack.c.b16 %v1852, %v1851
      %v1972 = vpack.c.b16 %v1854, %v1853
      %v1973 = vpack.c.b16 %v1856, %v1855
      %v1974 = vpack.c.b16 %v1858, %v1857
      %v1975 = vpack.c.b16 %v1860, %v1859
      %v1976 = vpack.c.b16 %v1862, %v1861
      %v1977 = vpack.c.b16 %v1864, %v1863
      %v1978 = vpack.c.b16 %v1866, %v1865
      %v1979 = vpack.c.b16 %v1868, %v1867
      %v1980 = vpack.c.b16 %v1870, %v1869
      %v1981 = vpack.c.b16 %v1872, %v1871
      %v1982 = vpack.c.b16 %v1874, %v1873
      %v1983 = vpack.c.b16 %v1876, %v1875
      %v1984 = vpack.c.b16 %v1878, %v1877
      %v1985 = vpack.c.b16 %v1880, %v1879
      %v1986 = vpack.c.b16 %v1882, %v1881
      %v1987 = vpack.c.b16 %v1884, %v1883
      %v1988 = vpack.c.b16 %v1886, %v1885
      %v1989 = vpack.c.b16 %v1888, %v1887
      %v1990 = vpack.c.b16 %v1890, %v1889
      %vm2091 = vcmask 523264
      %v2093 = vsel %vm2091, %v1153, 0
      %v2096 = vsel %vm2091, %v1166, 0
      %v2099 = vsel %vm2091, %v1179, 0
      %v2102 = vsel %vm2091, %v1192, 0
      %v2105 = vsel %vm2091, %v1205, 0
      %v2108 = vsel %vm2091, %v1218, 0
      %v2111 = vsel %vm2091, %v1231, 0
      %v2114 = vsel %vm2091, %v1244, 0
      %v2117 = vsel %vm2091, %v1257, 0
      %v2120 = vsel %vm2091, %v1270, 0
      %v2123 = vsel %vm2091, %v1283, 0
      %v2126 = vsel %vm2091, %v1296, 0
      %v2129 = vsel %vm2091, %v1309, 0
      %v2132 = vsel %vm2091, %v1322, 0
      %2134 = vmatprep.subr.bf16.mxu0 0
      %2135 = vmatpush1.bf16.msra.mxu0 %v1891
      %2136 = vmatprep.subr.bf16.mxu0 0
      %2137 = vmatpush1.bf16.msra.mxu0 %v1892
      %2138 = vmatprep.subr.bf16.mxu0 0
      %2139 = vmatpush1.bf16.msra.mxu0 %v1893
      %2140 = vmatprep.subr.bf16.mxu0 0
      %2141 = vmatpush1.bf16.msra.mxu0 %v1894
      %2142 = vmatprep.subr.bf16.mxu0 0
      %2143 = vmatpush1.bf16.msra.mxu0 %v1895
      %2144 = vmatprep.subr.bf16.mxu0 0
      %2145 = vmatpush1.bf16.msra.mxu0 %v1896
      %2146 = vmatprep.subr.bf16.mxu0 0
      %2147 = vmatpush1.bf16.msra.mxu0 %v1897
      %2148 = vmatprep.subr.bf16.mxu0 0
      %2149 = vmatpush1.bf16.msra.mxu0 %v1898
      %2150 = vmatprep.subr.bf16.mxu0 0
      %2151 = vmatpush1.bf16.msra.mxu0 %v1899
      %2152 = vmatprep.subr.bf16.mxu0 0
      %2153 = vmatpush1.bf16.msra.mxu0 %v1900
      %2154 = vmatprep.subr.bf16.mxu0 0
      %2155 = vmatpush1.bf16.msra.mxu0 %v1901
      %2156 = vmatprep.subr.bf16.mxu0 0
      %2157 = vmatpush1.bf16.msra.mxu0 %v1902
      %2158 = vmatprep.subr.bf16.mxu0 0
      %2159 = vmatpush1.bf16.msra.mxu0 %v1903
      %2160 = vmatprep.subr.bf16.mxu0 0
      %2161 = vmatpush1.bf16.msra.mxu0 %v1904
      %2162 = vmatprep.subr.bf16.mxu0 0
      %2163 = vmatpush1.bf16.msra.mxu0 %v1905
      %2164 = vmatprep.subr.bf16.mxu0 0
      %2165 = vmatpush1.bf16.msra.mxu0 %v1906
      %2166 = vmatprep.mubr.bf16.mxu0 %v1142
      %2167 = vmatmul.mubr.bf16.gmra.mrb[0].mxu0 %v1141
      %v2168 = vpop.f32.mrb[0].mxu0
      %v2169 = vadd.f32 %v579, %v2168
      %v2170 = vpop.f32.mrb[0].mxu0
      %v2171 = vpop.f32.mrb[0].mxu0
      %v2172 = vadd.f32 %v579, %v2171
      %v2173 = vpop.f32.mrb[0].mxu0
      %2174 = vmatprep.mubr.bf16.mxu0 %v1155
      %2175 = vmatmul.mubr.bf16.gmra.mrb[0].mxu0 %v1154
      %v2176 = vpop.f32.mrb[0].mxu0
      %v2177 = vadd.f32 %v579, %v2176
      %v2178 = vpop.f32.mrb[0].mxu0
      %v2179 = vpop.f32.mrb[0].mxu0
      %v2180 = vadd.f32 %v579, %v2179
      %v2181 = vpop.f32.mrb[0].mxu0
      %2182 = vmatprep.mubr.bf16.mxu0 %v1168
      %2183 = vmatmul.mubr.bf16.gmra.mrb[0].mxu0 %v1167
      %v2184 = vpop.f32.mrb[0].mxu0
      %v2185 = vadd.f32 %v579, %v2184
      %v2186 = vpop.f32.mrb[0].mxu0
      %v2187 = vpop.f32.mrb[0].mxu0
      %v2188 = vadd.f32 %v579, %v2187
      %v2189 = vpop.f32.mrb[0].mxu0
      %2190 = vmatprep.mubr.bf16.mxu0 %v1181
      %2191 = vmatmul.mubr.bf16.gmra.mrb[0].mxu0 %v1180
      %v2192 = vpop.f32.mrb[0].mxu0
      %v2193 = vadd.f32 %v579, %v2192
      %v2194 = vpop.f32.mrb[0].mxu0
      %v2195 = vpop.f32.mrb[0].mxu0
      %v2196 = vadd.f32 %v579, %v2195
      %v2197 = vpop.f32.mrb[0].mxu0
      %2198 = vmatprep.mubr.bf16.mxu0 %v1194
      %2199 = vmatmul.mubr.bf16.gmra.mrb[0].mxu0 %v1193
      %v2200 = vpop.f32.mrb[0].mxu0
      %v2201 = vadd.f32 %v579, %v2200
      %v2202 = vpop.f32.mrb[0].mxu0
      %v2203 = vpop.f32.mrb[0].mxu0
      %v2204 = vadd.f32 %v579, %v2203
      %v2205 = vpop.f32.mrb[0].mxu0
      %2206 = vmatprep.mubr.bf16.mxu0 %v1207
      %2207 = vmatmul.mubr.bf16.gmra.mrb[0].mxu0 %v1206
      %v2208 = vpop.f32.mrb[0].mxu0
      %v2209 = vadd.f32 %v579, %v2208
      %v2210 = vpop.f32.mrb[0].mxu0
      %v2211 = vpop.f32.mrb[0].mxu0
      %v2212 = vadd.f32 %v579, %v2211
      %v2213 = vpop.f32.mrb[0].mxu0
      %2214 = vmatprep.mubr.bf16.mxu0 %v1220
      %2215 = vmatmul.mubr.bf16.gmra.mrb[0].mxu0 %v1219
      %v2216 = vpop.f32.mrb[0].mxu0
      %v2217 = vadd.f32 %v579, %v2216
      %v2218 = vpop.f32.mrb[0].mxu0
      %v2219 = vpop.f32.mrb[0].mxu0
      %v2220 = vadd.f32 %v579, %v2219
      %v2221 = vpop.f32.mrb[0].mxu0
      %2222 = vmatprep.mubr.bf16.mxu0 %v1233
      %2223 = vmatmul.mubr.bf16.gmra.mrb[0].mxu0 %v1232
      %v2224 = vpop.f32.mrb[0].mxu0
      %v2225 = vadd.f32 %v579, %v2224
      %v2226 = vpop.f32.mrb[0].mxu0
      %v2227 = vpop.f32.mrb[0].mxu0
      %v2228 = vadd.f32 %v579, %v2227
      %v2229 = vpop.f32.mrb[0].mxu0
      %2230 = vmatprep.mubr.bf16.mxu0 %v1246
      %2231 = vmatmul.mubr.bf16.gmra.mrb[0].mxu0 %v1245
      %v2232 = vpop.f32.mrb[0].mxu0
      %v2233 = vadd.f32 %v579, %v2232
      %v2234 = vpop.f32.mrb[0].mxu0
      %v2235 = vpop.f32.mrb[0].mxu0
      %v2236 = vadd.f32 %v579, %v2235
      %v2237 = vpop.f32.mrb[0].mxu0
      %2238 = vmatprep.mubr.bf16.mxu0 %v1259
      %2239 = vmatmul.mubr.bf16.gmra.mrb[0].mxu0 %v1258
      %v2240 = vpop.f32.mrb[0].mxu0
      %v2241 = vadd.f32 %v579, %v2240
      %v2242 = vpop.f32.mrb[0].mxu0
      %v2243 = vpop.f32.mrb[0].mxu0
      %v2244 = vadd.f32 %v579, %v2243
      %v2245 = vpop.f32.mrb[0].mxu0
      %2246 = vmatprep.mubr.bf16.mxu0 %v1272
      %2247 = vmatmul.mubr.bf16.gmra.mrb[0].mxu0 %v1271
      %v2248 = vpop.f32.mrb[0].mxu0
      %v2249 = vadd.f32 %v579, %v2248
      %v2250 = vpop.f32.mrb[0].mxu0
      %v2251 = vpop.f32.mrb[0].mxu0
      %v2252 = vadd.f32 %v579, %v2251
      %v2253 = vpop.f32.mrb[0].mxu0
      %2254 = vmatprep.mubr.bf16.mxu0 %v1285
      %2255 = vmatmul.mubr.bf16.gmra.mrb[0].mxu0 %v1284
      %v2256 = vpop.f32.mrb[0].mxu0
      %v2257 = vadd.f32 %v579, %v2256
      %v2258 = vpop.f32.mrb[0].mxu0
      %v2259 = vpop.f32.mrb[0].mxu0
      %v2260 = vadd.f32 %v579, %v2259
      %v2261 = vpop.f32.mrb[0].mxu0
      %2262 = vmatprep.mubr.bf16.mxu0 %v1298
      %2263 = vmatmul.mubr.bf16.gmra.mrb[0].mxu0 %v1297
      %v2264 = vpop.f32.mrb[0].mxu0
      %v2265 = vadd.f32 %v579, %v2264
      %v2266 = vpop.f32.mrb[0].mxu0
      %v2267 = vpop.f32.mrb[0].mxu0
      %v2268 = vadd.f32 %v579, %v2267
      %v2269 = vpop.f32.mrb[0].mxu0
      %2270 = vmatprep.mubr.bf16.mxu0 %v1311
      %2271 = vmatmul.mubr.bf16.gmra.mrb[0].mxu0 %v1310
      %v2272 = vpop.f32.mrb[0].mxu0
      %v2273 = vadd.f32 %v579, %v2272
      %v2274 = vpop.f32.mrb[0].mxu0
      %v2275 = vpop.f32.mrb[0].mxu0
      %v2276 = vadd.f32 %v579, %v2275
      %v2277 = vpop.f32.mrb[0].mxu0
      %2278 = vdwg.mxu0
      %2279 = vmatprep.subr.bf16.mxu0 0
      %2280 = vmatpush1.bf16.msra.mxu0 %v1907
      %2281 = vmatprep.subr.bf16.mxu0 0
      %2282 = vmatpush1.bf16.msra.mxu0 %v1908
      %2283 = vmatprep.subr.bf16.mxu0 0
      %2284 = vmatpush1.bf16.msra.mxu0 %v1909
      %2285 = vmatprep.subr.bf16.mxu0 0
      %2286 = vmatpush1.bf16.msra.mxu0 %v1910
      %2287 = vmatprep.subr.bf16.mxu0 0
      %2288 = vmatpush1.bf16.msra.mxu0 %v1911
      %2289 = vmatprep.subr.bf16.mxu0 0
      %2290 = vmatpush1.bf16.msra.mxu0 %v1912
      %2291 = vmatprep.subr.bf16.mxu0 0
      %2292 = vmatpush1.bf16.msra.mxu0 %v1913
      %2293 = vmatprep.subr.bf16.mxu0 0
      %2294 = vmatpush1.bf16.msra.mxu0 %v1914
      %2295 = vmatprep.subr.bf16.mxu0 0
      %2296 = vmatpush1.bf16.msra.mxu0 %v1915
      %2297 = vmatprep.subr.bf16.mxu0 0
      %2298 = vmatpush1.bf16.msra.mxu0 %v1916
      %2299 = vmatprep.subr.bf16.mxu0 0
      %2300 = vmatpush1.bf16.msra.mxu0 %v1917
      %2301 = vmatprep.subr.bf16.mxu0 0
      %2302 = vmatpush1.bf16.msra.mxu0 %v1918
      %2303 = vmatprep.subr.bf16.mxu0 0
      %2304 = vmatpush1.bf16.msra.mxu0 %v1919
      %2305 = vmatprep.subr.bf16.mxu0 0
      %2306 = vmatpush1.bf16.msra.mxu0 %v1920
      %2307 = vmatprep.subr.bf16.mxu0 0
      %2308 = vmatpush1.bf16.msra.mxu0 %v1921
      %2309 = vmatprep.subr.bf16.mxu0 0
      %2310 = vmatpush1.bf16.msra.mxu0 %v1922
      %2311 = vmatprep.mubr.bf16.mxu0 %v1144
      %2312 = vmatmul.mubr.bf16.gmra.mrb[0].mxu0 %v1143
      %v2313 = vpop.f32.mrb[0].mxu0
      %v2314 = vadd.f32 %v2169, %v2313
      %v2315 = vpop.f32.mrb[0].mxu0
      %v2316 = vpop.f32.mrb[0].mxu0
      %v2317 = vadd.f32 %v2172, %v2316
      %v2318 = vpop.f32.mrb[0].mxu0
      %2319 = vmatprep.mubr.bf16.mxu0 %v1157
      %2320 = vmatmul.mubr.bf16.gmra.mrb[0].mxu0 %v1156
      %v2321 = vpop.f32.mrb[0].mxu0
      %v2322 = vadd.f32 %v2177, %v2321
      %v2323 = vpop.f32.mrb[0].mxu0
      %v2324 = vpop.f32.mrb[0].mxu0
      %v2325 = vadd.f32 %v2180, %v2324
      %v2326 = vpop.f32.mrb[0].mxu0
      %2327 = vmatprep.mubr.bf16.mxu0 %v1170
      %2328 = vmatmul.mubr.bf16.gmra.mrb[0].mxu0 %v1169
      %v2329 = vpop.f32.mrb[0].mxu0
      %v2330 = vadd.f32 %v2185, %v2329
      %v2331 = vpop.f32.mrb[0].mxu0
      %v2332 = vpop.f32.mrb[0].mxu0
      %v2333 = vadd.f32 %v2188, %v2332
      %v2334 = vpop.f32.mrb[0].mxu0
      %2335 = vmatprep.mubr.bf16.mxu0 %v1183
      %2336 = vmatmul.mubr.bf16.gmra.mrb[0].mxu0 %v1182
      %v2337 = vpop.f32.mrb[0].mxu0
      %v2338 = vadd.f32 %v2193, %v2337
      %v2339 = vpop.f32.mrb[0].mxu0
      %v2340 = vpop.f32.mrb[0].mxu0
      %v2341 = vadd.f32 %v2196, %v2340
      %v2342 = vpop.f32.mrb[0].mxu0
      %2343 = vmatprep.mubr.bf16.mxu0 %v1196
      %2344 = vmatmul.mubr.bf16.gmra.mrb[0].mxu0 %v1195
      %v2345 = vpop.f32.mrb[0].mxu0
      %v2346 = vadd.f32 %v2201, %v2345
      %v2347 = vpop.f32.mrb[0].mxu0
      %v2348 = vpop.f32.mrb[0].mxu0
      %v2349 = vadd.f32 %v2204, %v2348
      %v2350 = vpop.f32.mrb[0].mxu0
      %2351 = vmatprep.mubr.bf16.mxu0 %v1209
      %2352 = vmatmul.mubr.bf16.gmra.mrb[0].mxu0 %v1208
      %v2353 = vpop.f32.mrb[0].mxu0
      %v2354 = vadd.f32 %v2209, %v2353
      %v2355 = vpop.f32.mrb[0].mxu0
      %v2356 = vpop.f32.mrb[0].mxu0
      %v2357 = vadd.f32 %v2212, %v2356
      %v2358 = vpop.f32.mrb[0].mxu0
      %2359 = vmatprep.mubr.bf16.mxu0 %v1222
      %2360 = vmatmul.mubr.bf16.gmra.mrb[0].mxu0 %v1221
      %v2361 = vpop.f32.mrb[0].mxu0
      %v2362 = vadd.f32 %v2217, %v2361
      %v2363 = vpop.f32.mrb[0].mxu0
      %v2364 = vpop.f32.mrb[0].mxu0
      %v2365 = vadd.f32 %v2220, %v2364
      %v2366 = vpop.f32.mrb[0].mxu0
      %2367 = vmatprep.mubr.bf16.mxu0 %v1235
      %2368 = vmatmul.mubr.bf16.gmra.mrb[0].mxu0 %v1234
      %v2369 = vpop.f32.mrb[0].mxu0
      %v2370 = vadd.f32 %v2225, %v2369
      %v2371 = vpop.f32.mrb[0].mxu0
      %v2372 = vpop.f32.mrb[0].mxu0
      %v2373 = vadd.f32 %v2228, %v2372
      %v2374 = vpop.f32.mrb[0].mxu0
      %2375 = vmatprep.mubr.bf16.mxu0 %v1248
      %2376 = vmatmul.mubr.bf16.gmra.mrb[0].mxu0 %v1247
      %v2377 = vpop.f32.mrb[0].mxu0
      %v2378 = vadd.f32 %v2233, %v2377
      %v2379 = vpop.f32.mrb[0].mxu0
      %v2380 = vpop.f32.mrb[0].mxu0
      %v2381 = vadd.f32 %v2236, %v2380
      %v2382 = vpop.f32.mrb[0].mxu0
      %2383 = vmatprep.mubr.bf16.mxu0 %v1261
      %2384 = vmatmul.mubr.bf16.gmra.mrb[0].mxu0 %v1260
      %v2385 = vpop.f32.mrb[0].mxu0
      %v2386 = vadd.f32 %v2241, %v2385
      %v2387 = vpop.f32.mrb[0].mxu0
      %v2388 = vpop.f32.mrb[0].mxu0
      %v2389 = vadd.f32 %v2244, %v2388
      %v2390 = vpop.f32.mrb[0].mxu0
      %2391 = vmatprep.mubr.bf16.mxu0 %v1274
      %2392 = vmatmul.mubr.bf16.gmra.mrb[0].mxu0 %v1273
      %v2393 = vpop.f32.mrb[0].mxu0
      %v2394 = vadd.f32 %v2249, %v2393
      %v2395 = vpop.f32.mrb[0].mxu0
      %v2396 = vpop.f32.mrb[0].mxu0
      %v2397 = vadd.f32 %v2252, %v2396
      %v2398 = vpop.f32.mrb[0].mxu0
      %2399 = vmatprep.mubr.bf16.mxu0 %v1287
      %2400 = vmatmul.mubr.bf16.gmra.mrb[0].mxu0 %v1286
      %v2401 = vpop.f32.mrb[0].mxu0
      %v2402 = vadd.f32 %v2257, %v2401
      %v2403 = vpop.f32.mrb[0].mxu0
      %v2404 = vpop.f32.mrb[0].mxu0
      %v2405 = vadd.f32 %v2260, %v2404
      %v2406 = vpop.f32.mrb[0].mxu0
      %2407 = vmatprep.mubr.bf16.mxu0 %v1300
      %2408 = vmatmul.mubr.bf16.gmra.mrb[0].mxu0 %v1299
      %v2409 = vpop.f32.mrb[0].mxu0
      %v2410 = vadd.f32 %v2265, %v2409
      %v2411 = vpop.f32.mrb[0].mxu0
      %v2412 = vpop.f32.mrb[0].mxu0
      %v2413 = vadd.f32 %v2268, %v2412
      %v2414 = vpop.f32.mrb[0].mxu0
      %2415 = vmatprep.mubr.bf16.mxu0 %v1313
      %2416 = vmatmul.mubr.bf16.gmra.mrb[0].mxu0 %v1312
      %v2417 = vpop.f32.mrb[0].mxu0
      %v2418 = vadd.f32 %v2273, %v2417
      %v2419 = vpop.f32.mrb[0].mxu0
      %v2420 = vpop.f32.mrb[0].mxu0
      %v2421 = vadd.f32 %v2276, %v2420
      %v2422 = vpop.f32.mrb[0].mxu0
      %2423 = vdwg.mxu0
      %2424 = vmatprep.subr.bf16.mxu0 0
      %2425 = vmatpush1.bf16.msra.mxu0 %v1923
      %2426 = vmatprep.subr.bf16.mxu0 0
      %2427 = vmatpush1.bf16.msra.mxu0 %v1924
      %2428 = vmatprep.subr.bf16.mxu0 0
      %2429 = vmatpush1.bf16.msra.mxu0 %v1925
      %2430 = vmatprep.subr.bf16.mxu0 0
      %2431 = vmatpush1.bf16.msra.mxu0 %v1926
      %2432 = vmatprep.subr.bf16.mxu0 0
      %2433 = vmatpush1.bf16.msra.mxu0 %v1927
      %2434 = vmatprep.subr.bf16.mxu0 0
      %2435 = vmatpush1.bf16.msra.mxu0 %v1928
      %2436 = vmatprep.subr.bf16.mxu0 0
      %2437 = vmatpush1.bf16.msra.mxu0 %v1929
      %2438 = vmatprep.subr.bf16.mxu0 0
      %2439 = vmatpush1.bf16.msra.mxu0 %v1930
      %2440 = vmatprep.subr.bf16.mxu0 0
      %2441 = vmatpush1.bf16.msra.mxu0 %v1931
      %2442 = vmatprep.subr.bf16.mxu0 0
      %2443 = vmatpush1.bf16.msra.mxu0 %v1932
      %2444 = vmatprep.subr.bf16.mxu0 0
      %2445 = vmatpush1.bf16.msra.mxu0 %v1933
      %2446 = vmatprep.subr.bf16.mxu0 0
      %2447 = vmatpush1.bf16.msra.mxu0 %v1934
      %2448 = vmatprep.subr.bf16.mxu0 0
      %2449 = vmatpush1.bf16.msra.mxu0 %v1935
      %2450 = vmatprep.subr.bf16.mxu0 0
      %2451 = vmatpush1.bf16.msra.mxu0 %v1936
      %2452 = vmatprep.subr.bf16.mxu0 0
      %2453 = vmatpush1.bf16.msra.mxu0 %v1937
      %2454 = vmatprep.subr.bf16.mxu0 0
      %2455 = vmatpush1.bf16.msra.mxu0 %v1938
      %2456 = vmatprep.mubr.bf16.mxu0 %v1146
      %2457 = vmatmul.mubr.bf16.gmra.mrb[0].mxu0 %v1145
      %v2458 = vpop.f32.mrb[0].mxu0
      %v2459 = vadd.f32 %v2314, %v2458
      %v2460 = vpop.f32.mrb[0].mxu0
      %v2461 = vpop.f32.mrb[0].mxu0
      %v2462 = vadd.f32 %v2317, %v2461
      %v2463 = vpop.f32.mrb[0].mxu0
      %2464 = vmatprep.mubr.bf16.mxu0 %v1159
      %2465 = vmatmul.mubr.bf16.gmra.mrb[0].mxu0 %v1158
      %v2466 = vpop.f32.mrb[0].mxu0
      %v2467 = vadd.f32 %v2322, %v2466
      %v2468 = vpop.f32.mrb[0].mxu0
      %v2469 = vpop.f32.mrb[0].mxu0
      %v2470 = vadd.f32 %v2325, %v2469
      %v2471 = vpop.f32.mrb[0].mxu0
      %2472 = vmatprep.mubr.bf16.mxu0 %v1172
      %2473 = vmatmul.mubr.bf16.gmra.mrb[0].mxu0 %v1171
      %v2474 = vpop.f32.mrb[0].mxu0
      %v2475 = vadd.f32 %v2330, %v2474
      %v2476 = vpop.f32.mrb[0].mxu0
      %v2477 = vpop.f32.mrb[0].mxu0
      %v2478 = vadd.f32 %v2333, %v2477
      %v2479 = vpop.f32.mrb[0].mxu0
      %2480 = vmatprep.mubr.bf16.mxu0 %v1185
      %2481 = vmatmul.mubr.bf16.gmra.mrb[0].mxu0 %v1184
      %v2482 = vpop.f32.mrb[0].mxu0
      %v2483 = vadd.f32 %v2338, %v2482
      %v2484 = vpop.f32.mrb[0].mxu0
      %v2485 = vpop.f32.mrb[0].mxu0
      %v2486 = vadd.f32 %v2341, %v2485
      %v2487 = vpop.f32.mrb[0].mxu0
      %2488 = vmatprep.mubr.bf16.mxu0 %v1198
      %2489 = vmatmul.mubr.bf16.gmra.mrb[0].mxu0 %v1197
      %v2490 = vpop.f32.mrb[0].mxu0
      %v2491 = vadd.f32 %v2346, %v2490
      %v2492 = vpop.f32.mrb[0].mxu0
      %v2493 = vpop.f32.mrb[0].mxu0
      %v2494 = vadd.f32 %v2349, %v2493
      %v2495 = vpop.f32.mrb[0].mxu0
      %2496 = vmatprep.mubr.bf16.mxu0 %v1211
      %2497 = vmatmul.mubr.bf16.gmra.mrb[0].mxu0 %v1210
      %v2498 = vpop.f32.mrb[0].mxu0
      %v2499 = vadd.f32 %v2354, %v2498
      %v2500 = vpop.f32.mrb[0].mxu0
      %v2501 = vpop.f32.mrb[0].mxu0
      %v2502 = vadd.f32 %v2357, %v2501
      %v2503 = vpop.f32.mrb[0].mxu0
      %2504 = vmatprep.mubr.bf16.mxu0 %v1224
      %2505 = vmatmul.mubr.bf16.gmra.mrb[0].mxu0 %v1223
      %v2506 = vpop.f32.mrb[0].mxu0
      %v2507 = vadd.f32 %v2362, %v2506
      %v2508 = vpop.f32.mrb[0].mxu0
      %v2509 = vpop.f32.mrb[0].mxu0
      %v2510 = vadd.f32 %v2365, %v2509
      %v2511 = vpop.f32.mrb[0].mxu0
      %2512 = vmatprep.mubr.bf16.mxu0 %v1237
      %2513 = vmatmul.mubr.bf16.gmra.mrb[0].mxu0 %v1236
      %v2514 = vpop.f32.mrb[0].mxu0
      %v2515 = vadd.f32 %v2370, %v2514
      %v2516 = vpop.f32.mrb[0].mxu0
      %v2517 = vpop.f32.mrb[0].mxu0
      %v2518 = vadd.f32 %v2373, %v2517
      %v2519 = vpop.f32.mrb[0].mxu0
      %2520 = vmatprep.mubr.bf16.mxu0 %v1250
      %2521 = vmatmul.mubr.bf16.gmra.mrb[0].mxu0 %v1249
      %v2522 = vpop.f32.mrb[0].mxu0
      %v2523 = vadd.f32 %v2378, %v2522
      %v2524 = vpop.f32.mrb[0].mxu0
      %v2525 = vpop.f32.mrb[0].mxu0
      %v2526 = vadd.f32 %v2381, %v2525
      %v2527 = vpop.f32.mrb[0].mxu0
      %2528 = vmatprep.mubr.bf16.mxu0 %v1263
      %2529 = vmatmul.mubr.bf16.gmra.mrb[0].mxu0 %v1262
      %v2530 = vpop.f32.mrb[0].mxu0
      %v2531 = vadd.f32 %v2386, %v2530
      %v2532 = vpop.f32.mrb[0].mxu0
      %v2533 = vpop.f32.mrb[0].mxu0
      %v2534 = vadd.f32 %v2389, %v2533
      %v2535 = vpop.f32.mrb[0].mxu0
      %2536 = vmatprep.mubr.bf16.mxu0 %v1276
      %2537 = vmatmul.mubr.bf16.gmra.mrb[0].mxu0 %v1275
      %v2538 = vpop.f32.mrb[0].mxu0
      %v2539 = vadd.f32 %v2394, %v2538
      %v2540 = vpop.f32.mrb[0].mxu0
      %v2541 = vpop.f32.mrb[0].mxu0
      %v2542 = vadd.f32 %v2397, %v2541
      %v2543 = vpop.f32.mrb[0].mxu0
      %2544 = vmatprep.mubr.bf16.mxu0 %v1289
      %2545 = vmatmul.mubr.bf16.gmra.mrb[0].mxu0 %v1288
      %v2546 = vpop.f32.mrb[0].mxu0
      %v2547 = vadd.f32 %v2402, %v2546
      %v2548 = vpop.f32.mrb[0].mxu0
      %v2549 = vpop.f32.mrb[0].mxu0
      %v2550 = vadd.f32 %v2405, %v2549
      %v2551 = vpop.f32.mrb[0].mxu0
      %2552 = vmatprep.mubr.bf16.mxu0 %v1302
      %2553 = vmatmul.mubr.bf16.gmra.mrb[0].mxu0 %v1301
      %v2554 = vpop.f32.mrb[0].mxu0
      %v2555 = vadd.f32 %v2410, %v2554
      %v2556 = vpop.f32.mrb[0].mxu0
      %v2557 = vpop.f32.mrb[0].mxu0
      %v2558 = vadd.f32 %v2413, %v2557
      %v2559 = vpop.f32.mrb[0].mxu0
      %2560 = vmatprep.mubr.bf16.mxu0 %v1315
      %2561 = vmatmul.mubr.bf16.gmra.mrb[0].mxu0 %v1314
      %v2562 = vpop.f32.mrb[0].mxu0
      %v2563 = vadd.f32 %v2418, %v2562
      %v2564 = vpop.f32.mrb[0].mxu0
      %v2565 = vpop.f32.mrb[0].mxu0
      %v2566 = vadd.f32 %v2421, %v2565
      %v2567 = vpop.f32.mrb[0].mxu0
      %2568 = vdwg.mxu0
      %2569 = vmatprep.subr.bf16.mxu0 0
      %2570 = vmatpush1.bf16.msra.mxu0 %v1939
      %2571 = vmatprep.subr.bf16.mxu0 0
      %2572 = vmatpush1.bf16.msra.mxu0 %v1940
      %2573 = vmatprep.subr.bf16.mxu0 0
      %2574 = vmatpush1.bf16.msra.mxu0 %v1941
      %2575 = vmatprep.subr.bf16.mxu0 0
      %2576 = vmatpush1.bf16.msra.mxu0 %v1942
      %2577 = vmatprep.subr.bf16.mxu0 0
      %2578 = vmatpush1.bf16.msra.mxu0 %v1943
      %2579 = vmatprep.subr.bf16.mxu0 0
      %2580 = vmatpush1.bf16.msra.mxu0 %v1944
      %2581 = vmatprep.subr.bf16.mxu0 0
      %2582 = vmatpush1.bf16.msra.mxu0 %v1945
      %2583 = vmatprep.subr.bf16.mxu0 0
      %2584 = vmatpush1.bf16.msra.mxu0 %v1946
      %2585 = vmatprep.subr.bf16.mxu0 0
      %2586 = vmatpush1.bf16.msra.mxu0 %v1947
      %2587 = vmatprep.subr.bf16.mxu0 0
      %2588 = vmatpush1.bf16.msra.mxu0 %v1948
      %2589 = vmatprep.subr.bf16.mxu0 0
      %2590 = vmatpush1.bf16.msra.mxu0 %v1949
      %2591 = vmatprep.subr.bf16.mxu0 0
      %2592 = vmatpush1.bf16.msra.mxu0 %v1950
      %2593 = vmatprep.subr.bf16.mxu0 0
      %2594 = vmatpush1.bf16.msra.mxu0 %v1951
      %2595 = vmatprep.subr.bf16.mxu0 0
      %2596 = vmatpush1.bf16.msra.mxu0 %v1952
      %2597 = vmatprep.subr.bf16.mxu0 0
      %2598 = vmatpush1.bf16.msra.mxu0 %v1953
      %2599 = vmatprep.subr.bf16.mxu0 0
      %2600 = vmatpush1.bf16.msra.mxu0 %v1954
      %2601 = vmatprep.mubr.bf16.mxu0 %v1148
      %2602 = vmatmul.mubr.bf16.gmra.mrb[0].mxu0 %v1147
      %v2603 = vpop.f32.mrb[0].mxu0
      %v2604 = vadd.f32 %v2459, %v2603
      %v2605 = vpop.f32.mrb[0].mxu0
      %v2606 = vpop.f32.mrb[0].mxu0
      %v2607 = vadd.f32 %v2462, %v2606
      %v2608 = vpop.f32.mrb[0].mxu0
      %2609 = vmatprep.mubr.bf16.mxu0 %v1161
      %2610 = vmatmul.mubr.bf16.gmra.mrb[0].mxu0 %v1160
      %v2611 = vpop.f32.mrb[0].mxu0
      %v2612 = vadd.f32 %v2467, %v2611
      %v2613 = vpop.f32.mrb[0].mxu0
      %v2614 = vpop.f32.mrb[0].mxu0
      %v2615 = vadd.f32 %v2470, %v2614
      %v2616 = vpop.f32.mrb[0].mxu0
      %2617 = vmatprep.mubr.bf16.mxu0 %v1174
      %2618 = vmatmul.mubr.bf16.gmra.mrb[0].mxu0 %v1173
      %v2619 = vpop.f32.mrb[0].mxu0
      %v2620 = vadd.f32 %v2475, %v2619
      %v2621 = vpop.f32.mrb[0].mxu0
      %v2622 = vpop.f32.mrb[0].mxu0
      %v2623 = vadd.f32 %v2478, %v2622
      %v2624 = vpop.f32.mrb[0].mxu0
      %2625 = vmatprep.mubr.bf16.mxu0 %v1187
      %2626 = vmatmul.mubr.bf16.gmra.mrb[0].mxu0 %v1186
      %v2627 = vpop.f32.mrb[0].mxu0
      %v2628 = vadd.f32 %v2483, %v2627
      %v2629 = vpop.f32.mrb[0].mxu0
      %v2630 = vpop.f32.mrb[0].mxu0
      %v2631 = vadd.f32 %v2486, %v2630
      %v2632 = vpop.f32.mrb[0].mxu0
      %2633 = vmatprep.mubr.bf16.mxu0 %v1200
      %2634 = vmatmul.mubr.bf16.gmra.mrb[0].mxu0 %v1199
      %v2635 = vpop.f32.mrb[0].mxu0
      %v2636 = vadd.f32 %v2491, %v2635
      %v2637 = vpop.f32.mrb[0].mxu0
      %v2638 = vpop.f32.mrb[0].mxu0
      %v2639 = vadd.f32 %v2494, %v2638
      %v2640 = vpop.f32.mrb[0].mxu0
      %2641 = vmatprep.mubr.bf16.mxu0 %v1213
      %2642 = vmatmul.mubr.bf16.gmra.mrb[0].mxu0 %v1212
      %v2643 = vpop.f32.mrb[0].mxu0
      %v2644 = vadd.f32 %v2499, %v2643
      %v2645 = vpop.f32.mrb[0].mxu0
      %v2646 = vpop.f32.mrb[0].mxu0
      %v2647 = vadd.f32 %v2502, %v2646
      %v2648 = vpop.f32.mrb[0].mxu0
      %2649 = vmatprep.mubr.bf16.mxu0 %v1226
      %2650 = vmatmul.mubr.bf16.gmra.mrb[0].mxu0 %v1225
      %v2651 = vpop.f32.mrb[0].mxu0
      %v2652 = vadd.f32 %v2507, %v2651
      %v2653 = vpop.f32.mrb[0].mxu0
      %v2654 = vpop.f32.mrb[0].mxu0
      %v2655 = vadd.f32 %v2510, %v2654
      %v2656 = vpop.f32.mrb[0].mxu0
      %2657 = vmatprep.mubr.bf16.mxu0 %v1239
      %2658 = vmatmul.mubr.bf16.gmra.mrb[0].mxu0 %v1238
      %v2659 = vpop.f32.mrb[0].mxu0
      %v2660 = vadd.f32 %v2515, %v2659
      %v2661 = vpop.f32.mrb[0].mxu0
      %v2662 = vpop.f32.mrb[0].mxu0
      %v2663 = vadd.f32 %v2518, %v2662
      %v2664 = vpop.f32.mrb[0].mxu0
      %2665 = vmatprep.mubr.bf16.mxu0 %v1252
      %2666 = vmatmul.mubr.bf16.gmra.mrb[0].mxu0 %v1251
      %v2667 = vpop.f32.mrb[0].mxu0
      %v2668 = vadd.f32 %v2523, %v2667
      %v2669 = vpop.f32.mrb[0].mxu0
      %v2670 = vpop.f32.mrb[0].mxu0
      %v2671 = vadd.f32 %v2526, %v2670
      %v2672 = vpop.f32.mrb[0].mxu0
      %2673 = vmatprep.mubr.bf16.mxu0 %v1265
      %2674 = vmatmul.mubr.bf16.gmra.mrb[0].mxu0 %v1264
      %v2675 = vpop.f32.mrb[0].mxu0
      %v2676 = vadd.f32 %v2531, %v2675
      %v2677 = vpop.f32.mrb[0].mxu0
      %v2678 = vpop.f32.mrb[0].mxu0
      %v2679 = vadd.f32 %v2534, %v2678
      %v2680 = vpop.f32.mrb[0].mxu0
      %2681 = vmatprep.mubr.bf16.mxu0 %v1278
      %2682 = vmatmul.mubr.bf16.gmra.mrb[0].mxu0 %v1277
      %v2683 = vpop.f32.mrb[0].mxu0
      %v2684 = vadd.f32 %v2539, %v2683
      %v2685 = vpop.f32.mrb[0].mxu0
      %v2686 = vpop.f32.mrb[0].mxu0
      %v2687 = vadd.f32 %v2542, %v2686
      %v2688 = vpop.f32.mrb[0].mxu0
      %2689 = vmatprep.mubr.bf16.mxu0 %v1291
      %2690 = vmatmul.mubr.bf16.gmra.mrb[0].mxu0 %v1290
      %v2691 = vpop.f32.mrb[0].mxu0
      %v2692 = vadd.f32 %v2547, %v2691
      %v2693 = vpop.f32.mrb[0].mxu0
      %v2694 = vpop.f32.mrb[0].mxu0
      %v2695 = vadd.f32 %v2550, %v2694
      %v2696 = vpop.f32.mrb[0].mxu0
      %2697 = vmatprep.mubr.bf16.mxu0 %v1304
      %2698 = vmatmul.mubr.bf16.gmra.mrb[0].mxu0 %v1303
      %v2699 = vpop.f32.mrb[0].mxu0
      %v2700 = vadd.f32 %v2555, %v2699
      %v2701 = vpop.f32.mrb[0].mxu0
      %v2702 = vpop.f32.mrb[0].mxu0
      %v2703 = vadd.f32 %v2558, %v2702
      %v2704 = vpop.f32.mrb[0].mxu0
      %2705 = vmatprep.mubr.bf16.mxu0 %v1317
      %2706 = vmatmul.mubr.bf16.gmra.mrb[0].mxu0 %v1316
      %v2707 = vpop.f32.mrb[0].mxu0
      %v2708 = vadd.f32 %v2563, %v2707
      %v2709 = vpop.f32.mrb[0].mxu0
      %v2710 = vpop.f32.mrb[0].mxu0
      %v2711 = vadd.f32 %v2566, %v2710
      %v2712 = vpop.f32.mrb[0].mxu0
      %2713 = vdwg.mxu0
      %2714 = vmatprep.subr.bf16.mxu0 0
      %2715 = vmatpush1.bf16.msra.mxu0 %v1955
      %2716 = vmatprep.subr.bf16.mxu0 0
      %2717 = vmatpush1.bf16.msra.mxu0 %v1956
      %2718 = vmatprep.subr.bf16.mxu0 0
      %2719 = vmatpush1.bf16.msra.mxu0 %v1957
      %2720 = vmatprep.subr.bf16.mxu0 0
      %2721 = vmatpush1.bf16.msra.mxu0 %v1958
      %2722 = vmatprep.subr.bf16.mxu0 0
      %2723 = vmatpush1.bf16.msra.mxu0 %v1959
      %2724 = vmatprep.subr.bf16.mxu0 0
      %2725 = vmatpush1.bf16.msra.mxu0 %v1960
      %2726 = vmatprep.subr.bf16.mxu0 0
      %2727 = vmatpush1.bf16.msra.mxu0 %v1961
      %2728 = vmatprep.subr.bf16.mxu0 0
      %2729 = vmatpush1.bf16.msra.mxu0 %v1962
      %2730 = vmatprep.subr.bf16.mxu0 0
      %2731 = vmatpush1.bf16.msra.mxu0 %v1963
      %2732 = vmatprep.subr.bf16.mxu0 0
      %2733 = vmatpush1.bf16.msra.mxu0 %v1964
      %2734 = vmatprep.subr.bf16.mxu0 0
      %2735 = vmatpush1.bf16.msra.mxu0 %v1965
      %2736 = vmatprep.subr.bf16.mxu0 0
      %2737 = vmatpush1.bf16.msra.mxu0 %v1966
      %2738 = vmatprep.subr.bf16.mxu0 0
      %2739 = vmatpush1.bf16.msra.mxu0 %v1967
      %2740 = vmatprep.subr.bf16.mxu0 0
      %2741 = vmatpush1.bf16.msra.mxu0 %v1968
      %2742 = vmatprep.subr.bf16.mxu0 0
      %2743 = vmatpush1.bf16.msra.mxu0 %v1969
      %2744 = vmatprep.subr.bf16.mxu0 0
      %2745 = vmatpush1.bf16.msra.mxu0 %v1970
      %2746 = vmatprep.mubr.bf16.mxu0 %v1150
      %2747 = vmatmul.mubr.bf16.gmra.mrb[0].mxu0 %v1149
      %v2748 = vpop.f32.mrb[0].mxu0
      %v2749 = vadd.f32 %v2604, %v2748
      %v2750 = vpop.f32.mrb[0].mxu0
      %v2751 = vpop.f32.mrb[0].mxu0
      %v2752 = vadd.f32 %v2607, %v2751
      %v2753 = vpop.f32.mrb[0].mxu0
      %2754 = vmatprep.mubr.bf16.mxu0 %v1163
      %2755 = vmatmul.mubr.bf16.gmra.mrb[0].mxu0 %v1162
      %v2756 = vpop.f32.mrb[0].mxu0
      %v2757 = vadd.f32 %v2612, %v2756
      %v2758 = vpop.f32.mrb[0].mxu0
      %v2759 = vpop.f32.mrb[0].mxu0
      %v2760 = vadd.f32 %v2615, %v2759
      %v2761 = vpop.f32.mrb[0].mxu0
      %2762 = vmatprep.mubr.bf16.mxu0 %v1176
      %2763 = vmatmul.mubr.bf16.gmra.mrb[0].mxu0 %v1175
      %v2764 = vpop.f32.mrb[0].mxu0
      %v2765 = vadd.f32 %v2620, %v2764
      %v2766 = vpop.f32.mrb[0].mxu0
      %v2767 = vpop.f32.mrb[0].mxu0
      %v2768 = vadd.f32 %v2623, %v2767
      %v2769 = vpop.f32.mrb[0].mxu0
      %2770 = vmatprep.mubr.bf16.mxu0 %v1189
      %2771 = vmatmul.mubr.bf16.gmra.mrb[0].mxu0 %v1188
      %v2772 = vpop.f32.mrb[0].mxu0
      %v2773 = vadd.f32 %v2628, %v2772
      %v2774 = vpop.f32.mrb[0].mxu0
      %v2775 = vpop.f32.mrb[0].mxu0
      %v2776 = vadd.f32 %v2631, %v2775
      %v2777 = vpop.f32.mrb[0].mxu0
      %2778 = vmatprep.mubr.bf16.mxu0 %v1202
      %2779 = vmatmul.mubr.bf16.gmra.mrb[0].mxu0 %v1201
      %v2780 = vpop.f32.mrb[0].mxu0
      %v2781 = vadd.f32 %v2636, %v2780
      %v2782 = vpop.f32.mrb[0].mxu0
      %v2783 = vpop.f32.mrb[0].mxu0
      %v2784 = vadd.f32 %v2639, %v2783
      %v2785 = vpop.f32.mrb[0].mxu0
      %2786 = vmatprep.mubr.bf16.mxu0 %v1215
      %2787 = vmatmul.mubr.bf16.gmra.mrb[0].mxu0 %v1214
      %v2788 = vpop.f32.mrb[0].mxu0
      %v2789 = vadd.f32 %v2644, %v2788
      %v2790 = vpop.f32.mrb[0].mxu0
      %v2791 = vpop.f32.mrb[0].mxu0
      %v2792 = vadd.f32 %v2647, %v2791
      %v2793 = vpop.f32.mrb[0].mxu0
      %2794 = vmatprep.mubr.bf16.mxu0 %v1228
      %2795 = vmatmul.mubr.bf16.gmra.mrb[0].mxu0 %v1227
      %v2796 = vpop.f32.mrb[0].mxu0
      %v2797 = vadd.f32 %v2652, %v2796
      %v2798 = vpop.f32.mrb[0].mxu0
      %v2799 = vpop.f32.mrb[0].mxu0
      %v2800 = vadd.f32 %v2655, %v2799
      %v2801 = vpop.f32.mrb[0].mxu0
      %2802 = vmatprep.mubr.bf16.mxu0 %v1241
      %2803 = vmatmul.mubr.bf16.gmra.mrb[0].mxu0 %v1240
      %v2804 = vpop.f32.mrb[0].mxu0
      %v2805 = vadd.f32 %v2660, %v2804
      %v2806 = vpop.f32.mrb[0].mxu0
      %v2807 = vpop.f32.mrb[0].mxu0
      %v2808 = vadd.f32 %v2663, %v2807
      %v2809 = vpop.f32.mrb[0].mxu0
      %2810 = vmatprep.mubr.bf16.mxu0 %v1254
      %2811 = vmatmul.mubr.bf16.gmra.mrb[0].mxu0 %v1253
      %v2812 = vpop.f32.mrb[0].mxu0
      %v2813 = vadd.f32 %v2668, %v2812
      %v2814 = vpop.f32.mrb[0].mxu0
      %v2815 = vpop.f32.mrb[0].mxu0
      %v2816 = vadd.f32 %v2671, %v2815
      %v2817 = vpop.f32.mrb[0].mxu0
      %2818 = vmatprep.mubr.bf16.mxu0 %v1267
      %2819 = vmatmul.mubr.bf16.gmra.mrb[0].mxu0 %v1266
      %v2820 = vpop.f32.mrb[0].mxu0
      %v2821 = vadd.f32 %v2676, %v2820
      %v2822 = vpop.f32.mrb[0].mxu0
      %v2823 = vpop.f32.mrb[0].mxu0
      %v2824 = vadd.f32 %v2679, %v2823
      %v2825 = vpop.f32.mrb[0].mxu0
      %2826 = vmatprep.mubr.bf16.mxu0 %v1280
      %2827 = vmatmul.mubr.bf16.gmra.mrb[0].mxu0 %v1279
      %v2828 = vpop.f32.mrb[0].mxu0
      %v2829 = vadd.f32 %v2684, %v2828
      %v2830 = vpop.f32.mrb[0].mxu0
      %v2831 = vpop.f32.mrb[0].mxu0
      %v2832 = vadd.f32 %v2687, %v2831
      %v2833 = vpop.f32.mrb[0].mxu0
      %2834 = vmatprep.mubr.bf16.mxu0 %v1293
      %2835 = vmatmul.mubr.bf16.gmra.mrb[0].mxu0 %v1292
      %v2836 = vpop.f32.mrb[0].mxu0
      %v2837 = vadd.f32 %v2692, %v2836
      %v2838 = vpop.f32.mrb[0].mxu0
      %v2839 = vpop.f32.mrb[0].mxu0
      %v2840 = vadd.f32 %v2695, %v2839
      %v2841 = vpop.f32.mrb[0].mxu0
      %2842 = vmatprep.mubr.bf16.mxu0 %v1306
      %2843 = vmatmul.mubr.bf16.gmra.mrb[0].mxu0 %v1305
      %v2844 = vpop.f32.mrb[0].mxu0
      %v2845 = vadd.f32 %v2700, %v2844
      %v2846 = vpop.f32.mrb[0].mxu0
      %v2847 = vpop.f32.mrb[0].mxu0
      %v2848 = vadd.f32 %v2703, %v2847
      %v2849 = vpop.f32.mrb[0].mxu0
      %2850 = vmatprep.mubr.bf16.mxu0 %v1319
      %2851 = vmatmul.mubr.bf16.gmra.mrb[0].mxu0 %v1318
      %v2852 = vpop.f32.mrb[0].mxu0
      %v2853 = vadd.f32 %v2708, %v2852
      %v2854 = vpop.f32.mrb[0].mxu0
      %v2855 = vpop.f32.mrb[0].mxu0
      %v2856 = vadd.f32 %v2711, %v2855
      %v2857 = vpop.f32.mrb[0].mxu0
      %2858 = vdwg.mxu0
      %2859 = vmatprep.subr.bf16.mxu0 0
      %2860 = vmatpush1.bf16.msra.mxu0 %v1971
      %2861 = vmatprep.subr.bf16.mxu0 0
      %2862 = vmatpush1.bf16.msra.mxu0 %v1972
      %2863 = vmatprep.subr.bf16.mxu0 0
      %2864 = vmatpush1.bf16.msra.mxu0 %v1973
      %2865 = vmatprep.subr.bf16.mxu0 0
      %2866 = vmatpush1.bf16.msra.mxu0 %v1974
      %2867 = vmatprep.subr.bf16.mxu0 0
      %2868 = vmatpush1.bf16.msra.mxu0 %v1975
      %2869 = vmatprep.subr.bf16.mxu0 0
      %2870 = vmatpush1.bf16.msra.mxu0 %v1976
      %2871 = vmatprep.subr.bf16.mxu0 0
      %2872 = vmatpush1.bf16.msra.mxu0 %v1977
      %2873 = vmatprep.subr.bf16.mxu0 0
      %2874 = vmatpush1.bf16.msra.mxu0 %v1978
      %2875 = vmatprep.subr.bf16.mxu0 0
      %2876 = vmatpush1.bf16.msra.mxu0 %v1979
      %2877 = vmatprep.subr.bf16.mxu0 0
      %2878 = vmatpush1.bf16.msra.mxu0 %v1980
      %2879 = vmatprep.subr.bf16.mxu0 0
      %2880 = vmatpush1.bf16.msra.mxu0 %v1981
      %2881 = vmatprep.subr.bf16.mxu0 0
      %2882 = vmatpush1.bf16.msra.mxu0 %v1982
      %2883 = vmatprep.subr.bf16.mxu0 0
      %2884 = vmatpush1.bf16.msra.mxu0 %v1983
      %2885 = vmatprep.subr.bf16.mxu0 0
      %2886 = vmatpush1.bf16.msra.mxu0 %v1984
      %2887 = vmatprep.subr.bf16.mxu0 0
      %2888 = vmatpush1.bf16.msra.mxu0 %v1985
      %2889 = vmatprep.subr.bf16.mxu0 0
      %2890 = vmatpush1.bf16.msra.mxu0 %v1986
      %2891 = vmatprep.mubr.bf16.mxu0 %v1152
      %2892 = vmatmul.mubr.bf16.gmra.mrb[0].mxu0 %v1151
      %v2893 = vpop.f32.mrb[0].mxu0
      %v2894 = vadd.f32 %v2749, %v2893
      %v2895 = vpop.f32.mrb[0].mxu0
      %v2896 = vpop.f32.mrb[0].mxu0
      %v2897 = vadd.f32 %v2752, %v2896
      %v2898 = vpop.f32.mrb[0].mxu0
      %2899 = vmatprep.mubr.bf16.mxu0 %v1165
      %2900 = vmatmul.mubr.bf16.gmra.mrb[0].mxu0 %v1164
      %v2901 = vpop.f32.mrb[0].mxu0
      %v2902 = vadd.f32 %v2757, %v2901
      %v2903 = vpop.f32.mrb[0].mxu0
      %v2904 = vpop.f32.mrb[0].mxu0
      %v2905 = vadd.f32 %v2760, %v2904
      %v2906 = vpop.f32.mrb[0].mxu0
      %2907 = vmatprep.mubr.bf16.mxu0 %v1178
      %2908 = vmatmul.mubr.bf16.gmra.mrb[0].mxu0 %v1177
      %v2909 = vpop.f32.mrb[0].mxu0
      %v2910 = vadd.f32 %v2765, %v2909
      %v2911 = vpop.f32.mrb[0].mxu0
      %v2912 = vpop.f32.mrb[0].mxu0
      %v2913 = vadd.f32 %v2768, %v2912
      %v2914 = vpop.f32.mrb[0].mxu0
      %2915 = vmatprep.mubr.bf16.mxu0 %v1191
      %2916 = vmatmul.mubr.bf16.gmra.mrb[0].mxu0 %v1190
      %v2917 = vpop.f32.mrb[0].mxu0
      %v2918 = vadd.f32 %v2773, %v2917
      %v2919 = vpop.f32.mrb[0].mxu0
      %v2920 = vpop.f32.mrb[0].mxu0
      %v2921 = vadd.f32 %v2776, %v2920
      %v2922 = vpop.f32.mrb[0].mxu0
      %2923 = vmatprep.mubr.bf16.mxu0 %v1204
      %2924 = vmatmul.mubr.bf16.gmra.mrb[0].mxu0 %v1203
      %v2925 = vpop.f32.mrb[0].mxu0
      %v2926 = vadd.f32 %v2781, %v2925
      %v2927 = vpop.f32.mrb[0].mxu0
      %v2928 = vpop.f32.mrb[0].mxu0
      %v2929 = vadd.f32 %v2784, %v2928
      %v2930 = vpop.f32.mrb[0].mxu0
      %2931 = vmatprep.mubr.bf16.mxu0 %v1217
      %2932 = vmatmul.mubr.bf16.gmra.mrb[0].mxu0 %v1216
      %v2933 = vpop.f32.mrb[0].mxu0
      %v2934 = vadd.f32 %v2789, %v2933
      %v2935 = vpop.f32.mrb[0].mxu0
      %v2936 = vpop.f32.mrb[0].mxu0
      %v2937 = vadd.f32 %v2792, %v2936
      %v2938 = vpop.f32.mrb[0].mxu0
      %2939 = vmatprep.mubr.bf16.mxu0 %v1230
      %2940 = vmatmul.mubr.bf16.gmra.mrb[0].mxu0 %v1229
      %v2941 = vpop.f32.mrb[0].mxu0
      %v2942 = vadd.f32 %v2797, %v2941
      %v2943 = vpop.f32.mrb[0].mxu0
      %v2944 = vpop.f32.mrb[0].mxu0
      %v2945 = vadd.f32 %v2800, %v2944
      %v2946 = vpop.f32.mrb[0].mxu0
      %2947 = vmatprep.mubr.bf16.mxu0 %v1243
      %2948 = vmatmul.mubr.bf16.gmra.mrb[0].mxu0 %v1242
      %v2949 = vpop.f32.mrb[0].mxu0
      %v2950 = vadd.f32 %v2805, %v2949
      %v2951 = vpop.f32.mrb[0].mxu0
      %v2952 = vpop.f32.mrb[0].mxu0
      %v2953 = vadd.f32 %v2808, %v2952
      %v2954 = vpop.f32.mrb[0].mxu0
      %2955 = vmatprep.mubr.bf16.mxu0 %v1256
      %2956 = vmatmul.mubr.bf16.gmra.mrb[0].mxu0 %v1255
      %v2957 = vpop.f32.mrb[0].mxu0
      %v2958 = vadd.f32 %v2813, %v2957
      %v2959 = vpop.f32.mrb[0].mxu0
      %v2960 = vpop.f32.mrb[0].mxu0
      %v2961 = vadd.f32 %v2816, %v2960
      %v2962 = vpop.f32.mrb[0].mxu0
      %2963 = vmatprep.mubr.bf16.mxu0 %v1269
      %2964 = vmatmul.mubr.bf16.gmra.mrb[0].mxu0 %v1268
      %v2965 = vpop.f32.mrb[0].mxu0
      %v2966 = vadd.f32 %v2821, %v2965
      %v2967 = vpop.f32.mrb[0].mxu0
      %v2968 = vpop.f32.mrb[0].mxu0
      %v2969 = vadd.f32 %v2824, %v2968
      %v2970 = vpop.f32.mrb[0].mxu0
      %2971 = vmatprep.mubr.bf16.mxu0 %v1282
      %2972 = vmatmul.mubr.bf16.gmra.mrb[0].mxu0 %v1281
      %v2973 = vpop.f32.mrb[0].mxu0
      %v2974 = vadd.f32 %v2829, %v2973
      %v2975 = vpop.f32.mrb[0].mxu0
      %v2976 = vpop.f32.mrb[0].mxu0
      %v2977 = vadd.f32 %v2832, %v2976
      %v2978 = vpop.f32.mrb[0].mxu0
      %2979 = vmatprep.mubr.bf16.mxu0 %v1295
      %2980 = vmatmul.mubr.bf16.gmra.mrb[0].mxu0 %v1294
      %v2981 = vpop.f32.mrb[0].mxu0
      %v2982 = vadd.f32 %v2837, %v2981
      %v2983 = vpop.f32.mrb[0].mxu0
      %v2984 = vpop.f32.mrb[0].mxu0
      %v2985 = vadd.f32 %v2840, %v2984
      %v2986 = vpop.f32.mrb[0].mxu0
      %2987 = vmatprep.mubr.bf16.mxu0 %v1308
      %2988 = vmatmul.mubr.bf16.gmra.mrb[0].mxu0 %v1307
      %v2989 = vpop.f32.mrb[0].mxu0
      %v2990 = vadd.f32 %v2845, %v2989
      %v2991 = vpop.f32.mrb[0].mxu0
      %v2992 = vpop.f32.mrb[0].mxu0
      %v2993 = vadd.f32 %v2848, %v2992
      %v2994 = vpop.f32.mrb[0].mxu0
      %2995 = vmatprep.mubr.bf16.mxu0 %v1321
      %2996 = vmatmul.mubr.bf16.gmra.mrb[0].mxu0 %v1320
      %v2997 = vpop.f32.mrb[0].mxu0
      %v2998 = vadd.f32 %v2853, %v2997
      %v2999 = vpop.f32.mrb[0].mxu0
      %v3000 = vpop.f32.mrb[0].mxu0
      %v3001 = vadd.f32 %v2856, %v3000
      %v3002 = vpop.f32.mrb[0].mxu0
      %3003 = vdwg.mxu0
      %3004 = vmatprep.subr.bf16.mxu0 0
      %3005 = vmatpush1.bf16.msra.mxu0 %v1987
      %3006 = vmatprep.subr.bf16.mxu0 0
      %3007 = vmatpush1.bf16.msra.mxu0 %v1988
      %3008 = vmatprep.subr.bf16.mxu0 0
      %3009 = vmatpush1.bf16.msra.mxu0 %v1989
      %3010 = vmatprep.subr.bf16.mxu0 0
      %3011 = vmatpush1.bf16.msra.mxu0 %v1990
      %3012 = vmatprep.subr.bf16.mxu0 0
      %3013 = vmatpush1.bf16.msra.mxu0 0
      %3014 = vmatprep.subr.bf16.mxu0 0
      %3015 = vmatpush1.bf16.msra.mxu0 0
      %3016 = vmatprep.subr.bf16.mxu0 0
      %3017 = vmatpush1.bf16.msra.mxu0 0
      %3018 = vmatprep.subr.bf16.mxu0 0
      %3019 = vmatpush1.bf16.msra.mxu0 0
      %3020 = vmatprep.subr.bf16.mxu0 0
      %3021 = vmatpush1.bf16.msra.mxu0 0
      %3022 = vmatprep.subr.bf16.mxu0 0
      %3023 = vmatpush1.bf16.msra.mxu0 0
      %3024 = vmatprep.subr.bf16.mxu0 0
      %3025 = vmatpush1.bf16.msra.mxu0 0
      %3026 = vmatprep.subr.bf16.mxu0 0
      %3027 = vmatpush1.bf16.msra.mxu0 0
      %3028 = vmatprep.subr.bf16.mxu0 0
      %3029 = vmatpush1.bf16.msra.mxu0 0
      %3030 = vmatprep.subr.bf16.mxu0 0
      %3031 = vmatpush1.bf16.msra.mxu0 0
      %3032 = vmatprep.subr.bf16.mxu0 0
      %3033 = vmatpush1.bf16.msra.mxu0 0
      %3034 = vmatprep.subr.bf16.mxu0 0
      %3035 = vmatpush1.bf16.msra.mxu0 0
      %3036 = vmatprep.mubr.bf16.mxu0 0
      %3037 = vmatmul.mubr.bf16.gmra.mrb[0].mxu0 %v2093
      %v3038 = vpop.f32.mrb[0].mxu0
      %v3039 = vadd.f32 %v2894, %v3038
      %v3040 = vpop.f32.mrb[0].mxu0
      %v3041 = vpop.f32.mrb[0].mxu0
      %v3042 = vadd.f32 %v2897, %v3041
      %v3043 = vpop.f32.mrb[0].mxu0
      %3044 = vmatprep.mubr.bf16.mxu0 0
      %3045 = vmatmul.mubr.bf16.gmra.mrb[0].mxu0 %v2096
      %v3046 = vpop.f32.mrb[0].mxu0
      %v3047 = vadd.f32 %v2902, %v3046
      %v3048 = vpop.f32.mrb[0].mxu0
      %v3049 = vpop.f32.mrb[0].mxu0
      %v3050 = vadd.f32 %v2905, %v3049
      %v3051 = vpop.f32.mrb[0].mxu0
      %3052 = vmatprep.mubr.bf16.mxu0 0
      %3053 = vmatmul.mubr.bf16.gmra.mrb[0].mxu0 %v2099
      %v3054 = vpop.f32.mrb[0].mxu0
      %v3055 = vadd.f32 %v2910, %v3054
      %v3056 = vpop.f32.mrb[0].mxu0
      %v3057 = vpop.f32.mrb[0].mxu0
      %v3058 = vadd.f32 %v2913, %v3057
      %v3059 = vpop.f32.mrb[0].mxu0
      %3060 = vmatprep.mubr.bf16.mxu0 0
      %3061 = vmatmul.mubr.bf16.gmra.mrb[0].mxu0 %v2102
      %v3062 = vpop.f32.mrb[0].mxu0
      %v3063 = vadd.f32 %v2918, %v3062
      %v3064 = vpop.f32.mrb[0].mxu0
      %v3065 = vpop.f32.mrb[0].mxu0
      %v3066 = vadd.f32 %v2921, %v3065
      %v3067 = vpop.f32.mrb[0].mxu0
      %3068 = vmatprep.mubr.bf16.mxu0 0
      %3069 = vmatmul.mubr.bf16.gmra.mrb[0].mxu0 %v2105
      %v3070 = vpop.f32.mrb[0].mxu0
      %v3071 = vadd.f32 %v2926, %v3070
      %v3072 = vpop.f32.mrb[0].mxu0
      %v3073 = vpop.f32.mrb[0].mxu0
      %v3074 = vadd.f32 %v2929, %v3073
      %v3075 = vpop.f32.mrb[0].mxu0
      %3076 = vmatprep.mubr.bf16.mxu0 0
      %3077 = vmatmul.mubr.bf16.gmra.mrb[0].mxu0 %v2108
      %v3078 = vpop.f32.mrb[0].mxu0
      %v3079 = vadd.f32 %v2934, %v3078
      %v3080 = vpop.f32.mrb[0].mxu0
      %v3081 = vpop.f32.mrb[0].mxu0
      %v3082 = vadd.f32 %v2937, %v3081
      %v3083 = vpop.f32.mrb[0].mxu0
      %3084 = vmatprep.mubr.bf16.mxu0 0
      %3085 = vmatmul.mubr.bf16.gmra.mrb[0].mxu0 %v2111
      %v3086 = vpop.f32.mrb[0].mxu0
      %v3087 = vadd.f32 %v2942, %v3086
      %v3088 = vpop.f32.mrb[0].mxu0
      %v3089 = vpop.f32.mrb[0].mxu0
      %v3090 = vadd.f32 %v2945, %v3089
      %v3091 = vpop.f32.mrb[0].mxu0
      %3092 = vmatprep.mubr.bf16.mxu0 0
      %3093 = vmatmul.mubr.bf16.gmra.mrb[0].mxu0 %v2114
      %v3094 = vpop.f32.mrb[0].mxu0
      %v3095 = vadd.f32 %v2950, %v3094
      %v3096 = vpop.f32.mrb[0].mxu0
      %v3097 = vpop.f32.mrb[0].mxu0
      %v3098 = vadd.f32 %v2953, %v3097
      %v3099 = vpop.f32.mrb[0].mxu0
      %3100 = vmatprep.mubr.bf16.mxu0 0
      %3101 = vmatmul.mubr.bf16.gmra.mrb[0].mxu0 %v2117
      %v3102 = vpop.f32.mrb[0].mxu0
      %v3103 = vadd.f32 %v2958, %v3102
      %v3104 = vpop.f32.mrb[0].mxu0
      %v3105 = vpop.f32.mrb[0].mxu0
      %v3106 = vadd.f32 %v2961, %v3105
      %v3107 = vpop.f32.mrb[0].mxu0
      %3108 = vmatprep.mubr.bf16.mxu0 0
      %3109 = vmatmul.mubr.bf16.gmra.mrb[0].mxu0 %v2120
      %v3110 = vpop.f32.mrb[0].mxu0
      %v3111 = vadd.f32 %v2966, %v3110
      %v3112 = vpop.f32.mrb[0].mxu0
      %v3113 = vpop.f32.mrb[0].mxu0
      %v3114 = vadd.f32 %v2969, %v3113
      %v3115 = vpop.f32.mrb[0].mxu0
      %3116 = vmatprep.mubr.bf16.mxu0 0
      %3117 = vmatmul.mubr.bf16.gmra.mrb[0].mxu0 %v2123
      %v3118 = vpop.f32.mrb[0].mxu0
      %v3119 = vadd.f32 %v2974, %v3118
      %v3120 = vpop.f32.mrb[0].mxu0
      %v3121 = vpop.f32.mrb[0].mxu0
      %v3122 = vadd.f32 %v2977, %v3121
      %v3123 = vpop.f32.mrb[0].mxu0
      %3124 = vmatprep.mubr.bf16.mxu0 0
      %3125 = vmatmul.mubr.bf16.gmra.mrb[0].mxu0 %v2126
      %v3126 = vpop.f32.mrb[0].mxu0
      %v3127 = vadd.f32 %v2982, %v3126
      %v3128 = vpop.f32.mrb[0].mxu0
      %v3129 = vpop.f32.mrb[0].mxu0
      %v3130 = vadd.f32 %v2985, %v3129
      %v3131 = vpop.f32.mrb[0].mxu0
      %3132 = vmatprep.mubr.bf16.mxu0 0
      %3133 = vmatmul.mubr.bf16.gmra.mrb[0].mxu0 %v2129
      %v3134 = vpop.f32.mrb[0].mxu0
      %v3135 = vadd.f32 %v2990, %v3134
      %v3136 = vpop.f32.mrb[0].mxu0
      %v3137 = vpop.f32.mrb[0].mxu0
      %v3138 = vadd.f32 %v2993, %v3137
      %v3139 = vpop.f32.mrb[0].mxu0
      %3140 = vmatprep.mubr.bf16.mxu0 0
      %3141 = vmatmul.mubr.bf16.gmra.mrb[0].mxu0 %v2132
      %v3142 = vpop.f32.mrb[0].mxu0
      %v3143 = vadd.f32 %v2998, %v3142
      %v3144 = vpop.f32.mrb[0].mxu0
      %v3145 = vpop.f32.mrb[0].mxu0
      %v3146 = vadd.f32 %v3001, %v3145
      %v3147 = vpop.f32.mrb[0].mxu0
      %3148 = vdwg.mxu0
      %vm3149 = vcmask 7168
      %3150 = vst.msk [vmem:[%s175] sm:$0xff] %vm3149, %v3039
      %3151 = vst.msk [vmem:[%s175 + $0x8] sm:$0xff] %vm3149, %v3042
      %3152 = vst.msk [vmem:[%s175 + $0x10] sm:$0xff] %vm3149, %v3047
      %3153 = vst.msk [vmem:[%s175 + $0x18] sm:$0xff] %vm3149, %v3050
      %3154 = vst.msk [vmem:[%s175 + $0x20] sm:$0xff] %vm3149, %v3055
      %3155 = vst.msk [vmem:[%s175 + $0x28] sm:$0xff] %vm3149, %v3058
      %3156 = vst.msk [vmem:[%s175 + $0x30] sm:$0xff] %vm3149, %v3063
      %3157 = vst.msk [vmem:[%s175 + $0x38] sm:$0xff] %vm3149, %v3066
      %3158 = vst.msk [vmem:[%s175 + $0x40] sm:$0xff] %vm3149, %v3071
      %3159 = vst.msk [vmem:[%s175 + $0x48] sm:$0xff] %vm3149, %v3074
      %3160 = vst.msk [vmem:[%s175 + $0x50] sm:$0xff] %vm3149, %v3079
      %3161 = vst.msk [vmem:[%s175 + $0x58] sm:$0xff] %vm3149, %v3082
      %3162 = vst.msk [vmem:[%s175 + $0x60] sm:$0xff] %vm3149, %v3087
      %3163 = vst.msk [vmem:[%s175 + $0x68] sm:$0xff] %vm3149, %v3090
      %3164 = vst.msk [vmem:[%s175 + $0x70] sm:$0xff] %vm3149, %v3095
      %3165 = vst.msk [vmem:[%s175 + $0x78] sm:$0xff] %vm3149, %v3098
      %3166 = vst.msk [vmem:[%s175 + $0x80] sm:$0xff] %vm3149, %v3103
      %3167 = vst.msk [vmem:[%s175 + $0x88] sm:$0xff] %vm3149, %v3106
      %3168 = vst.msk [vmem:[%s175 + $0x90] sm:$0xff] %vm3149, %v3111
      %3169 = vst.msk [vmem:[%s175 + $0x98] sm:$0xff] %vm3149, %v3114
      %3170 = vst.msk [vmem:[%s175 + $0xa0] sm:$0xff] %vm3149, %v3119
      %3171 = vst.msk [vmem:[%s175 + $0xa8] sm:$0xff] %vm3149, %v3122
      %3172 = vst.msk [vmem:[%s175 + $0xb0] sm:$0xff] %vm3149, %v3127
      %3173 = vst.msk [vmem:[%s175 + $0xb8] sm:$0xff] %vm3149, %v3130
      %3174 = vst.msk [vmem:[%s175 + $0xc0] sm:$0xff] %vm3149, %v3135
      %3175 = vst.msk [vmem:[%s175 + $0xc8] sm:$0xff] %vm3149, %v3138
      %3176 = vst.msk [vmem:[%s175 + $0xd0] sm:$0xff] %vm3149, %v3143
      %3177 = vst.msk [vmem:[%s175 + $0xd8] sm:$0xff] %vm3149, %v3146
      %s3178 = smul.u32 28, %s14
      %p3179 = scmp.lt.s32.totalorder %s3178, 195
      %s3180 = scalar_select %p3179, %s3178, 195
      %s3181 = smul.addr %s3180, 8
      %s3182 = scalar_lea.vmem %s3, %s3181
      // Predicated region
      $region33: #{cvae2_pool_forward.27} parent=31 // pred_check
        %p3183 = pneg %p100
      $region34: #{cvae2_pool_forward.27} parent=31 // pred_check_branch
        %3185 = sbr.rel (%p3183) target = $region36
      $region35: #{cvae2_pool_forward.27} parent=31 // pred_region
        %s3186 = smul.u32 28, %s14
      $region36: #{cvae2_pool_forward.27} parent=31 // pred_fallthru
        _
    $region32: #{cvae2_pool_forward.27} parent=5 // pred_fallthru
      _
    %p3187 = scmp.le.s32.totalorder 2, %s9
    // Predicated region
    $region37: #{cvae2_pool_forward.27} parent=5 // pred_check
      %p3188 = pneg %p3187
    $region38: #{cvae2_pool_forward.27} parent=5 // pred_check_branch
      %3190 = sbr.rel (%p3188) target = $region40
    $region39: #{cvae2_pool_forward.27} parent=5 // pred_region
      %s3191 = ssub.s32 %s9, 2
      // Predicated region
      $region41: #{cvae2_pool_forward.27} parent=39 // pred_check
        %p3192 = pneg %p106
      $region42: #{cvae2_pool_forward.27} parent=39 // pred_check_branch
        %3194 = sbr.rel (%p3192) target = $region44
      $region43: #{cvae2_pool_forward.27} parent=39 // pred_region
        %s3195 = smul.u32 28, %s15
        %p3196 = scmp.lt.s32.totalorder %s3195, 195
        %s3197 = scalar_select %p3196, %s3195, 195
        %s3198 = smul.addr %s3197, 8
        %s3199 = scalar_lea.vmem %s3, %s3198
      $region44: #{cvae2_pool_forward.27} parent=39 // pred_fallthru
        _
    $region40: #{cvae2_pool_forward.27} parent=5 // pred_fallthru
      _
  $region6: #{cvae2_pool_forward.27} parent=0 // loop_footer
    %s13 = sadd.s32 1, %s9
  $region7: #{cvae2_pool_forward.27} parent=0 // loop_footer_branch
    %8 = sbr.rel target = $region3
  $region8: #{cvae2_pool_forward.27} parent=0 // loop_exit
    _

</llo_original>
